<compile_context>
chip_gen: v7x
topology: tpu7x:2x2x1
jax: 0.10.0
libtpu: 0.0.40
codegen_flags: <defaults>
</compile_context>

<pallas_src>
import functools

import jax
import jax.numpy as jnp
from jax.experimental import pallas as pl
from jax.experimental.pallas import tpu as pltpu


_LAYERS = [
    # ConvTranspose2d(3, 16, 3, stride=1, padding=1) -> BN(16) -> ReLU
    dict(k=3, pt_pad=1, cin=3, cout=16, relu_last=True),
    # ConvTranspose2d(16, 8, 5, stride=1, padding=0) -> BN(8) -> ReLU
    dict(k=5, pt_pad=0, cin=16, cout=8, relu_last=True),
    # ConvTranspose2d(8, 3, 3, stride=1, padding=1) -> ReLU -> BN(3)
    dict(k=3, pt_pad=1, cin=8, cout=3, relu_last=False),
]


def _geometry(h0, w0):
    """Static per-layer geometry (conv-equivalent padding, padded sizes)."""
    geo, h, w = [], h0, w0
    for cfg in _LAYERS:
        k = cfg["k"]
        pad = k - 1 - cfg["pt_pad"]                 # transpose-conv -> conv pad
        hp, wp = h + 2 * pad, w + 2 * pad
        ho, wo = hp - k + 1, wp - k + 1
        geo.append(dict(k=k, pad=pad, hin=h, win=w, hp=hp, wp=wp, ho=ho, wo=wo,
                        m_rows=ho * wp,             # full padded-width rows
                        r_alloc=(hp + 1) * wp,      # +1 guard row for tap shifts
                        cin=cfg["cin"], cout=cfg["cout"]))
        h, w = ho, wo
    return geo


# ----------------------------------------------------------------------------
# Fused decoder kernel: one grid step == one image, everything stays in VMEM.
# ----------------------------------------------------------------------------
def _decoder_kernel(x_ref, w1_ref, w2_ref, w3_ref, b1_ref, b2_ref,
                    pre3_ref, s3_ref, post3_ref, o_ref,
                    pad1, pad2, pad3, *, geo):
    g1, g2, g3 = geo

    # Zero the padded staging buffers (borders / guard region must be zero).
    pad1[...] = jnp.zeros_like(pad1)
    pad2[...] = jnp.zeros_like(pad2)
    pad3[...] = jnp.zeros_like(pad3)

    # Place the input image (f32 -> bf16) into pad1's interior.  Row-by-row
    # because the padded row pitch differs from the input pitch.
    for y in range(g1["hin"]):
        d = (y + g1["pad"]) * g1["wp"] + g1["pad"]
        pad1[:, d:d + g1["win"]] = (
            x_ref[:, y * g1["win"]:(y + 1) * g1["win"]].astype(jnp.bfloat16))

    def conv(xp_ref, w_ref, g):
        """Stride-1 conv: k*k statically unrolled tap matmuls, vreg accumulator.

        xp_ref : [Cin, r_alloc]   bf16 zero-padded activation (row = y*wp + x)
        w_ref  : [k*k, Cout, Cin] bf16 per-tap weights (whole block resident)
        returns: [Cout, m_rows]   f32 (lane-dense: flattened spatial on lanes)
        """
        k, wp, m = g["k"], g["wp"], g["m_rows"]
        acc = jnp.zeros((g["cout"], m), jnp.float32)
        for ky in range(k):
            for kx in range(k):
                off = ky * wp + kx                       # static tap offset
                a = xp_ref[:, off:off + m]               # [Cin, m] bf16
                wt = w_ref[ky * k + kx]                  # [Cout, Cin] bf16
                acc = acc + jnp.dot(wt, a, preferred_element_type=jnp.float32)
        return acc

    def scatter_rows(dst_ref, src, g_out, g_next):
        """Copy valid output rows into the next layer's zero-padded buffer."""
        for y in range(g_out["ho"]):
            s = y * g_out["wp"]
            d = (y + g_next["pad"]) * g_next["wp"] + g_next["pad"]
            dst_ref[:, d:d + g_out["wo"]] = src[:, s:s + g_out["wo"]]

    # ---- layer 1: conv3x3 (3->16), BN folded into W/b, ReLU -----------------
    y1 = jnp.maximum(conv(pad1, w1_ref, g1) + b1_ref[...], 0.0)
    scatter_rows(pad2, y1.astype(jnp.bfloat16), g1, g2)

    # ---- layer 2: conv5x5 (16->8), BN folded into W/b, ReLU -----------------
    y2 = jnp.maximum(conv(pad2, w2_ref, g2) + b2_ref[...], 0.0)
    scatter_rows(pad3, y2.astype(jnp.bfloat16), g2, g3)

    # ---- layer 3: conv3x3 (8->3) + bias -> ReLU -> BN (f32 epilogue) --------
    y3 = (jnp.maximum(conv(pad3, w3_ref, g3) + pre3_ref[...], 0.0)
          * s3_ref[...] + post3_ref[...])
    for y in range(g3["ho"]):                            # compact junk columns
        o_ref[:, y * g3["wo"]:(y + 1) * g3["wo"]] = (
            y3[:, y * g3["wp"]:y * g3["wp"] + g3["wo"]].astype(o_ref.dtype))


# ----------------------------------------------------------------------------
# Host wrapper
# ----------------------------------------------------------------------------
def decoder_forward(params, x_nchw):
    n, cin, h0, w0 = x_nchw.shape
    geo = _geometry(h0, w0)
    g1, g2, g3 = geo
    x = x_nchw.reshape(n, cin, h0 * w0)          # free reshape, stays NCHW/f32

    kernel = functools.partial(_decoder_kernel, geo=geo)

    out = pl.pallas_call(
        kernel,
        out_shape=jax.ShapeDtypeStruct((n, g3["cout"], g3["ho"] * g3["wo"]),
                                       jnp.float32),
        grid_spec=pltpu.PrefetchScalarGridSpec(
            num_scalar_prefetch=0,
            grid=(n,),
            in_specs=[
                pl.BlockSpec((None, cin, h0 * w0), lambda b: (b, 0, 0)),
                # Weights / epilogue vectors as whole resident blocks: constant
                # block index -> DMA'd once for the whole call.
                pl.BlockSpec((g1["k"] ** 2, g1["cout"], g1["cin"]),
                             lambda b: (0, 0, 0)),
                pl.BlockSpec((g2["k"] ** 2, g2["cout"], g2["cin"]),
                             lambda b: (0, 0, 0)),
                pl.BlockSpec((g3["k"] ** 2, g3["cout"], g3["cin"]),
                             lambda b: (0, 0, 0)),
                pl.BlockSpec((g1["cout"], 1), lambda b: (0, 0)),
                pl.BlockSpec((g2["cout"], 1), lambda b: (0, 0)),
                pl.BlockSpec((g3["cout"], 1), lambda b: (0, 0)),
                pl.BlockSpec((g3["cout"], 1), lambda b: (0, 0)),
                pl.BlockSpec((g3["cout"], 1), lambda b: (0, 0)),
            ],
            out_specs=pl.BlockSpec((None, g3["cout"], g3["ho"] * g3["wo"]),
                                   lambda b: (b, 0, 0)),
            scratch_shapes=[
                pltpu.VMEM((g1["cin"], g1["r_alloc"]), jnp.bfloat16),
                pltpu.VMEM((g2["cin"], g2["r_alloc"]), jnp.bfloat16),
                pltpu.VMEM((g3["cin"], g3["r_alloc"]), jnp.bfloat16),
            ],
        ),
        compiler_params=pltpu.CompilerParams(
            # Batch axis is embarrassingly parallel: with batch=2, one image
            # per TensorCore on v7x.  All tap/reduction work is in-kernel.
            dimension_semantics=("parallel",),
            vmem_limit_bytes=32 * 1024 * 1024,
        ),
    )(x, params["w1"], params["w2"], params["w3"],
      params["b1"], params["b2"],
      params["pre3"], params["scale3"], params["post3"])

    return out.reshape(n, g3["cout"], g3["ho"], g3["wo"])


# ----------------------------------------------------------------------------
# Synthetic deterministic parameters (kernel-ready, BN pre-folded)
# ----------------------------------------------------------------------------
def make_decoder_params(key):
    params = {}
    for li, cfg in enumerate(_LAYERS):
        k, cin, cout = cfg["k"], cfg["cin"], cfg["cout"]
        kk = [jax.random.fold_in(key, 10 * li + j) for j in range(4)]
        fan_in = k * k * cin
        # Conv-equivalent HWIO weight of the stride-1 ConvTranspose.
        w = jax.random.normal(kk[0], (k, k, cin, cout), jnp.float32) \
            * (2.0 / fan_in) ** 0.5
        conv_bias = 0.05 * jax.random.normal(kk[1], (cout,), jnp.float32)
        # Eval-mode BatchNorm folded to an affine: y = scale * z + post.
        bn_scale = 1.0 + 0.05 * jax.random.normal(kk[2], (cout,), jnp.float32)
        bn_post = 0.05 * jax.random.normal(kk[3], (cout,), jnp.float32)

        w_taps = jnp.transpose(w.reshape(k * k, cin, cout), (0, 2, 1))  # [T,Co,Ci]
        if cfg["relu_last"]:
            # conv -> BN -> ReLU: fold BN scale into W, bias+shift into one vec.
            w_taps = w_taps * bn_scale[None, :, None]
            bias = bn_scale * conv_bias + bn_post
            params[f"w{li + 1}"] = w_taps.astype(jnp.bfloat16)
            params[f"b{li + 1}"] = bias.reshape(cout, 1)
        else:
            # conv -> ReLU -> BN: scale cannot fold through the ReLU in general.
            params[f"w{li + 1}"] = w_taps.astype(jnp.bfloat16)
            params[f"pre{li + 1}"] = conv_bias.reshape(cout, 1)
            params[f"scale{li + 1}"] = bn_scale.reshape(cout, 1)
            params[f"post{li + 1}"] = bn_post.reshape(cout, 1)
    return params


# ----------------------------------------------------------------------------
# Demo
# ----------------------------------------------------------------------------
if __name__ == "__main__":
    key = jax.random.PRNGKey(0)
    params = make_decoder_params(jax.random.fold_in(key, 1))
    x = jax.random.normal(jax.random.fold_in(key, 2), (2, 3, 16, 16),
                          jnp.float32)

    fwd = jax.jit(decoder_forward)
    out = jax.block_until_ready(fwd(params, x))

    # ConvT(3,p=1): 16 -> 16 ; ConvT(5,p=0): 16 -> 20 ; ConvT(3,p=1): 20 -> 20
    assert out.shape == (2, 3, 20, 20), out.shape
    assert bool(jnp.all(jnp.isfinite(out)))
    print("KERNEL_OK")
</pallas_src>

<mosaic_0001>
module attributes {stable_mosaic.version = 11 : i64} {
  func.func @_decoder_kernel(%arg0: i32, %arg1: memref<1x3x256xf32, #tpu.memory_space<vmem>>, %arg2: memref<9x16x3xbf16, #tpu.memory_space<vmem>>, %arg3: memref<25x8x16xbf16, #tpu.memory_space<vmem>>, %arg4: memref<9x3x8xbf16, #tpu.memory_space<vmem>>, %arg5: memref<16x1xf32, #tpu.memory_space<vmem>>, %arg6: memref<8x1xf32, #tpu.memory_space<vmem>>, %arg7: memref<3x1xf32, #tpu.memory_space<vmem>>, %arg8: memref<3x1xf32, #tpu.memory_space<vmem>>, %arg9: memref<3x1xf32, #tpu.memory_space<vmem>>, %arg10: memref<1x3x400xf32, #tpu.memory_space<vmem>>, %arg11: memref<3x342xbf16, #tpu.memory_space<vmem>>, %arg12: memref<16x600xbf16, #tpu.memory_space<vmem>>, %arg13: memref<8x506xbf16, #tpu.memory_space<vmem>>) attributes {dimension_semantics = [#tpu.dimension_semantics<parallel>], iteration_bounds = array<i64: 2>, scalar_prefetch = 0 : i64, scratch_operands = 3 : i64, tpu.core_type = #tpu.core_type<tc>, window_params = [{transform_indices = @transform_0, window_bounds = array<i64: 1, 3, 256>}, {pipeline_mode = #tpu.pipeline_mode<synchronous>, transform_indices = @transform_1, window_bounds = array<i64: 9, 16, 3>}, {pipeline_mode = #tpu.pipeline_mode<synchronous>, transform_indices = @transform_2, window_bounds = array<i64: 25, 8, 16>}, {pipeline_mode = #tpu.pipeline_mode<synchronous>, transform_indices = @transform_3, window_bounds = array<i64: 9, 3, 8>}, {pipeline_mode = #tpu.pipeline_mode<synchronous>, transform_indices = @transform_4, window_bounds = array<i64: 16, 1>}, {pipeline_mode = #tpu.pipeline_mode<synchronous>, transform_indices = @transform_5, window_bounds = array<i64: 8, 1>}, {pipeline_mode = #tpu.pipeline_mode<synchronous>, transform_indices = @transform_6, window_bounds = array<i64: 3, 1>}, {pipeline_mode = #tpu.pipeline_mode<synchronous>, transform_indices = @transform_7, window_bounds = array<i64: 3, 1>}, {pipeline_mode = #tpu.pipeline_mode<synchronous>, transform_indices = @transform_8, window_bounds = array<i64: 3, 1>}, {transform_indices = @transform_9, window_bounds = array<i64: 1, 3, 400>}]} {
    %cst = arith.constant 0.000000e+00 : bf16
    %0 = vector.broadcast %cst : bf16 to vector<3x342xbf16>
    %c0 = arith.constant 0 : index
    %c0_0 = arith.constant 0 : index
    %1 = vector.load %arg11[%c0, %c0_0] : memref<3x342xbf16, #tpu.memory_space<vmem>>, vector<3x342xbf16>
    tpu.vector_store %arg11[%c0, %c0_0], %0 {strides = array<i32>} : memref<3x342xbf16, #tpu.memory_space<vmem>>, vector<3x342xbf16>,
    %cst_1 = arith.constant 0.000000e+00 : bf16
    %2 = vector.broadcast %cst_1 : bf16 to vector<16x600xbf16>
    %c0_2 = arith.constant 0 : index
    %c0_3 = arith.constant 0 : index
    %3 = vector.load %arg12[%c0_2, %c0_3] : memref<16x600xbf16, #tpu.memory_space<vmem>>, vector<16x600xbf16>
    tpu.vector_store %arg12[%c0_2, %c0_3], %2 {strides = array<i32>} : memref<16x600xbf16, #tpu.memory_space<vmem>>, vector<16x600xbf16>,
    %cst_4 = arith.constant 0.000000e+00 : bf16
    %4 = vector.broadcast %cst_4 : bf16 to vector<8x506xbf16>
    %c0_5 = arith.constant 0 : index
    %c0_6 = arith.constant 0 : index
    %5 = vector.load %arg13[%c0_5, %c0_6] : memref<8x506xbf16, #tpu.memory_space<vmem>>, vector<8x506xbf16>
    tpu.vector_store %arg13[%c0_5, %c0_6], %4 {strides = array<i32>} : memref<8x506xbf16, #tpu.memory_space<vmem>>, vector<8x506xbf16>,
    %c0_7 = arith.constant 0 : index
    %c0_8 = arith.constant 0 : index
    %c0_9 = arith.constant 0 : index
    %6 = vector.load %arg1[%c0_7, %c0_8, %c0_9] : memref<1x3x256xf32, #tpu.memory_space<vmem>>, vector<1x3x16xf32>
    %7 = vector.shape_cast %6 : vector<1x3x16xf32> to vector<3x16xf32>
    %8 = arith.truncf %7 : vector<3x16xf32> to vector<3x16xbf16>
    %c0_10 = arith.constant 0 : index
    %c19 = arith.constant 19 : index
    %9 = vector.load %arg11[%c0_10, %c19] : memref<3x342xbf16, #tpu.memory_space<vmem>>, vector<3x16xbf16>
    tpu.vector_store %arg11[%c0_10, %c19], %8 {strides = array<i32>} : memref<3x342xbf16, #tpu.memory_space<vmem>>, vector<3x16xbf16>,
    %c0_11 = arith.constant 0 : index
    %c0_12 = arith.constant 0 : index
    %c16 = arith.constant 16 : index
    %10 = vector.load %arg1[%c0_11, %c0_12, %c16] : memref<1x3x256xf32, #tpu.memory_space<vmem>>, vector<1x3x16xf32>
    %11 = vector.shape_cast %10 : vector<1x3x16xf32> to vector<3x16xf32>
    %12 = arith.truncf %11 : vector<3x16xf32> to vector<3x16xbf16>
    %c0_13 = arith.constant 0 : index
    %c37 = arith.constant 37 : index
    %13 = vector.load %arg11[%c0_13, %c37] : memref<3x342xbf16, #tpu.memory_space<vmem>>, vector<3x16xbf16>
    tpu.vector_store %arg11[%c0_13, %c37], %12 {strides = array<i32>} : memref<3x342xbf16, #tpu.memory_space<vmem>>, vector<3x16xbf16>,
    %c0_14 = arith.constant 0 : index
    %c0_15 = arith.constant 0 : index
    %c32 = arith.constant 32 : index
    %14 = vector.load %arg1[%c0_14, %c0_15, %c32] : memref<1x3x256xf32, #tpu.memory_space<vmem>>, vector<1x3x16xf32>
    %15 = vector.shape_cast %14 : vector<1x3x16xf32> to vector<3x16xf32>
    %16 = arith.truncf %15 : vector<3x16xf32> to vector<3x16xbf16>
    %c0_16 = arith.constant 0 : index
    %c55 = arith.constant 55 : index
    %17 = vector.load %arg11[%c0_16, %c55] : memref<3x342xbf16, #tpu.memory_space<vmem>>, vector<3x16xbf16>
    tpu.vector_store %arg11[%c0_16, %c55], %16 {strides = array<i32>} : memref<3x342xbf16, #tpu.memory_space<vmem>>, vector<3x16xbf16>,
    %c0_17 = arith.constant 0 : index
    %c0_18 = arith.constant 0 : index
    %c48 = arith.constant 48 : index
    %18 = vector.load %arg1[%c0_17, %c0_18, %c48] : memref<1x3x256xf32, #tpu.memory_space<vmem>>, vector<1x3x16xf32>
    %19 = vector.shape_cast %18 : vector<1x3x16xf32> to vector<3x16xf32>
    %20 = arith.truncf %19 : vector<3x16xf32> to vector<3x16xbf16>
    %c0_19 = arith.constant 0 : index
    %c73 = arith.constant 73 : index
    %21 = vector.load %arg11[%c0_19, %c73] : memref<3x342xbf16, #tpu.memory_space<vmem>>, vector<3x16xbf16>
    tpu.vector_store %arg11[%c0_19, %c73], %20 {strides = array<i32>} : memref<3x342xbf16, #tpu.memory_space<vmem>>, vector<3x16xbf16>,
    %c0_20 = arith.constant 0 : index
    %c0_21 = arith.constant 0 : index
    %c64 = arith.constant 64 : index
    %22 = vector.load %arg1[%c0_20, %c0_21, %c64] : memref<1x3x256xf32, #tpu.memory_space<vmem>>, vector<1x3x16xf32>
    %23 = vector.shape_cast %22 : vector<1x3x16xf32> to vector<3x16xf32>
    %24 = arith.truncf %23 : vector<3x16xf32> to vector<3x16xbf16>
    %c0_22 = arith.constant 0 : index
    %c91 = arith.constant 91 : index
    %25 = vector.load %arg11[%c0_22, %c91] : memref<3x342xbf16, #tpu.memory_space<vmem>>, vector<3x16xbf16>
    tpu.vector_store %arg11[%c0_22, %c91], %24 {strides = array<i32>} : memref<3x342xbf16, #tpu.memory_space<vmem>>, vector<3x16xbf16>,
    %c0_23 = arith.constant 0 : index
    %c0_24 = arith.constant 0 : index
    %c80 = arith.constant 80 : index
    %26 = vector.load %arg1[%c0_23, %c0_24, %c80] : memref<1x3x256xf32, #tpu.memory_space<vmem>>, vector<1x3x16xf32>
    %27 = vector.shape_cast %26 : vector<1x3x16xf32> to vector<3x16xf32>
    %28 = arith.truncf %27 : vector<3x16xf32> to vector<3x16xbf16>
    %c0_25 = arith.constant 0 : index
    %c109 = arith.constant 109 : index
    %29 = vector.load %arg11[%c0_25, %c109] : memref<3x342xbf16, #tpu.memory_space<vmem>>, vector<3x16xbf16>
    tpu.vector_store %arg11[%c0_25, %c109], %28 {strides = array<i32>} : memref<3x342xbf16, #tpu.memory_space<vmem>>, vector<3x16xbf16>,
    %c0_26 = arith.constant 0 : index
    %c0_27 = arith.constant 0 : index
    %c96 = arith.constant 96 : index
    %30 = vector.load %arg1[%c0_26, %c0_27, %c96] : memref<1x3x256xf32, #tpu.memory_space<vmem>>, vector<1x3x16xf32>
    %31 = vector.shape_cast %30 : vector<1x3x16xf32> to vector<3x16xf32>
    %32 = arith.truncf %31 : vector<3x16xf32> to vector<3x16xbf16>
    %c0_28 = arith.constant 0 : index
    %c127 = arith.constant 127 : index
    %33 = vector.load %arg11[%c0_28, %c127] : memref<3x342xbf16, #tpu.memory_space<vmem>>, vector<3x16xbf16>
    tpu.vector_store %arg11[%c0_28, %c127], %32 {strides = array<i32>} : memref<3x342xbf16, #tpu.memory_space<vmem>>, vector<3x16xbf16>,
    %c0_29 = arith.constant 0 : index
    %c0_30 = arith.constant 0 : index
    %c112 = arith.constant 112 : index
    %34 = vector.load %arg1[%c0_29, %c0_30, %c112] : memref<1x3x256xf32, #tpu.memory_space<vmem>>, vector<1x3x16xf32>
    %35 = vector.shape_cast %34 : vector<1x3x16xf32> to vector<3x16xf32>
    %36 = arith.truncf %35 : vector<3x16xf32> to vector<3x16xbf16>
    %c0_31 = arith.constant 0 : index
    %c145 = arith.constant 145 : index
    %37 = vector.load %arg11[%c0_31, %c145] : memref<3x342xbf16, #tpu.memory_space<vmem>>, vector<3x16xbf16>
    tpu.vector_store %arg11[%c0_31, %c145], %36 {strides = array<i32>} : memref<3x342xbf16, #tpu.memory_space<vmem>>, vector<3x16xbf16>,
    %c0_32 = arith.constant 0 : index
    %c0_33 = arith.constant 0 : index
    %c128 = arith.constant 128 : index
    %38 = vector.load %arg1[%c0_32, %c0_33, %c128] : memref<1x3x256xf32, #tpu.memory_space<vmem>>, vector<1x3x16xf32>
    %39 = vector.shape_cast %38 : vector<1x3x16xf32> to vector<3x16xf32>
    %40 = arith.truncf %39 : vector<3x16xf32> to vector<3x16xbf16>
    %c0_34 = arith.constant 0 : index
    %c163 = arith.constant 163 : index
    %41 = vector.load %arg11[%c0_34, %c163] : memref<3x342xbf16, #tpu.memory_space<vmem>>, vector<3x16xbf16>
    tpu.vector_store %arg11[%c0_34, %c163], %40 {strides = array<i32>} : memref<3x342xbf16, #tpu.memory_space<vmem>>, vector<3x16xbf16>,
    %c0_35 = arith.constant 0 : index
    %c0_36 = arith.constant 0 : index
    %c144 = arith.constant 144 : index
    %42 = vector.load %arg1[%c0_35, %c0_36, %c144] : memref<1x3x256xf32, #tpu.memory_space<vmem>>, vector<1x3x16xf32>
    %43 = vector.shape_cast %42 : vector<1x3x16xf32> to vector<3x16xf32>
    %44 = arith.truncf %43 : vector<3x16xf32> to vector<3x16xbf16>
    %c0_37 = arith.constant 0 : index
    %c181 = arith.constant 181 : index
    %45 = vector.load %arg11[%c0_37, %c181] : memref<3x342xbf16, #tpu.memory_space<vmem>>, vector<3x16xbf16>
    tpu.vector_store %arg11[%c0_37, %c181], %44 {strides = array<i32>} : memref<3x342xbf16, #tpu.memory_space<vmem>>, vector<3x16xbf16>,
    %c0_38 = arith.constant 0 : index
    %c0_39 = arith.constant 0 : index
    %c160 = arith.constant 160 : index
    %46 = vector.load %arg1[%c0_38, %c0_39, %c160] : memref<1x3x256xf32, #tpu.memory_space<vmem>>, vector<1x3x16xf32>
    %47 = vector.shape_cast %46 : vector<1x3x16xf32> to vector<3x16xf32>
    %48 = arith.truncf %47 : vector<3x16xf32> to vector<3x16xbf16>
    %c0_40 = arith.constant 0 : index
    %c199 = arith.constant 199 : index
    %49 = vector.load %arg11[%c0_40, %c199] : memref<3x342xbf16, #tpu.memory_space<vmem>>, vector<3x16xbf16>
    tpu.vector_store %arg11[%c0_40, %c199], %48 {strides = array<i32>} : memref<3x342xbf16, #tpu.memory_space<vmem>>, vector<3x16xbf16>,
    %c0_41 = arith.constant 0 : index
    %c0_42 = arith.constant 0 : index
    %c176 = arith.constant 176 : index
    %50 = vector.load %arg1[%c0_41, %c0_42, %c176] : memref<1x3x256xf32, #tpu.memory_space<vmem>>, vector<1x3x16xf32>
    %51 = vector.shape_cast %50 : vector<1x3x16xf32> to vector<3x16xf32>
    %52 = arith.truncf %51 : vector<3x16xf32> to vector<3x16xbf16>
    %c0_43 = arith.constant 0 : index
    %c217 = arith.constant 217 : index
    %53 = vector.load %arg11[%c0_43, %c217] : memref<3x342xbf16, #tpu.memory_space<vmem>>, vector<3x16xbf16>
    tpu.vector_store %arg11[%c0_43, %c217], %52 {strides = array<i32>} : memref<3x342xbf16, #tpu.memory_space<vmem>>, vector<3x16xbf16>,
    %c0_44 = arith.constant 0 : index
    %c0_45 = arith.constant 0 : index
    %c192 = arith.constant 192 : index
    %54 = vector.load %arg1[%c0_44, %c0_45, %c192] : memref<1x3x256xf32, #tpu.memory_space<vmem>>, vector<1x3x16xf32>
    %55 = vector.shape_cast %54 : vector<1x3x16xf32> to vector<3x16xf32>
    %56 = arith.truncf %55 : vector<3x16xf32> to vector<3x16xbf16>
    %c0_46 = arith.constant 0 : index
    %c235 = arith.constant 235 : index
    %57 = vector.load %arg11[%c0_46, %c235] : memref<3x342xbf16, #tpu.memory_space<vmem>>, vector<3x16xbf16>
    tpu.vector_store %arg11[%c0_46, %c235], %56 {strides = array<i32>} : memref<3x342xbf16, #tpu.memory_space<vmem>>, vector<3x16xbf16>,
    %c0_47 = arith.constant 0 : index
    %c0_48 = arith.constant 0 : index
    %c208 = arith.constant 208 : index
    %58 = vector.load %arg1[%c0_47, %c0_48, %c208] : memref<1x3x256xf32, #tpu.memory_space<vmem>>, vector<1x3x16xf32>
    %59 = vector.shape_cast %58 : vector<1x3x16xf32> to vector<3x16xf32>
    %60 = arith.truncf %59 : vector<3x16xf32> to vector<3x16xbf16>
    %c0_49 = arith.constant 0 : index
    %c253 = arith.constant 253 : index
    %61 = vector.load %arg11[%c0_49, %c253] : memref<3x342xbf16, #tpu.memory_space<vmem>>, vector<3x16xbf16>
    tpu.vector_store %arg11[%c0_49, %c253], %60 {strides = array<i32>} : memref<3x342xbf16, #tpu.memory_space<vmem>>, vector<3x16xbf16>,
    %c0_50 = arith.constant 0 : index
    %c0_51 = arith.constant 0 : index
    %c224 = arith.constant 224 : index
    %62 = vector.load %arg1[%c0_50, %c0_51, %c224] : memref<1x3x256xf32, #tpu.memory_space<vmem>>, vector<1x3x16xf32>
    %63 = vector.shape_cast %62 : vector<1x3x16xf32> to vector<3x16xf32>
    %64 = arith.truncf %63 : vector<3x16xf32> to vector<3x16xbf16>
    %c0_52 = arith.constant 0 : index
    %c271 = arith.constant 271 : index
    %65 = vector.load %arg11[%c0_52, %c271] : memref<3x342xbf16, #tpu.memory_space<vmem>>, vector<3x16xbf16>
    tpu.vector_store %arg11[%c0_52, %c271], %64 {strides = array<i32>} : memref<3x342xbf16, #tpu.memory_space<vmem>>, vector<3x16xbf16>,
    %c0_53 = arith.constant 0 : index
    %c0_54 = arith.constant 0 : index
    %c240 = arith.constant 240 : index
    %66 = vector.load %arg1[%c0_53, %c0_54, %c240] : memref<1x3x256xf32, #tpu.memory_space<vmem>>, vector<1x3x16xf32>
    %67 = vector.shape_cast %66 : vector<1x3x16xf32> to vector<3x16xf32>
    %68 = arith.truncf %67 : vector<3x16xf32> to vector<3x16xbf16>
    %c0_55 = arith.constant 0 : index
    %c289 = arith.constant 289 : index
    %69 = vector.load %arg11[%c0_55, %c289] : memref<3x342xbf16, #tpu.memory_space<vmem>>, vector<3x16xbf16>
    tpu.vector_store %arg11[%c0_55, %c289], %68 {strides = array<i32>} : memref<3x342xbf16, #tpu.memory_space<vmem>>, vector<3x16xbf16>,
    %cst_56 = arith.constant 0.000000e+00 : f32
    %70 = vector.broadcast %cst_56 : f32 to vector<16x288xf32>
    %c0_57 = arith.constant 0 : index
    %c0_58 = arith.constant 0 : index
    %71 = vector.load %arg11[%c0_57, %c0_58] : memref<3x342xbf16, #tpu.memory_space<vmem>>, vector<3x288xbf16>
    %c0_59 = arith.constant 0 : index
    %c0_60 = arith.constant 0 : index
    %c0_61 = arith.constant 0 : index
    %72 = vector.load %arg2[%c0_59, %c0_60, %c0_61] : memref<9x16x3xbf16, #tpu.memory_space<vmem>>, vector<1x16x3xbf16>
    %73 = vector.shape_cast %72 : vector<1x16x3xbf16> to vector<16x3xbf16>
    %cst_62 = arith.constant dense<0.000000e+00> : vector<16x288xf32>
    %74 = tpu.matmul %73, %71, %cst_62 {dimension_numbers = #tpu.dot_dimension_numbers<[1], [0], [0], [1], [0, 0, 1, 1], [], []>} : vector<16x3xbf16>, vector<3x288xbf16>, vector<16x288xf32> -> vector<16x288xf32>
    %75 = arith.addf %70, %74 : vector<16x288xf32>
    %c0_63 = arith.constant 0 : index
    %c1 = arith.constant 1 : index
    %76 = vector.load %arg11[%c0_63, %c1] : memref<3x342xbf16, #tpu.memory_space<vmem>>, vector<3x288xbf16>
    %c1_64 = arith.constant 1 : index
    %c0_65 = arith.constant 0 : index
    %c0_66 = arith.constant 0 : index
    %77 = vector.load %arg2[%c1_64, %c0_65, %c0_66] : memref<9x16x3xbf16, #tpu.memory_space<vmem>>, vector<1x16x3xbf16>
    %78 = vector.shape_cast %77 : vector<1x16x3xbf16> to vector<16x3xbf16>
    %cst_67 = arith.constant dense<0.000000e+00> : vector<16x288xf32>
    %79 = tpu.matmul %78, %76, %cst_67 {dimension_numbers = #tpu.dot_dimension_numbers<[1], [0], [0], [1], [0, 0, 1, 1], [], []>} : vector<16x3xbf16>, vector<3x288xbf16>, vector<16x288xf32> -> vector<16x288xf32>
    %80 = arith.addf %75, %79 : vector<16x288xf32>
    %c0_68 = arith.constant 0 : index
    %c2 = arith.constant 2 : index
    %81 = vector.load %arg11[%c0_68, %c2] : memref<3x342xbf16, #tpu.memory_space<vmem>>, vector<3x288xbf16>
    %c2_69 = arith.constant 2 : index
    %c0_70 = arith.constant 0 : index
    %c0_71 = arith.constant 0 : index
    %82 = vector.load %arg2[%c2_69, %c0_70, %c0_71] : memref<9x16x3xbf16, #tpu.memory_space<vmem>>, vector<1x16x3xbf16>
    %83 = vector.shape_cast %82 : vector<1x16x3xbf16> to vector<16x3xbf16>
    %cst_72 = arith.constant dense<0.000000e+00> : vector<16x288xf32>
    %84 = tpu.matmul %83, %81, %cst_72 {dimension_numbers = #tpu.dot_dimension_numbers<[1], [0], [0], [1], [0, 0, 1, 1], [], []>} : vector<16x3xbf16>, vector<3x288xbf16>, vector<16x288xf32> -> vector<16x288xf32>
    %85 = arith.addf %80, %84 : vector<16x288xf32>
    %c0_73 = arith.constant 0 : index
    %c18 = arith.constant 18 : index
    %86 = vector.load %arg11[%c0_73, %c18] : memref<3x342xbf16, #tpu.memory_space<vmem>>, vector<3x288xbf16>
    %c3 = arith.constant 3 : index
    %c0_74 = arith.constant 0 : index
    %c0_75 = arith.constant 0 : index
    %87 = vector.load %arg2[%c3, %c0_74, %c0_75] : memref<9x16x3xbf16, #tpu.memory_space<vmem>>, vector<1x16x3xbf16>
    %88 = vector.shape_cast %87 : vector<1x16x3xbf16> to vector<16x3xbf16>
    %cst_76 = arith.constant dense<0.000000e+00> : vector<16x288xf32>
    %89 = tpu.matmul %88, %86, %cst_76 {dimension_numbers = #tpu.dot_dimension_numbers<[1], [0], [0], [1], [0, 0, 1, 1], [], []>} : vector<16x3xbf16>, vector<3x288xbf16>, vector<16x288xf32> -> vector<16x288xf32>
    %90 = arith.addf %85, %89 : vector<16x288xf32>
    %c0_77 = arith.constant 0 : index
    %c19_78 = arith.constant 19 : index
    %91 = vector.load %arg11[%c0_77, %c19_78] : memref<3x342xbf16, #tpu.memory_space<vmem>>, vector<3x288xbf16>
    %c4 = arith.constant 4 : index
    %c0_79 = arith.constant 0 : index
    %c0_80 = arith.constant 0 : index
    %92 = vector.load %arg2[%c4, %c0_79, %c0_80] : memref<9x16x3xbf16, #tpu.memory_space<vmem>>, vector<1x16x3xbf16>
    %93 = vector.shape_cast %92 : vector<1x16x3xbf16> to vector<16x3xbf16>
    %cst_81 = arith.constant dense<0.000000e+00> : vector<16x288xf32>
    %94 = tpu.matmul %93, %91, %cst_81 {dimension_numbers = #tpu.dot_dimension_numbers<[1], [0], [0], [1], [0, 0, 1, 1], [], []>} : vector<16x3xbf16>, vector<3x288xbf16>, vector<16x288xf32> -> vector<16x288xf32>
    %95 = arith.addf %90, %94 : vector<16x288xf32>
    %c0_82 = arith.constant 0 : index
    %c20 = arith.constant 20 : index
    %96 = vector.load %arg11[%c0_82, %c20] : memref<3x342xbf16, #tpu.memory_space<vmem>>, vector<3x288xbf16>
    %c5 = arith.constant 5 : index
    %c0_83 = arith.constant 0 : index
    %c0_84 = arith.constant 0 : index
    %97 = vector.load %arg2[%c5, %c0_83, %c0_84] : memref<9x16x3xbf16, #tpu.memory_space<vmem>>, vector<1x16x3xbf16>
    %98 = vector.shape_cast %97 : vector<1x16x3xbf16> to vector<16x3xbf16>
    %cst_85 = arith.constant dense<0.000000e+00> : vector<16x288xf32>
    %99 = tpu.matmul %98, %96, %cst_85 {dimension_numbers = #tpu.dot_dimension_numbers<[1], [0], [0], [1], [0, 0, 1, 1], [], []>} : vector<16x3xbf16>, vector<3x288xbf16>, vector<16x288xf32> -> vector<16x288xf32>
    %100 = arith.addf %95, %99 : vector<16x288xf32>
    %c0_86 = arith.constant 0 : index
    %c36 = arith.constant 36 : index
    %101 = vector.load %arg11[%c0_86, %c36] : memref<3x342xbf16, #tpu.memory_space<vmem>>, vector<3x288xbf16>
    %c6 = arith.constant 6 : index
    %c0_87 = arith.constant 0 : index
    %c0_88 = arith.constant 0 : index
    %102 = vector.load %arg2[%c6, %c0_87, %c0_88] : memref<9x16x3xbf16, #tpu.memory_space<vmem>>, vector<1x16x3xbf16>
    %103 = vector.shape_cast %102 : vector<1x16x3xbf16> to vector<16x3xbf16>
    %cst_89 = arith.constant dense<0.000000e+00> : vector<16x288xf32>
    %104 = tpu.matmul %103, %101, %cst_89 {dimension_numbers = #tpu.dot_dimension_numbers<[1], [0], [0], [1], [0, 0, 1, 1], [], []>} : vector<16x3xbf16>, vector<3x288xbf16>, vector<16x288xf32> -> vector<16x288xf32>
    %105 = arith.addf %100, %104 : vector<16x288xf32>
    %c0_90 = arith.constant 0 : index
    %c37_91 = arith.constant 37 : index
    %106 = vector.load %arg11[%c0_90, %c37_91] : memref<3x342xbf16, #tpu.memory_space<vmem>>, vector<3x288xbf16>
    %c7 = arith.constant 7 : index
    %c0_92 = arith.constant 0 : index
    %c0_93 = arith.constant 0 : index
    %107 = vector.load %arg2[%c7, %c0_92, %c0_93] : memref<9x16x3xbf16, #tpu.memory_space<vmem>>, vector<1x16x3xbf16>
    %108 = vector.shape_cast %107 : vector<1x16x3xbf16> to vector<16x3xbf16>
    %cst_94 = arith.constant dense<0.000000e+00> : vector<16x288xf32>
    %109 = tpu.matmul %108, %106, %cst_94 {dimension_numbers = #tpu.dot_dimension_numbers<[1], [0], [0], [1], [0, 0, 1, 1], [], []>} : vector<16x3xbf16>, vector<3x288xbf16>, vector<16x288xf32> -> vector<16x288xf32>
    %110 = arith.addf %105, %109 : vector<16x288xf32>
    %c0_95 = arith.constant 0 : index
    %c38 = arith.constant 38 : index
    %111 = vector.load %arg11[%c0_95, %c38] : memref<3x342xbf16, #tpu.memory_space<vmem>>, vector<3x288xbf16>
    %c8 = arith.constant 8 : index
    %c0_96 = arith.constant 0 : index
    %c0_97 = arith.constant 0 : index
    %112 = vector.load %arg2[%c8, %c0_96, %c0_97] : memref<9x16x3xbf16, #tpu.memory_space<vmem>>, vector<1x16x3xbf16>
    %113 = vector.shape_cast %112 : vector<1x16x3xbf16> to vector<16x3xbf16>
    %cst_98 = arith.constant dense<0.000000e+00> : vector<16x288xf32>
    %114 = tpu.matmul %113, %111, %cst_98 {dimension_numbers = #tpu.dot_dimension_numbers<[1], [0], [0], [1], [0, 0, 1, 1], [], []>} : vector<16x3xbf16>, vector<3x288xbf16>, vector<16x288xf32> -> vector<16x288xf32>
    %115 = arith.addf %110, %114 : vector<16x288xf32>
    %c0_99 = arith.constant 0 : index
    %c0_100 = arith.constant 0 : index
    %116 = vector.load %arg5[%c0_99, %c0_100] : memref<16x1xf32, #tpu.memory_space<vmem>>, vector<16x1xf32>
    %117 = vector.broadcast %116 : vector<16x1xf32> to vector<16x288xf32>
    %118 = arith.addf %115, %117 : vector<16x288xf32>
    %cst_101 = arith.constant 0.000000e+00 : f32
    %119 = vector.broadcast %cst_101 : f32 to vector<16x288xf32>
    %120 = arith.maximumf %118, %119 : vector<16x288xf32>
    %121 = arith.truncf %120 : vector<16x288xf32> to vector<16x288xbf16>
    %122 = vector.extract_strided_slice %121 {offsets = [0, 0], sizes = [16, 16], strides = [1, 1]} : vector<16x288xbf16> to vector<16x16xbf16>
    %c0_102 = arith.constant 0 : index
    %c100 = arith.constant 100 : index
    %123 = vector.load %arg12[%c0_102, %c100] : memref<16x600xbf16, #tpu.memory_space<vmem>>, vector<16x16xbf16>
    tpu.vector_store %arg12[%c0_102, %c100], %122 {strides = array<i32>} : memref<16x600xbf16, #tpu.memory_space<vmem>>, vector<16x16xbf16>,
    %124 = vector.extract_strided_slice %121 {offsets = [0, 18], sizes = [16, 16], strides = [1, 1]} : vector<16x288xbf16> to vector<16x16xbf16>
    %c0_103 = arith.constant 0 : index
    %c124 = arith.constant 124 : index
    %125 = vector.load %arg12[%c0_103, %c124] : memref<16x600xbf16, #tpu.memory_space<vmem>>, vector<16x16xbf16>
    tpu.vector_store %arg12[%c0_103, %c124], %124 {strides = array<i32>} : memref<16x600xbf16, #tpu.memory_space<vmem>>, vector<16x16xbf16>,
    %126 = vector.extract_strided_slice %121 {offsets = [0, 36], sizes = [16, 16], strides = [1, 1]} : vector<16x288xbf16> to vector<16x16xbf16>
    %c0_104 = arith.constant 0 : index
    %c148 = arith.constant 148 : index
    %127 = vector.load %arg12[%c0_104, %c148] : memref<16x600xbf16, #tpu.memory_space<vmem>>, vector<16x16xbf16>
    tpu.vector_store %arg12[%c0_104, %c148], %126 {strides = array<i32>} : memref<16x600xbf16, #tpu.memory_space<vmem>>, vector<16x16xbf16>,
    %128 = vector.extract_strided_slice %121 {offsets = [0, 54], sizes = [16, 16], strides = [1, 1]} : vector<16x288xbf16> to vector<16x16xbf16>
    %c0_105 = arith.constant 0 : index
    %c172 = arith.constant 172 : index
    %129 = vector.load %arg12[%c0_105, %c172] : memref<16x600xbf16, #tpu.memory_space<vmem>>, vector<16x16xbf16>
    tpu.vector_store %arg12[%c0_105, %c172], %128 {strides = array<i32>} : memref<16x600xbf16, #tpu.memory_space<vmem>>, vector<16x16xbf16>,
    %130 = vector.extract_strided_slice %121 {offsets = [0, 72], sizes = [16, 16], strides = [1, 1]} : vector<16x288xbf16> to vector<16x16xbf16>
    %c0_106 = arith.constant 0 : index
    %c196 = arith.constant 196 : index
    %131 = vector.load %arg12[%c0_106, %c196] : memref<16x600xbf16, #tpu.memory_space<vmem>>, vector<16x16xbf16>
    tpu.vector_store %arg12[%c0_106, %c196], %130 {strides = array<i32>} : memref<16x600xbf16, #tpu.memory_space<vmem>>, vector<16x16xbf16>,
    %132 = vector.extract_strided_slice %121 {offsets = [0, 90], sizes = [16, 16], strides = [1, 1]} : vector<16x288xbf16> to vector<16x16xbf16>
    %c0_107 = arith.constant 0 : index
    %c220 = arith.constant 220 : index
    %133 = vector.load %arg12[%c0_107, %c220] : memref<16x600xbf16, #tpu.memory_space<vmem>>, vector<16x16xbf16>
    tpu.vector_store %arg12[%c0_107, %c220], %132 {strides = array<i32>} : memref<16x600xbf16, #tpu.memory_space<vmem>>, vector<16x16xbf16>,
    %134 = vector.extract_strided_slice %121 {offsets = [0, 108], sizes = [16, 16], strides = [1, 1]} : vector<16x288xbf16> to vector<16x16xbf16>
    %c0_108 = arith.constant 0 : index
    %c244 = arith.constant 244 : index
    %135 = vector.load %arg12[%c0_108, %c244] : memref<16x600xbf16, #tpu.memory_space<vmem>>, vector<16x16xbf16>
    tpu.vector_store %arg12[%c0_108, %c244], %134 {strides = array<i32>} : memref<16x600xbf16, #tpu.memory_space<vmem>>, vector<16x16xbf16>,
    %136 = vector.extract_strided_slice %121 {offsets = [0, 126], sizes = [16, 16], strides = [1, 1]} : vector<16x288xbf16> to vector<16x16xbf16>
    %c0_109 = arith.constant 0 : index
    %c268 = arith.constant 268 : index
    %137 = vector.load %arg12[%c0_109, %c268] : memref<16x600xbf16, #tpu.memory_space<vmem>>, vector<16x16xbf16>
    tpu.vector_store %arg12[%c0_109, %c268], %136 {strides = array<i32>} : memref<16x600xbf16, #tpu.memory_space<vmem>>, vector<16x16xbf16>,
    %138 = vector.extract_strided_slice %121 {offsets = [0, 144], sizes = [16, 16], strides = [1, 1]} : vector<16x288xbf16> to vector<16x16xbf16>
    %c0_110 = arith.constant 0 : index
    %c292 = arith.constant 292 : index
    %139 = vector.load %arg12[%c0_110, %c292] : memref<16x600xbf16, #tpu.memory_space<vmem>>, vector<16x16xbf16>
    tpu.vector_store %arg12[%c0_110, %c292], %138 {strides = array<i32>} : memref<16x600xbf16, #tpu.memory_space<vmem>>, vector<16x16xbf16>,
    %140 = vector.extract_strided_slice %121 {offsets = [0, 162], sizes = [16, 16], strides = [1, 1]} : vector<16x288xbf16> to vector<16x16xbf16>
    %c0_111 = arith.constant 0 : index
    %c316 = arith.constant 316 : index
    %141 = vector.load %arg12[%c0_111, %c316] : memref<16x600xbf16, #tpu.memory_space<vmem>>, vector<16x16xbf16>
    tpu.vector_store %arg12[%c0_111, %c316], %140 {strides = array<i32>} : memref<16x600xbf16, #tpu.memory_space<vmem>>, vector<16x16xbf16>,
    %142 = vector.extract_strided_slice %121 {offsets = [0, 180], sizes = [16, 16], strides = [1, 1]} : vector<16x288xbf16> to vector<16x16xbf16>
    %c0_112 = arith.constant 0 : index
    %c340 = arith.constant 340 : index
    %143 = vector.load %arg12[%c0_112, %c340] : memref<16x600xbf16, #tpu.memory_space<vmem>>, vector<16x16xbf16>
    tpu.vector_store %arg12[%c0_112, %c340], %142 {strides = array<i32>} : memref<16x600xbf16, #tpu.memory_space<vmem>>, vector<16x16xbf16>,
    %144 = vector.extract_strided_slice %121 {offsets = [0, 198], sizes = [16, 16], strides = [1, 1]} : vector<16x288xbf16> to vector<16x16xbf16>
    %c0_113 = arith.constant 0 : index
    %c364 = arith.constant 364 : index
    %145 = vector.load %arg12[%c0_113, %c364] : memref<16x600xbf16, #tpu.memory_space<vmem>>, vector<16x16xbf16>
    tpu.vector_store %arg12[%c0_113, %c364], %144 {strides = array<i32>} : memref<16x600xbf16, #tpu.memory_space<vmem>>, vector<16x16xbf16>,
    %146 = vector.extract_strided_slice %121 {offsets = [0, 216], sizes = [16, 16], strides = [1, 1]} : vector<16x288xbf16> to vector<16x16xbf16>
    %c0_114 = arith.constant 0 : index
    %c388 = arith.constant 388 : index
    %147 = vector.load %arg12[%c0_114, %c388] : memref<16x600xbf16, #tpu.memory_space<vmem>>, vector<16x16xbf16>
    tpu.vector_store %arg12[%c0_114, %c388], %146 {strides = array<i32>} : memref<16x600xbf16, #tpu.memory_space<vmem>>, vector<16x16xbf16>,
    %148 = vector.extract_strided_slice %121 {offsets = [0, 234], sizes = [16, 16], strides = [1, 1]} : vector<16x288xbf16> to vector<16x16xbf16>
    %c0_115 = arith.constant 0 : index
    %c412 = arith.constant 412 : index
    %149 = vector.load %arg12[%c0_115, %c412] : memref<16x600xbf16, #tpu.memory_space<vmem>>, vector<16x16xbf16>
    tpu.vector_store %arg12[%c0_115, %c412], %148 {strides = array<i32>} : memref<16x600xbf16, #tpu.memory_space<vmem>>, vector<16x16xbf16>,
    %150 = vector.extract_strided_slice %121 {offsets = [0, 252], sizes = [16, 16], strides = [1, 1]} : vector<16x288xbf16> to vector<16x16xbf16>
    %c0_116 = arith.constant 0 : index
    %c436 = arith.constant 436 : index
    %151 = vector.load %arg12[%c0_116, %c436] : memref<16x600xbf16, #tpu.memory_space<vmem>>, vector<16x16xbf16>
    tpu.vector_store %arg12[%c0_116, %c436], %150 {strides = array<i32>} : memref<16x600xbf16, #tpu.memory_space<vmem>>, vector<16x16xbf16>,
    %152 = vector.extract_strided_slice %121 {offsets = [0, 270], sizes = [16, 16], strides = [1, 1]} : vector<16x288xbf16> to vector<16x16xbf16>
    %c0_117 = arith.constant 0 : index
    %c460 = arith.constant 460 : index
    %153 = vector.load %arg12[%c0_117, %c460] : memref<16x600xbf16, #tpu.memory_space<vmem>>, vector<16x16xbf16>
    tpu.vector_store %arg12[%c0_117, %c460], %152 {strides = array<i32>} : memref<16x600xbf16, #tpu.memory_space<vmem>>, vector<16x16xbf16>,
    %cst_118 = arith.constant 0.000000e+00 : f32
    %154 = vector.broadcast %cst_118 : f32 to vector<8x480xf32>
    %c0_119 = arith.constant 0 : index
    %c0_120 = arith.constant 0 : index
    %155 = vector.load %arg12[%c0_119, %c0_120] : memref<16x600xbf16, #tpu.memory_space<vmem>>, vector<16x480xbf16>
    %c0_121 = arith.constant 0 : index
    %c0_122 = arith.constant 0 : index
    %c0_123 = arith.constant 0 : index
    %156 = vector.load %arg3[%c0_121, %c0_122, %c0_123] : memref<25x8x16xbf16, #tpu.memory_space<vmem>>, vector<1x8x16xbf16>
    %157 = vector.shape_cast %156 : vector<1x8x16xbf16> to vector<8x16xbf16>
    %cst_124 = arith.constant dense<0.000000e+00> : vector<8x480xf32>
    %158 = tpu.matmul %157, %155, %cst_124 {dimension_numbers = #tpu.dot_dimension_numbers<[1], [0], [0], [1], [0, 0, 1, 1], [], []>} : vector<8x16xbf16>, vector<16x480xbf16>, vector<8x480xf32> -> vector<8x480xf32>
    %159 = arith.addf %154, %158 : vector<8x480xf32>
    %c0_125 = arith.constant 0 : index
    %c1_126 = arith.constant 1 : index
    %160 = vector.load %arg12[%c0_125, %c1_126] : memref<16x600xbf16, #tpu.memory_space<vmem>>, vector<16x480xbf16>
    %c1_127 = arith.constant 1 : index
    %c0_128 = arith.constant 0 : index
    %c0_129 = arith.constant 0 : index
    %161 = vector.load %arg3[%c1_127, %c0_128, %c0_129] : memref<25x8x16xbf16, #tpu.memory_space<vmem>>, vector<1x8x16xbf16>
    %162 = vector.shape_cast %161 : vector<1x8x16xbf16> to vector<8x16xbf16>
    %cst_130 = arith.constant dense<0.000000e+00> : vector<8x480xf32>
    %163 = tpu.matmul %162, %160, %cst_130 {dimension_numbers = #tpu.dot_dimension_numbers<[1], [0], [0], [1], [0, 0, 1, 1], [], []>} : vector<8x16xbf16>, vector<16x480xbf16>, vector<8x480xf32> -> vector<8x480xf32>
    %164 = arith.addf %159, %163 : vector<8x480xf32>
    %c0_131 = arith.constant 0 : index
    %c2_132 = arith.constant 2 : index
    %165 = vector.load %arg12[%c0_131, %c2_132] : memref<16x600xbf16, #tpu.memory_space<vmem>>, vector<16x480xbf16>
    %c2_133 = arith.constant 2 : index
    %c0_134 = arith.constant 0 : index
    %c0_135 = arith.constant 0 : index
    %166 = vector.load %arg3[%c2_133, %c0_134, %c0_135] : memref<25x8x16xbf16, #tpu.memory_space<vmem>>, vector<1x8x16xbf16>
    %167 = vector.shape_cast %166 : vector<1x8x16xbf16> to vector<8x16xbf16>
    %cst_136 = arith.constant dense<0.000000e+00> : vector<8x480xf32>
    %168 = tpu.matmul %167, %165, %cst_136 {dimension_numbers = #tpu.dot_dimension_numbers<[1], [0], [0], [1], [0, 0, 1, 1], [], []>} : vector<8x16xbf16>, vector<16x480xbf16>, vector<8x480xf32> -> vector<8x480xf32>
    %169 = arith.addf %164, %168 : vector<8x480xf32>
    %c0_137 = arith.constant 0 : index
    %c3_138 = arith.constant 3 : index
    %170 = vector.load %arg12[%c0_137, %c3_138] : memref<16x600xbf16, #tpu.memory_space<vmem>>, vector<16x480xbf16>
    %c3_139 = arith.constant 3 : index
    %c0_140 = arith.constant 0 : index
    %c0_141 = arith.constant 0 : index
    %171 = vector.load %arg3[%c3_139, %c0_140, %c0_141] : memref<25x8x16xbf16, #tpu.memory_space<vmem>>, vector<1x8x16xbf16>
    %172 = vector.shape_cast %171 : vector<1x8x16xbf16> to vector<8x16xbf16>
    %cst_142 = arith.constant dense<0.000000e+00> : vector<8x480xf32>
    %173 = tpu.matmul %172, %170, %cst_142 {dimension_numbers = #tpu.dot_dimension_numbers<[1], [0], [0], [1], [0, 0, 1, 1], [], []>} : vector<8x16xbf16>, vector<16x480xbf16>, vector<8x480xf32> -> vector<8x480xf32>
    %174 = arith.addf %169, %173 : vector<8x480xf32>
    %c0_143 = arith.constant 0 : index
    %c4_144 = arith.constant 4 : index
    %175 = vector.load %arg12[%c0_143, %c4_144] : memref<16x600xbf16, #tpu.memory_space<vmem>>, vector<16x480xbf16>
    %c4_145 = arith.constant 4 : index
    %c0_146 = arith.constant 0 : index
    %c0_147 = arith.constant 0 : index
    %176 = vector.load %arg3[%c4_145, %c0_146, %c0_147] : memref<25x8x16xbf16, #tpu.memory_space<vmem>>, vector<1x8x16xbf16>
    %177 = vector.shape_cast %176 : vector<1x8x16xbf16> to vector<8x16xbf16>
    %cst_148 = arith.constant dense<0.000000e+00> : vector<8x480xf32>
    %178 = tpu.matmul %177, %175, %cst_148 {dimension_numbers = #tpu.dot_dimension_numbers<[1], [0], [0], [1], [0, 0, 1, 1], [], []>} : vector<8x16xbf16>, vector<16x480xbf16>, vector<8x480xf32> -> vector<8x480xf32>
    %179 = arith.addf %174, %178 : vector<8x480xf32>
    %c0_149 = arith.constant 0 : index
    %c24 = arith.constant 24 : index
    %180 = vector.load %arg12[%c0_149, %c24] : memref<16x600xbf16, #tpu.memory_space<vmem>>, vector<16x480xbf16>
    %c5_150 = arith.constant 5 : index
    %c0_151 = arith.constant 0 : index
    %c0_152 = arith.constant 0 : index
    %181 = vector.load %arg3[%c5_150, %c0_151, %c0_152] : memref<25x8x16xbf16, #tpu.memory_space<vmem>>, vector<1x8x16xbf16>
    %182 = vector.shape_cast %181 : vector<1x8x16xbf16> to vector<8x16xbf16>
    %cst_153 = arith.constant dense<0.000000e+00> : vector<8x480xf32>
    %183 = tpu.matmul %182, %180, %cst_153 {dimension_numbers = #tpu.dot_dimension_numbers<[1], [0], [0], [1], [0, 0, 1, 1], [], []>} : vector<8x16xbf16>, vector<16x480xbf16>, vector<8x480xf32> -> vector<8x480xf32>
    %184 = arith.addf %179, %183 : vector<8x480xf32>
    %c0_154 = arith.constant 0 : index
    %c25 = arith.constant 25 : index
    %185 = vector.load %arg12[%c0_154, %c25] : memref<16x600xbf16, #tpu.memory_space<vmem>>, vector<16x480xbf16>
    %c6_155 = arith.constant 6 : index
    %c0_156 = arith.constant 0 : index
    %c0_157 = arith.constant 0 : index
    %186 = vector.load %arg3[%c6_155, %c0_156, %c0_157] : memref<25x8x16xbf16, #tpu.memory_space<vmem>>, vector<1x8x16xbf16>
    %187 = vector.shape_cast %186 : vector<1x8x16xbf16> to vector<8x16xbf16>
    %cst_158 = arith.constant dense<0.000000e+00> : vector<8x480xf32>
    %188 = tpu.matmul %187, %185, %cst_158 {dimension_numbers = #tpu.dot_dimension_numbers<[1], [0], [0], [1], [0, 0, 1, 1], [], []>} : vector<8x16xbf16>, vector<16x480xbf16>, vector<8x480xf32> -> vector<8x480xf32>
    %189 = arith.addf %184, %188 : vector<8x480xf32>
    %c0_159 = arith.constant 0 : index
    %c26 = arith.constant 26 : index
    %190 = vector.load %arg12[%c0_159, %c26] : memref<16x600xbf16, #tpu.memory_space<vmem>>, vector<16x480xbf16>
    %c7_160 = arith.constant 7 : index
    %c0_161 = arith.constant 0 : index
    %c0_162 = arith.constant 0 : index
    %191 = vector.load %arg3[%c7_160, %c0_161, %c0_162] : memref<25x8x16xbf16, #tpu.memory_space<vmem>>, vector<1x8x16xbf16>
    %192 = vector.shape_cast %191 : vector<1x8x16xbf16> to vector<8x16xbf16>
    %cst_163 = arith.constant dense<0.000000e+00> : vector<8x480xf32>
    %193 = tpu.matmul %192, %190, %cst_163 {dimension_numbers = #tpu.dot_dimension_numbers<[1], [0], [0], [1], [0, 0, 1, 1], [], []>} : vector<8x16xbf16>, vector<16x480xbf16>, vector<8x480xf32> -> vector<8x480xf32>
    %194 = arith.addf %189, %193 : vector<8x480xf32>
    %c0_164 = arith.constant 0 : index
    %c27 = arith.constant 27 : index
    %195 = vector.load %arg12[%c0_164, %c27] : memref<16x600xbf16, #tpu.memory_space<vmem>>, vector<16x480xbf16>
    %c8_165 = arith.constant 8 : index
    %c0_166 = arith.constant 0 : index
    %c0_167 = arith.constant 0 : index
    %196 = vector.load %arg3[%c8_165, %c0_166, %c0_167] : memref<25x8x16xbf16, #tpu.memory_space<vmem>>, vector<1x8x16xbf16>
    %197 = vector.shape_cast %196 : vector<1x8x16xbf16> to vector<8x16xbf16>
    %cst_168 = arith.constant dense<0.000000e+00> : vector<8x480xf32>
    %198 = tpu.matmul %197, %195, %cst_168 {dimension_numbers = #tpu.dot_dimension_numbers<[1], [0], [0], [1], [0, 0, 1, 1], [], []>} : vector<8x16xbf16>, vector<16x480xbf16>, vector<8x480xf32> -> vector<8x480xf32>
    %199 = arith.addf %194, %198 : vector<8x480xf32>
    %c0_169 = arith.constant 0 : index
    %c28 = arith.constant 28 : index
    %200 = vector.load %arg12[%c0_169, %c28] : memref<16x600xbf16, #tpu.memory_space<vmem>>, vector<16x480xbf16>
    %c9 = arith.constant 9 : index
    %c0_170 = arith.constant 0 : index
    %c0_171 = arith.constant 0 : index
    %201 = vector.load %arg3[%c9, %c0_170, %c0_171] : memref<25x8x16xbf16, #tpu.memory_space<vmem>>, vector<1x8x16xbf16>
    %202 = vector.shape_cast %201 : vector<1x8x16xbf16> to vector<8x16xbf16>
    %cst_172 = arith.constant dense<0.000000e+00> : vector<8x480xf32>
    %203 = tpu.matmul %202, %200, %cst_172 {dimension_numbers = #tpu.dot_dimension_numbers<[1], [0], [0], [1], [0, 0, 1, 1], [], []>} : vector<8x16xbf16>, vector<16x480xbf16>, vector<8x480xf32> -> vector<8x480xf32>
    %204 = arith.addf %199, %203 : vector<8x480xf32>
    %c0_173 = arith.constant 0 : index
    %c48_174 = arith.constant 48 : index
    %205 = vector.load %arg12[%c0_173, %c48_174] : memref<16x600xbf16, #tpu.memory_space<vmem>>, vector<16x480xbf16>
    %c10 = arith.constant 10 : index
    %c0_175 = arith.constant 0 : index
    %c0_176 = arith.constant 0 : index
    %206 = vector.load %arg3[%c10, %c0_175, %c0_176] : memref<25x8x16xbf16, #tpu.memory_space<vmem>>, vector<1x8x16xbf16>
    %207 = vector.shape_cast %206 : vector<1x8x16xbf16> to vector<8x16xbf16>
    %cst_177 = arith.constant dense<0.000000e+00> : vector<8x480xf32>
    %208 = tpu.matmul %207, %205, %cst_177 {dimension_numbers = #tpu.dot_dimension_numbers<[1], [0], [0], [1], [0, 0, 1, 1], [], []>} : vector<8x16xbf16>, vector<16x480xbf16>, vector<8x480xf32> -> vector<8x480xf32>
    %209 = arith.addf %204, %208 : vector<8x480xf32>
    %c0_178 = arith.constant 0 : index
    %c49 = arith.constant 49 : index
    %210 = vector.load %arg12[%c0_178, %c49] : memref<16x600xbf16, #tpu.memory_space<vmem>>, vector<16x480xbf16>
    %c11 = arith.constant 11 : index
    %c0_179 = arith.constant 0 : index
    %c0_180 = arith.constant 0 : index
    %211 = vector.load %arg3[%c11, %c0_179, %c0_180] : memref<25x8x16xbf16, #tpu.memory_space<vmem>>, vector<1x8x16xbf16>
    %212 = vector.shape_cast %211 : vector<1x8x16xbf16> to vector<8x16xbf16>
    %cst_181 = arith.constant dense<0.000000e+00> : vector<8x480xf32>
    %213 = tpu.matmul %212, %210, %cst_181 {dimension_numbers = #tpu.dot_dimension_numbers<[1], [0], [0], [1], [0, 0, 1, 1], [], []>} : vector<8x16xbf16>, vector<16x480xbf16>, vector<8x480xf32> -> vector<8x480xf32>
    %214 = arith.addf %209, %213 : vector<8x480xf32>
    %c0_182 = arith.constant 0 : index
    %c50 = arith.constant 50 : index
    %215 = vector.load %arg12[%c0_182, %c50] : memref<16x600xbf16, #tpu.memory_space<vmem>>, vector<16x480xbf16>
    %c12 = arith.constant 12 : index
    %c0_183 = arith.constant 0 : index
    %c0_184 = arith.constant 0 : index
    %216 = vector.load %arg3[%c12, %c0_183, %c0_184] : memref<25x8x16xbf16, #tpu.memory_space<vmem>>, vector<1x8x16xbf16>
    %217 = vector.shape_cast %216 : vector<1x8x16xbf16> to vector<8x16xbf16>
    %cst_185 = arith.constant dense<0.000000e+00> : vector<8x480xf32>
    %218 = tpu.matmul %217, %215, %cst_185 {dimension_numbers = #tpu.dot_dimension_numbers<[1], [0], [0], [1], [0, 0, 1, 1], [], []>} : vector<8x16xbf16>, vector<16x480xbf16>, vector<8x480xf32> -> vector<8x480xf32>
    %219 = arith.addf %214, %218 : vector<8x480xf32>
    %c0_186 = arith.constant 0 : index
    %c51 = arith.constant 51 : index
    %220 = vector.load %arg12[%c0_186, %c51] : memref<16x600xbf16, #tpu.memory_space<vmem>>, vector<16x480xbf16>
    %c13 = arith.constant 13 : index
    %c0_187 = arith.constant 0 : index
    %c0_188 = arith.constant 0 : index
    %221 = vector.load %arg3[%c13, %c0_187, %c0_188] : memref<25x8x16xbf16, #tpu.memory_space<vmem>>, vector<1x8x16xbf16>
    %222 = vector.shape_cast %221 : vector<1x8x16xbf16> to vector<8x16xbf16>
    %cst_189 = arith.constant dense<0.000000e+00> : vector<8x480xf32>
    %223 = tpu.matmul %222, %220, %cst_189 {dimension_numbers = #tpu.dot_dimension_numbers<[1], [0], [0], [1], [0, 0, 1, 1], [], []>} : vector<8x16xbf16>, vector<16x480xbf16>, vector<8x480xf32> -> vector<8x480xf32>
    %224 = arith.addf %219, %223 : vector<8x480xf32>
    %c0_190 = arith.constant 0 : index
    %c52 = arith.constant 52 : index
    %225 = vector.load %arg12[%c0_190, %c52] : memref<16x600xbf16, #tpu.memory_space<vmem>>, vector<16x480xbf16>
    %c14 = arith.constant 14 : index
    %c0_191 = arith.constant 0 : index
    %c0_192 = arith.constant 0 : index
    %226 = vector.load %arg3[%c14, %c0_191, %c0_192] : memref<25x8x16xbf16, #tpu.memory_space<vmem>>, vector<1x8x16xbf16>
    %227 = vector.shape_cast %226 : vector<1x8x16xbf16> to vector<8x16xbf16>
    %cst_193 = arith.constant dense<0.000000e+00> : vector<8x480xf32>
    %228 = tpu.matmul %227, %225, %cst_193 {dimension_numbers = #tpu.dot_dimension_numbers<[1], [0], [0], [1], [0, 0, 1, 1], [], []>} : vector<8x16xbf16>, vector<16x480xbf16>, vector<8x480xf32> -> vector<8x480xf32>
    %229 = arith.addf %224, %228 : vector<8x480xf32>
    %c0_194 = arith.constant 0 : index
    %c72 = arith.constant 72 : index
    %230 = vector.load %arg12[%c0_194, %c72] : memref<16x600xbf16, #tpu.memory_space<vmem>>, vector<16x480xbf16>
    %c15 = arith.constant 15 : index
    %c0_195 = arith.constant 0 : index
    %c0_196 = arith.constant 0 : index
    %231 = vector.load %arg3[%c15, %c0_195, %c0_196] : memref<25x8x16xbf16, #tpu.memory_space<vmem>>, vector<1x8x16xbf16>
    %232 = vector.shape_cast %231 : vector<1x8x16xbf16> to vector<8x16xbf16>
    %cst_197 = arith.constant dense<0.000000e+00> : vector<8x480xf32>
    %233 = tpu.matmul %232, %230, %cst_197 {dimension_numbers = #tpu.dot_dimension_numbers<[1], [0], [0], [1], [0, 0, 1, 1], [], []>} : vector<8x16xbf16>, vector<16x480xbf16>, vector<8x480xf32> -> vector<8x480xf32>
    %234 = arith.addf %229, %233 : vector<8x480xf32>
    %c0_198 = arith.constant 0 : index
    %c73_199 = arith.constant 73 : index
    %235 = vector.load %arg12[%c0_198, %c73_199] : memref<16x600xbf16, #tpu.memory_space<vmem>>, vector<16x480xbf16>
    %c16_200 = arith.constant 16 : index
    %c0_201 = arith.constant 0 : index
    %c0_202 = arith.constant 0 : index
    %236 = vector.load %arg3[%c16_200, %c0_201, %c0_202] : memref<25x8x16xbf16, #tpu.memory_space<vmem>>, vector<1x8x16xbf16>
    %237 = vector.shape_cast %236 : vector<1x8x16xbf16> to vector<8x16xbf16>
    %cst_203 = arith.constant dense<0.000000e+00> : vector<8x480xf32>
    %238 = tpu.matmul %237, %235, %cst_203 {dimension_numbers = #tpu.dot_dimension_numbers<[1], [0], [0], [1], [0, 0, 1, 1], [], []>} : vector<8x16xbf16>, vector<16x480xbf16>, vector<8x480xf32> -> vector<8x480xf32>
    %239 = arith.addf %234, %238 : vector<8x480xf32>
    %c0_204 = arith.constant 0 : index
    %c74 = arith.constant 74 : index
    %240 = vector.load %arg12[%c0_204, %c74] : memref<16x600xbf16, #tpu.memory_space<vmem>>, vector<16x480xbf16>
    %c17 = arith.constant 17 : index
    %c0_205 = arith.constant 0 : index
    %c0_206 = arith.constant 0 : index
    %241 = vector.load %arg3[%c17, %c0_205, %c0_206] : memref<25x8x16xbf16, #tpu.memory_space<vmem>>, vector<1x8x16xbf16>
    %242 = vector.shape_cast %241 : vector<1x8x16xbf16> to vector<8x16xbf16>
    %cst_207 = arith.constant dense<0.000000e+00> : vector<8x480xf32>
    %243 = tpu.matmul %242, %240, %cst_207 {dimension_numbers = #tpu.dot_dimension_numbers<[1], [0], [0], [1], [0, 0, 1, 1], [], []>} : vector<8x16xbf16>, vector<16x480xbf16>, vector<8x480xf32> -> vector<8x480xf32>
    %244 = arith.addf %239, %243 : vector<8x480xf32>
    %c0_208 = arith.constant 0 : index
    %c75 = arith.constant 75 : index
    %245 = vector.load %arg12[%c0_208, %c75] : memref<16x600xbf16, #tpu.memory_space<vmem>>, vector<16x480xbf16>
    %c18_209 = arith.constant 18 : index
    %c0_210 = arith.constant 0 : index
    %c0_211 = arith.constant 0 : index
    %246 = vector.load %arg3[%c18_209, %c0_210, %c0_211] : memref<25x8x16xbf16, #tpu.memory_space<vmem>>, vector<1x8x16xbf16>
    %247 = vector.shape_cast %246 : vector<1x8x16xbf16> to vector<8x16xbf16>
    %cst_212 = arith.constant dense<0.000000e+00> : vector<8x480xf32>
    %248 = tpu.matmul %247, %245, %cst_212 {dimension_numbers = #tpu.dot_dimension_numbers<[1], [0], [0], [1], [0, 0, 1, 1], [], []>} : vector<8x16xbf16>, vector<16x480xbf16>, vector<8x480xf32> -> vector<8x480xf32>
    %249 = arith.addf %244, %248 : vector<8x480xf32>
    %c0_213 = arith.constant 0 : index
    %c76 = arith.constant 76 : index
    %250 = vector.load %arg12[%c0_213, %c76] : memref<16x600xbf16, #tpu.memory_space<vmem>>, vector<16x480xbf16>
    %c19_214 = arith.constant 19 : index
    %c0_215 = arith.constant 0 : index
    %c0_216 = arith.constant 0 : index
    %251 = vector.load %arg3[%c19_214, %c0_215, %c0_216] : memref<25x8x16xbf16, #tpu.memory_space<vmem>>, vector<1x8x16xbf16>
    %252 = vector.shape_cast %251 : vector<1x8x16xbf16> to vector<8x16xbf16>
    %cst_217 = arith.constant dense<0.000000e+00> : vector<8x480xf32>
    %253 = tpu.matmul %252, %250, %cst_217 {dimension_numbers = #tpu.dot_dimension_numbers<[1], [0], [0], [1], [0, 0, 1, 1], [], []>} : vector<8x16xbf16>, vector<16x480xbf16>, vector<8x480xf32> -> vector<8x480xf32>
    %254 = arith.addf %249, %253 : vector<8x480xf32>
    %c0_218 = arith.constant 0 : index
    %c96_219 = arith.constant 96 : index
    %255 = vector.load %arg12[%c0_218, %c96_219] : memref<16x600xbf16, #tpu.memory_space<vmem>>, vector<16x480xbf16>
    %c20_220 = arith.constant 20 : index
    %c0_221 = arith.constant 0 : index
    %c0_222 = arith.constant 0 : index
    %256 = vector.load %arg3[%c20_220, %c0_221, %c0_222] : memref<25x8x16xbf16, #tpu.memory_space<vmem>>, vector<1x8x16xbf16>
    %257 = vector.shape_cast %256 : vector<1x8x16xbf16> to vector<8x16xbf16>
    %cst_223 = arith.constant dense<0.000000e+00> : vector<8x480xf32>
    %258 = tpu.matmul %257, %255, %cst_223 {dimension_numbers = #tpu.dot_dimension_numbers<[1], [0], [0], [1], [0, 0, 1, 1], [], []>} : vector<8x16xbf16>, vector<16x480xbf16>, vector<8x480xf32> -> vector<8x480xf32>
    %259 = arith.addf %254, %258 : vector<8x480xf32>
    %c0_224 = arith.constant 0 : index
    %c97 = arith.constant 97 : index
    %260 = vector.load %arg12[%c0_224, %c97] : memref<16x600xbf16, #tpu.memory_space<vmem>>, vector<16x480xbf16>
    %c21 = arith.constant 21 : index
    %c0_225 = arith.constant 0 : index
    %c0_226 = arith.constant 0 : index
    %261 = vector.load %arg3[%c21, %c0_225, %c0_226] : memref<25x8x16xbf16, #tpu.memory_space<vmem>>, vector<1x8x16xbf16>
    %262 = vector.shape_cast %261 : vector<1x8x16xbf16> to vector<8x16xbf16>
    %cst_227 = arith.constant dense<0.000000e+00> : vector<8x480xf32>
    %263 = tpu.matmul %262, %260, %cst_227 {dimension_numbers = #tpu.dot_dimension_numbers<[1], [0], [0], [1], [0, 0, 1, 1], [], []>} : vector<8x16xbf16>, vector<16x480xbf16>, vector<8x480xf32> -> vector<8x480xf32>
    %264 = arith.addf %259, %263 : vector<8x480xf32>
    %c0_228 = arith.constant 0 : index
    %c98 = arith.constant 98 : index
    %265 = vector.load %arg12[%c0_228, %c98] : memref<16x600xbf16, #tpu.memory_space<vmem>>, vector<16x480xbf16>
    %c22 = arith.constant 22 : index
    %c0_229 = arith.constant 0 : index
    %c0_230 = arith.constant 0 : index
    %266 = vector.load %arg3[%c22, %c0_229, %c0_230] : memref<25x8x16xbf16, #tpu.memory_space<vmem>>, vector<1x8x16xbf16>
    %267 = vector.shape_cast %266 : vector<1x8x16xbf16> to vector<8x16xbf16>
    %cst_231 = arith.constant dense<0.000000e+00> : vector<8x480xf32>
    %268 = tpu.matmul %267, %265, %cst_231 {dimension_numbers = #tpu.dot_dimension_numbers<[1], [0], [0], [1], [0, 0, 1, 1], [], []>} : vector<8x16xbf16>, vector<16x480xbf16>, vector<8x480xf32> -> vector<8x480xf32>
    %269 = arith.addf %264, %268 : vector<8x480xf32>
    %c0_232 = arith.constant 0 : index
    %c99 = arith.constant 99 : index
    %270 = vector.load %arg12[%c0_232, %c99] : memref<16x600xbf16, #tpu.memory_space<vmem>>, vector<16x480xbf16>
    %c23 = arith.constant 23 : index
    %c0_233 = arith.constant 0 : index
    %c0_234 = arith.constant 0 : index
    %271 = vector.load %arg3[%c23, %c0_233, %c0_234] : memref<25x8x16xbf16, #tpu.memory_space<vmem>>, vector<1x8x16xbf16>
    %272 = vector.shape_cast %271 : vector<1x8x16xbf16> to vector<8x16xbf16>
    %cst_235 = arith.constant dense<0.000000e+00> : vector<8x480xf32>
    %273 = tpu.matmul %272, %270, %cst_235 {dimension_numbers = #tpu.dot_dimension_numbers<[1], [0], [0], [1], [0, 0, 1, 1], [], []>} : vector<8x16xbf16>, vector<16x480xbf16>, vector<8x480xf32> -> vector<8x480xf32>
    %274 = arith.addf %269, %273 : vector<8x480xf32>
    %c0_236 = arith.constant 0 : index
    %c100_237 = arith.constant 100 : index
    %275 = vector.load %arg12[%c0_236, %c100_237] : memref<16x600xbf16, #tpu.memory_space<vmem>>, vector<16x480xbf16>
    %c24_238 = arith.constant 24 : index
    %c0_239 = arith.constant 0 : index
    %c0_240 = arith.constant 0 : index
    %276 = vector.load %arg3[%c24_238, %c0_239, %c0_240] : memref<25x8x16xbf16, #tpu.memory_space<vmem>>, vector<1x8x16xbf16>
    %277 = vector.shape_cast %276 : vector<1x8x16xbf16> to vector<8x16xbf16>
    %cst_241 = arith.constant dense<0.000000e+00> : vector<8x480xf32>
    %278 = tpu.matmul %277, %275, %cst_241 {dimension_numbers = #tpu.dot_dimension_numbers<[1], [0], [0], [1], [0, 0, 1, 1], [], []>} : vector<8x16xbf16>, vector<16x480xbf16>, vector<8x480xf32> -> vector<8x480xf32>
    %279 = arith.addf %274, %278 : vector<8x480xf32>
    %c0_242 = arith.constant 0 : index
    %c0_243 = arith.constant 0 : index
    %280 = vector.load %arg6[%c0_242, %c0_243] : memref<8x1xf32, #tpu.memory_space<vmem>>, vector<8x1xf32>
    %281 = vector.broadcast %280 : vector<8x1xf32> to vector<8x480xf32>
    %282 = arith.addf %279, %281 : vector<8x480xf32>
    %cst_244 = arith.constant 0.000000e+00 : f32
    %283 = vector.broadcast %cst_244 : f32 to vector<8x480xf32>
    %284 = arith.maximumf %282, %283 : vector<8x480xf32>
    %285 = arith.truncf %284 : vector<8x480xf32> to vector<8x480xbf16>
    %286 = vector.extract_strided_slice %285 {offsets = [0, 0], sizes = [8, 20], strides = [1, 1]} : vector<8x480xbf16> to vector<8x20xbf16>
    %c0_245 = arith.constant 0 : index
    %c23_246 = arith.constant 23 : index
    %287 = vector.load %arg13[%c0_245, %c23_246] : memref<8x506xbf16, #tpu.memory_space<vmem>>, vector<8x20xbf16>
    tpu.vector_store %arg13[%c0_245, %c23_246], %286 {strides = array<i32>} : memref<8x506xbf16, #tpu.memory_space<vmem>>, vector<8x20xbf16>,
    %288 = vector.extract_strided_slice %285 {offsets = [0, 24], sizes = [8, 20], strides = [1, 1]} : vector<8x480xbf16> to vector<8x20xbf16>
    %c0_247 = arith.constant 0 : index
    %c45 = arith.constant 45 : index
    %289 = vector.load %arg13[%c0_247, %c45] : memref<8x506xbf16, #tpu.memory_space<vmem>>, vector<8x20xbf16>
    tpu.vector_store %arg13[%c0_247, %c45], %288 {strides = array<i32>} : memref<8x506xbf16, #tpu.memory_space<vmem>>, vector<8x20xbf16>,
    %290 = vector.extract_strided_slice %285 {offsets = [0, 48], sizes = [8, 20], strides = [1, 1]} : vector<8x480xbf16> to vector<8x20xbf16>
    %c0_248 = arith.constant 0 : index
    %c67 = arith.constant 67 : index
    %291 = vector.load %arg13[%c0_248, %c67] : memref<8x506xbf16, #tpu.memory_space<vmem>>, vector<8x20xbf16>
    tpu.vector_store %arg13[%c0_248, %c67], %290 {strides = array<i32>} : memref<8x506xbf16, #tpu.memory_space<vmem>>, vector<8x20xbf16>,
    %292 = vector.extract_strided_slice %285 {offsets = [0, 72], sizes = [8, 20], strides = [1, 1]} : vector<8x480xbf16> to vector<8x20xbf16>
    %c0_249 = arith.constant 0 : index
    %c89 = arith.constant 89 : index
    %293 = vector.load %arg13[%c0_249, %c89] : memref<8x506xbf16, #tpu.memory_space<vmem>>, vector<8x20xbf16>
    tpu.vector_store %arg13[%c0_249, %c89], %292 {strides = array<i32>} : memref<8x506xbf16, #tpu.memory_space<vmem>>, vector<8x20xbf16>,
    %294 = vector.extract_strided_slice %285 {offsets = [0, 96], sizes = [8, 20], strides = [1, 1]} : vector<8x480xbf16> to vector<8x20xbf16>
    %c0_250 = arith.constant 0 : index
    %c111 = arith.constant 111 : index
    %295 = vector.load %arg13[%c0_250, %c111] : memref<8x506xbf16, #tpu.memory_space<vmem>>, vector<8x20xbf16>
    tpu.vector_store %arg13[%c0_250, %c111], %294 {strides = array<i32>} : memref<8x506xbf16, #tpu.memory_space<vmem>>, vector<8x20xbf16>,
    %296 = vector.extract_strided_slice %285 {offsets = [0, 120], sizes = [8, 20], strides = [1, 1]} : vector<8x480xbf16> to vector<8x20xbf16>
    %c0_251 = arith.constant 0 : index
    %c133 = arith.constant 133 : index
    %297 = vector.load %arg13[%c0_251, %c133] : memref<8x506xbf16, #tpu.memory_space<vmem>>, vector<8x20xbf16>
    tpu.vector_store %arg13[%c0_251, %c133], %296 {strides = array<i32>} : memref<8x506xbf16, #tpu.memory_space<vmem>>, vector<8x20xbf16>,
    %298 = vector.extract_strided_slice %285 {offsets = [0, 144], sizes = [8, 20], strides = [1, 1]} : vector<8x480xbf16> to vector<8x20xbf16>
    %c0_252 = arith.constant 0 : index
    %c155 = arith.constant 155 : index
    %299 = vector.load %arg13[%c0_252, %c155] : memref<8x506xbf16, #tpu.memory_space<vmem>>, vector<8x20xbf16>
    tpu.vector_store %arg13[%c0_252, %c155], %298 {strides = array<i32>} : memref<8x506xbf16, #tpu.memory_space<vmem>>, vector<8x20xbf16>,
    %300 = vector.extract_strided_slice %285 {offsets = [0, 168], sizes = [8, 20], strides = [1, 1]} : vector<8x480xbf16> to vector<8x20xbf16>
    %c0_253 = arith.constant 0 : index
    %c177 = arith.constant 177 : index
    %301 = vector.load %arg13[%c0_253, %c177] : memref<8x506xbf16, #tpu.memory_space<vmem>>, vector<8x20xbf16>
    tpu.vector_store %arg13[%c0_253, %c177], %300 {strides = array<i32>} : memref<8x506xbf16, #tpu.memory_space<vmem>>, vector<8x20xbf16>,
    %302 = vector.extract_strided_slice %285 {offsets = [0, 192], sizes = [8, 20], strides = [1, 1]} : vector<8x480xbf16> to vector<8x20xbf16>
    %c0_254 = arith.constant 0 : index
    %c199_255 = arith.constant 199 : index
    %303 = vector.load %arg13[%c0_254, %c199_255] : memref<8x506xbf16, #tpu.memory_space<vmem>>, vector<8x20xbf16>
    tpu.vector_store %arg13[%c0_254, %c199_255], %302 {strides = array<i32>} : memref<8x506xbf16, #tpu.memory_space<vmem>>, vector<8x20xbf16>,
    %304 = vector.extract_strided_slice %285 {offsets = [0, 216], sizes = [8, 20], strides = [1, 1]} : vector<8x480xbf16> to vector<8x20xbf16>
    %c0_256 = arith.constant 0 : index
    %c221 = arith.constant 221 : index
    %305 = vector.load %arg13[%c0_256, %c221] : memref<8x506xbf16, #tpu.memory_space<vmem>>, vector<8x20xbf16>
    tpu.vector_store %arg13[%c0_256, %c221], %304 {strides = array<i32>} : memref<8x506xbf16, #tpu.memory_space<vmem>>, vector<8x20xbf16>,
    %306 = vector.extract_strided_slice %285 {offsets = [0, 240], sizes = [8, 20], strides = [1, 1]} : vector<8x480xbf16> to vector<8x20xbf16>
    %c0_257 = arith.constant 0 : index
    %c243 = arith.constant 243 : index
    %307 = vector.load %arg13[%c0_257, %c243] : memref<8x506xbf16, #tpu.memory_space<vmem>>, vector<8x20xbf16>
    tpu.vector_store %arg13[%c0_257, %c243], %306 {strides = array<i32>} : memref<8x506xbf16, #tpu.memory_space<vmem>>, vector<8x20xbf16>,
    %308 = vector.extract_strided_slice %285 {offsets = [0, 264], sizes = [8, 20], strides = [1, 1]} : vector<8x480xbf16> to vector<8x20xbf16>
    %c0_258 = arith.constant 0 : index
    %c265 = arith.constant 265 : index
    %309 = vector.load %arg13[%c0_258, %c265] : memref<8x506xbf16, #tpu.memory_space<vmem>>, vector<8x20xbf16>
    tpu.vector_store %arg13[%c0_258, %c265], %308 {strides = array<i32>} : memref<8x506xbf16, #tpu.memory_space<vmem>>, vector<8x20xbf16>,
    %310 = vector.extract_strided_slice %285 {offsets = [0, 288], sizes = [8, 20], strides = [1, 1]} : vector<8x480xbf16> to vector<8x20xbf16>
    %c0_259 = arith.constant 0 : index
    %c287 = arith.constant 287 : index
    %311 = vector.load %arg13[%c0_259, %c287] : memref<8x506xbf16, #tpu.memory_space<vmem>>, vector<8x20xbf16>
    tpu.vector_store %arg13[%c0_259, %c287], %310 {strides = array<i32>} : memref<8x506xbf16, #tpu.memory_space<vmem>>, vector<8x20xbf16>,
    %312 = vector.extract_strided_slice %285 {offsets = [0, 312], sizes = [8, 20], strides = [1, 1]} : vector<8x480xbf16> to vector<8x20xbf16>
    %c0_260 = arith.constant 0 : index
    %c309 = arith.constant 309 : index
    %313 = vector.load %arg13[%c0_260, %c309] : memref<8x506xbf16, #tpu.memory_space<vmem>>, vector<8x20xbf16>
    tpu.vector_store %arg13[%c0_260, %c309], %312 {strides = array<i32>} : memref<8x506xbf16, #tpu.memory_space<vmem>>, vector<8x20xbf16>,
    %314 = vector.extract_strided_slice %285 {offsets = [0, 336], sizes = [8, 20], strides = [1, 1]} : vector<8x480xbf16> to vector<8x20xbf16>
    %c0_261 = arith.constant 0 : index
    %c331 = arith.constant 331 : index
    %315 = vector.load %arg13[%c0_261, %c331] : memref<8x506xbf16, #tpu.memory_space<vmem>>, vector<8x20xbf16>
    tpu.vector_store %arg13[%c0_261, %c331], %314 {strides = array<i32>} : memref<8x506xbf16, #tpu.memory_space<vmem>>, vector<8x20xbf16>,
    %316 = vector.extract_strided_slice %285 {offsets = [0, 360], sizes = [8, 20], strides = [1, 1]} : vector<8x480xbf16> to vector<8x20xbf16>
    %c0_262 = arith.constant 0 : index
    %c353 = arith.constant 353 : index
    %317 = vector.load %arg13[%c0_262, %c353] : memref<8x506xbf16, #tpu.memory_space<vmem>>, vector<8x20xbf16>
    tpu.vector_store %arg13[%c0_262, %c353], %316 {strides = array<i32>} : memref<8x506xbf16, #tpu.memory_space<vmem>>, vector<8x20xbf16>,
    %318 = vector.extract_strided_slice %285 {offsets = [0, 384], sizes = [8, 20], strides = [1, 1]} : vector<8x480xbf16> to vector<8x20xbf16>
    %c0_263 = arith.constant 0 : index
    %c375 = arith.constant 375 : index
    %319 = vector.load %arg13[%c0_263, %c375] : memref<8x506xbf16, #tpu.memory_space<vmem>>, vector<8x20xbf16>
    tpu.vector_store %arg13[%c0_263, %c375], %318 {strides = array<i32>} : memref<8x506xbf16, #tpu.memory_space<vmem>>, vector<8x20xbf16>,
    %320 = vector.extract_strided_slice %285 {offsets = [0, 408], sizes = [8, 20], strides = [1, 1]} : vector<8x480xbf16> to vector<8x20xbf16>
    %c0_264 = arith.constant 0 : index
    %c397 = arith.constant 397 : index
    %321 = vector.load %arg13[%c0_264, %c397] : memref<8x506xbf16, #tpu.memory_space<vmem>>, vector<8x20xbf16>
    tpu.vector_store %arg13[%c0_264, %c397], %320 {strides = array<i32>} : memref<8x506xbf16, #tpu.memory_space<vmem>>, vector<8x20xbf16>,
    %322 = vector.extract_strided_slice %285 {offsets = [0, 432], sizes = [8, 20], strides = [1, 1]} : vector<8x480xbf16> to vector<8x20xbf16>
    %c0_265 = arith.constant 0 : index
    %c419 = arith.constant 419 : index
    %323 = vector.load %arg13[%c0_265, %c419] : memref<8x506xbf16, #tpu.memory_space<vmem>>, vector<8x20xbf16>
    tpu.vector_store %arg13[%c0_265, %c419], %322 {strides = array<i32>} : memref<8x506xbf16, #tpu.memory_space<vmem>>, vector<8x20xbf16>,
    %324 = vector.extract_strided_slice %285 {offsets = [0, 456], sizes = [8, 20], strides = [1, 1]} : vector<8x480xbf16> to vector<8x20xbf16>
    %c0_266 = arith.constant 0 : index
    %c441 = arith.constant 441 : index
    %325 = vector.load %arg13[%c0_266, %c441] : memref<8x506xbf16, #tpu.memory_space<vmem>>, vector<8x20xbf16>
    tpu.vector_store %arg13[%c0_266, %c441], %324 {strides = array<i32>} : memref<8x506xbf16, #tpu.memory_space<vmem>>, vector<8x20xbf16>,
    %cst_267 = arith.constant 0.000000e+00 : f32
    %326 = vector.broadcast %cst_267 : f32 to vector<3x440xf32>
    %c0_268 = arith.constant 0 : index
    %c0_269 = arith.constant 0 : index
    %327 = vector.load %arg13[%c0_268, %c0_269] : memref<8x506xbf16, #tpu.memory_space<vmem>>, vector<8x440xbf16>
    %c0_270 = arith.constant 0 : index
    %c0_271 = arith.constant 0 : index
    %c0_272 = arith.constant 0 : index
    %328 = vector.load %arg4[%c0_270, %c0_271, %c0_272] : memref<9x3x8xbf16, #tpu.memory_space<vmem>>, vector<1x3x8xbf16>
    %329 = vector.shape_cast %328 : vector<1x3x8xbf16> to vector<3x8xbf16>
    %cst_273 = arith.constant dense<0.000000e+00> : vector<3x440xf32>
    %330 = tpu.matmul %329, %327, %cst_273 {dimension_numbers = #tpu.dot_dimension_numbers<[1], [0], [0], [1], [0, 0, 1, 1], [], []>} : vector<3x8xbf16>, vector<8x440xbf16>, vector<3x440xf32> -> vector<3x440xf32>
    %331 = arith.addf %326, %330 : vector<3x440xf32>
    %c0_274 = arith.constant 0 : index
    %c1_275 = arith.constant 1 : index
    %332 = vector.load %arg13[%c0_274, %c1_275] : memref<8x506xbf16, #tpu.memory_space<vmem>>, vector<8x440xbf16>
    %c1_276 = arith.constant 1 : index
    %c0_277 = arith.constant 0 : index
    %c0_278 = arith.constant 0 : index
    %333 = vector.load %arg4[%c1_276, %c0_277, %c0_278] : memref<9x3x8xbf16, #tpu.memory_space<vmem>>, vector<1x3x8xbf16>
    %334 = vector.shape_cast %333 : vector<1x3x8xbf16> to vector<3x8xbf16>
    %cst_279 = arith.constant dense<0.000000e+00> : vector<3x440xf32>
    %335 = tpu.matmul %334, %332, %cst_279 {dimension_numbers = #tpu.dot_dimension_numbers<[1], [0], [0], [1], [0, 0, 1, 1], [], []>} : vector<3x8xbf16>, vector<8x440xbf16>, vector<3x440xf32> -> vector<3x440xf32>
    %336 = arith.addf %331, %335 : vector<3x440xf32>
    %c0_280 = arith.constant 0 : index
    %c2_281 = arith.constant 2 : index
    %337 = vector.load %arg13[%c0_280, %c2_281] : memref<8x506xbf16, #tpu.memory_space<vmem>>, vector<8x440xbf16>
    %c2_282 = arith.constant 2 : index
    %c0_283 = arith.constant 0 : index
    %c0_284 = arith.constant 0 : index
    %338 = vector.load %arg4[%c2_282, %c0_283, %c0_284] : memref<9x3x8xbf16, #tpu.memory_space<vmem>>, vector<1x3x8xbf16>
    %339 = vector.shape_cast %338 : vector<1x3x8xbf16> to vector<3x8xbf16>
    %cst_285 = arith.constant dense<0.000000e+00> : vector<3x440xf32>
    %340 = tpu.matmul %339, %337, %cst_285 {dimension_numbers = #tpu.dot_dimension_numbers<[1], [0], [0], [1], [0, 0, 1, 1], [], []>} : vector<3x8xbf16>, vector<8x440xbf16>, vector<3x440xf32> -> vector<3x440xf32>
    %341 = arith.addf %336, %340 : vector<3x440xf32>
    %c0_286 = arith.constant 0 : index
    %c22_287 = arith.constant 22 : index
    %342 = vector.load %arg13[%c0_286, %c22_287] : memref<8x506xbf16, #tpu.memory_space<vmem>>, vector<8x440xbf16>
    %c3_288 = arith.constant 3 : index
    %c0_289 = arith.constant 0 : index
    %c0_290 = arith.constant 0 : index
    %343 = vector.load %arg4[%c3_288, %c0_289, %c0_290] : memref<9x3x8xbf16, #tpu.memory_space<vmem>>, vector<1x3x8xbf16>
    %344 = vector.shape_cast %343 : vector<1x3x8xbf16> to vector<3x8xbf16>
    %cst_291 = arith.constant dense<0.000000e+00> : vector<3x440xf32>
    %345 = tpu.matmul %344, %342, %cst_291 {dimension_numbers = #tpu.dot_dimension_numbers<[1], [0], [0], [1], [0, 0, 1, 1], [], []>} : vector<3x8xbf16>, vector<8x440xbf16>, vector<3x440xf32> -> vector<3x440xf32>
    %346 = arith.addf %341, %345 : vector<3x440xf32>
    %c0_292 = arith.constant 0 : index
    %c23_293 = arith.constant 23 : index
    %347 = vector.load %arg13[%c0_292, %c23_293] : memref<8x506xbf16, #tpu.memory_space<vmem>>, vector<8x440xbf16>
    %c4_294 = arith.constant 4 : index
    %c0_295 = arith.constant 0 : index
    %c0_296 = arith.constant 0 : index
    %348 = vector.load %arg4[%c4_294, %c0_295, %c0_296] : memref<9x3x8xbf16, #tpu.memory_space<vmem>>, vector<1x3x8xbf16>
    %349 = vector.shape_cast %348 : vector<1x3x8xbf16> to vector<3x8xbf16>
    %cst_297 = arith.constant dense<0.000000e+00> : vector<3x440xf32>
    %350 = tpu.matmul %349, %347, %cst_297 {dimension_numbers = #tpu.dot_dimension_numbers<[1], [0], [0], [1], [0, 0, 1, 1], [], []>} : vector<3x8xbf16>, vector<8x440xbf16>, vector<3x440xf32> -> vector<3x440xf32>
    %351 = arith.addf %346, %350 : vector<3x440xf32>
    %c0_298 = arith.constant 0 : index
    %c24_299 = arith.constant 24 : index
    %352 = vector.load %arg13[%c0_298, %c24_299] : memref<8x506xbf16, #tpu.memory_space<vmem>>, vector<8x440xbf16>
    %c5_300 = arith.constant 5 : index
    %c0_301 = arith.constant 0 : index
    %c0_302 = arith.constant 0 : index
    %353 = vector.load %arg4[%c5_300, %c0_301, %c0_302] : memref<9x3x8xbf16, #tpu.memory_space<vmem>>, vector<1x3x8xbf16>
    %354 = vector.shape_cast %353 : vector<1x3x8xbf16> to vector<3x8xbf16>
    %cst_303 = arith.constant dense<0.000000e+00> : vector<3x440xf32>
    %355 = tpu.matmul %354, %352, %cst_303 {dimension_numbers = #tpu.dot_dimension_numbers<[1], [0], [0], [1], [0, 0, 1, 1], [], []>} : vector<3x8xbf16>, vector<8x440xbf16>, vector<3x440xf32> -> vector<3x440xf32>
    %356 = arith.addf %351, %355 : vector<3x440xf32>
    %c0_304 = arith.constant 0 : index
    %c44 = arith.constant 44 : index
    %357 = vector.load %arg13[%c0_304, %c44] : memref<8x506xbf16, #tpu.memory_space<vmem>>, vector<8x440xbf16>
    %c6_305 = arith.constant 6 : index
    %c0_306 = arith.constant 0 : index
    %c0_307 = arith.constant 0 : index
    %358 = vector.load %arg4[%c6_305, %c0_306, %c0_307] : memref<9x3x8xbf16, #tpu.memory_space<vmem>>, vector<1x3x8xbf16>
    %359 = vector.shape_cast %358 : vector<1x3x8xbf16> to vector<3x8xbf16>
    %cst_308 = arith.constant dense<0.000000e+00> : vector<3x440xf32>
    %360 = tpu.matmul %359, %357, %cst_308 {dimension_numbers = #tpu.dot_dimension_numbers<[1], [0], [0], [1], [0, 0, 1, 1], [], []>} : vector<3x8xbf16>, vector<8x440xbf16>, vector<3x440xf32> -> vector<3x440xf32>
    %361 = arith.addf %356, %360 : vector<3x440xf32>
    %c0_309 = arith.constant 0 : index
    %c45_310 = arith.constant 45 : index
    %362 = vector.load %arg13[%c0_309, %c45_310] : memref<8x506xbf16, #tpu.memory_space<vmem>>, vector<8x440xbf16>
    %c7_311 = arith.constant 7 : index
    %c0_312 = arith.constant 0 : index
    %c0_313 = arith.constant 0 : index
    %363 = vector.load %arg4[%c7_311, %c0_312, %c0_313] : memref<9x3x8xbf16, #tpu.memory_space<vmem>>, vector<1x3x8xbf16>
    %364 = vector.shape_cast %363 : vector<1x3x8xbf16> to vector<3x8xbf16>
    %cst_314 = arith.constant dense<0.000000e+00> : vector<3x440xf32>
    %365 = tpu.matmul %364, %362, %cst_314 {dimension_numbers = #tpu.dot_dimension_numbers<[1], [0], [0], [1], [0, 0, 1, 1], [], []>} : vector<3x8xbf16>, vector<8x440xbf16>, vector<3x440xf32> -> vector<3x440xf32>
    %366 = arith.addf %361, %365 : vector<3x440xf32>
    %c0_315 = arith.constant 0 : index
    %c46 = arith.constant 46 : index
    %367 = vector.load %arg13[%c0_315, %c46] : memref<8x506xbf16, #tpu.memory_space<vmem>>, vector<8x440xbf16>
    %c8_316 = arith.constant 8 : index
    %c0_317 = arith.constant 0 : index
    %c0_318 = arith.constant 0 : index
    %368 = vector.load %arg4[%c8_316, %c0_317, %c0_318] : memref<9x3x8xbf16, #tpu.memory_space<vmem>>, vector<1x3x8xbf16>
    %369 = vector.shape_cast %368 : vector<1x3x8xbf16> to vector<3x8xbf16>
    %cst_319 = arith.constant dense<0.000000e+00> : vector<3x440xf32>
    %370 = tpu.matmul %369, %367, %cst_319 {dimension_numbers = #tpu.dot_dimension_numbers<[1], [0], [0], [1], [0, 0, 1, 1], [], []>} : vector<3x8xbf16>, vector<8x440xbf16>, vector<3x440xf32> -> vector<3x440xf32>
    %371 = arith.addf %366, %370 : vector<3x440xf32>
    %c0_320 = arith.constant 0 : index
    %c0_321 = arith.constant 0 : index
    %372 = vector.load %arg7[%c0_320, %c0_321] : memref<3x1xf32, #tpu.memory_space<vmem>>, vector<3x1xf32>
    %373 = vector.broadcast %372 : vector<3x1xf32> to vector<3x440xf32>
    %374 = arith.addf %371, %373 : vector<3x440xf32>
    %cst_322 = arith.constant 0.000000e+00 : f32
    %375 = vector.broadcast %cst_322 : f32 to vector<3x440xf32>
    %376 = arith.maximumf %374, %375 : vector<3x440xf32>
    %c0_323 = arith.constant 0 : index
    %c0_324 = arith.constant 0 : index
    %377 = vector.load %arg8[%c0_323, %c0_324] : memref<3x1xf32, #tpu.memory_space<vmem>>, vector<3x1xf32>
    %378 = vector.broadcast %377 : vector<3x1xf32> to vector<3x440xf32>
    %379 = arith.mulf %376, %378 : vector<3x440xf32>
    %c0_325 = arith.constant 0 : index
    %c0_326 = arith.constant 0 : index
    %380 = vector.load %arg9[%c0_325, %c0_326] : memref<3x1xf32, #tpu.memory_space<vmem>>, vector<3x1xf32>
    %381 = vector.broadcast %380 : vector<3x1xf32> to vector<3x440xf32>
    %382 = arith.addf %379, %381 : vector<3x440xf32>
    %383 = vector.extract_strided_slice %382 {offsets = [0, 0], sizes = [3, 20], strides = [1, 1]} : vector<3x440xf32> to vector<3x20xf32>
    %c0_327 = arith.constant 0 : index
    %c0_328 = arith.constant 0 : index
    %c0_329 = arith.constant 0 : index
    %384 = vector.load %arg10[%c0_327, %c0_328, %c0_329] : memref<1x3x400xf32, #tpu.memory_space<vmem>>, vector<1x3x20xf32>
    %385 = vector.shape_cast %384 : vector<1x3x20xf32> to vector<3x20xf32>
    %386 = vector.shape_cast %383 : vector<3x20xf32> to vector<1x3x20xf32>
    tpu.vector_store %arg10[%c0_327, %c0_328, %c0_329], %386 {strides = array<i32>} : memref<1x3x400xf32, #tpu.memory_space<vmem>>, vector<1x3x20xf32>,
    %387 = vector.extract_strided_slice %382 {offsets = [0, 22], sizes = [3, 20], strides = [1, 1]} : vector<3x440xf32> to vector<3x20xf32>
    %c0_330 = arith.constant 0 : index
    %c0_331 = arith.constant 0 : index
    %c20_332 = arith.constant 20 : index
    %388 = vector.load %arg10[%c0_330, %c0_331, %c20_332] : memref<1x3x400xf32, #tpu.memory_space<vmem>>, vector<1x3x20xf32>
    %389 = vector.shape_cast %388 : vector<1x3x20xf32> to vector<3x20xf32>
    %390 = vector.shape_cast %387 : vector<3x20xf32> to vector<1x3x20xf32>
    tpu.vector_store %arg10[%c0_330, %c0_331, %c20_332], %390 {strides = array<i32>} : memref<1x3x400xf32, #tpu.memory_space<vmem>>, vector<1x3x20xf32>,
    %391 = vector.extract_strided_slice %382 {offsets = [0, 44], sizes = [3, 20], strides = [1, 1]} : vector<3x440xf32> to vector<3x20xf32>
    %c0_333 = arith.constant 0 : index
    %c0_334 = arith.constant 0 : index
    %c40 = arith.constant 40 : index
    %392 = vector.load %arg10[%c0_333, %c0_334, %c40] : memref<1x3x400xf32, #tpu.memory_space<vmem>>, vector<1x3x20xf32>
    %393 = vector.shape_cast %392 : vector<1x3x20xf32> to vector<3x20xf32>
    %394 = vector.shape_cast %391 : vector<3x20xf32> to vector<1x3x20xf32>
    tpu.vector_store %arg10[%c0_333, %c0_334, %c40], %394 {strides = array<i32>} : memref<1x3x400xf32, #tpu.memory_space<vmem>>, vector<1x3x20xf32>,
    %395 = vector.extract_strided_slice %382 {offsets = [0, 66], sizes = [3, 20], strides = [1, 1]} : vector<3x440xf32> to vector<3x20xf32>
    %c0_335 = arith.constant 0 : index
    %c0_336 = arith.constant 0 : index
    %c60 = arith.constant 60 : index
    %396 = vector.load %arg10[%c0_335, %c0_336, %c60] : memref<1x3x400xf32, #tpu.memory_space<vmem>>, vector<1x3x20xf32>
    %397 = vector.shape_cast %396 : vector<1x3x20xf32> to vector<3x20xf32>
    %398 = vector.shape_cast %395 : vector<3x20xf32> to vector<1x3x20xf32>
    tpu.vector_store %arg10[%c0_335, %c0_336, %c60], %398 {strides = array<i32>} : memref<1x3x400xf32, #tpu.memory_space<vmem>>, vector<1x3x20xf32>,
    %399 = vector.extract_strided_slice %382 {offsets = [0, 88], sizes = [3, 20], strides = [1, 1]} : vector<3x440xf32> to vector<3x20xf32>
    %c0_337 = arith.constant 0 : index
    %c0_338 = arith.constant 0 : index
    %c80_339 = arith.constant 80 : index
    %400 = vector.load %arg10[%c0_337, %c0_338, %c80_339] : memref<1x3x400xf32, #tpu.memory_space<vmem>>, vector<1x3x20xf32>
    %401 = vector.shape_cast %400 : vector<1x3x20xf32> to vector<3x20xf32>
    %402 = vector.shape_cast %399 : vector<3x20xf32> to vector<1x3x20xf32>
    tpu.vector_store %arg10[%c0_337, %c0_338, %c80_339], %402 {strides = array<i32>} : memref<1x3x400xf32, #tpu.memory_space<vmem>>, vector<1x3x20xf32>,
    %403 = vector.extract_strided_slice %382 {offsets = [0, 110], sizes = [3, 20], strides = [1, 1]} : vector<3x440xf32> to vector<3x20xf32>
    %c0_340 = arith.constant 0 : index
    %c0_341 = arith.constant 0 : index
    %c100_342 = arith.constant 100 : index
    %404 = vector.load %arg10[%c0_340, %c0_341, %c100_342] : memref<1x3x400xf32, #tpu.memory_space<vmem>>, vector<1x3x20xf32>
    %405 = vector.shape_cast %404 : vector<1x3x20xf32> to vector<3x20xf32>
    %406 = vector.shape_cast %403 : vector<3x20xf32> to vector<1x3x20xf32>
    tpu.vector_store %arg10[%c0_340, %c0_341, %c100_342], %406 {strides = array<i32>} : memref<1x3x400xf32, #tpu.memory_space<vmem>>, vector<1x3x20xf32>,
    %407 = vector.extract_strided_slice %382 {offsets = [0, 132], sizes = [3, 20], strides = [1, 1]} : vector<3x440xf32> to vector<3x20xf32>
    %c0_343 = arith.constant 0 : index
    %c0_344 = arith.constant 0 : index
    %c120 = arith.constant 120 : index
    %408 = vector.load %arg10[%c0_343, %c0_344, %c120] : memref<1x3x400xf32, #tpu.memory_space<vmem>>, vector<1x3x20xf32>
    %409 = vector.shape_cast %408 : vector<1x3x20xf32> to vector<3x20xf32>
    %410 = vector.shape_cast %407 : vector<3x20xf32> to vector<1x3x20xf32>
    tpu.vector_store %arg10[%c0_343, %c0_344, %c120], %410 {strides = array<i32>} : memref<1x3x400xf32, #tpu.memory_space<vmem>>, vector<1x3x20xf32>,
    %411 = vector.extract_strided_slice %382 {offsets = [0, 154], sizes = [3, 20], strides = [1, 1]} : vector<3x440xf32> to vector<3x20xf32>
    %c0_345 = arith.constant 0 : index
    %c0_346 = arith.constant 0 : index
    %c140 = arith.constant 140 : index
    %412 = vector.load %arg10[%c0_345, %c0_346, %c140] : memref<1x3x400xf32, #tpu.memory_space<vmem>>, vector<1x3x20xf32>
    %413 = vector.shape_cast %412 : vector<1x3x20xf32> to vector<3x20xf32>
    %414 = vector.shape_cast %411 : vector<3x20xf32> to vector<1x3x20xf32>
    tpu.vector_store %arg10[%c0_345, %c0_346, %c140], %414 {strides = array<i32>} : memref<1x3x400xf32, #tpu.memory_space<vmem>>, vector<1x3x20xf32>,
    %415 = vector.extract_strided_slice %382 {offsets = [0, 176], sizes = [3, 20], strides = [1, 1]} : vector<3x440xf32> to vector<3x20xf32>
    %c0_347 = arith.constant 0 : index
    %c0_348 = arith.constant 0 : index
    %c160_349 = arith.constant 160 : index
    %416 = vector.load %arg10[%c0_347, %c0_348, %c160_349] : memref<1x3x400xf32, #tpu.memory_space<vmem>>, vector<1x3x20xf32>
    %417 = vector.shape_cast %416 : vector<1x3x20xf32> to vector<3x20xf32>
    %418 = vector.shape_cast %415 : vector<3x20xf32> to vector<1x3x20xf32>
    tpu.vector_store %arg10[%c0_347, %c0_348, %c160_349], %418 {strides = array<i32>} : memref<1x3x400xf32, #tpu.memory_space<vmem>>, vector<1x3x20xf32>,
    %419 = vector.extract_strided_slice %382 {offsets = [0, 198], sizes = [3, 20], strides = [1, 1]} : vector<3x440xf32> to vector<3x20xf32>
    %c0_350 = arith.constant 0 : index
    %c0_351 = arith.constant 0 : index
    %c180 = arith.constant 180 : index
    %420 = vector.load %arg10[%c0_350, %c0_351, %c180] : memref<1x3x400xf32, #tpu.memory_space<vmem>>, vector<1x3x20xf32>
    %421 = vector.shape_cast %420 : vector<1x3x20xf32> to vector<3x20xf32>
    %422 = vector.shape_cast %419 : vector<3x20xf32> to vector<1x3x20xf32>
    tpu.vector_store %arg10[%c0_350, %c0_351, %c180], %422 {strides = array<i32>} : memref<1x3x400xf32, #tpu.memory_space<vmem>>, vector<1x3x20xf32>,
    %423 = vector.extract_strided_slice %382 {offsets = [0, 220], sizes = [3, 20], strides = [1, 1]} : vector<3x440xf32> to vector<3x20xf32>
    %c0_352 = arith.constant 0 : index
    %c0_353 = arith.constant 0 : index
    %c200 = arith.constant 200 : index
    %424 = vector.load %arg10[%c0_352, %c0_353, %c200] : memref<1x3x400xf32, #tpu.memory_space<vmem>>, vector<1x3x20xf32>
    %425 = vector.shape_cast %424 : vector<1x3x20xf32> to vector<3x20xf32>
    %426 = vector.shape_cast %423 : vector<3x20xf32> to vector<1x3x20xf32>
    tpu.vector_store %arg10[%c0_352, %c0_353, %c200], %426 {strides = array<i32>} : memref<1x3x400xf32, #tpu.memory_space<vmem>>, vector<1x3x20xf32>,
    %427 = vector.extract_strided_slice %382 {offsets = [0, 242], sizes = [3, 20], strides = [1, 1]} : vector<3x440xf32> to vector<3x20xf32>
    %c0_354 = arith.constant 0 : index
    %c0_355 = arith.constant 0 : index
    %c220_356 = arith.constant 220 : index
    %428 = vector.load %arg10[%c0_354, %c0_355, %c220_356] : memref<1x3x400xf32, #tpu.memory_space<vmem>>, vector<1x3x20xf32>
    %429 = vector.shape_cast %428 : vector<1x3x20xf32> to vector<3x20xf32>
    %430 = vector.shape_cast %427 : vector<3x20xf32> to vector<1x3x20xf32>
    tpu.vector_store %arg10[%c0_354, %c0_355, %c220_356], %430 {strides = array<i32>} : memref<1x3x400xf32, #tpu.memory_space<vmem>>, vector<1x3x20xf32>,
    %431 = vector.extract_strided_slice %382 {offsets = [0, 264], sizes = [3, 20], strides = [1, 1]} : vector<3x440xf32> to vector<3x20xf32>
    %c0_357 = arith.constant 0 : index
    %c0_358 = arith.constant 0 : index
    %c240_359 = arith.constant 240 : index
    %432 = vector.load %arg10[%c0_357, %c0_358, %c240_359] : memref<1x3x400xf32, #tpu.memory_space<vmem>>, vector<1x3x20xf32>
    %433 = vector.shape_cast %432 : vector<1x3x20xf32> to vector<3x20xf32>
    %434 = vector.shape_cast %431 : vector<3x20xf32> to vector<1x3x20xf32>
    tpu.vector_store %arg10[%c0_357, %c0_358, %c240_359], %434 {strides = array<i32>} : memref<1x3x400xf32, #tpu.memory_space<vmem>>, vector<1x3x20xf32>,
    %435 = vector.extract_strided_slice %382 {offsets = [0, 286], sizes = [3, 20], strides = [1, 1]} : vector<3x440xf32> to vector<3x20xf32>
    %c0_360 = arith.constant 0 : index
    %c0_361 = arith.constant 0 : index
    %c260 = arith.constant 260 : index
    %436 = vector.load %arg10[%c0_360, %c0_361, %c260] : memref<1x3x400xf32, #tpu.memory_space<vmem>>, vector<1x3x20xf32>
    %437 = vector.shape_cast %436 : vector<1x3x20xf32> to vector<3x20xf32>
    %438 = vector.shape_cast %435 : vector<3x20xf32> to vector<1x3x20xf32>
    tpu.vector_store %arg10[%c0_360, %c0_361, %c260], %438 {strides = array<i32>} : memref<1x3x400xf32, #tpu.memory_space<vmem>>, vector<1x3x20xf32>,
    %439 = vector.extract_strided_slice %382 {offsets = [0, 308], sizes = [3, 20], strides = [1, 1]} : vector<3x440xf32> to vector<3x20xf32>
    %c0_362 = arith.constant 0 : index
    %c0_363 = arith.constant 0 : index
    %c280 = arith.constant 280 : index
    %440 = vector.load %arg10[%c0_362, %c0_363, %c280] : memref<1x3x400xf32, #tpu.memory_space<vmem>>, vector<1x3x20xf32>
    %441 = vector.shape_cast %440 : vector<1x3x20xf32> to vector<3x20xf32>
    %442 = vector.shape_cast %439 : vector<3x20xf32> to vector<1x3x20xf32>
    tpu.vector_store %arg10[%c0_362, %c0_363, %c280], %442 {strides = array<i32>} : memref<1x3x400xf32, #tpu.memory_space<vmem>>, vector<1x3x20xf32>,
    %443 = vector.extract_strided_slice %382 {offsets = [0, 330], sizes = [3, 20], strides = [1, 1]} : vector<3x440xf32> to vector<3x20xf32>
    %c0_364 = arith.constant 0 : index
    %c0_365 = arith.constant 0 : index
    %c300 = arith.constant 300 : index
    %444 = vector.load %arg10[%c0_364, %c0_365, %c300] : memref<1x3x400xf32, #tpu.memory_space<vmem>>, vector<1x3x20xf32>
    %445 = vector.shape_cast %444 : vector<1x3x20xf32> to vector<3x20xf32>
    %446 = vector.shape_cast %443 : vector<3x20xf32> to vector<1x3x20xf32>
    tpu.vector_store %arg10[%c0_364, %c0_365, %c300], %446 {strides = array<i32>} : memref<1x3x400xf32, #tpu.memory_space<vmem>>, vector<1x3x20xf32>,
    %447 = vector.extract_strided_slice %382 {offsets = [0, 352], sizes = [3, 20], strides = [1, 1]} : vector<3x440xf32> to vector<3x20xf32>
    %c0_366 = arith.constant 0 : index
    %c0_367 = arith.constant 0 : index
    %c320 = arith.constant 320 : index
    %448 = vector.load %arg10[%c0_366, %c0_367, %c320] : memref<1x3x400xf32, #tpu.memory_space<vmem>>, vector<1x3x20xf32>
    %449 = vector.shape_cast %448 : vector<1x3x20xf32> to vector<3x20xf32>
    %450 = vector.shape_cast %447 : vector<3x20xf32> to vector<1x3x20xf32>
    tpu.vector_store %arg10[%c0_366, %c0_367, %c320], %450 {strides = array<i32>} : memref<1x3x400xf32, #tpu.memory_space<vmem>>, vector<1x3x20xf32>,
    %451 = vector.extract_strided_slice %382 {offsets = [0, 374], sizes = [3, 20], strides = [1, 1]} : vector<3x440xf32> to vector<3x20xf32>
    %c0_368 = arith.constant 0 : index
    %c0_369 = arith.constant 0 : index
    %c340_370 = arith.constant 340 : index
    %452 = vector.load %arg10[%c0_368, %c0_369, %c340_370] : memref<1x3x400xf32, #tpu.memory_space<vmem>>, vector<1x3x20xf32>
    %453 = vector.shape_cast %452 : vector<1x3x20xf32> to vector<3x20xf32>
    %454 = vector.shape_cast %451 : vector<3x20xf32> to vector<1x3x20xf32>
    tpu.vector_store %arg10[%c0_368, %c0_369, %c340_370], %454 {strides = array<i32>} : memref<1x3x400xf32, #tpu.memory_space<vmem>>, vector<1x3x20xf32>,
    %455 = vector.extract_strided_slice %382 {offsets = [0, 396], sizes = [3, 20], strides = [1, 1]} : vector<3x440xf32> to vector<3x20xf32>
    %c0_371 = arith.constant 0 : index
    %c0_372 = arith.constant 0 : index
    %c360 = arith.constant 360 : index
    %456 = vector.load %arg10[%c0_371, %c0_372, %c360] : memref<1x3x400xf32, #tpu.memory_space<vmem>>, vector<1x3x20xf32>
    %457 = vector.shape_cast %456 : vector<1x3x20xf32> to vector<3x20xf32>
    %458 = vector.shape_cast %455 : vector<3x20xf32> to vector<1x3x20xf32>
    tpu.vector_store %arg10[%c0_371, %c0_372, %c360], %458 {strides = array<i32>} : memref<1x3x400xf32, #tpu.memory_space<vmem>>, vector<1x3x20xf32>,
    %459 = vector.extract_strided_slice %382 {offsets = [0, 418], sizes = [3, 20], strides = [1, 1]} : vector<3x440xf32> to vector<3x20xf32>
    %c0_373 = arith.constant 0 : index
    %c0_374 = arith.constant 0 : index
    %c380 = arith.constant 380 : index
    %460 = vector.load %arg10[%c0_373, %c0_374, %c380] : memref<1x3x400xf32, #tpu.memory_space<vmem>>, vector<1x3x20xf32>
    %461 = vector.shape_cast %460 : vector<1x3x20xf32> to vector<3x20xf32>
    %462 = vector.shape_cast %459 : vector<3x20xf32> to vector<1x3x20xf32>
    tpu.vector_store %arg10[%c0_373, %c0_374, %c380], %462 {strides = array<i32>} : memref<1x3x400xf32, #tpu.memory_space<vmem>>, vector<1x3x20xf32>,
    return
  }
  func.func @transform_0(%arg0: i32) -> (i32, i32, i32) {
    %c0_i32 = arith.constant 0 : i32
    %c0_i32_0 = arith.constant 0 : i32
    %c0_i32_1 = arith.constant 0 : i32
    return %arg0, %c0_i32, %c0_i32_0 : i32, i32, i32
  }
  func.func @transform_1(%arg0: i32) -> (i32, i32, i32) {
    %c0_i32 = arith.constant 0 : i32
    %c0_i32_0 = arith.constant 0 : i32
    %c0_i32_1 = arith.constant 0 : i32
    %c0_i32_2 = arith.constant 0 : i32
    return %c0_i32, %c0_i32_0, %c0_i32_1 : i32, i32, i32
  }
  func.func @transform_2(%arg0: i32) -> (i32, i32, i32) {
    %c0_i32 = arith.constant 0 : i32
    %c0_i32_0 = arith.constant 0 : i32
    %c0_i32_1 = arith.constant 0 : i32
    %c0_i32_2 = arith.constant 0 : i32
    return %c0_i32, %c0_i32_0, %c0_i32_1 : i32, i32, i32
  }
  func.func @transform_3(%arg0: i32) -> (i32, i32, i32) {
    %c0_i32 = arith.constant 0 : i32
    %c0_i32_0 = arith.constant 0 : i32
    %c0_i32_1 = arith.constant 0 : i32
    %c0_i32_2 = arith.constant 0 : i32
    return %c0_i32, %c0_i32_0, %c0_i32_1 : i32, i32, i32
  }
  func.func @transform_4(%arg0: i32) -> (i32, i32) {
    %c0_i32 = arith.constant 0 : i32
    %c0_i32_0 = arith.constant 0 : i32
    %c0_i32_1 = arith.constant 0 : i32
    return %c0_i32, %c0_i32_0 : i32, i32
  }
  func.func @transform_5(%arg0: i32) -> (i32, i32) {
    %c0_i32 = arith.constant 0 : i32
    %c0_i32_0 = arith.constant 0 : i32
    %c0_i32_1 = arith.constant 0 : i32
    return %c0_i32, %c0_i32_0 : i32, i32
  }
  func.func @transform_6(%arg0: i32) -> (i32, i32) {
    %c0_i32 = arith.constant 0 : i32
    %c0_i32_0 = arith.constant 0 : i32
    %c0_i32_1 = arith.constant 0 : i32
    return %c0_i32, %c0_i32_0 : i32, i32
  }
  func.func @transform_7(%arg0: i32) -> (i32, i32) {
    %c0_i32 = arith.constant 0 : i32
    %c0_i32_0 = arith.constant 0 : i32
    %c0_i32_1 = arith.constant 0 : i32
    return %c0_i32, %c0_i32_0 : i32, i32
  }
  func.func @transform_8(%arg0: i32) -> (i32, i32) {
    %c0_i32 = arith.constant 0 : i32
    %c0_i32_0 = arith.constant 0 : i32
    %c0_i32_1 = arith.constant 0 : i32
    return %c0_i32, %c0_i32_0 : i32, i32
  }
  func.func @transform_9(%arg0: i32) -> (i32, i32, i32) {
    %c0_i32 = arith.constant 0 : i32
    %c0_i32_0 = arith.constant 0 : i32
    %c0_i32_1 = arith.constant 0 : i32
    return %arg0, %c0_i32, %c0_i32_0 : i32, i32, i32
  }
}

</mosaic_0001>

<llo_original>
// kernel: decoder_forward.1
$region0: #{decoder_forward.1}
  #allocation0 [shape = 'u32[]', space=smem, size = 0x4, offset = 0x4, fixed_abs, tag = 'smem constant byte address 0x4 - core index']
  #allocation1 [shape = 'u32[144,128]{1,0:T(1,128)}', space=vmem, size = 0x12000, scoped, tag = 'internal scratch']
  #allocation2 [shape = 'bf16[3,342]{1,0:T(4,128)(2,1)}', space=vmem, size = 0xc00, scoped, tag = 'scratch operand']
  #allocation3 [shape = 'bf16[16,600]{1,0:T(16,128)(2,1)}', space=vmem, size = 0x5000, scoped, tag = 'scratch operand']
  #allocation4 [shape = 'bf16[8,506]{1,0:T(8,128)(2,1)}', space=vmem, size = 0x2000, scoped, tag = 'scratch operand']
  %s0 = inlined_call_operand.vmem [shape: f32[2,3,256], index: 0, kind: input, shape index: {}]
  %s1 = inlined_call_operand.vmem [shape: bf16[9,16,3], index: 1, kind: input, shape index: {}]
  %s2 = inlined_call_operand.vmem [shape: bf16[25,8,16], index: 2, kind: input, shape index: {}]
  %s3 = inlined_call_operand.vmem [shape: bf16[9,3,8], index: 3, kind: input, shape index: {}]
  %s4 = inlined_call_operand.vmem [shape: f32[16,1], index: 4, kind: input, shape index: {}]
  %s5 = inlined_call_operand.vmem [shape: f32[8,1], index: 5, kind: input, shape index: {}]
  %s6 = inlined_call_operand.vmem [shape: f32[3,1], index: 6, kind: input, shape index: {}]
  %s7 = inlined_call_operand.vmem [shape: f32[3,1], index: 7, kind: input, shape index: {}]
  %s8 = inlined_call_operand.vmem [shape: f32[3,1], index: 8, kind: input, shape index: {}]
  %s9 = inlined_call_operand.vmem [shape: f32[2,3,400], index: 9, kind: output, shape index: {}]
  %s10 = sld [smem:[#allocation0]]
  $region69: #{decoder_forward.1} parent=0
    _
  %s12 = ssub.s32 1, %s10
  %s13 = scalar_select 0, %s12, %s10
  loop: start=0, step=1, limit=4
  $region2: #{decoder_forward.1} parent=0 // loop_pre_header
    _
  $region3: #{decoder_forward.1} parent=0 // loop_header
    %s15 = sphi 0, %s19
    %p16 = scmp.ge.s32.totalorder %s15, 4
    %s25 = sphi 0, %s27
    %s28 = sphi 0, %s25
    %s29 = sphi 0, %s28
    %s45 = sphi 0, %s29
    %s49 = sphi 0, %s49
    %s51 = sphi 0, %s49
    %s52 = sphi 0, %s51
    %s66 = sphi 0, %s52
    %s70 = sphi 0, %s70
    %s72 = sphi 0, %s70
    %s73 = sphi 0, %s72
    %s87 = sphi 0, %s73
    %s91 = sphi 0, %s91
    %s93 = sphi 0, %s91
    %s94 = sphi 0, %s93
    %s108 = sphi 0, %s94
    %s112 = sphi 0, %s112
    %s114 = sphi 0, %s112
    %s115 = sphi 0, %s114
    %s129 = sphi 0, %s115
    %s133 = sphi 0, %s133
    %s135 = sphi 0, %s133
    %s136 = sphi 0, %s135
    %s150 = sphi 0, %s136
    %s154 = sphi 0, %s154
    %s156 = sphi 0, %s154
    %s157 = sphi 0, %s156
    %s171 = sphi 0, %s157
    %s175 = sphi 0, %s175
    %s177 = sphi 0, %s175
    %s178 = sphi 0, %s177
    %s192 = sphi 0, %s178
    %s196 = sphi 0, %s196
    %s198 = sphi 0, %s196
    %s199 = sphi 0, %s198
    %s213 = sphi 0, %s199
    %s219 = sphi 0, %s221
    %s222 = sphi 0, %s219
    %s223 = sphi 0, %s222
    %s239 = sphi 0, %s223
  $region4: #{decoder_forward.1} parent=0 // loop_header_branch
    %18 = sbr.rel (%p16) target = $region8
  $region5: #{decoder_forward.1} parent=0 // loop_body
    %s20 = ssub.s32 %s15, 1
    %s21 = ssub.s32 %s15, 2
    %s22 = sadd.s32 %s15, 1
    %s23 = ssub.s32 %s15, %s22
    %p24 = scmp.eq.s32.totalorder %s23, 0
    %s26 = sadd.s32 %s25, 1
    %s27 = scalar_select %p24, %s25, %s26
    %p30 = pneg %p24
    %p31 = scmp.eq.s32.totalorder %s15, 1
    %p32 = por %p30, %p31
    %p33 = scmp.ne.s32.totalorder %s25, %s28
    %p34 = scmp.eq.s32.totalorder %s15, 0
    %p35 = por %p33, %p34
    %p36 = scmp.ne.s32.totalorder %s25, %s28
    %p37 = scmp.eq.s32.totalorder %s20, 1
    %p38 = por %p36, %p37
    %p39 = scmp.ne.s32.totalorder %s28, %s29
    %p40 = scmp.eq.s32.totalorder %s20, 0
    %p41 = por %p39, %p40
    %p42 = scmp.ne.s32.totalorder %s28, %s29
    %p43 = scmp.eq.s32.totalorder %s21, 1
    %p44 = por %p42, %p43
    %p46 = scmp.ne.s32.totalorder %s29, %s45
    %p47 = scmp.eq.s32.totalorder %s21, 0
    %p48 = por %p46, %p47
    %s50 = sadd.s32 %s49, 1
    %p53 = scmp.eq.s32.totalorder %s15, 1
    %p54 = scmp.ne.s32.totalorder %s49, %s51
    %p55 = scmp.eq.s32.totalorder %s15, 0
    %p56 = por %p54, %p55
    %p57 = scmp.ne.s32.totalorder %s49, %s51
    %p58 = scmp.eq.s32.totalorder %s20, 1
    %p59 = por %p57, %p58
    %p60 = scmp.ne.s32.totalorder %s51, %s52
    %p61 = scmp.eq.s32.totalorder %s20, 0
    %p62 = por %p60, %p61
    %p63 = scmp.ne.s32.totalorder %s51, %s52
    %p64 = scmp.eq.s32.totalorder %s21, 1
    %p65 = por %p63, %p64
    %p67 = scmp.ne.s32.totalorder %s52, %s66
    %p68 = scmp.eq.s32.totalorder %s21, 0
    %p69 = por %p67, %p68
    %s71 = sadd.s32 %s70, 1
    %p74 = scmp.eq.s32.totalorder %s15, 1
    %p75 = scmp.ne.s32.totalorder %s70, %s72
    %p76 = scmp.eq.s32.totalorder %s15, 0
    %p77 = por %p75, %p76
    %p78 = scmp.ne.s32.totalorder %s70, %s72
    %p79 = scmp.eq.s32.totalorder %s20, 1
    %p80 = por %p78, %p79
    %p81 = scmp.ne.s32.totalorder %s72, %s73
    %p82 = scmp.eq.s32.totalorder %s20, 0
    %p83 = por %p81, %p82
    %p84 = scmp.ne.s32.totalorder %s72, %s73
    %p85 = scmp.eq.s32.totalorder %s21, 1
    %p86 = por %p84, %p85
    %p88 = scmp.ne.s32.totalorder %s73, %s87
    %p89 = scmp.eq.s32.totalorder %s21, 0
    %p90 = por %p88, %p89
    %s92 = sadd.s32 %s91, 1
    %p95 = scmp.eq.s32.totalorder %s15, 1
    %p96 = scmp.ne.s32.totalorder %s91, %s93
    %p97 = scmp.eq.s32.totalorder %s15, 0
    %p98 = por %p96, %p97
    %p99 = scmp.ne.s32.totalorder %s91, %s93
    %p100 = scmp.eq.s32.totalorder %s20, 1
    %p101 = por %p99, %p100
    %p102 = scmp.ne.s32.totalorder %s93, %s94
    %p103 = scmp.eq.s32.totalorder %s20, 0
    %p104 = por %p102, %p103
    %p105 = scmp.ne.s32.totalorder %s93, %s94
    %p106 = scmp.eq.s32.totalorder %s21, 1
    %p107 = por %p105, %p106
    %p109 = scmp.ne.s32.totalorder %s94, %s108
    %p110 = scmp.eq.s32.totalorder %s21, 0
    %p111 = por %p109, %p110
    %s113 = sadd.s32 %s112, 1
    %p116 = scmp.eq.s32.totalorder %s15, 1
    %p117 = scmp.ne.s32.totalorder %s112, %s114
    %p118 = scmp.eq.s32.totalorder %s15, 0
    %p119 = por %p117, %p118
    %p120 = scmp.ne.s32.totalorder %s112, %s114
    %p121 = scmp.eq.s32.totalorder %s20, 1
    %p122 = por %p120, %p121
    %p123 = scmp.ne.s32.totalorder %s114, %s115
    %p124 = scmp.eq.s32.totalorder %s20, 0
    %p125 = por %p123, %p124
    %p126 = scmp.ne.s32.totalorder %s114, %s115
    %p127 = scmp.eq.s32.totalorder %s21, 1
    %p128 = por %p126, %p127
    %p130 = scmp.ne.s32.totalorder %s115, %s129
    %p131 = scmp.eq.s32.totalorder %s21, 0
    %p132 = por %p130, %p131
    %s134 = sadd.s32 %s133, 1
    %p137 = scmp.eq.s32.totalorder %s15, 1
    %p138 = scmp.ne.s32.totalorder %s133, %s135
    %p139 = scmp.eq.s32.totalorder %s15, 0
    %p140 = por %p138, %p139
    %p141 = scmp.ne.s32.totalorder %s133, %s135
    %p142 = scmp.eq.s32.totalorder %s20, 1
    %p143 = por %p141, %p142
    %p144 = scmp.ne.s32.totalorder %s135, %s136
    %p145 = scmp.eq.s32.totalorder %s20, 0
    %p146 = por %p144, %p145
    %p147 = scmp.ne.s32.totalorder %s135, %s136
    %p148 = scmp.eq.s32.totalorder %s21, 1
    %p149 = por %p147, %p148
    %p151 = scmp.ne.s32.totalorder %s136, %s150
    %p152 = scmp.eq.s32.totalorder %s21, 0
    %p153 = por %p151, %p152
    %s155 = sadd.s32 %s154, 1
    %p158 = scmp.eq.s32.totalorder %s15, 1
    %p159 = scmp.ne.s32.totalorder %s154, %s156
    %p160 = scmp.eq.s32.totalorder %s15, 0
    %p161 = por %p159, %p160
    %p162 = scmp.ne.s32.totalorder %s154, %s156
    %p163 = scmp.eq.s32.totalorder %s20, 1
    %p164 = por %p162, %p163
    %p165 = scmp.ne.s32.totalorder %s156, %s157
    %p166 = scmp.eq.s32.totalorder %s20, 0
    %p167 = por %p165, %p166
    %p168 = scmp.ne.s32.totalorder %s156, %s157
    %p169 = scmp.eq.s32.totalorder %s21, 1
    %p170 = por %p168, %p169
    %p172 = scmp.ne.s32.totalorder %s157, %s171
    %p173 = scmp.eq.s32.totalorder %s21, 0
    %p174 = por %p172, %p173
    %s176 = sadd.s32 %s175, 1
    %p179 = scmp.eq.s32.totalorder %s15, 1
    %p180 = scmp.ne.s32.totalorder %s175, %s177
    %p181 = scmp.eq.s32.totalorder %s15, 0
    %p182 = por %p180, %p181
    %p183 = scmp.ne.s32.totalorder %s175, %s177
    %p184 = scmp.eq.s32.totalorder %s20, 1
    %p185 = por %p183, %p184
    %p186 = scmp.ne.s32.totalorder %s177, %s178
    %p187 = scmp.eq.s32.totalorder %s20, 0
    %p188 = por %p186, %p187
    %p189 = scmp.ne.s32.totalorder %s177, %s178
    %p190 = scmp.eq.s32.totalorder %s21, 1
    %p191 = por %p189, %p190
    %p193 = scmp.ne.s32.totalorder %s178, %s192
    %p194 = scmp.eq.s32.totalorder %s21, 0
    %p195 = por %p193, %p194
    %s197 = sadd.s32 %s196, 1
    %p200 = scmp.eq.s32.totalorder %s15, 1
    %p201 = scmp.ne.s32.totalorder %s196, %s198
    %p202 = scmp.eq.s32.totalorder %s15, 0
    %p203 = por %p201, %p202
    %p204 = scmp.ne.s32.totalorder %s196, %s198
    %p205 = scmp.eq.s32.totalorder %s20, 1
    %p206 = por %p204, %p205
    %p207 = scmp.ne.s32.totalorder %s198, %s199
    %p208 = scmp.eq.s32.totalorder %s20, 0
    %p209 = por %p207, %p208
    %p210 = scmp.ne.s32.totalorder %s198, %s199
    %p211 = scmp.eq.s32.totalorder %s21, 1
    %p212 = por %p210, %p211
    %p214 = scmp.ne.s32.totalorder %s199, %s213
    %p215 = scmp.eq.s32.totalorder %s21, 0
    %p216 = por %p214, %p215
    %s217 = ssub.s32 %s15, %s22
    %p218 = scmp.eq.s32.totalorder %s217, 0
    %s220 = sadd.s32 %s219, 1
    %s221 = scalar_select %p218, %s219, %s220
    %p224 = pneg %p218
    %p225 = scmp.eq.s32.totalorder %s15, 1
    %p226 = por %p224, %p225
    %p227 = scmp.ne.s32.totalorder %s219, %s222
    %p228 = scmp.eq.s32.totalorder %s15, 0
    %p229 = por %p227, %p228
    %p230 = scmp.ne.s32.totalorder %s219, %s222
    %p231 = scmp.eq.s32.totalorder %s20, 1
    %p232 = por %p230, %p231
    %p233 = scmp.ne.s32.totalorder %s222, %s223
    %p234 = scmp.eq.s32.totalorder %s20, 0
    %p235 = por %p233, %p234
    %p236 = scmp.ne.s32.totalorder %s222, %s223
    %p237 = scmp.eq.s32.totalorder %s21, 1
    %p238 = por %p236, %p237
    %p240 = scmp.ne.s32.totalorder %s223, %s239
    %p241 = scmp.eq.s32.totalorder %s21, 0
    %p242 = por %p240, %p241
    %p243 = scmp.le.s32.totalorder 1, %s15
    %p244 = scmp.lt.s32.totalorder %s15, 3
    %p245 = pnand %p243, %p244
    %p246 = pneg %p245
    // Predicated region
    $region9: #{decoder_forward.1} parent=5 // pred_check
      _
    $region10: #{decoder_forward.1} parent=5 // pred_check_branch
      %248 = sbr.rel (%p245) target = $region12
    $region11: #{decoder_forward.1} parent=5 // pred_region
      %s249 = ssub.s32 %s15, 1
      // Predicated region
      $region13: #{decoder_forward.1} parent=11 // pred_check
        %p250 = pneg %p62
      $region14: #{decoder_forward.1} parent=11 // pred_check_branch
        %252 = sbr.rel (%p250) target = $region16
      $region15: #{decoder_forward.1} parent=11 // pred_region
        _
      $region16: #{decoder_forward.1} parent=11 // pred_fallthru
        _
      // Predicated region
      $region17: #{decoder_forward.1} parent=11 // pred_check
        %p253 = pneg %p83
      $region18: #{decoder_forward.1} parent=11 // pred_check_branch
        %255 = sbr.rel (%p253) target = $region20
      $region19: #{decoder_forward.1} parent=11 // pred_region
        _
      $region20: #{decoder_forward.1} parent=11 // pred_fallthru
        _
      // Predicated region
      $region21: #{decoder_forward.1} parent=11 // pred_check
        %p256 = pneg %p104
      $region22: #{decoder_forward.1} parent=11 // pred_check_branch
        %258 = sbr.rel (%p256) target = $region24
      $region23: #{decoder_forward.1} parent=11 // pred_region
        _
      $region24: #{decoder_forward.1} parent=11 // pred_fallthru
        _
      // Predicated region
      $region25: #{decoder_forward.1} parent=11 // pred_check
        %p259 = pneg %p125
      $region26: #{decoder_forward.1} parent=11 // pred_check_branch
        %261 = sbr.rel (%p259) target = $region28
      $region27: #{decoder_forward.1} parent=11 // pred_region
        _
      $region28: #{decoder_forward.1} parent=11 // pred_fallthru
        _
      // Predicated region
      $region29: #{decoder_forward.1} parent=11 // pred_check
        %p262 = pneg %p146
      $region30: #{decoder_forward.1} parent=11 // pred_check_branch
        %264 = sbr.rel (%p262) target = $region32
      $region31: #{decoder_forward.1} parent=11 // pred_region
        _
      $region32: #{decoder_forward.1} parent=11 // pred_fallthru
        _
      // Predicated region
      $region33: #{decoder_forward.1} parent=11 // pred_check
        %p265 = pneg %p167
      $region34: #{decoder_forward.1} parent=11 // pred_check_branch
        %267 = sbr.rel (%p265) target = $region36
      $region35: #{decoder_forward.1} parent=11 // pred_region
        _
      $region36: #{decoder_forward.1} parent=11 // pred_fallthru
        _
      // Predicated region
      $region37: #{decoder_forward.1} parent=11 // pred_check
        %p268 = pneg %p188
      $region38: #{decoder_forward.1} parent=11 // pred_check_branch
        %270 = sbr.rel (%p268) target = $region40
      $region39: #{decoder_forward.1} parent=11 // pred_region
        _
      $region40: #{decoder_forward.1} parent=11 // pred_fallthru
        _
      // Predicated region
      $region41: #{decoder_forward.1} parent=11 // pred_check
        %p271 = pneg %p209
      $region42: #{decoder_forward.1} parent=11 // pred_check_branch
        %273 = sbr.rel (%p271) target = $region44
      $region43: #{decoder_forward.1} parent=11 // pred_region
        _
      $region44: #{decoder_forward.1} parent=11 // pred_fallthru
        _
    $region12: #{decoder_forward.1} parent=5 // pred_fallthru
      _
    %p274 = scmp.lt.s32.totalorder %s15, 2
    // Predicated region
    $region45: #{decoder_forward.1} parent=5 // pred_check
      %p275 = pneg %p274
    $region46: #{decoder_forward.1} parent=5 // pred_check_branch
      %277 = sbr.rel (%p275) target = $region48
    $region47: #{decoder_forward.1} parent=5 // pred_region
      // Predicated region
      $region49: #{decoder_forward.1} parent=47 // pred_check
        %p278 = pneg %p35
      $region50: #{decoder_forward.1} parent=47 // pred_check_branch
        %280 = sbr.rel (%p278) target = $region52
      $region51: #{decoder_forward.1} parent=47 // pred_region
        %p281 = scmp.lt.s32.totalorder %s15, 1
        %s282 = scalar_select %p281, %s15, 1
        %s283 = smul.addr %s282, 2
        %s284 = smul.addr %s283, 4
        %s285 = scalar_lea.vmem %s0, %s284
      $region52: #{decoder_forward.1} parent=47 // pred_fallthru
        _
    $region48: #{decoder_forward.1} parent=5 // pred_fallthru
      _
    %p286 = scmp.le.s32.totalorder 1, %s15
    %p287 = scmp.lt.s32.totalorder %s15, 3
    %p288 = pnand %p286, %p287
    %p289 = pneg %p288
    // Predicated region
    $region53: #{decoder_forward.1} parent=5 // pred_check
      _
    $region54: #{decoder_forward.1} parent=5 // pred_check_branch
      %291 = sbr.rel (%p288) target = $region56
    $region55: #{decoder_forward.1} parent=5 // pred_region
      %s292 = ssub.s32 %s15, 1
      %p293 = scmp.lt.s32.totalorder %s20, 1
      %s294 = scalar_select %p293, %s20, 1
      %s295 = smul.addr %s294, 2
      %s296 = smul.addr %s295, 4
      %s297 = scalar_lea.vmem %s0, %s296
      %p298 = pneg %p41
      %p299 = pneg %p38
      %p300 = pneg %p62
      %p301 = pneg %p59
      %p302 = pneg %p83
      %p303 = pneg %p80
      %p304 = pneg %p104
      %p305 = pneg %p101
      %p306 = pneg %p125
      %p307 = pneg %p122
      %p308 = pneg %p146
      %p309 = pneg %p143
      %p310 = pneg %p167
      %p311 = pneg %p164
      %p312 = pneg %p188
      %p313 = pneg %p185
      %p314 = pneg %p209
      %p315 = pneg %p206
      %p316 = pneg %p235
      %p317 = pneg %p232
      %p318 = scmp.lt.s32.totalorder %s20, 1
      %s319 = scalar_select %p318, %s20, 1
      %s320 = smul.addr %s319, 4
      %s321 = smul.addr %s320, 4
      %s322 = scalar_lea.vmem %s9, %s321
      %p323 = scmp.lt.s32.totalorder %s20, 1
      %s324 = scalar_select %p323, %s20, 1
      %s325 = smul.addr %s324, 2
      %s326 = smul.addr %s325, 4
      %s327 = scalar_lea.vmem %s0, %s326
      %p328 = scmp.lt.s32.totalorder %s20, 1
      %s329 = scalar_select %p328, %s20, 1
      %s330 = smul.addr %s329, 4
      %s331 = smul.addr %s330, 4
      %s332 = scalar_lea.vmem %s9, %s331
      %vm334 = vcmask 1041408
      %vm335 = vsmask.f32 1280
      %vm336 = vmand %vm334, %vm335
      %vm337 = vcmask 1043458
      %vm338 = vsmask.f32 3328
      %vm339 = vmand %vm337, %vm338
      %vm340 = vmor %vm339, %vm336
      %vm341 = vcmask 701444
      %vm342 = vsmask.f32 5376
      %vm343 = vmand %vm341, %vm342
      %vm344 = vmor %vm343, %vm340
      %v345 = vld [vmem:[#allocation2] sm:$0x3f]
      %v346 = vsel %vm344, 0, %v345
      %347 = vst [vmem:[#allocation2] sm:$0x3f] %v346
      %348 = vst [vmem:[#allocation3] sm:$0xff] 0
      %349 = vst [vmem:[#allocation3 + $0x8] sm:$0xff] 0
      %350 = vst [vmem:[#allocation3 + $0x10] sm:$0xff] 0
      %351 = vst [vmem:[#allocation3 + $0x18] sm:$0xff] 0
      %vm352 = vcmask 719872
      %353 = vst.msk [vmem:[#allocation3 + $0x20] sm:$0xff] %vm352, 0
      %354 = vst [vmem:[#allocation4] sm:$0xff] 0
      %vm355 = vcmask 1043456
      %vm356 = vcmask 998404
      %vm357 = vmor %vm356, %vm355
      %358 = vst.msk [vmem:[#allocation4 + $0x8] sm:$0xff] %vm357, 0
      %v359 = vld [vmem:[%s327] sm:$0x7]
      %v360 = vpack.c.bf16 %v359, %v359
      %v363 = vunpack.c.l.s4 1983009808
      %v364 = vunpack.c.0.s8 %v363
      %v365 = vlaneseq
      %v366 = vshrl.u32 %v365, 7
      %v367 = vsub.s32 %v364, %v366
      %v368 = vrot.slane %v360, %v367
      %369 = vrot.lane.b32.xlu0 %v368, 19
      %v370 = vpop.permute.xlu0 %369
      %vm372 = vcmask 279704
      %vm373 = vmand %vm372, %vm335
      %v374 = vld [vmem:[#allocation2] sm:$0x3]
      %v375 = vsel %vm373, %v370, %v374
      %376 = vst [vmem:[#allocation2] sm:$0x3] %v375
      %v377 = vld [vmem:[%s327] sm:$0x7]
      %v378 = vpack.c.bf16 %v377, %v377
      %v381 = vunpack.c.l.s4 1983009808
      %v382 = vunpack.c.0.s8 %v381
      %v383 = vlaneseq
      %v384 = vshrl.u32 %v383, 7
      %v385 = vsub.s32 %v382, %v384
      %v386 = vrot.slane %v378, %v385
      %387 = vrot.lane.b32.xlu0 %v386, 21
      %v388 = vpop.permute.xlu0 %387
      %vm390 = vcmask 427304
      %vm391 = vmand %vm390, %vm335
      %v392 = vld [vmem:[#allocation2] sm:$0x3]
      %v393 = vsel %vm391, %v388, %v392
      %394 = vst [vmem:[#allocation2] sm:$0x3] %v393
      %v395 = vld [vmem:[%s327] sm:$0x7]
      %v396 = vpack.c.bf16 %v395, %v395
      %v399 = vunpack.c.l.s4 1983009808
      %v400 = vunpack.c.0.s8 %v399
      %v401 = vlaneseq
      %v402 = vshrl.u32 %v401, 7
      %v403 = vsub.s32 %v400, %v402
      %v404 = vrot.slane %v396, %v403
      %405 = vrot.lane.b32.xlu0 %v404, 23
      %v406 = vpop.permute.xlu0 %405
      %vm408 = vcmask 574904
      %vm409 = vmand %vm408, %vm335
      %v410 = vld [vmem:[#allocation2] sm:$0x3]
      %v411 = vsel %vm409, %v406, %v410
      %412 = vst [vmem:[#allocation2] sm:$0x3] %v411
      %v413 = vld [vmem:[%s327] sm:$0x7]
      %v414 = vpack.c.bf16 %v413, %v413
      %v417 = vunpack.c.l.s4 1983009808
      %v418 = vunpack.c.0.s8 %v417
      %v419 = vlaneseq
      %v420 = vshrl.u32 %v419, 7
      %v421 = vsub.s32 %v418, %v420
      %v422 = vrot.slane %v414, %v421
      %423 = vrot.lane.b32.xlu0 %v422, 25
      %v424 = vpop.permute.xlu0 %423
      %vm426 = vcmask 722504
      %vm427 = vmand %vm426, %vm335
      %v428 = vld [vmem:[#allocation2] sm:$0x3]
      %v429 = vsel %vm427, %v424, %v428
      %430 = vst [vmem:[#allocation2] sm:$0x3] %v429
      %v431 = vld [vmem:[%s327] sm:$0x7]
      %v432 = vpack.c.bf16 %v431, %v431
      %v435 = vunpack.c.l.s4 1983009808
      %v436 = vunpack.c.0.s8 %v435
      %v437 = vlaneseq
      %v438 = vshrl.u32 %v437, 7
      %v439 = vsub.s32 %v436, %v438
      %v440 = vrot.slane %v432, %v439
      %441 = vrot.lane.b32.xlu0 %v440, 27
      %v442 = vpop.permute.xlu0 %441
      %vm444 = vcmask 870104
      %vm445 = vmand %vm444, %vm335
      %v446 = vld [vmem:[#allocation2] sm:$0x3]
      %v447 = vsel %vm445, %v442, %v446
      %448 = vst [vmem:[#allocation2] sm:$0x3] %v447
      %v449 = vld [vmem:[%s327] sm:$0x7]
      %v450 = vpack.c.bf16 %v449, %v449
      %v453 = vunpack.c.l.s4 1983009808
      %v454 = vunpack.c.0.s8 %v453
      %v455 = vlaneseq
      %v456 = vshrl.u32 %v455, 7
      %v457 = vsub.s32 %v454, %v456
      %v458 = vrot.slane %v450, %v457
      %459 = vrot.lane.b32.xlu0 %v458, 29
      %v460 = vpop.permute.xlu0 %459
      %vm462 = vcmask 1017704
      %vm463 = vmand %vm462, %vm335
      %v464 = vld [vmem:[#allocation2] sm:$0x3]
      %v465 = vsel %vm463, %v460, %v464
      %466 = vst [vmem:[#allocation2] sm:$0x3] %v465
      %v467 = vld [vmem:[%s327] sm:$0x7]
      %v468 = vpack.c.bf16 %v467, %v467
      %v471 = vunpack.c.l.s4 1983009808
      %v472 = vunpack.c.0.s8 %v471
      %v473 = vlaneseq
      %v474 = vshrl.u32 %v473, 7
      %v475 = vsub.s32 %v472, %v474
      %v476 = vrot.slane %v468, %v475
      %477 = vrot.lane.b32.xlu0 %v476, 31
      %v478 = vpop.permute.xlu0 %477
      %v479 = vrot.slane %v478, 6
      %vm480 = vcmask 252928
      %v481 = vsel %vm480, %v479, %v478
      %vm483 = vcmask 1042424
      %vm484 = vmand %vm483, %vm335
      %vm485 = vcmask 117762
      %vm486 = vmand %vm485, %vm338
      %vm487 = vmor %vm486, %vm484
      %v488 = vld [vmem:[#allocation2] sm:$0xf]
      %v489 = vsel %vm487, %v481, %v488
      %490 = vst [vmem:[#allocation2] sm:$0xf] %v489
      %v491 = vld [vmem:[%s327] sm:$0x7]
      %v492 = vpack.c.bf16 %v491, %v491
      %v495 = vunpack.c.l.s4 1983009808
      %v496 = vunpack.c.0.s8 %v495
      %v497 = vlaneseq
      %v498 = vshrl.u32 %v497, 7
      %v499 = vsub.s32 %v496, %v498
      %v500 = vrot.slane %v492, %v499
      %501 = vrot.lane.b32.xlu0 %v500, 33
      %v502 = vpop.permute.xlu0 %501
      %vm504 = vcmask 263304
      %vm505 = vmand %vm504, %vm335
      %v506 = vld [vmem:[#allocation2 + $0x2] sm:$0x3]
      %v507 = vsel %vm505, %v502, %v506
      %508 = vst [vmem:[#allocation2 + $0x2] sm:$0x3] %v507
      %v509 = vld [vmem:[%s327 + $0x4] sm:$0x7]
      %v510 = vpack.c.bf16 %v509, %v509
      %v513 = vunpack.c.l.s4 1983009808
      %v514 = vunpack.c.0.s8 %v513
      %v515 = vlaneseq
      %v516 = vshrl.u32 %v515, 7
      %v517 = vsub.s32 %v514, %v516
      %v518 = vrot.slane %v510, %v517
      %519 = vrot.lane.b32.xlu0 %v518, 35
      %v520 = vpop.permute.xlu0 %519
      %vm522 = vcmask 410904
      %vm523 = vmand %vm522, %vm335
      %v524 = vld [vmem:[#allocation2 + $0x2] sm:$0x3]
      %v525 = vsel %vm523, %v520, %v524
      %526 = vst [vmem:[#allocation2 + $0x2] sm:$0x3] %v525
      %v527 = vld [vmem:[%s327 + $0x4] sm:$0x7]
      %v528 = vpack.c.bf16 %v527, %v527
      %v531 = vunpack.c.l.s4 1983009808
      %v532 = vunpack.c.0.s8 %v531
      %v533 = vlaneseq
      %v534 = vshrl.u32 %v533, 7
      %v535 = vsub.s32 %v532, %v534
      %v536 = vrot.slane %v528, %v535
      %537 = vrot.lane.b32.xlu0 %v536, 37
      %v538 = vpop.permute.xlu0 %537
      %vm540 = vcmask 558504
      %vm541 = vmand %vm540, %vm335
      %v542 = vld [vmem:[#allocation2 + $0x2] sm:$0x3]
      %v543 = vsel %vm541, %v538, %v542
      %544 = vst [vmem:[#allocation2 + $0x2] sm:$0x3] %v543
      %v545 = vld [vmem:[%s327 + $0x4] sm:$0x7]
      %v546 = vpack.c.bf16 %v545, %v545
      %v549 = vunpack.c.l.s4 1983009808
      %v550 = vunpack.c.0.s8 %v549
      %v551 = vlaneseq
      %v552 = vshrl.u32 %v551, 7
      %v553 = vsub.s32 %v550, %v552
      %v554 = vrot.slane %v546, %v553
      %555 = vrot.lane.b32.xlu0 %v554, 39
      %v556 = vpop.permute.xlu0 %555
      %vm558 = vcmask 706104
      %vm559 = vmand %vm558, %vm335
      %v560 = vld [vmem:[#allocation2 + $0x2] sm:$0x3]
      %v561 = vsel %vm559, %v556, %v560
      %562 = vst [vmem:[#allocation2 + $0x2] sm:$0x3] %v561
      %v563 = vld [vmem:[%s327 + $0x4] sm:$0x7]
      %v564 = vpack.c.bf16 %v563, %v563
      %v567 = vunpack.c.l.s4 1983009808
      %v568 = vunpack.c.0.s8 %v567
      %v569 = vlaneseq
      %v570 = vshrl.u32 %v569, 7
      %v571 = vsub.s32 %v568, %v570
      %v572 = vrot.slane %v564, %v571
      %573 = vrot.lane.b32.xlu0 %v572, 41
      %v574 = vpop.permute.xlu0 %573
      %vm576 = vcmask 853704
      %vm577 = vmand %vm576, %vm335
      %v578 = vld [vmem:[#allocation2 + $0x2] sm:$0x3]
      %v579 = vsel %vm577, %v574, %v578
      %580 = vst [vmem:[#allocation2 + $0x2] sm:$0x3] %v579
      %v581 = vld [vmem:[%s327 + $0x4] sm:$0x7]
      %v582 = vpack.c.bf16 %v581, %v581
      %v585 = vunpack.c.l.s4 1983009808
      %v586 = vunpack.c.0.s8 %v585
      %v587 = vlaneseq
      %v588 = vshrl.u32 %v587, 7
      %v589 = vsub.s32 %v586, %v588
      %v590 = vrot.slane %v582, %v589
      %591 = vrot.lane.b32.xlu0 %v590, 43
      %v592 = vpop.permute.xlu0 %591
      %vm594 = vcmask 1001304
      %vm595 = vmand %vm594, %vm335
      %v596 = vld [vmem:[#allocation2 + $0x2] sm:$0x3]
      %v597 = vsel %vm595, %v592, %v596
      %598 = vst [vmem:[#allocation2 + $0x2] sm:$0x3] %v597
      %v599 = vld [vmem:[%s327 + $0x4] sm:$0x7]
      %v600 = vpack.c.bf16 %v599, %v599
      %v603 = vunpack.c.l.s4 1983009808
      %v604 = vunpack.c.0.s8 %v603
      %v605 = vlaneseq
      %v606 = vshrl.u32 %v605, 7
      %v607 = vsub.s32 %v604, %v606
      %v608 = vrot.slane %v600, %v607
      %609 = vrot.lane.b32.xlu0 %v608, 45
      %v610 = vpop.permute.xlu0 %609
      %v611 = vrot.slane %v610, 6
      %vm612 = vcmask 367616
      %v613 = vsel %vm612, %v611, %v610
      %vm615 = vcmask 1042408
      %vm616 = vmand %vm615, %vm335
      %vm617 = vcmask 101378
      %vm618 = vmand %vm617, %vm338
      %vm619 = vmor %vm618, %vm616
      %v620 = vld [vmem:[#allocation2 + $0x2] sm:$0xf]
      %v621 = vsel %vm619, %v613, %v620
      %622 = vst [vmem:[#allocation2 + $0x2] sm:$0xf] %v621
      %v623 = vld [vmem:[%s327 + $0x4] sm:$0x7]
      %v624 = vpack.c.bf16 %v623, %v623
      %v627 = vunpack.c.l.s4 1983009808
      %v628 = vunpack.c.0.s8 %v627
      %v629 = vlaneseq
      %v630 = vshrl.u32 %v629, 7
      %v631 = vsub.s32 %v628, %v630
      %v632 = vrot.slane %v624, %v631
      %633 = vrot.lane.b32.xlu0 %v632, 47
      %v634 = vpop.permute.xlu0 %633
      %vm636 = vcmask 246904
      %vm637 = vmand %vm636, %vm335
      %v638 = vld [vmem:[#allocation2 + $0x4] sm:$0x3]
      %v639 = vsel %vm637, %v634, %v638
      %640 = vst [vmem:[#allocation2 + $0x4] sm:$0x3] %v639
      %v641 = vld [vmem:[%s327 + $0x4] sm:$0x7]
      %v642 = vpack.c.bf16 %v641, %v641
      %v645 = vunpack.c.l.s4 1983009808
      %v646 = vunpack.c.0.s8 %v645
      %v647 = vlaneseq
      %v648 = vshrl.u32 %v647, 7
      %v649 = vsub.s32 %v646, %v648
      %v650 = vrot.slane %v642, %v649
      %651 = vrot.lane.b32.xlu0 %v650, 49
      %v652 = vpop.permute.xlu0 %651
      %vm654 = vcmask 394504
      %vm655 = vmand %vm654, %vm335
      %v656 = vld [vmem:[#allocation2 + $0x4] sm:$0x3]
      %v657 = vsel %vm655, %v652, %v656
      %658 = vst [vmem:[#allocation2 + $0x4] sm:$0x3] %v657
      %v659 = vld [vmem:[#allocation2] sm:$0x3f]
      %v660 = vld [vmem:[%s1] sm:$0xf]
      %v661 = vld [vmem:[%s1 + $0x4] sm:$0xf]
      %s662 = scalar_lea.vmem %s1, 8
      %v663 = vld [vmem:[%s662] sm:$0xf]
      %v664 = vld [vmem:[%s662 + $0x4] sm:$0xf]
      %v667 = vunpack.c.l.b16 %v663
      %v668 = vunpack.c.l.b16 %v664
      %v669 = vpack.c.b16 %v668, %v667
      %v671 = vcombine.high %v659, %v659
      %v673 = vunpack.c.l.s4 1983009808
      %v674 = vunpack.c.0.s8 %v673
      %v675 = vlaneseq
      %v676 = vshrl.u32 %v675, 7
      %v677 = vsub.s32 %v674, %v676
      %v678 = vrot.slane %v659, %v677
      %v680 = vunpack.c.l.s4 1983009808
      %v681 = vunpack.c.0.s8 %v680
      %v682 = vlaneseq
      %v683 = vshrl.u32 %v682, 7
      %v684 = vsub.s32 %v681, %v683
      %v685 = vrot.slane %v671, %v684
      %v686 = vcombine.high %v678, %v678
      %687 = vrot.lane.b32.xlu0 %v678, 127
      %v688 = vpop.permute.xlu0 %687
      %689 = vrot.lane.b32.xlu0 %v686, 127
      %v690 = vpop.permute.xlu0 %689
      %691 = vrot.lane.b32.xlu0 %v685, 127
      %v692 = vpop.permute.xlu0 %691
      %vm693 = vcmask 1039360
      %v694 = vsel %vm693, %v688, %v690
      %v695 = vsel %vm693, %v690, %v692
      %vm696 = vcmask 23552
      %v698 = vsel %vm696, %v669, 0
      %vm700 = vcmask 1040384
      %vm701 = vcmask 1041408
      %v702 = vsel %vm700, 4294967295, 65535
      %v703 = vsel %vm701, %v702, 0
      %v705 = vand.u32 %v694, %v703
      %v708 = vand.u32 %v695, %v703
      %v711 = vand.u32 %v692, %v703
      %713 = vmatprep.subr.bf16.mxu0 %v708
      %714 = vmatpush1.bf16.msra.mxu0 %v705
      %715 = vmatprep.subr.bf16.mxu0 0
      %716 = vmatpush1.bf16.msra.mxu0 0
      %717 = vmatprep.subr.bf16.mxu0 0
      %718 = vmatpush1.bf16.msra.mxu0 0
      %719 = vmatprep.subr.bf16.mxu0 0
      %720 = vmatpush1.bf16.msra.mxu0 0
      %721 = vmatprep.subr.bf16.mxu0 0
      %722 = vmatpush1.bf16.msra.mxu0 0
      %723 = vmatprep.subr.bf16.mxu0 0
      %724 = vmatpush1.bf16.msra.mxu0 0
      %725 = vmatprep.subr.bf16.mxu0 0
      %726 = vmatpush1.bf16.msra.mxu0 0
      %727 = vmatprep.subr.bf16.mxu0 0
      %728 = vmatpush1.bf16.msra.mxu0 0
      %729 = vmatprep.subr.bf16.mxu0 0
      %730 = vmatpush1.bf16.msra.mxu0 0
      %731 = vmatprep.subr.bf16.mxu0 0
      %732 = vmatpush1.bf16.msra.mxu0 0
      %733 = vmatprep.subr.bf16.mxu0 0
      %734 = vmatpush1.bf16.msra.mxu0 0
      %735 = vmatprep.subr.bf16.mxu0 0
      %736 = vmatpush1.bf16.msra.mxu0 0
      %737 = vmatprep.subr.bf16.mxu0 0
      %738 = vmatpush1.bf16.msra.mxu0 0
      %739 = vmatprep.subr.bf16.mxu0 0
      %740 = vmatpush1.bf16.msra.mxu0 0
      %741 = vmatprep.subr.bf16.mxu0 0
      %742 = vmatpush1.bf16.msra.mxu0 0
      %743 = vmatprep.subr.bf16.mxu0 0
      %744 = vmatpush1.bf16.msra.mxu0 0
      %745 = vmatprep.mubr.bf16.mxu0 0
      %746 = vmatmul.mubr.bf16.gmra.mrb[0].mxu0 %v698
      %v747 = vpop.f32.mrb[0].mxu0
      %v748 = vadd.f32 0.0, %v747
      %v749 = vpop.f32.mrb[0].mxu0
      %v750 = vadd.f32 0.0, %v749
      %v751 = vpop.f32.mrb[0].mxu0
      %v752 = vadd.f32 0.0, %v751
      %v753 = vpop.f32.mrb[0].mxu0
      %v754 = vadd.f32 0.0, %v753
      %755 = vdwg.mxu0
      %756 = vmatprep.subr.bf16.mxu0 0
      %757 = vmatpush1.bf16.msra.mxu0 %v711
      %758 = vmatprep.subr.bf16.mxu0 0
      %759 = vmatpush1.bf16.msra.mxu0 0
      %760 = vmatprep.subr.bf16.mxu0 0
      %761 = vmatpush1.bf16.msra.mxu0 0
      %762 = vmatprep.subr.bf16.mxu0 0
      %763 = vmatpush1.bf16.msra.mxu0 0
      %764 = vmatprep.subr.bf16.mxu0 0
      %765 = vmatpush1.bf16.msra.mxu0 0
      %766 = vmatprep.subr.bf16.mxu0 0
      %767 = vmatpush1.bf16.msra.mxu0 0
      %768 = vmatprep.subr.bf16.mxu0 0
      %769 = vmatpush1.bf16.msra.mxu0 0
      %770 = vmatprep.subr.bf16.mxu0 0
      %771 = vmatpush1.bf16.msra.mxu0 0
      %772 = vmatprep.subr.bf16.mxu0 0
      %773 = vmatpush1.bf16.msra.mxu0 0
      %774 = vmatprep.subr.bf16.mxu0 0
      %775 = vmatpush1.bf16.msra.mxu0 0
      %776 = vmatprep.subr.bf16.mxu0 0
      %777 = vmatpush1.bf16.msra.mxu0 0
      %778 = vmatprep.subr.bf16.mxu0 0
      %779 = vmatpush1.bf16.msra.mxu0 0
      %780 = vmatprep.subr.bf16.mxu0 0
      %781 = vmatpush1.bf16.msra.mxu0 0
      %782 = vmatprep.subr.bf16.mxu0 0
      %783 = vmatpush1.bf16.msra.mxu0 0
      %784 = vmatprep.subr.bf16.mxu0 0
      %785 = vmatpush1.bf16.msra.mxu0 0
      %786 = vmatprep.subr.bf16.mxu0 0
      %787 = vmatpush1.bf16.msra.mxu0 0
      %788 = vmatprep.mubr.bf16.mxu0 0
      %789 = vmatmul.mubr.bf16.gmra.mrb[0].mxu0 %v698
      %v790 = vpop.f32.mrb[0].mxu0
      %v791 = vadd.f32 0.0, %v790
      %v792 = vpop.f32.mrb[0].mxu0
      %v793 = vpop.f32.mrb[0].mxu0
      %v794 = vadd.f32 0.0, %v793
      %v795 = vpop.f32.mrb[0].mxu0
      %796 = vdwg.mxu0
      %v799 = vunpack.c.l.b16 %v660
      %v800 = vunpack.c.l.b16 %v661
      %v801 = vpack.c.b16 %v800, %v799
      %v803 = vsel %vm696, %v801, 0
      %v806 = vand.u32 %v678, %v703
      %v809 = vand.u32 %v686, %v703
      %v812 = vand.u32 %v685, %v703
      %814 = vmatprep.subr.bf16.mxu0 %v809
      %815 = vmatpush1.bf16.msra.mxu0 %v806
      %816 = vmatprep.subr.bf16.mxu0 0
      %817 = vmatpush1.bf16.msra.mxu0 0
      %818 = vmatprep.subr.bf16.mxu0 0
      %819 = vmatpush1.bf16.msra.mxu0 0
      %820 = vmatprep.subr.bf16.mxu0 0
      %821 = vmatpush1.bf16.msra.mxu0 0
      %822 = vmatprep.subr.bf16.mxu0 0
      %823 = vmatpush1.bf16.msra.mxu0 0
      %824 = vmatprep.subr.bf16.mxu0 0
      %825 = vmatpush1.bf16.msra.mxu0 0
      %826 = vmatprep.subr.bf16.mxu0 0
      %827 = vmatpush1.bf16.msra.mxu0 0
      %828 = vmatprep.subr.bf16.mxu0 0
      %829 = vmatpush1.bf16.msra.mxu0 0
      %830 = vmatprep.subr.bf16.mxu0 0
      %831 = vmatpush1.bf16.msra.mxu0 0
      %832 = vmatprep.subr.bf16.mxu0 0
      %833 = vmatpush1.bf16.msra.mxu0 0
      %834 = vmatprep.subr.bf16.mxu0 0
      %835 = vmatpush1.bf16.msra.mxu0 0
      %836 = vmatprep.subr.bf16.mxu0 0
      %837 = vmatpush1.bf16.msra.mxu0 0
      %838 = vmatprep.subr.bf16.mxu0 0
      %839 = vmatpush1.bf16.msra.mxu0 0
      %840 = vmatprep.subr.bf16.mxu0 0
      %841 = vmatpush1.bf16.msra.mxu0 0
      %842 = vmatprep.subr.bf16.mxu0 0
      %843 = vmatpush1.bf16.msra.mxu0 0
      %844 = vmatprep.subr.bf16.mxu0 0
      %845 = vmatpush1.bf16.msra.mxu0 0
      %846 = vmatprep.mubr.bf16.mxu0 0
      %847 = vmatmul.mubr.bf16.gmra.mrb[0].mxu0 %v803
      %v848 = vpop.f32.mrb[0].mxu0
      %v849 = vadd.f32 %v748, %v848
      %v850 = vpop.f32.mrb[0].mxu0
      %v851 = vadd.f32 %v750, %v850
      %v852 = vpop.f32.mrb[0].mxu0
      %v853 = vadd.f32 %v752, %v852
      %v854 = vpop.f32.mrb[0].mxu0
      %v855 = vadd.f32 %v754, %v854
      %856 = vdwg.mxu0
      %857 = vmatprep.subr.bf16.mxu0 0
      %858 = vmatpush1.bf16.msra.mxu0 %v812
      %859 = vmatprep.subr.bf16.mxu0 0
      %860 = vmatpush1.bf16.msra.mxu0 0
      %861 = vmatprep.subr.bf16.mxu0 0
      %862 = vmatpush1.bf16.msra.mxu0 0
      %863 = vmatprep.subr.bf16.mxu0 0
      %864 = vmatpush1.bf16.msra.mxu0 0
      %865 = vmatprep.subr.bf16.mxu0 0
      %866 = vmatpush1.bf16.msra.mxu0 0
      %867 = vmatprep.subr.bf16.mxu0 0
      %868 = vmatpush1.bf16.msra.mxu0 0
      %869 = vmatprep.subr.bf16.mxu0 0
      %870 = vmatpush1.bf16.msra.mxu0 0
      %871 = vmatprep.subr.bf16.mxu0 0
      %872 = vmatpush1.bf16.msra.mxu0 0
      %873 = vmatprep.subr.bf16.mxu0 0
      %874 = vmatpush1.bf16.msra.mxu0 0
      %875 = vmatprep.subr.bf16.mxu0 0
      %876 = vmatpush1.bf16.msra.mxu0 0
      %877 = vmatprep.subr.bf16.mxu0 0
      %878 = vmatpush1.bf16.msra.mxu0 0
      %879 = vmatprep.subr.bf16.mxu0 0
      %880 = vmatpush1.bf16.msra.mxu0 0
      %881 = vmatprep.subr.bf16.mxu0 0
      %882 = vmatpush1.bf16.msra.mxu0 0
      %883 = vmatprep.subr.bf16.mxu0 0
      %884 = vmatpush1.bf16.msra.mxu0 0
      %885 = vmatprep.subr.bf16.mxu0 0
      %886 = vmatpush1.bf16.msra.mxu0 0
      %887 = vmatprep.subr.bf16.mxu0 0
      %888 = vmatpush1.bf16.msra.mxu0 0
      %889 = vmatprep.mubr.bf16.mxu0 0
      %890 = vmatmul.mubr.bf16.gmra.mrb[0].mxu0 %v803
      %v891 = vpop.f32.mrb[0].mxu0
      %v892 = vadd.f32 %v791, %v891
      %v893 = vpop.f32.mrb[0].mxu0
      %v894 = vpop.f32.mrb[0].mxu0
      %v895 = vadd.f32 %v794, %v894
      %v896 = vpop.f32.mrb[0].mxu0
      %897 = vdwg.mxu0
      %v898 = vld [vmem:[#allocation2] sm:$0x3f]
      %s899 = scalar_lea.vmem %s1, 16
      %v900 = vld [vmem:[%s899] sm:$0xf]
      %v901 = vld [vmem:[%s899 + $0x4] sm:$0xf]
      %v904 = vunpack.c.l.b16 %v900
      %v905 = vunpack.c.l.b16 %v901
      %v906 = vpack.c.b16 %v905, %v904
      %v908 = vcombine.high %v898, %v898
      %v910 = vunpack.c.l.s4 1983009808
      %v911 = vunpack.c.0.s8 %v910
      %v912 = vlaneseq
      %v913 = vshrl.u32 %v912, 7
      %v914 = vsub.s32 %v911, %v913
      %v915 = vrot.slane %v898, %v914
      %v917 = vunpack.c.l.s4 1983009808
      %v918 = vunpack.c.0.s8 %v917
      %v919 = vlaneseq
      %v920 = vshrl.u32 %v919, 7
      %v921 = vsub.s32 %v918, %v920
      %v922 = vrot.slane %v908, %v921
      %v923 = vcombine.high %v915, %v915
      %924 = vrot.lane.b32.xlu0 %v915, 126
      %v925 = vpop.permute.xlu0 %924
      %926 = vrot.lane.b32.xlu0 %v923, 126
      %v927 = vpop.permute.xlu0 %926
      %928 = vrot.lane.b32.xlu0 %v922, 126
      %v929 = vpop.permute.xlu0 %928
      %vm930 = vcmask 1031168
      %v931 = vsel %vm930, %v925, %v927
      %v932 = vsel %vm930, %v927, %v929
      %v934 = vsel %vm696, %v906, 0
      %v937 = vand.u32 %v931, %v703
      %v940 = vand.u32 %v932, %v703
      %v943 = vand.u32 %v929, %v703
      %945 = vmatprep.subr.bf16.mxu0 %v940
      %946 = vmatpush1.bf16.msra.mxu0 %v937
      %947 = vmatprep.subr.bf16.mxu0 0
      %948 = vmatpush1.bf16.msra.mxu0 0
      %949 = vmatprep.subr.bf16.mxu0 0
      %950 = vmatpush1.bf16.msra.mxu0 0
      %951 = vmatprep.subr.bf16.mxu0 0
      %952 = vmatpush1.bf16.msra.mxu0 0
      %953 = vmatprep.subr.bf16.mxu0 0
      %954 = vmatpush1.bf16.msra.mxu0 0
      %955 = vmatprep.subr.bf16.mxu0 0
      %956 = vmatpush1.bf16.msra.mxu0 0
      %957 = vmatprep.subr.bf16.mxu0 0
      %958 = vmatpush1.bf16.msra.mxu0 0
      %959 = vmatprep.subr.bf16.mxu0 0
      %960 = vmatpush1.bf16.msra.mxu0 0
      %961 = vmatprep.subr.bf16.mxu0 0
      %962 = vmatpush1.bf16.msra.mxu0 0
      %963 = vmatprep.subr.bf16.mxu0 0
      %964 = vmatpush1.bf16.msra.mxu0 0
      %965 = vmatprep.subr.bf16.mxu0 0
      %966 = vmatpush1.bf16.msra.mxu0 0
      %967 = vmatprep.subr.bf16.mxu0 0
      %968 = vmatpush1.bf16.msra.mxu0 0
      %969 = vmatprep.subr.bf16.mxu0 0
      %970 = vmatpush1.bf16.msra.mxu0 0
      %971 = vmatprep.subr.bf16.mxu0 0
      %972 = vmatpush1.bf16.msra.mxu0 0
      %973 = vmatprep.subr.bf16.mxu0 0
      %974 = vmatpush1.bf16.msra.mxu0 0
      %975 = vmatprep.subr.bf16.mxu0 0
      %976 = vmatpush1.bf16.msra.mxu0 0
      %977 = vmatprep.mubr.bf16.mxu0 0
      %978 = vmatmul.mubr.bf16.gmra.mrb[0].mxu0 %v934
      %v979 = vpop.f32.mrb[0].mxu0
      %v980 = vadd.f32 0.0, %v979
      %v981 = vpop.f32.mrb[0].mxu0
      %v982 = vadd.f32 0.0, %v981
      %v983 = vpop.f32.mrb[0].mxu0
      %v984 = vadd.f32 0.0, %v983
      %v985 = vpop.f32.mrb[0].mxu0
      %v986 = vadd.f32 0.0, %v985
      %987 = vdwg.mxu0
      %988 = vmatprep.subr.bf16.mxu0 0
      %989 = vmatpush1.bf16.msra.mxu0 %v943
      %990 = vmatprep.subr.bf16.mxu0 0
      %991 = vmatpush1.bf16.msra.mxu0 0
      %992 = vmatprep.subr.bf16.mxu0 0
      %993 = vmatpush1.bf16.msra.mxu0 0
      %994 = vmatprep.subr.bf16.mxu0 0
      %995 = vmatpush1.bf16.msra.mxu0 0
      %996 = vmatprep.subr.bf16.mxu0 0
      %997 = vmatpush1.bf16.msra.mxu0 0
      %998 = vmatprep.subr.bf16.mxu0 0
      %999 = vmatpush1.bf16.msra.mxu0 0
      %1000 = vmatprep.subr.bf16.mxu0 0
      %1001 = vmatpush1.bf16.msra.mxu0 0
      %1002 = vmatprep.subr.bf16.mxu0 0
      %1003 = vmatpush1.bf16.msra.mxu0 0
      %1004 = vmatprep.subr.bf16.mxu0 0
      %1005 = vmatpush1.bf16.msra.mxu0 0
      %1006 = vmatprep.subr.bf16.mxu0 0
      %1007 = vmatpush1.bf16.msra.mxu0 0
      %1008 = vmatprep.subr.bf16.mxu0 0
      %1009 = vmatpush1.bf16.msra.mxu0 0
      %1010 = vmatprep.subr.bf16.mxu0 0
      %1011 = vmatpush1.bf16.msra.mxu0 0
      %1012 = vmatprep.subr.bf16.mxu0 0
      %1013 = vmatpush1.bf16.msra.mxu0 0
      %1014 = vmatprep.subr.bf16.mxu0 0
      %1015 = vmatpush1.bf16.msra.mxu0 0
      %1016 = vmatprep.subr.bf16.mxu0 0
      %1017 = vmatpush1.bf16.msra.mxu0 0
      %1018 = vmatprep.subr.bf16.mxu0 0
      %1019 = vmatpush1.bf16.msra.mxu0 0
      %1020 = vmatprep.mubr.bf16.mxu0 0
      %1021 = vmatmul.mubr.bf16.gmra.mrb[0].mxu0 %v934
      %v1022 = vpop.f32.mrb[0].mxu0
      %v1023 = vadd.f32 0.0, %v1022
      %v1024 = vpop.f32.mrb[0].mxu0
      %v1025 = vpop.f32.mrb[0].mxu0
      %v1026 = vadd.f32 0.0, %v1025
      %v1027 = vpop.f32.mrb[0].mxu0
      %1028 = vdwg.mxu0
      %v1029 = vadd.f32 %v849, %v980
      %v1030 = vadd.f32 %v851, %v982
      %v1031 = vadd.f32 %v892, %v1023
      %v1032 = vadd.f32 %v853, %v984
      %v1033 = vadd.f32 %v855, %v986
      %v1034 = vadd.f32 %v895, %v1026
      %v1035 = vld [vmem:[#allocation2] sm:$0x3f]
      %s1036 = scalar_lea.vmem %s1, 24
      %v1037 = vld [vmem:[%s1036] sm:$0xf]
      %v1038 = vld [vmem:[%s1036 + $0x4] sm:$0xf]
      %v1041 = vunpack.c.l.b16 %v1037
      %v1042 = vunpack.c.l.b16 %v1038
      %v1043 = vpack.c.b16 %v1042, %v1041
      %v1045 = vcombine.high %v1035, %v1035
      %v1047 = vunpack.c.l.s4 1983009808
      %v1048 = vunpack.c.0.s8 %v1047
      %v1049 = vlaneseq
      %v1050 = vshrl.u32 %v1049, 7
      %v1051 = vsub.s32 %v1048, %v1050
      %v1052 = vrot.slane %v1035, %v1051
      %v1054 = vunpack.c.l.s4 1983009808
      %v1055 = vunpack.c.0.s8 %v1054
      %v1056 = vlaneseq
      %v1057 = vshrl.u32 %v1056, 7
      %v1058 = vsub.s32 %v1055, %v1057
      %v1059 = vrot.slane %v1045, %v1058
      %v1060 = vcombine.high %v1052, %v1052
      %1061 = vrot.lane.b32.xlu0 %v1052, 110
      %v1062 = vpop.permute.xlu0 %1061
      %1063 = vrot.lane.b32.xlu0 %v1060, 110
      %v1064 = vpop.permute.xlu0 %1063
      %1065 = vrot.lane.b32.xlu0 %v1059, 110
      %v1066 = vpop.permute.xlu0 %1065
      %vm1067 = vcmask 900096
      %v1068 = vsel %vm1067, %v1062, %v1064
      %v1069 = vsel %vm1067, %v1064, %v1066
      %v1071 = vsel %vm696, %v1043, 0
      %v1074 = vand.u32 %v1068, %v703
      %v1077 = vand.u32 %v1069, %v703
      %v1080 = vand.u32 %v1066, %v703
      %1082 = vmatprep.subr.bf16.mxu0 %v1077
      %1083 = vmatpush1.bf16.msra.mxu0 %v1074
      %1084 = vmatprep.subr.bf16.mxu0 0
      %1085 = vmatpush1.bf16.msra.mxu0 0
      %1086 = vmatprep.subr.bf16.mxu0 0
      %1087 = vmatpush1.bf16.msra.mxu0 0
      %1088 = vmatprep.subr.bf16.mxu0 0
      %1089 = vmatpush1.bf16.msra.mxu0 0
      %1090 = vmatprep.subr.bf16.mxu0 0
      %1091 = vmatpush1.bf16.msra.mxu0 0
      %1092 = vmatprep.subr.bf16.mxu0 0
      %1093 = vmatpush1.bf16.msra.mxu0 0
      %1094 = vmatprep.subr.bf16.mxu0 0
      %1095 = vmatpush1.bf16.msra.mxu0 0
      %1096 = vmatprep.subr.bf16.mxu0 0
      %1097 = vmatpush1.bf16.msra.mxu0 0
      %1098 = vmatprep.subr.bf16.mxu0 0
      %1099 = vmatpush1.bf16.msra.mxu0 0
      %1100 = vmatprep.subr.bf16.mxu0 0
      %1101 = vmatpush1.bf16.msra.mxu0 0
      %1102 = vmatprep.subr.bf16.mxu0 0
      %1103 = vmatpush1.bf16.msra.mxu0 0
      %1104 = vmatprep.subr.bf16.mxu0 0
      %1105 = vmatpush1.bf16.msra.mxu0 0
      %1106 = vmatprep.subr.bf16.mxu0 0
      %1107 = vmatpush1.bf16.msra.mxu0 0
      %1108 = vmatprep.subr.bf16.mxu0 0
      %1109 = vmatpush1.bf16.msra.mxu0 0
      %1110 = vmatprep.subr.bf16.mxu0 0
      %1111 = vmatpush1.bf16.msra.mxu0 0
      %1112 = vmatprep.subr.bf16.mxu0 0
      %1113 = vmatpush1.bf16.msra.mxu0 0
      %1114 = vmatprep.mubr.bf16.mxu0 0
      %1115 = vmatmul.mubr.bf16.gmra.mrb[0].mxu0 %v1071
      %v1116 = vpop.f32.mrb[0].mxu0
      %v1117 = vadd.f32 0.0, %v1116
      %v1118 = vpop.f32.mrb[0].mxu0
      %v1119 = vadd.f32 0.0, %v1118
      %v1120 = vpop.f32.mrb[0].mxu0
      %v1121 = vadd.f32 0.0, %v1120
      %v1122 = vpop.f32.mrb[0].mxu0
      %v1123 = vadd.f32 0.0, %v1122
      %1124 = vdwg.mxu0
      %1125 = vmatprep.subr.bf16.mxu0 0
      %1126 = vmatpush1.bf16.msra.mxu0 %v1080
      %1127 = vmatprep.subr.bf16.mxu0 0
      %1128 = vmatpush1.bf16.msra.mxu0 0
      %1129 = vmatprep.subr.bf16.mxu0 0
      %1130 = vmatpush1.bf16.msra.mxu0 0
      %1131 = vmatprep.subr.bf16.mxu0 0
      %1132 = vmatpush1.bf16.msra.mxu0 0
      %1133 = vmatprep.subr.bf16.mxu0 0
      %1134 = vmatpush1.bf16.msra.mxu0 0
      %1135 = vmatprep.subr.bf16.mxu0 0
      %1136 = vmatpush1.bf16.msra.mxu0 0
      %1137 = vmatprep.subr.bf16.mxu0 0
      %1138 = vmatpush1.bf16.msra.mxu0 0
      %1139 = vmatprep.subr.bf16.mxu0 0
      %1140 = vmatpush1.bf16.msra.mxu0 0
      %1141 = vmatprep.subr.bf16.mxu0 0
      %1142 = vmatpush1.bf16.msra.mxu0 0
      %1143 = vmatprep.subr.bf16.mxu0 0
      %1144 = vmatpush1.bf16.msra.mxu0 0
      %1145 = vmatprep.subr.bf16.mxu0 0
      %1146 = vmatpush1.bf16.msra.mxu0 0
      %1147 = vmatprep.subr.bf16.mxu0 0
      %1148 = vmatpush1.bf16.msra.mxu0 0
      %1149 = vmatprep.subr.bf16.mxu0 0
      %1150 = vmatpush1.bf16.msra.mxu0 0
      %1151 = vmatprep.subr.bf16.mxu0 0
      %1152 = vmatpush1.bf16.msra.mxu0 0
      %1153 = vmatprep.subr.bf16.mxu0 0
      %1154 = vmatpush1.bf16.msra.mxu0 0
      %1155 = vmatprep.subr.bf16.mxu0 0
      %1156 = vmatpush1.bf16.msra.mxu0 0
      %1157 = vmatprep.mubr.bf16.mxu0 0
      %1158 = vmatmul.mubr.bf16.gmra.mrb[0].mxu0 %v1071
      %v1159 = vpop.f32.mrb[0].mxu0
      %v1160 = vadd.f32 0.0, %v1159
      %v1161 = vpop.f32.mrb[0].mxu0
      %v1162 = vpop.f32.mrb[0].mxu0
      %v1163 = vadd.f32 0.0, %v1162
      %v1164 = vpop.f32.mrb[0].mxu0
      %1165 = vdwg.mxu0
      %v1166 = vadd.f32 %v1029, %v1117
      %v1167 = vadd.f32 %v1030, %v1119
      %v1168 = vadd.f32 %v1031, %v1160
      %v1169 = vadd.f32 %v1032, %v1121
      %v1170 = vadd.f32 %v1033, %v1123
      %v1171 = vadd.f32 %v1034, %v1163
      %v1172 = vld [vmem:[#allocation2] sm:$0x3f]
      %s1173 = scalar_lea.vmem %s1, 32
      %v1174 = vld [vmem:[%s1173] sm:$0xf]
      %v1175 = vld [vmem:[%s1173 + $0x4] sm:$0xf]
      %v1178 = vunpack.c.l.b16 %v1174
      %v1179 = vunpack.c.l.b16 %v1175
      %v1180 = vpack.c.b16 %v1179, %v1178
      %v1182 = vcombine.high %v1172, %v1172
      %v1184 = vunpack.c.l.s4 1983009808
      %v1185 = vunpack.c.0.s8 %v1184
      %v1186 = vlaneseq
      %v1187 = vshrl.u32 %v1186, 7
      %v1188 = vsub.s32 %v1185, %v1187
      %v1189 = vrot.slane %v1172, %v1188
      %v1191 = vunpack.c.l.s4 1983009808
      %v1192 = vunpack.c.0.s8 %v1191
      %v1193 = vlaneseq
      %v1194 = vshrl.u32 %v1193, 7
      %v1195 = vsub.s32 %v1192, %v1194
      %v1196 = vrot.slane %v1182, %v1195
      %v1197 = vcombine.high %v1189, %v1189
      %1198 = vrot.lane.b32.xlu0 %v1189, 109
      %v1199 = vpop.permute.xlu0 %1198
      %1200 = vrot.lane.b32.xlu0 %v1197, 109
      %v1201 = vpop.permute.xlu0 %1200
      %1202 = vrot.lane.b32.xlu0 %v1196, 109
      %v1203 = vpop.permute.xlu0 %1202
      %vm1204 = vcmask 891904
      %v1205 = vsel %vm1204, %v1199, %v1201
      %v1206 = vsel %vm1204, %v1201, %v1203
      %v1208 = vsel %vm696, %v1180, 0
      %v1211 = vand.u32 %v1205, %v703
      %v1214 = vand.u32 %v1206, %v703
      %v1217 = vand.u32 %v1203, %v703
      %1219 = vmatprep.subr.bf16.mxu0 %v1214
      %1220 = vmatpush1.bf16.msra.mxu0 %v1211
      %1221 = vmatprep.subr.bf16.mxu0 0
      %1222 = vmatpush1.bf16.msra.mxu0 0
      %1223 = vmatprep.subr.bf16.mxu0 0
      %1224 = vmatpush1.bf16.msra.mxu0 0
      %1225 = vmatprep.subr.bf16.mxu0 0
      %1226 = vmatpush1.bf16.msra.mxu0 0
      %1227 = vmatprep.subr.bf16.mxu0 0
      %1228 = vmatpush1.bf16.msra.mxu0 0
      %1229 = vmatprep.subr.bf16.mxu0 0
      %1230 = vmatpush1.bf16.msra.mxu0 0
      %1231 = vmatprep.subr.bf16.mxu0 0
      %1232 = vmatpush1.bf16.msra.mxu0 0
      %1233 = vmatprep.subr.bf16.mxu0 0
      %1234 = vmatpush1.bf16.msra.mxu0 0
      %1235 = vmatprep.subr.bf16.mxu0 0
      %1236 = vmatpush1.bf16.msra.mxu0 0
      %1237 = vmatprep.subr.bf16.mxu0 0
      %1238 = vmatpush1.bf16.msra.mxu0 0
      %1239 = vmatprep.subr.bf16.mxu0 0
      %1240 = vmatpush1.bf16.msra.mxu0 0
      %1241 = vmatprep.subr.bf16.mxu0 0
      %1242 = vmatpush1.bf16.msra.mxu0 0
      %1243 = vmatprep.subr.bf16.mxu0 0
      %1244 = vmatpush1.bf16.msra.mxu0 0
      %1245 = vmatprep.subr.bf16.mxu0 0
      %1246 = vmatpush1.bf16.msra.mxu0 0
      %1247 = vmatprep.subr.bf16.mxu0 0
      %1248 = vmatpush1.bf16.msra.mxu0 0
      %1249 = vmatprep.subr.bf16.mxu0 0
      %1250 = vmatpush1.bf16.msra.mxu0 0
      %1251 = vmatprep.mubr.bf16.mxu0 0
      %1252 = vmatmul.mubr.bf16.gmra.mrb[0].mxu0 %v1208
      %v1253 = vpop.f32.mrb[0].mxu0
      %v1254 = vadd.f32 0.0, %v1253
      %v1255 = vpop.f32.mrb[0].mxu0
      %v1256 = vadd.f32 0.0, %v1255
      %v1257 = vpop.f32.mrb[0].mxu0
      %v1258 = vadd.f32 0.0, %v1257
      %v1259 = vpop.f32.mrb[0].mxu0
      %v1260 = vadd.f32 0.0, %v1259
      %1261 = vdwg.mxu0
      %1262 = vmatprep.subr.bf16.mxu0 0
      %1263 = vmatpush1.bf16.msra.mxu0 %v1217
      %1264 = vmatprep.subr.bf16.mxu0 0
      %1265 = vmatpush1.bf16.msra.mxu0 0
      %1266 = vmatprep.subr.bf16.mxu0 0
      %1267 = vmatpush1.bf16.msra.mxu0 0
      %1268 = vmatprep.subr.bf16.mxu0 0
      %1269 = vmatpush1.bf16.msra.mxu0 0
      %1270 = vmatprep.subr.bf16.mxu0 0
      %1271 = vmatpush1.bf16.msra.mxu0 0
      %1272 = vmatprep.subr.bf16.mxu0 0
      %1273 = vmatpush1.bf16.msra.mxu0 0
      %1274 = vmatprep.subr.bf16.mxu0 0
      %1275 = vmatpush1.bf16.msra.mxu0 0
      %1276 = vmatprep.subr.bf16.mxu0 0
      %1277 = vmatpush1.bf16.msra.mxu0 0
      %1278 = vmatprep.subr.bf16.mxu0 0
      %1279 = vmatpush1.bf16.msra.mxu0 0
      %1280 = vmatprep.subr.bf16.mxu0 0
      %1281 = vmatpush1.bf16.msra.mxu0 0
      %1282 = vmatprep.subr.bf16.mxu0 0
      %1283 = vmatpush1.bf16.msra.mxu0 0
      %1284 = vmatprep.subr.bf16.mxu0 0
      %1285 = vmatpush1.bf16.msra.mxu0 0
      %1286 = vmatprep.subr.bf16.mxu0 0
      %1287 = vmatpush1.bf16.msra.mxu0 0
      %1288 = vmatprep.subr.bf16.mxu0 0
      %1289 = vmatpush1.bf16.msra.mxu0 0
      %1290 = vmatprep.subr.bf16.mxu0 0
      %1291 = vmatpush1.bf16.msra.mxu0 0
      %1292 = vmatprep.subr.bf16.mxu0 0
      %1293 = vmatpush1.bf16.msra.mxu0 0
      %1294 = vmatprep.mubr.bf16.mxu0 0
      %1295 = vmatmul.mubr.bf16.gmra.mrb[0].mxu0 %v1208
      %v1296 = vpop.f32.mrb[0].mxu0
      %v1297 = vadd.f32 0.0, %v1296
      %v1298 = vpop.f32.mrb[0].mxu0
      %v1299 = vpop.f32.mrb[0].mxu0
      %v1300 = vadd.f32 0.0, %v1299
      %v1301 = vpop.f32.mrb[0].mxu0
      %1302 = vdwg.mxu0
      %v1303 = vadd.f32 %v1166, %v1254
      %v1304 = vadd.f32 %v1167, %v1256
      %v1305 = vadd.f32 %v1168, %v1297
      %v1306 = vadd.f32 %v1169, %v1258
      %v1307 = vadd.f32 %v1170, %v1260
      %v1308 = vadd.f32 %v1171, %v1300
      %v1309 = vld [vmem:[#allocation2] sm:$0x3f]
      %s1310 = scalar_lea.vmem %s1, 40
      %v1311 = vld [vmem:[%s1310] sm:$0xf]
      %v1312 = vld [vmem:[%s1310 + $0x4] sm:$0xf]
      %v1315 = vunpack.c.l.b16 %v1311
      %v1316 = vunpack.c.l.b16 %v1312
      %v1317 = vpack.c.b16 %v1316, %v1315
      %v1319 = vcombine.high %v1309, %v1309
      %v1321 = vunpack.c.l.s4 1983009808
      %v1322 = vunpack.c.0.s8 %v1321
      %v1323 = vlaneseq
      %v1324 = vshrl.u32 %v1323, 7
      %v1325 = vsub.s32 %v1322, %v1324
      %v1326 = vrot.slane %v1309, %v1325
      %v1328 = vunpack.c.l.s4 1983009808
      %v1329 = vunpack.c.0.s8 %v1328
      %v1330 = vlaneseq
      %v1331 = vshrl.u32 %v1330, 7
      %v1332 = vsub.s32 %v1329, %v1331
      %v1333 = vrot.slane %v1319, %v1332
      %v1334 = vcombine.high %v1326, %v1326
      %1335 = vrot.lane.b32.xlu0 %v1326, 108
      %v1336 = vpop.permute.xlu0 %1335
      %1337 = vrot.lane.b32.xlu0 %v1334, 108
      %v1338 = vpop.permute.xlu0 %1337
      %1339 = vrot.lane.b32.xlu0 %v1333, 108
      %v1340 = vpop.permute.xlu0 %1339
      %vm1341 = vcmask 883712
      %v1342 = vsel %vm1341, %v1336, %v1338
      %v1343 = vsel %vm1341, %v1338, %v1340
      %v1345 = vsel %vm696, %v1317, 0
      %v1348 = vand.u32 %v1342, %v703
      %v1351 = vand.u32 %v1343, %v703
      %v1354 = vand.u32 %v1340, %v703
      %1356 = vmatprep.subr.bf16.mxu0 %v1351
      %1357 = vmatpush1.bf16.msra.mxu0 %v1348
      %1358 = vmatprep.subr.bf16.mxu0 0
      %1359 = vmatpush1.bf16.msra.mxu0 0
      %1360 = vmatprep.subr.bf16.mxu0 0
      %1361 = vmatpush1.bf16.msra.mxu0 0
      %1362 = vmatprep.subr.bf16.mxu0 0
      %1363 = vmatpush1.bf16.msra.mxu0 0
      %1364 = vmatprep.subr.bf16.mxu0 0
      %1365 = vmatpush1.bf16.msra.mxu0 0
      %1366 = vmatprep.subr.bf16.mxu0 0
      %1367 = vmatpush1.bf16.msra.mxu0 0
      %1368 = vmatprep.subr.bf16.mxu0 0
      %1369 = vmatpush1.bf16.msra.mxu0 0
      %1370 = vmatprep.subr.bf16.mxu0 0
      %1371 = vmatpush1.bf16.msra.mxu0 0
      %1372 = vmatprep.subr.bf16.mxu0 0
      %1373 = vmatpush1.bf16.msra.mxu0 0
      %1374 = vmatprep.subr.bf16.mxu0 0
      %1375 = vmatpush1.bf16.msra.mxu0 0
      %1376 = vmatprep.subr.bf16.mxu0 0
      %1377 = vmatpush1.bf16.msra.mxu0 0
      %1378 = vmatprep.subr.bf16.mxu0 0
      %1379 = vmatpush1.bf16.msra.mxu0 0
      %1380 = vmatprep.subr.bf16.mxu0 0
      %1381 = vmatpush1.bf16.msra.mxu0 0
      %1382 = vmatprep.subr.bf16.mxu0 0
      %1383 = vmatpush1.bf16.msra.mxu0 0
      %1384 = vmatprep.subr.bf16.mxu0 0
      %1385 = vmatpush1.bf16.msra.mxu0 0
      %1386 = vmatprep.subr.bf16.mxu0 0
      %1387 = vmatpush1.bf16.msra.mxu0 0
      %1388 = vmatprep.mubr.bf16.mxu0 0
      %1389 = vmatmul.mubr.bf16.gmra.mrb[0].mxu0 %v1345
      %v1390 = vpop.f32.mrb[0].mxu0
      %v1391 = vadd.f32 0.0, %v1390
      %v1392 = vpop.f32.mrb[0].mxu0
      %v1393 = vadd.f32 0.0, %v1392
      %v1394 = vpop.f32.mrb[0].mxu0
      %v1395 = vadd.f32 0.0, %v1394
      %v1396 = vpop.f32.mrb[0].mxu0
      %v1397 = vadd.f32 0.0, %v1396
      %1398 = vdwg.mxu0
      %1399 = vmatprep.subr.bf16.mxu0 0
      %1400 = vmatpush1.bf16.msra.mxu0 %v1354
      %1401 = vmatprep.subr.bf16.mxu0 0
      %1402 = vmatpush1.bf16.msra.mxu0 0
      %1403 = vmatprep.subr.bf16.mxu0 0
      %1404 = vmatpush1.bf16.msra.mxu0 0
      %1405 = vmatprep.subr.bf16.mxu0 0
      %1406 = vmatpush1.bf16.msra.mxu0 0
      %1407 = vmatprep.subr.bf16.mxu0 0
      %1408 = vmatpush1.bf16.msra.mxu0 0
      %1409 = vmatprep.subr.bf16.mxu0 0
      %1410 = vmatpush1.bf16.msra.mxu0 0
      %1411 = vmatprep.subr.bf16.mxu0 0
      %1412 = vmatpush1.bf16.msra.mxu0 0
      %1413 = vmatprep.subr.bf16.mxu0 0
      %1414 = vmatpush1.bf16.msra.mxu0 0
      %1415 = vmatprep.subr.bf16.mxu0 0
      %1416 = vmatpush1.bf16.msra.mxu0 0
      %1417 = vmatprep.subr.bf16.mxu0 0
      %1418 = vmatpush1.bf16.msra.mxu0 0
      %1419 = vmatprep.subr.bf16.mxu0 0
      %1420 = vmatpush1.bf16.msra.mxu0 0
      %1421 = vmatprep.subr.bf16.mxu0 0
      %1422 = vmatpush1.bf16.msra.mxu0 0
      %1423 = vmatprep.subr.bf16.mxu0 0
      %1424 = vmatpush1.bf16.msra.mxu0 0
      %1425 = vmatprep.subr.bf16.mxu0 0
      %1426 = vmatpush1.bf16.msra.mxu0 0
      %1427 = vmatprep.subr.bf16.mxu0 0
      %1428 = vmatpush1.bf16.msra.mxu0 0
      %1429 = vmatprep.subr.bf16.mxu0 0
      %1430 = vmatpush1.bf16.msra.mxu0 0
      %1431 = vmatprep.mubr.bf16.mxu0 0
      %1432 = vmatmul.mubr.bf16.gmra.mrb[0].mxu0 %v1345
      %v1433 = vpop.f32.mrb[0].mxu0
      %v1434 = vadd.f32 0.0, %v1433
      %v1435 = vpop.f32.mrb[0].mxu0
      %v1436 = vpop.f32.mrb[0].mxu0
      %v1437 = vadd.f32 0.0, %v1436
      %v1438 = vpop.f32.mrb[0].mxu0
      %1439 = vdwg.mxu0
      %v1440 = vadd.f32 %v1303, %v1391
      %v1441 = vadd.f32 %v1304, %v1393
      %v1442 = vadd.f32 %v1305, %v1434
      %v1443 = vadd.f32 %v1306, %v1395
      %v1444 = vadd.f32 %v1307, %v1397
      %v1445 = vadd.f32 %v1308, %v1437
      %v1446 = vld [vmem:[#allocation2] sm:$0x3f]
      %s1447 = scalar_lea.vmem %s1, 48
      %v1448 = vld [vmem:[%s1447] sm:$0xf]
      %v1449 = vld [vmem:[%s1447 + $0x4] sm:$0xf]
      %v1452 = vunpack.c.l.b16 %v1448
      %v1453 = vunpack.c.l.b16 %v1449
      %v1454 = vpack.c.b16 %v1453, %v1452
      %v1456 = vcombine.high %v1446, %v1446
      %v1458 = vunpack.c.l.s4 1983009808
      %v1459 = vunpack.c.0.s8 %v1458
      %v1460 = vlaneseq
      %v1461 = vshrl.u32 %v1460, 7
      %v1462 = vsub.s32 %v1459, %v1461
      %v1463 = vrot.slane %v1446, %v1462
      %v1465 = vunpack.c.l.s4 1983009808
      %v1466 = vunpack.c.0.s8 %v1465
      %v1467 = vlaneseq
      %v1468 = vshrl.u32 %v1467, 7
      %v1469 = vsub.s32 %v1466, %v1468
      %v1470 = vrot.slane %v1456, %v1469
      %v1471 = vcombine.high %v1463, %v1463
      %1472 = vrot.lane.b32.xlu0 %v1463, 92
      %v1473 = vpop.permute.xlu0 %1472
      %1474 = vrot.lane.b32.xlu0 %v1471, 92
      %v1475 = vpop.permute.xlu0 %1474
      %1476 = vrot.lane.b32.xlu0 %v1470, 92
      %v1477 = vpop.permute.xlu0 %1476
      %vm1478 = vcmask 752640
      %v1479 = vsel %vm1478, %v1473, %v1475
      %v1480 = vsel %vm1478, %v1475, %v1477
      %v1482 = vsel %vm696, %v1454, 0
      %v1485 = vand.u32 %v1479, %v703
      %v1488 = vand.u32 %v1480, %v703
      %v1491 = vand.u32 %v1477, %v703
      %1493 = vmatprep.subr.bf16.mxu0 %v1488
      %1494 = vmatpush1.bf16.msra.mxu0 %v1485
      %1495 = vmatprep.subr.bf16.mxu0 0
      %1496 = vmatpush1.bf16.msra.mxu0 0
      %1497 = vmatprep.subr.bf16.mxu0 0
      %1498 = vmatpush1.bf16.msra.mxu0 0
      %1499 = vmatprep.subr.bf16.mxu0 0
      %1500 = vmatpush1.bf16.msra.mxu0 0
      %1501 = vmatprep.subr.bf16.mxu0 0
      %1502 = vmatpush1.bf16.msra.mxu0 0
      %1503 = vmatprep.subr.bf16.mxu0 0
      %1504 = vmatpush1.bf16.msra.mxu0 0
      %1505 = vmatprep.subr.bf16.mxu0 0
      %1506 = vmatpush1.bf16.msra.mxu0 0
      %1507 = vmatprep.subr.bf16.mxu0 0
      %1508 = vmatpush1.bf16.msra.mxu0 0
      %1509 = vmatprep.subr.bf16.mxu0 0
      %1510 = vmatpush1.bf16.msra.mxu0 0
      %1511 = vmatprep.subr.bf16.mxu0 0
      %1512 = vmatpush1.bf16.msra.mxu0 0
      %1513 = vmatprep.subr.bf16.mxu0 0
      %1514 = vmatpush1.bf16.msra.mxu0 0
      %1515 = vmatprep.subr.bf16.mxu0 0
      %1516 = vmatpush1.bf16.msra.mxu0 0
      %1517 = vmatprep.subr.bf16.mxu0 0
      %1518 = vmatpush1.bf16.msra.mxu0 0
      %1519 = vmatprep.subr.bf16.mxu0 0
      %1520 = vmatpush1.bf16.msra.mxu0 0
      %1521 = vmatprep.subr.bf16.mxu0 0
      %1522 = vmatpush1.bf16.msra.mxu0 0
      %1523 = vmatprep.subr.bf16.mxu0 0
      %1524 = vmatpush1.bf16.msra.mxu0 0
      %1525 = vmatprep.mubr.bf16.mxu0 0
      %1526 = vmatmul.mubr.bf16.gmra.mrb[0].mxu0 %v1482
      %v1527 = vpop.f32.mrb[0].mxu0
      %v1528 = vadd.f32 0.0, %v1527
      %v1529 = vpop.f32.mrb[0].mxu0
      %v1530 = vadd.f32 0.0, %v1529
      %v1531 = vpop.f32.mrb[0].mxu0
      %v1532 = vadd.f32 0.0, %v1531
      %v1533 = vpop.f32.mrb[0].mxu0
      %v1534 = vadd.f32 0.0, %v1533
      %1535 = vdwg.mxu0
      %1536 = vmatprep.subr.bf16.mxu0 0
      %1537 = vmatpush1.bf16.msra.mxu0 %v1491
      %1538 = vmatprep.subr.bf16.mxu0 0
      %1539 = vmatpush1.bf16.msra.mxu0 0
      %1540 = vmatprep.subr.bf16.mxu0 0
      %1541 = vmatpush1.bf16.msra.mxu0 0
      %1542 = vmatprep.subr.bf16.mxu0 0
      %1543 = vmatpush1.bf16.msra.mxu0 0
      %1544 = vmatprep.subr.bf16.mxu0 0
      %1545 = vmatpush1.bf16.msra.mxu0 0
      %1546 = vmatprep.subr.bf16.mxu0 0
      %1547 = vmatpush1.bf16.msra.mxu0 0
      %1548 = vmatprep.subr.bf16.mxu0 0
      %1549 = vmatpush1.bf16.msra.mxu0 0
      %1550 = vmatprep.subr.bf16.mxu0 0
      %1551 = vmatpush1.bf16.msra.mxu0 0
      %1552 = vmatprep.subr.bf16.mxu0 0
      %1553 = vmatpush1.bf16.msra.mxu0 0
      %1554 = vmatprep.subr.bf16.mxu0 0
      %1555 = vmatpush1.bf16.msra.mxu0 0
      %1556 = vmatprep.subr.bf16.mxu0 0
      %1557 = vmatpush1.bf16.msra.mxu0 0
      %1558 = vmatprep.subr.bf16.mxu0 0
      %1559 = vmatpush1.bf16.msra.mxu0 0
      %1560 = vmatprep.subr.bf16.mxu0 0
      %1561 = vmatpush1.bf16.msra.mxu0 0
      %1562 = vmatprep.subr.bf16.mxu0 0
      %1563 = vmatpush1.bf16.msra.mxu0 0
      %1564 = vmatprep.subr.bf16.mxu0 0
      %1565 = vmatpush1.bf16.msra.mxu0 0
      %1566 = vmatprep.subr.bf16.mxu0 0
      %1567 = vmatpush1.bf16.msra.mxu0 0
      %1568 = vmatprep.mubr.bf16.mxu0 0
      %1569 = vmatmul.mubr.bf16.gmra.mrb[0].mxu0 %v1482
      %v1570 = vpop.f32.mrb[0].mxu0
      %v1571 = vadd.f32 0.0, %v1570
      %v1572 = vpop.f32.mrb[0].mxu0
      %v1573 = vpop.f32.mrb[0].mxu0
      %v1574 = vadd.f32 0.0, %v1573
      %v1575 = vpop.f32.mrb[0].mxu0
      %1576 = vdwg.mxu0
      %v1577 = vadd.f32 %v1440, %v1528
      %v1578 = vadd.f32 %v1441, %v1530
      %v1579 = vadd.f32 %v1442, %v1571
      %v1580 = vadd.f32 %v1443, %v1532
      %v1581 = vadd.f32 %v1444, %v1534
      %v1582 = vadd.f32 %v1445, %v1574
      %v1583 = vld [vmem:[#allocation2] sm:$0x3f]
      %s1584 = scalar_lea.vmem %s1, 56
      %v1585 = vld [vmem:[%s1584] sm:$0xf]
      %v1586 = vld [vmem:[%s1584 + $0x4] sm:$0xf]
      %v1589 = vunpack.c.l.b16 %v1585
      %v1590 = vunpack.c.l.b16 %v1586
      %v1591 = vpack.c.b16 %v1590, %v1589
      %v1593 = vcombine.high %v1583, %v1583
      %v1595 = vunpack.c.l.s4 1983009808
      %v1596 = vunpack.c.0.s8 %v1595
      %v1597 = vlaneseq
      %v1598 = vshrl.u32 %v1597, 7
      %v1599 = vsub.s32 %v1596, %v1598
      %v1600 = vrot.slane %v1583, %v1599
      %v1602 = vunpack.c.l.s4 1983009808
      %v1603 = vunpack.c.0.s8 %v1602
      %v1604 = vlaneseq
      %v1605 = vshrl.u32 %v1604, 7
      %v1606 = vsub.s32 %v1603, %v1605
      %v1607 = vrot.slane %v1593, %v1606
      %v1608 = vcombine.high %v1600, %v1600
      %1609 = vrot.lane.b32.xlu0 %v1600, 91
      %v1610 = vpop.permute.xlu0 %1609
      %1611 = vrot.lane.b32.xlu0 %v1608, 91
      %v1612 = vpop.permute.xlu0 %1611
      %1613 = vrot.lane.b32.xlu0 %v1607, 91
      %v1614 = vpop.permute.xlu0 %1613
      %vm1615 = vcmask 744448
      %v1616 = vsel %vm1615, %v1610, %v1612
      %v1617 = vsel %vm1615, %v1612, %v1614
      %v1619 = vsel %vm696, %v1591, 0
      %v1622 = vand.u32 %v1616, %v703
      %v1625 = vand.u32 %v1617, %v703
      %v1628 = vand.u32 %v1614, %v703
      %1630 = vmatprep.subr.bf16.mxu0 %v1625
      %1631 = vmatpush1.bf16.msra.mxu0 %v1622
      %1632 = vmatprep.subr.bf16.mxu0 0
      %1633 = vmatpush1.bf16.msra.mxu0 0
      %1634 = vmatprep.subr.bf16.mxu0 0
      %1635 = vmatpush1.bf16.msra.mxu0 0
      %1636 = vmatprep.subr.bf16.mxu0 0
      %1637 = vmatpush1.bf16.msra.mxu0 0
      %1638 = vmatprep.subr.bf16.mxu0 0
      %1639 = vmatpush1.bf16.msra.mxu0 0
      %1640 = vmatprep.subr.bf16.mxu0 0
      %1641 = vmatpush1.bf16.msra.mxu0 0
      %1642 = vmatprep.subr.bf16.mxu0 0
      %1643 = vmatpush1.bf16.msra.mxu0 0
      %1644 = vmatprep.subr.bf16.mxu0 0
      %1645 = vmatpush1.bf16.msra.mxu0 0
      %1646 = vmatprep.subr.bf16.mxu0 0
      %1647 = vmatpush1.bf16.msra.mxu0 0
      %1648 = vmatprep.subr.bf16.mxu0 0
      %1649 = vmatpush1.bf16.msra.mxu0 0
      %1650 = vmatprep.subr.bf16.mxu0 0
      %1651 = vmatpush1.bf16.msra.mxu0 0
      %1652 = vmatprep.subr.bf16.mxu0 0
      %1653 = vmatpush1.bf16.msra.mxu0 0
      %1654 = vmatprep.subr.bf16.mxu0 0
      %1655 = vmatpush1.bf16.msra.mxu0 0
      %1656 = vmatprep.subr.bf16.mxu0 0
      %1657 = vmatpush1.bf16.msra.mxu0 0
      %1658 = vmatprep.subr.bf16.mxu0 0
      %1659 = vmatpush1.bf16.msra.mxu0 0
      %1660 = vmatprep.subr.bf16.mxu0 0
      %1661 = vmatpush1.bf16.msra.mxu0 0
      %1662 = vmatprep.mubr.bf16.mxu0 0
      %1663 = vmatmul.mubr.bf16.gmra.mrb[0].mxu0 %v1619
      %v1664 = vpop.f32.mrb[0].mxu0
      %v1665 = vadd.f32 0.0, %v1664
      %v1666 = vpop.f32.mrb[0].mxu0
      %v1667 = vadd.f32 0.0, %v1666
      %v1668 = vpop.f32.mrb[0].mxu0
      %v1669 = vadd.f32 0.0, %v1668
      %v1670 = vpop.f32.mrb[0].mxu0
      %v1671 = vadd.f32 0.0, %v1670
      %1672 = vdwg.mxu0
      %1673 = vmatprep.subr.bf16.mxu0 0
      %1674 = vmatpush1.bf16.msra.mxu0 %v1628
      %1675 = vmatprep.subr.bf16.mxu0 0
      %1676 = vmatpush1.bf16.msra.mxu0 0
      %1677 = vmatprep.subr.bf16.mxu0 0
      %1678 = vmatpush1.bf16.msra.mxu0 0
      %1679 = vmatprep.subr.bf16.mxu0 0
      %1680 = vmatpush1.bf16.msra.mxu0 0
      %1681 = vmatprep.subr.bf16.mxu0 0
      %1682 = vmatpush1.bf16.msra.mxu0 0
      %1683 = vmatprep.subr.bf16.mxu0 0
      %1684 = vmatpush1.bf16.msra.mxu0 0
      %1685 = vmatprep.subr.bf16.mxu0 0
      %1686 = vmatpush1.bf16.msra.mxu0 0
      %1687 = vmatprep.subr.bf16.mxu0 0
      %1688 = vmatpush1.bf16.msra.mxu0 0
      %1689 = vmatprep.subr.bf16.mxu0 0
      %1690 = vmatpush1.bf16.msra.mxu0 0
      %1691 = vmatprep.subr.bf16.mxu0 0
      %1692 = vmatpush1.bf16.msra.mxu0 0
      %1693 = vmatprep.subr.bf16.mxu0 0
      %1694 = vmatpush1.bf16.msra.mxu0 0
      %1695 = vmatprep.subr.bf16.mxu0 0
      %1696 = vmatpush1.bf16.msra.mxu0 0
      %1697 = vmatprep.subr.bf16.mxu0 0
      %1698 = vmatpush1.bf16.msra.mxu0 0
      %1699 = vmatprep.subr.bf16.mxu0 0
      %1700 = vmatpush1.bf16.msra.mxu0 0
      %1701 = vmatprep.subr.bf16.mxu0 0
      %1702 = vmatpush1.bf16.msra.mxu0 0
      %1703 = vmatprep.subr.bf16.mxu0 0
      %1704 = vmatpush1.bf16.msra.mxu0 0
      %1705 = vmatprep.mubr.bf16.mxu0 0
      %1706 = vmatmul.mubr.bf16.gmra.mrb[0].mxu0 %v1619
      %v1707 = vpop.f32.mrb[0].mxu0
      %v1708 = vadd.f32 0.0, %v1707
      %v1709 = vpop.f32.mrb[0].mxu0
      %v1710 = vpop.f32.mrb[0].mxu0
      %v1711 = vadd.f32 0.0, %v1710
      %v1712 = vpop.f32.mrb[0].mxu0
      %1713 = vdwg.mxu0
      %v1714 = vadd.f32 %v1577, %v1665
      %v1715 = vadd.f32 %v1578, %v1667
      %v1716 = vadd.f32 %v1579, %v1708
      %v1717 = vadd.f32 %v1580, %v1669
      %v1718 = vadd.f32 %v1581, %v1671
      %v1719 = vadd.f32 %v1582, %v1711
      %v1720 = vld [vmem:[#allocation2] sm:$0x3f]
      %s1721 = scalar_lea.vmem %s1, 64
      %v1722 = vld [vmem:[%s1721] sm:$0xf]
      %v1723 = vld [vmem:[%s1721 + $0x4] sm:$0xf]
      %v1726 = vunpack.c.l.b16 %v1722
      %v1727 = vunpack.c.l.b16 %v1723
      %v1728 = vpack.c.b16 %v1727, %v1726
      %v1730 = vcombine.high %v1720, %v1720
      %v1732 = vunpack.c.l.s4 1983009808
      %v1733 = vunpack.c.0.s8 %v1732
      %v1734 = vlaneseq
      %v1735 = vshrl.u32 %v1734, 7
      %v1736 = vsub.s32 %v1733, %v1735
      %v1737 = vrot.slane %v1720, %v1736
      %v1739 = vunpack.c.l.s4 1983009808
      %v1740 = vunpack.c.0.s8 %v1739
      %v1741 = vlaneseq
      %v1742 = vshrl.u32 %v1741, 7
      %v1743 = vsub.s32 %v1740, %v1742
      %v1744 = vrot.slane %v1730, %v1743
      %v1745 = vcombine.high %v1737, %v1737
      %1746 = vrot.lane.b32.xlu0 %v1737, 90
      %v1747 = vpop.permute.xlu0 %1746
      %1748 = vrot.lane.b32.xlu0 %v1745, 90
      %v1749 = vpop.permute.xlu0 %1748
      %1750 = vrot.lane.b32.xlu0 %v1744, 90
      %v1751 = vpop.permute.xlu0 %1750
      %vm1752 = vcmask 736256
      %v1753 = vsel %vm1752, %v1747, %v1749
      %v1754 = vsel %vm1752, %v1749, %v1751
      %v1756 = vsel %vm696, %v1728, 0
      %v1759 = vand.u32 %v1753, %v703
      %v1762 = vand.u32 %v1754, %v703
      %v1765 = vand.u32 %v1751, %v703
      %1767 = vmatprep.subr.bf16.mxu0 %v1762
      %1768 = vmatpush1.bf16.msra.mxu0 %v1759
      %1769 = vmatprep.subr.bf16.mxu0 0
      %1770 = vmatpush1.bf16.msra.mxu0 0
      %1771 = vmatprep.subr.bf16.mxu0 0
      %1772 = vmatpush1.bf16.msra.mxu0 0
      %1773 = vmatprep.subr.bf16.mxu0 0
      %1774 = vmatpush1.bf16.msra.mxu0 0
      %1775 = vmatprep.subr.bf16.mxu0 0
      %1776 = vmatpush1.bf16.msra.mxu0 0
      %1777 = vmatprep.subr.bf16.mxu0 0
      %1778 = vmatpush1.bf16.msra.mxu0 0
      %1779 = vmatprep.subr.bf16.mxu0 0
      %1780 = vmatpush1.bf16.msra.mxu0 0
      %1781 = vmatprep.subr.bf16.mxu0 0
      %1782 = vmatpush1.bf16.msra.mxu0 0
      %1783 = vmatprep.subr.bf16.mxu0 0
      %1784 = vmatpush1.bf16.msra.mxu0 0
      %1785 = vmatprep.subr.bf16.mxu0 0
      %1786 = vmatpush1.bf16.msra.mxu0 0
      %1787 = vmatprep.subr.bf16.mxu0 0
      %1788 = vmatpush1.bf16.msra.mxu0 0
      %1789 = vmatprep.subr.bf16.mxu0 0
      %1790 = vmatpush1.bf16.msra.mxu0 0
      %1791 = vmatprep.subr.bf16.mxu0 0
      %1792 = vmatpush1.bf16.msra.mxu0 0
      %1793 = vmatprep.subr.bf16.mxu0 0
      %1794 = vmatpush1.bf16.msra.mxu0 0
      %1795 = vmatprep.subr.bf16.mxu0 0
      %1796 = vmatpush1.bf16.msra.mxu0 0
      %1797 = vmatprep.subr.bf16.mxu0 0
      %1798 = vmatpush1.bf16.msra.mxu0 0
      %1799 = vmatprep.mubr.bf16.mxu0 0
      %1800 = vmatmul.mubr.bf16.gmra.mrb[0].mxu0 %v1756
      %v1801 = vpop.f32.mrb[0].mxu0
      %v1802 = vadd.f32 0.0, %v1801
      %v1803 = vpop.f32.mrb[0].mxu0
      %v1804 = vadd.f32 0.0, %v1803
      %v1805 = vpop.f32.mrb[0].mxu0
      %v1806 = vadd.f32 0.0, %v1805
      %v1807 = vpop.f32.mrb[0].mxu0
      %v1808 = vadd.f32 0.0, %v1807
      %1809 = vdwg.mxu0
      %1810 = vmatprep.subr.bf16.mxu0 0
      %1811 = vmatpush1.bf16.msra.mxu0 %v1765
      %1812 = vmatprep.subr.bf16.mxu0 0
      %1813 = vmatpush1.bf16.msra.mxu0 0
      %1814 = vmatprep.subr.bf16.mxu0 0
      %1815 = vmatpush1.bf16.msra.mxu0 0
      %1816 = vmatprep.subr.bf16.mxu0 0
      %1817 = vmatpush1.bf16.msra.mxu0 0
      %1818 = vmatprep.subr.bf16.mxu0 0
      %1819 = vmatpush1.bf16.msra.mxu0 0
      %1820 = vmatprep.subr.bf16.mxu0 0
      %1821 = vmatpush1.bf16.msra.mxu0 0
      %1822 = vmatprep.subr.bf16.mxu0 0
      %1823 = vmatpush1.bf16.msra.mxu0 0
      %1824 = vmatprep.subr.bf16.mxu0 0
      %1825 = vmatpush1.bf16.msra.mxu0 0
      %1826 = vmatprep.subr.bf16.mxu0 0
      %1827 = vmatpush1.bf16.msra.mxu0 0
      %1828 = vmatprep.subr.bf16.mxu0 0
      %1829 = vmatpush1.bf16.msra.mxu0 0
      %1830 = vmatprep.subr.bf16.mxu0 0
      %1831 = vmatpush1.bf16.msra.mxu0 0
      %1832 = vmatprep.subr.bf16.mxu0 0
      %1833 = vmatpush1.bf16.msra.mxu0 0
      %1834 = vmatprep.subr.bf16.mxu0 0
      %1835 = vmatpush1.bf16.msra.mxu0 0
      %1836 = vmatprep.subr.bf16.mxu0 0
      %1837 = vmatpush1.bf16.msra.mxu0 0
      %1838 = vmatprep.subr.bf16.mxu0 0
      %1839 = vmatpush1.bf16.msra.mxu0 0
      %1840 = vmatprep.subr.bf16.mxu0 0
      %1841 = vmatpush1.bf16.msra.mxu0 0
      %1842 = vmatprep.mubr.bf16.mxu0 0
      %1843 = vmatmul.mubr.bf16.gmra.mrb[0].mxu0 %v1756
      %v1844 = vpop.f32.mrb[0].mxu0
      %v1845 = vadd.f32 0.0, %v1844
      %v1846 = vpop.f32.mrb[0].mxu0
      %v1847 = vpop.f32.mrb[0].mxu0
      %v1848 = vadd.f32 0.0, %v1847
      %v1849 = vpop.f32.mrb[0].mxu0
      %1850 = vdwg.mxu0
      %v1851 = vadd.f32 %v1714, %v1802
      %v1852 = vadd.f32 %v1715, %v1804
      %v1853 = vadd.f32 %v1716, %v1845
      %v1854 = vadd.f32 %v1717, %v1806
      %v1855 = vadd.f32 %v1718, %v1808
      %v1856 = vadd.f32 %v1719, %v1848
      %v1857 = vld [vmem:[%s4] sm:$0xff]
      %v1858 = vld [vmem:[%s4 + $0x8] sm:$0xff]
      %1860 = vset.pattern.permute.xlu0 0
      %1861 = vperm.xlu0 %1860, %v1857
      %v1862 = vpop.permute.xlu0 %1861
      %1865 = vset.pattern.permute.xlu0 0
      %1866 = vperm.xlu0 %1865, %v1858
      %v1867 = vpop.permute.xlu0 %1866
      %v1869 = vadd.f32 %v1851, %v1862
      %v1870 = vadd.f32 %v1852, %v1862
      %v1871 = vadd.f32 %v1853, %v1862
      %v1872 = vadd.f32 %v1854, %v1867
      %v1873 = vadd.f32 %v1855, %v1867
      %v1874 = vadd.f32 %v1856, %v1867
      %v1875 = vmax.f32 %v1869, 0.0
      %v1876 = vmax.f32 %v1870, 0.0
      %v1877 = vmax.f32 %v1871, 0.0
      %v1878 = vmax.f32 %v1872, 0.0
      %v1879 = vmax.f32 %v1873, 0.0
      %v1880 = vmax.f32 %v1874, 0.0
      %v1881 = vpack.c.bf16 %v1878, %v1875
      %v1882 = vpack.c.bf16 %v1879, %v1876
      %v1883 = vpack.c.bf16 %v1880, %v1877
      %1885 = vrot.lane.b32.xlu0 %v1881, 100
      %v1886 = vpop.permute.xlu0 %1885
      %vm1888 = vcmask 950048
      %1889 = vst.msk [vmem:[#allocation3] sm:$0xff] %vm1888, %v1886
      %1890 = vrot.lane.b32.xlu0 %v1881, 106
      %v1891 = vpop.permute.xlu0 %1890
      %vm1893 = vcmask 1048544
      %1894 = vst.msk [vmem:[#allocation3] sm:$0xff] %vm1893, %v1891
      %vm1895 = vcmask 97280
      %1896 = vst.msk [vmem:[#allocation3 + $0x8] sm:$0xff] %vm1895, %v1891
      %1897 = vrot.lane.b32.xlu0 %v1881, 112
      %v1898 = vpop.permute.xlu0 %1897
      %vm1900 = vcmask 294048
      %1901 = vst.msk [vmem:[#allocation3 + $0x8] sm:$0xff] %vm1900, %v1898
      %1902 = vrot.lane.b32.xlu0 %v1881, 118
      %v1903 = vpop.permute.xlu0 %1902
      %vm1905 = vcmask 490848
      %1906 = vst.msk [vmem:[#allocation3 + $0x8] sm:$0xff] %vm1905, %v1903
      %1907 = vrot.lane.b32.xlu0 %v1881, 124
      %v1908 = vpop.permute.xlu0 %1907
      %vm1910 = vcmask 687648
      %1911 = vst.msk [vmem:[#allocation3 + $0x8] sm:$0xff] %vm1910, %v1908
      %1912 = vrot.lane.b32.xlu0 %v1881, 2
      %v1913 = vpop.permute.xlu0 %1912
      %vm1915 = vcmask 884448
      %1916 = vst.msk [vmem:[#allocation3 + $0x8] sm:$0xff] %vm1915, %v1913
      %1917 = vrot.lane.b32.xlu0 %v1881, 8
      %v1918 = vpop.permute.xlu0 %1917
      %vm1920 = vcmask 1048480
      %1921 = vst.msk [vmem:[#allocation3 + $0x8] sm:$0xff] %vm1920, %v1918
      %vm1922 = vcmask 31744
      %1923 = vst.msk [vmem:[#allocation3 + $0x10] sm:$0xff] %vm1922, %v1918
      %1925 = vrot.lane.b32.xlu0 %v1881, 14
      %v1926 = vpop.permute.xlu0 %1925
      %1927 = vrot.lane.b32.xlu0 %v1882, 14
      %v1928 = vpop.permute.xlu0 %1927
      %vm1929 = vcmask 113664
      %v1930 = vsel %vm1929, %v1926, %v1928
      %vm1932 = vcmask 228448
      %1933 = vst.msk [vmem:[#allocation3 + $0x10] sm:$0xff] %vm1932, %v1930
      %1934 = vrot.lane.b32.xlu0 %v1882, 20
      %v1935 = vpop.permute.xlu0 %1934
      %vm1937 = vcmask 425248
      %1938 = vst.msk [vmem:[#allocation3 + $0x10] sm:$0xff] %vm1937, %v1935
      %1939 = vrot.lane.b32.xlu0 %v1882, 26
      %v1940 = vpop.permute.xlu0 %1939
      %vm1942 = vcmask 622048
      %1943 = vst.msk [vmem:[#allocation3 + $0x10] sm:$0xff] %vm1942, %v1940
      %1944 = vrot.lane.b32.xlu0 %v1882, 32
      %v1945 = vpop.permute.xlu0 %1944
      %vm1947 = vcmask 818848
      %1948 = vst.msk [vmem:[#allocation3 + $0x10] sm:$0xff] %vm1947, %v1945
      %1949 = vrot.lane.b32.xlu0 %v1882, 38
      %v1950 = vpop.permute.xlu0 %1949
      %vm1952 = vcmask 1015648
      %1953 = vst.msk [vmem:[#allocation3 + $0x10] sm:$0xff] %vm1952, %v1950
      %1954 = vrot.lane.b32.xlu0 %v1882, 44
      %v1955 = vpop.permute.xlu0 %1954
      %vm1957 = vcmask 162848
      %1958 = vst.msk [vmem:[#allocation3 + $0x18] sm:$0xff] %vm1957, %v1955
      %1959 = vrot.lane.b32.xlu0 %v1882, 50
      %v1960 = vpop.permute.xlu0 %1959
      %vm1962 = vcmask 359648
      %1963 = vst.msk [vmem:[#allocation3 + $0x18] sm:$0xff] %vm1962, %v1960
      %1965 = vrot.lane.b32.xlu0 %v1882, 56
      %v1966 = vpop.permute.xlu0 %1965
      %1967 = vrot.lane.b32.xlu0 %v1883, 56
      %v1968 = vpop.permute.xlu0 %1967
      %vm1969 = vcmask 457728
      %v1970 = vsel %vm1969, %v1966, %v1968
      %vm1972 = vcmask 556448
      %1973 = vst.msk [vmem:[#allocation3 + $0x18] sm:$0xff] %vm1972, %v1970
      %1974 = vrot.lane.b32.xlu0 %v1883, 62
      %v1975 = vpop.permute.xlu0 %1974
      %vm1977 = vcmask 753248
      %1978 = vst.msk [vmem:[#allocation3 + $0x18] sm:$0xff] %vm1977, %v1975
      %v1979 = vld [vmem:[#allocation3] sm:$0xff]
      %v1980 = vld [vmem:[#allocation3 + $0x8] sm:$0xff]
      %v1981 = vld [vmem:[#allocation3 + $0x10] sm:$0xff]
      %v1982 = vld [vmem:[#allocation3 + $0x18] sm:$0xff]
      %v1983 = vld [vmem:[%s2] sm:$0xf]
      %s1984 = scalar_lea.vmem %s2, 4
      %v1985 = vld [vmem:[%s1984] sm:$0xf]
      %1990 = vrot.lane.b32.xlu0 %v1979, 127
      %v1991 = vpop.permute.xlu0 %1990
      %1992 = vrot.lane.b32.xlu0 %v1980, 127
      %v1993 = vpop.permute.xlu0 %1992
      %1994 = vrot.lane.b32.xlu0 %v1981, 127
      %v1995 = vpop.permute.xlu0 %1994
      %1996 = vrot.lane.b32.xlu0 %v1982, 127
      %v1997 = vpop.permute.xlu0 %1996
      %v1998 = vsel %vm693, %v1991, %v1993
      %v1999 = vsel %vm693, %v1993, %v1995
      %v2000 = vsel %vm693, %v1995, %v1997
      %vm2005 = vcmask 130048
      %v2007 = vsel %vm2005, %v1985, 0
      %2009 = vmatprep.subr.bf16.mxu0 %v1999
      %2010 = vmatpush1.bf16.msra.mxu0 %v1998
      %2011 = vmatprep.subr.bf16.mxu0 0
      %2012 = vmatpush1.bf16.msra.mxu0 0
      %2013 = vmatprep.subr.bf16.mxu0 0
      %2014 = vmatpush1.bf16.msra.mxu0 0
      %2015 = vmatprep.subr.bf16.mxu0 0
      %2016 = vmatpush1.bf16.msra.mxu0 0
      %2017 = vmatprep.subr.bf16.mxu0 0
      %2018 = vmatpush1.bf16.msra.mxu0 0
      %2019 = vmatprep.subr.bf16.mxu0 0
      %2020 = vmatpush1.bf16.msra.mxu0 0
      %2021 = vmatprep.subr.bf16.mxu0 0
      %2022 = vmatpush1.bf16.msra.mxu0 0
      %2023 = vmatprep.subr.bf16.mxu0 0
      %2024 = vmatpush1.bf16.msra.mxu0 0
      %2025 = vmatprep.subr.bf16.mxu0 0
      %2026 = vmatpush1.bf16.msra.mxu0 0
      %2027 = vmatprep.subr.bf16.mxu0 0
      %2028 = vmatpush1.bf16.msra.mxu0 0
      %2029 = vmatprep.subr.bf16.mxu0 0
      %2030 = vmatpush1.bf16.msra.mxu0 0
      %2031 = vmatprep.subr.bf16.mxu0 0
      %2032 = vmatpush1.bf16.msra.mxu0 0
      %2033 = vmatprep.subr.bf16.mxu0 0
      %2034 = vmatpush1.bf16.msra.mxu0 0
      %2035 = vmatprep.subr.bf16.mxu0 0
      %2036 = vmatpush1.bf16.msra.mxu0 0
      %2037 = vmatprep.subr.bf16.mxu0 0
      %2038 = vmatpush1.bf16.msra.mxu0 0
      %2039 = vmatprep.subr.bf16.mxu0 0
      %2040 = vmatpush1.bf16.msra.mxu0 0
      %2041 = vmatprep.mubr.bf16.mxu0 0
      %2042 = vmatmul.mubr.bf16.gmra.mrb[0].mxu0 %v2007
      %v2043 = vpop.f32.mrb[0].mxu0
      %v2044 = vadd.f32 0.0, %v2043
      %v2045 = vpop.f32.mrb[0].mxu0
      %v2046 = vadd.f32 0.0, %v2045
      %v2047 = vpop.f32.mrb[0].mxu0
      %v2048 = vpop.f32.mrb[0].mxu0
      %2049 = vdwg.mxu0
      %2050 = vmatprep.subr.bf16.mxu0 %v1997
      %2051 = vmatpush1.bf16.msra.mxu0 %v2000
      %2052 = vmatprep.subr.bf16.mxu0 0
      %2053 = vmatpush1.bf16.msra.mxu0 0
      %2054 = vmatprep.subr.bf16.mxu0 0
      %2055 = vmatpush1.bf16.msra.mxu0 0
      %2056 = vmatprep.subr.bf16.mxu0 0
      %2057 = vmatpush1.bf16.msra.mxu0 0
      %2058 = vmatprep.subr.bf16.mxu0 0
      %2059 = vmatpush1.bf16.msra.mxu0 0
      %2060 = vmatprep.subr.bf16.mxu0 0
      %2061 = vmatpush1.bf16.msra.mxu0 0
      %2062 = vmatprep.subr.bf16.mxu0 0
      %2063 = vmatpush1.bf16.msra.mxu0 0
      %2064 = vmatprep.subr.bf16.mxu0 0
      %2065 = vmatpush1.bf16.msra.mxu0 0
      %2066 = vmatprep.subr.bf16.mxu0 0
      %2067 = vmatpush1.bf16.msra.mxu0 0
      %2068 = vmatprep.subr.bf16.mxu0 0
      %2069 = vmatpush1.bf16.msra.mxu0 0
      %2070 = vmatprep.subr.bf16.mxu0 0
      %2071 = vmatpush1.bf16.msra.mxu0 0
      %2072 = vmatprep.subr.bf16.mxu0 0
      %2073 = vmatpush1.bf16.msra.mxu0 0
      %2074 = vmatprep.subr.bf16.mxu0 0
      %2075 = vmatpush1.bf16.msra.mxu0 0
      %2076 = vmatprep.subr.bf16.mxu0 0
      %2077 = vmatpush1.bf16.msra.mxu0 0
      %2078 = vmatprep.subr.bf16.mxu0 0
      %2079 = vmatpush1.bf16.msra.mxu0 0
      %2080 = vmatprep.subr.bf16.mxu0 0
      %2081 = vmatpush1.bf16.msra.mxu0 0
      %2082 = vmatprep.mubr.bf16.mxu0 0
      %2083 = vmatmul.mubr.bf16.gmra.mrb[0].mxu0 %v2007
      %v2084 = vpop.f32.mrb[0].mxu0
      %v2085 = vadd.f32 0.0, %v2084
      %v2086 = vpop.f32.mrb[0].mxu0
      %v2087 = vadd.f32 0.0, %v2086
      %v2088 = vpop.f32.mrb[0].mxu0
      %v2089 = vpop.f32.mrb[0].mxu0
      %2090 = vdwg.mxu0
      %v2092 = vsel %vm2005, %v1983, 0
      %2094 = vmatprep.subr.bf16.mxu0 %v1980
      %2095 = vmatpush1.bf16.msra.mxu0 %v1979
      %2096 = vmatprep.subr.bf16.mxu0 0
      %2097 = vmatpush1.bf16.msra.mxu0 0
      %2098 = vmatprep.subr.bf16.mxu0 0
      %2099 = vmatpush1.bf16.msra.mxu0 0
      %2100 = vmatprep.subr.bf16.mxu0 0
      %2101 = vmatpush1.bf16.msra.mxu0 0
      %2102 = vmatprep.subr.bf16.mxu0 0
      %2103 = vmatpush1.bf16.msra.mxu0 0
      %2104 = vmatprep.subr.bf16.mxu0 0
      %2105 = vmatpush1.bf16.msra.mxu0 0
      %2106 = vmatprep.subr.bf16.mxu0 0
      %2107 = vmatpush1.bf16.msra.mxu0 0
      %2108 = vmatprep.subr.bf16.mxu0 0
      %2109 = vmatpush1.bf16.msra.mxu0 0
      %2110 = vmatprep.subr.bf16.mxu0 0
      %2111 = vmatpush1.bf16.msra.mxu0 0
      %2112 = vmatprep.subr.bf16.mxu0 0
      %2113 = vmatpush1.bf16.msra.mxu0 0
      %2114 = vmatprep.subr.bf16.mxu0 0
      %2115 = vmatpush1.bf16.msra.mxu0 0
      %2116 = vmatprep.subr.bf16.mxu0 0
      %2117 = vmatpush1.bf16.msra.mxu0 0
      %2118 = vmatprep.subr.bf16.mxu0 0
      %2119 = vmatpush1.bf16.msra.mxu0 0
      %2120 = vmatprep.subr.bf16.mxu0 0
      %2121 = vmatpush1.bf16.msra.mxu0 0
      %2122 = vmatprep.subr.bf16.mxu0 0
      %2123 = vmatpush1.bf16.msra.mxu0 0
      %2124 = vmatprep.subr.bf16.mxu0 0
      %2125 = vmatpush1.bf16.msra.mxu0 0
      %2126 = vmatprep.mubr.bf16.mxu0 0
      %2127 = vmatmul.mubr.bf16.gmra.mrb[0].mxu0 %v2092
      %v2128 = vpop.f32.mrb[0].mxu0
      %v2129 = vadd.f32 %v2044, %v2128
      %v2130 = vpop.f32.mrb[0].mxu0
      %v2131 = vadd.f32 %v2046, %v2130
      %v2132 = vpop.f32.mrb[0].mxu0
      %v2133 = vpop.f32.mrb[0].mxu0
      %2134 = vdwg.mxu0
      %2135 = vmatprep.subr.bf16.mxu0 %v1982
      %2136 = vmatpush1.bf16.msra.mxu0 %v1981
      %2137 = vmatprep.subr.bf16.mxu0 0
      %2138 = vmatpush1.bf16.msra.mxu0 0
      %2139 = vmatprep.subr.bf16.mxu0 0
      %2140 = vmatpush1.bf16.msra.mxu0 0
      %2141 = vmatprep.subr.bf16.mxu0 0
      %2142 = vmatpush1.bf16.msra.mxu0 0
      %2143 = vmatprep.subr.bf16.mxu0 0
      %2144 = vmatpush1.bf16.msra.mxu0 0
      %2145 = vmatprep.subr.bf16.mxu0 0
      %2146 = vmatpush1.bf16.msra.mxu0 0
      %2147 = vmatprep.subr.bf16.mxu0 0
      %2148 = vmatpush1.bf16.msra.mxu0 0
      %2149 = vmatprep.subr.bf16.mxu0 0
      %2150 = vmatpush1.bf16.msra.mxu0 0
      %2151 = vmatprep.subr.bf16.mxu0 0
      %2152 = vmatpush1.bf16.msra.mxu0 0
      %2153 = vmatprep.subr.bf16.mxu0 0
      %2154 = vmatpush1.bf16.msra.mxu0 0
      %2155 = vmatprep.subr.bf16.mxu0 0
      %2156 = vmatpush1.bf16.msra.mxu0 0
      %2157 = vmatprep.subr.bf16.mxu0 0
      %2158 = vmatpush1.bf16.msra.mxu0 0
      %2159 = vmatprep.subr.bf16.mxu0 0
      %2160 = vmatpush1.bf16.msra.mxu0 0
      %2161 = vmatprep.subr.bf16.mxu0 0
      %2162 = vmatpush1.bf16.msra.mxu0 0
      %2163 = vmatprep.subr.bf16.mxu0 0
      %2164 = vmatpush1.bf16.msra.mxu0 0
      %2165 = vmatprep.subr.bf16.mxu0 0
      %2166 = vmatpush1.bf16.msra.mxu0 0
      %2167 = vmatprep.mubr.bf16.mxu0 0
      %2168 = vmatmul.mubr.bf16.gmra.mrb[0].mxu0 %v2092
      %v2169 = vpop.f32.mrb[0].mxu0
      %v2170 = vadd.f32 %v2085, %v2169
      %v2171 = vpop.f32.mrb[0].mxu0
      %v2172 = vadd.f32 %v2087, %v2171
      %v2173 = vpop.f32.mrb[0].mxu0
      %v2174 = vpop.f32.mrb[0].mxu0
      %2175 = vdwg.mxu0
      %s2176 = scalar_lea.vmem %s2, 8
      %v2177 = vld [vmem:[%s2176] sm:$0xf]
      %2178 = vrot.lane.b32.xlu0 %v1979, 126
      %v2179 = vpop.permute.xlu0 %2178
      %2180 = vrot.lane.b32.xlu0 %v1980, 126
      %v2181 = vpop.permute.xlu0 %2180
      %2182 = vrot.lane.b32.xlu0 %v1981, 126
      %v2183 = vpop.permute.xlu0 %2182
      %2184 = vrot.lane.b32.xlu0 %v1982, 126
      %v2185 = vpop.permute.xlu0 %2184
      %v2186 = vsel %vm930, %v2179, %v2181
      %v2187 = vsel %vm930, %v2181, %v2183
      %v2188 = vsel %vm930, %v2183, %v2185
      %v2194 = vsel %vm2005, %v2177, 0
      %2196 = vmatprep.subr.bf16.mxu0 %v2187
      %2197 = vmatpush1.bf16.msra.mxu0 %v2186
      %2198 = vmatprep.subr.bf16.mxu0 0
      %2199 = vmatpush1.bf16.msra.mxu0 0
      %2200 = vmatprep.subr.bf16.mxu0 0
      %2201 = vmatpush1.bf16.msra.mxu0 0
      %2202 = vmatprep.subr.bf16.mxu0 0
      %2203 = vmatpush1.bf16.msra.mxu0 0
      %2204 = vmatprep.subr.bf16.mxu0 0
      %2205 = vmatpush1.bf16.msra.mxu0 0
      %2206 = vmatprep.subr.bf16.mxu0 0
      %2207 = vmatpush1.bf16.msra.mxu0 0
      %2208 = vmatprep.subr.bf16.mxu0 0
      %2209 = vmatpush1.bf16.msra.mxu0 0
      %2210 = vmatprep.subr.bf16.mxu0 0
      %2211 = vmatpush1.bf16.msra.mxu0 0
      %2212 = vmatprep.subr.bf16.mxu0 0
      %2213 = vmatpush1.bf16.msra.mxu0 0
      %2214 = vmatprep.subr.bf16.mxu0 0
      %2215 = vmatpush1.bf16.msra.mxu0 0
      %2216 = vmatprep.subr.bf16.mxu0 0
      %2217 = vmatpush1.bf16.msra.mxu0 0
      %2218 = vmatprep.subr.bf16.mxu0 0
      %2219 = vmatpush1.bf16.msra.mxu0 0
      %2220 = vmatprep.subr.bf16.mxu0 0
      %2221 = vmatpush1.bf16.msra.mxu0 0
      %2222 = vmatprep.subr.bf16.mxu0 0
      %2223 = vmatpush1.bf16.msra.mxu0 0
      %2224 = vmatprep.subr.bf16.mxu0 0
      %2225 = vmatpush1.bf16.msra.mxu0 0
      %2226 = vmatprep.subr.bf16.mxu0 0
      %2227 = vmatpush1.bf16.msra.mxu0 0
      %2228 = vmatprep.mubr.bf16.mxu0 0
      %2229 = vmatmul.mubr.bf16.gmra.mrb[0].mxu0 %v2194
      %v2230 = vpop.f32.mrb[0].mxu0
      %v2231 = vadd.f32 0.0, %v2230
      %v2232 = vpop.f32.mrb[0].mxu0
      %v2233 = vadd.f32 0.0, %v2232
      %v2234 = vpop.f32.mrb[0].mxu0
      %v2235 = vpop.f32.mrb[0].mxu0
      %2236 = vdwg.mxu0
      %2237 = vmatprep.subr.bf16.mxu0 %v2185
      %2238 = vmatpush1.bf16.msra.mxu0 %v2188
      %2239 = vmatprep.subr.bf16.mxu0 0
      %2240 = vmatpush1.bf16.msra.mxu0 0
      %2241 = vmatprep.subr.bf16.mxu0 0
      %2242 = vmatpush1.bf16.msra.mxu0 0
      %2243 = vmatprep.subr.bf16.mxu0 0
      %2244 = vmatpush1.bf16.msra.mxu0 0
      %2245 = vmatprep.subr.bf16.mxu0 0
      %2246 = vmatpush1.bf16.msra.mxu0 0
      %2247 = vmatprep.subr.bf16.mxu0 0
      %2248 = vmatpush1.bf16.msra.mxu0 0
      %2249 = vmatprep.subr.bf16.mxu0 0
      %2250 = vmatpush1.bf16.msra.mxu0 0
      %2251 = vmatprep.subr.bf16.mxu0 0
      %2252 = vmatpush1.bf16.msra.mxu0 0
      %2253 = vmatprep.subr.bf16.mxu0 0
      %2254 = vmatpush1.bf16.msra.mxu0 0
      %2255 = vmatprep.subr.bf16.mxu0 0
      %2256 = vmatpush1.bf16.msra.mxu0 0
      %2257 = vmatprep.subr.bf16.mxu0 0
      %2258 = vmatpush1.bf16.msra.mxu0 0
      %2259 = vmatprep.subr.bf16.mxu0 0
      %2260 = vmatpush1.bf16.msra.mxu0 0
      %2261 = vmatprep.subr.bf16.mxu0 0
      %2262 = vmatpush1.bf16.msra.mxu0 0
      %2263 = vmatprep.subr.bf16.mxu0 0
      %2264 = vmatpush1.bf16.msra.mxu0 0
      %2265 = vmatprep.subr.bf16.mxu0 0
      %2266 = vmatpush1.bf16.msra.mxu0 0
      %2267 = vmatprep.subr.bf16.mxu0 0
      %2268 = vmatpush1.bf16.msra.mxu0 0
      %2269 = vmatprep.mubr.bf16.mxu0 0
      %2270 = vmatmul.mubr.bf16.gmra.mrb[0].mxu0 %v2194
      %v2271 = vpop.f32.mrb[0].mxu0
      %v2272 = vadd.f32 0.0, %v2271
      %v2273 = vpop.f32.mrb[0].mxu0
      %v2274 = vadd.f32 0.0, %v2273
      %v2275 = vpop.f32.mrb[0].mxu0
      %v2276 = vpop.f32.mrb[0].mxu0
      %2277 = vdwg.mxu0
      %v2278 = vadd.f32 %v2129, %v2231
      %v2279 = vadd.f32 %v2131, %v2233
      %v2280 = vadd.f32 %v2170, %v2272
      %v2281 = vadd.f32 %v2172, %v2274
      %s2282 = scalar_lea.vmem %s2, 12
      %v2283 = vld [vmem:[%s2282] sm:$0xf]
      %2284 = vrot.lane.b32.xlu0 %v1979, 125
      %v2285 = vpop.permute.xlu0 %2284
      %2286 = vrot.lane.b32.xlu0 %v1980, 125
      %v2287 = vpop.permute.xlu0 %2286
      %2288 = vrot.lane.b32.xlu0 %v1981, 125
      %v2289 = vpop.permute.xlu0 %2288
      %2290 = vrot.lane.b32.xlu0 %v1982, 125
      %v2291 = vpop.permute.xlu0 %2290
      %vm2292 = vcmask 1022976
      %v2293 = vsel %vm2292, %v2285, %v2287
      %v2294 = vsel %vm2292, %v2287, %v2289
      %v2295 = vsel %vm2292, %v2289, %v2291
      %v2301 = vsel %vm2005, %v2283, 0
      %2303 = vmatprep.subr.bf16.mxu0 %v2294
      %2304 = vmatpush1.bf16.msra.mxu0 %v2293
      %2305 = vmatprep.subr.bf16.mxu0 0
      %2306 = vmatpush1.bf16.msra.mxu0 0
      %2307 = vmatprep.subr.bf16.mxu0 0
      %2308 = vmatpush1.bf16.msra.mxu0 0
      %2309 = vmatprep.subr.bf16.mxu0 0
      %2310 = vmatpush1.bf16.msra.mxu0 0
      %2311 = vmatprep.subr.bf16.mxu0 0
      %2312 = vmatpush1.bf16.msra.mxu0 0
      %2313 = vmatprep.subr.bf16.mxu0 0
      %2314 = vmatpush1.bf16.msra.mxu0 0
      %2315 = vmatprep.subr.bf16.mxu0 0
      %2316 = vmatpush1.bf16.msra.mxu0 0
      %2317 = vmatprep.subr.bf16.mxu0 0
      %2318 = vmatpush1.bf16.msra.mxu0 0
      %2319 = vmatprep.subr.bf16.mxu0 0
      %2320 = vmatpush1.bf16.msra.mxu0 0
      %2321 = vmatprep.subr.bf16.mxu0 0
      %2322 = vmatpush1.bf16.msra.mxu0 0
      %2323 = vmatprep.subr.bf16.mxu0 0
      %2324 = vmatpush1.bf16.msra.mxu0 0
      %2325 = vmatprep.subr.bf16.mxu0 0
      %2326 = vmatpush1.bf16.msra.mxu0 0
      %2327 = vmatprep.subr.bf16.mxu0 0
      %2328 = vmatpush1.bf16.msra.mxu0 0
      %2329 = vmatprep.subr.bf16.mxu0 0
      %2330 = vmatpush1.bf16.msra.mxu0 0
      %2331 = vmatprep.subr.bf16.mxu0 0
      %2332 = vmatpush1.bf16.msra.mxu0 0
      %2333 = vmatprep.subr.bf16.mxu0 0
      %2334 = vmatpush1.bf16.msra.mxu0 0
      %2335 = vmatprep.mubr.bf16.mxu0 0
      %2336 = vmatmul.mubr.bf16.gmra.mrb[0].mxu0 %v2301
      %v2337 = vpop.f32.mrb[0].mxu0
      %v2338 = vadd.f32 0.0, %v2337
      %v2339 = vpop.f32.mrb[0].mxu0
      %v2340 = vadd.f32 0.0, %v2339
      %v2341 = vpop.f32.mrb[0].mxu0
      %v2342 = vpop.f32.mrb[0].mxu0
      %2343 = vdwg.mxu0
      %2344 = vmatprep.subr.bf16.mxu0 %v2291
      %2345 = vmatpush1.bf16.msra.mxu0 %v2295
      %2346 = vmatprep.subr.bf16.mxu0 0
      %2347 = vmatpush1.bf16.msra.mxu0 0
      %2348 = vmatprep.subr.bf16.mxu0 0
      %2349 = vmatpush1.bf16.msra.mxu0 0
      %2350 = vmatprep.subr.bf16.mxu0 0
      %2351 = vmatpush1.bf16.msra.mxu0 0
      %2352 = vmatprep.subr.bf16.mxu0 0
      %2353 = vmatpush1.bf16.msra.mxu0 0
      %2354 = vmatprep.subr.bf16.mxu0 0
      %2355 = vmatpush1.bf16.msra.mxu0 0
      %2356 = vmatprep.subr.bf16.mxu0 0
      %2357 = vmatpush1.bf16.msra.mxu0 0
      %2358 = vmatprep.subr.bf16.mxu0 0
      %2359 = vmatpush1.bf16.msra.mxu0 0
      %2360 = vmatprep.subr.bf16.mxu0 0
      %2361 = vmatpush1.bf16.msra.mxu0 0
      %2362 = vmatprep.subr.bf16.mxu0 0
      %2363 = vmatpush1.bf16.msra.mxu0 0
      %2364 = vmatprep.subr.bf16.mxu0 0
      %2365 = vmatpush1.bf16.msra.mxu0 0
      %2366 = vmatprep.subr.bf16.mxu0 0
      %2367 = vmatpush1.bf16.msra.mxu0 0
      %2368 = vmatprep.subr.bf16.mxu0 0
      %2369 = vmatpush1.bf16.msra.mxu0 0
      %2370 = vmatprep.subr.bf16.mxu0 0
      %2371 = vmatpush1.bf16.msra.mxu0 0
      %2372 = vmatprep.subr.bf16.mxu0 0
      %2373 = vmatpush1.bf16.msra.mxu0 0
      %2374 = vmatprep.subr.bf16.mxu0 0
      %2375 = vmatpush1.bf16.msra.mxu0 0
      %2376 = vmatprep.mubr.bf16.mxu0 0
      %2377 = vmatmul.mubr.bf16.gmra.mrb[0].mxu0 %v2301
      %v2378 = vpop.f32.mrb[0].mxu0
      %v2379 = vadd.f32 0.0, %v2378
      %v2380 = vpop.f32.mrb[0].mxu0
      %v2381 = vadd.f32 0.0, %v2380
      %v2382 = vpop.f32.mrb[0].mxu0
      %v2383 = vpop.f32.mrb[0].mxu0
      %2384 = vdwg.mxu0
      %v2385 = vadd.f32 %v2278, %v2338
      %v2386 = vadd.f32 %v2279, %v2340
      %v2387 = vadd.f32 %v2280, %v2379
      %v2388 = vadd.f32 %v2281, %v2381
      %s2389 = scalar_lea.vmem %s2, 16
      %v2390 = vld [vmem:[%s2389] sm:$0xf]
      %2391 = vrot.lane.b32.xlu0 %v1979, 124
      %v2392 = vpop.permute.xlu0 %2391
      %2393 = vrot.lane.b32.xlu0 %v1980, 124
      %v2394 = vpop.permute.xlu0 %2393
      %2395 = vrot.lane.b32.xlu0 %v1981, 124
      %v2396 = vpop.permute.xlu0 %2395
      %2397 = vrot.lane.b32.xlu0 %v1982, 124
      %v2398 = vpop.permute.xlu0 %2397
      %vm2399 = vcmask 1014784
      %v2400 = vsel %vm2399, %v2392, %v2394
      %v2401 = vsel %vm2399, %v2394, %v2396
      %v2402 = vsel %vm2399, %v2396, %v2398
      %v2408 = vsel %vm2005, %v2390, 0
      %2410 = vmatprep.subr.bf16.mxu0 %v2401
      %2411 = vmatpush1.bf16.msra.mxu0 %v2400
      %2412 = vmatprep.subr.bf16.mxu0 0
      %2413 = vmatpush1.bf16.msra.mxu0 0
      %2414 = vmatprep.subr.bf16.mxu0 0
      %2415 = vmatpush1.bf16.msra.mxu0 0
      %2416 = vmatprep.subr.bf16.mxu0 0
      %2417 = vmatpush1.bf16.msra.mxu0 0
      %2418 = vmatprep.subr.bf16.mxu0 0
      %2419 = vmatpush1.bf16.msra.mxu0 0
      %2420 = vmatprep.subr.bf16.mxu0 0
      %2421 = vmatpush1.bf16.msra.mxu0 0
      %2422 = vmatprep.subr.bf16.mxu0 0
      %2423 = vmatpush1.bf16.msra.mxu0 0
      %2424 = vmatprep.subr.bf16.mxu0 0
      %2425 = vmatpush1.bf16.msra.mxu0 0
      %2426 = vmatprep.subr.bf16.mxu0 0
      %2427 = vmatpush1.bf16.msra.mxu0 0
      %2428 = vmatprep.subr.bf16.mxu0 0
      %2429 = vmatpush1.bf16.msra.mxu0 0
      %2430 = vmatprep.subr.bf16.mxu0 0
      %2431 = vmatpush1.bf16.msra.mxu0 0
      %2432 = vmatprep.subr.bf16.mxu0 0
      %2433 = vmatpush1.bf16.msra.mxu0 0
      %2434 = vmatprep.subr.bf16.mxu0 0
      %2435 = vmatpush1.bf16.msra.mxu0 0
      %2436 = vmatprep.subr.bf16.mxu0 0
      %2437 = vmatpush1.bf16.msra.mxu0 0
      %2438 = vmatprep.subr.bf16.mxu0 0
      %2439 = vmatpush1.bf16.msra.mxu0 0
      %2440 = vmatprep.subr.bf16.mxu0 0
      %2441 = vmatpush1.bf16.msra.mxu0 0
      %2442 = vmatprep.mubr.bf16.mxu0 0
      %2443 = vmatmul.mubr.bf16.gmra.mrb[0].mxu0 %v2408
      %v2444 = vpop.f32.mrb[0].mxu0
      %v2445 = vadd.f32 0.0, %v2444
      %v2446 = vpop.f32.mrb[0].mxu0
      %v2447 = vadd.f32 0.0, %v2446
      %v2448 = vpop.f32.mrb[0].mxu0
      %v2449 = vpop.f32.mrb[0].mxu0
      %2450 = vdwg.mxu0
      %2451 = vmatprep.subr.bf16.mxu0 %v2398
      %2452 = vmatpush1.bf16.msra.mxu0 %v2402
      %2453 = vmatprep.subr.bf16.mxu0 0
      %2454 = vmatpush1.bf16.msra.mxu0 0
      %2455 = vmatprep.subr.bf16.mxu0 0
      %2456 = vmatpush1.bf16.msra.mxu0 0
      %2457 = vmatprep.subr.bf16.mxu0 0
      %2458 = vmatpush1.bf16.msra.mxu0 0
      %2459 = vmatprep.subr.bf16.mxu0 0
      %2460 = vmatpush1.bf16.msra.mxu0 0
      %2461 = vmatprep.subr.bf16.mxu0 0
      %2462 = vmatpush1.bf16.msra.mxu0 0
      %2463 = vmatprep.subr.bf16.mxu0 0
      %2464 = vmatpush1.bf16.msra.mxu0 0
      %2465 = vmatprep.subr.bf16.mxu0 0
      %2466 = vmatpush1.bf16.msra.mxu0 0
      %2467 = vmatprep.subr.bf16.mxu0 0
      %2468 = vmatpush1.bf16.msra.mxu0 0
      %2469 = vmatprep.subr.bf16.mxu0 0
      %2470 = vmatpush1.bf16.msra.mxu0 0
      %2471 = vmatprep.subr.bf16.mxu0 0
      %2472 = vmatpush1.bf16.msra.mxu0 0
      %2473 = vmatprep.subr.bf16.mxu0 0
      %2474 = vmatpush1.bf16.msra.mxu0 0
      %2475 = vmatprep.subr.bf16.mxu0 0
      %2476 = vmatpush1.bf16.msra.mxu0 0
      %2477 = vmatprep.subr.bf16.mxu0 0
      %2478 = vmatpush1.bf16.msra.mxu0 0
      %2479 = vmatprep.subr.bf16.mxu0 0
      %2480 = vmatpush1.bf16.msra.mxu0 0
      %2481 = vmatprep.subr.bf16.mxu0 0
      %2482 = vmatpush1.bf16.msra.mxu0 0
      %2483 = vmatprep.mubr.bf16.mxu0 0
      %2484 = vmatmul.mubr.bf16.gmra.mrb[0].mxu0 %v2408
      %v2485 = vpop.f32.mrb[0].mxu0
      %v2486 = vadd.f32 0.0, %v2485
      %v2487 = vpop.f32.mrb[0].mxu0
      %v2488 = vadd.f32 0.0, %v2487
      %v2489 = vpop.f32.mrb[0].mxu0
      %v2490 = vpop.f32.mrb[0].mxu0
      %2491 = vdwg.mxu0
      %v2492 = vadd.f32 %v2385, %v2445
      %v2493 = vadd.f32 %v2386, %v2447
      %v2494 = vadd.f32 %v2387, %v2486
      %v2495 = vadd.f32 %v2388, %v2488
      %s2496 = scalar_lea.vmem %s2, 20
      %v2497 = vld [vmem:[%s2496] sm:$0xf]
      %2498 = vrot.lane.b32.xlu0 %v1979, 104
      %v2499 = vpop.permute.xlu0 %2498
      %2500 = vrot.lane.b32.xlu0 %v1980, 104
      %v2501 = vpop.permute.xlu0 %2500
      %2502 = vrot.lane.b32.xlu0 %v1981, 104
      %v2503 = vpop.permute.xlu0 %2502
      %2504 = vrot.lane.b32.xlu0 %v1982, 104
      %v2505 = vpop.permute.xlu0 %2504
      %vm2506 = vcmask 850944
      %v2507 = vsel %vm2506, %v2499, %v2501
      %v2508 = vsel %vm2506, %v2501, %v2503
      %v2509 = vsel %vm2506, %v2503, %v2505
      %v2515 = vsel %vm2005, %v2497, 0
      %2517 = vmatprep.subr.bf16.mxu0 %v2508
      %2518 = vmatpush1.bf16.msra.mxu0 %v2507
      %2519 = vmatprep.subr.bf16.mxu0 0
      %2520 = vmatpush1.bf16.msra.mxu0 0
      %2521 = vmatprep.subr.bf16.mxu0 0
      %2522 = vmatpush1.bf16.msra.mxu0 0
      %2523 = vmatprep.subr.bf16.mxu0 0
      %2524 = vmatpush1.bf16.msra.mxu0 0
      %2525 = vmatprep.subr.bf16.mxu0 0
      %2526 = vmatpush1.bf16.msra.mxu0 0
      %2527 = vmatprep.subr.bf16.mxu0 0
      %2528 = vmatpush1.bf16.msra.mxu0 0
      %2529 = vmatprep.subr.bf16.mxu0 0
      %2530 = vmatpush1.bf16.msra.mxu0 0
      %2531 = vmatprep.subr.bf16.mxu0 0
      %2532 = vmatpush1.bf16.msra.mxu0 0
      %2533 = vmatprep.subr.bf16.mxu0 0
      %2534 = vmatpush1.bf16.msra.mxu0 0
      %2535 = vmatprep.subr.bf16.mxu0 0
      %2536 = vmatpush1.bf16.msra.mxu0 0
      %2537 = vmatprep.subr.bf16.mxu0 0
      %2538 = vmatpush1.bf16.msra.mxu0 0
      %2539 = vmatprep.subr.bf16.mxu0 0
      %2540 = vmatpush1.bf16.msra.mxu0 0
      %2541 = vmatprep.subr.bf16.mxu0 0
      %2542 = vmatpush1.bf16.msra.mxu0 0
      %2543 = vmatprep.subr.bf16.mxu0 0
      %2544 = vmatpush1.bf16.msra.mxu0 0
      %2545 = vmatprep.subr.bf16.mxu0 0
      %2546 = vmatpush1.bf16.msra.mxu0 0
      %2547 = vmatprep.subr.bf16.mxu0 0
      %2548 = vmatpush1.bf16.msra.mxu0 0
      %2549 = vmatprep.mubr.bf16.mxu0 0
      %2550 = vmatmul.mubr.bf16.gmra.mrb[0].mxu0 %v2515
      %v2551 = vpop.f32.mrb[0].mxu0
      %v2552 = vadd.f32 0.0, %v2551
      %v2553 = vpop.f32.mrb[0].mxu0
      %v2554 = vadd.f32 0.0, %v2553
      %v2555 = vpop.f32.mrb[0].mxu0
      %v2556 = vpop.f32.mrb[0].mxu0
      %2557 = vdwg.mxu0
      %2558 = vmatprep.subr.bf16.mxu0 %v2505
      %2559 = vmatpush1.bf16.msra.mxu0 %v2509
      %2560 = vmatprep.subr.bf16.mxu0 0
      %2561 = vmatpush1.bf16.msra.mxu0 0
      %2562 = vmatprep.subr.bf16.mxu0 0
      %2563 = vmatpush1.bf16.msra.mxu0 0
      %2564 = vmatprep.subr.bf16.mxu0 0
      %2565 = vmatpush1.bf16.msra.mxu0 0
      %2566 = vmatprep.subr.bf16.mxu0 0
      %2567 = vmatpush1.bf16.msra.mxu0 0
      %2568 = vmatprep.subr.bf16.mxu0 0
      %2569 = vmatpush1.bf16.msra.mxu0 0
      %2570 = vmatprep.subr.bf16.mxu0 0
      %2571 = vmatpush1.bf16.msra.mxu0 0
      %2572 = vmatprep.subr.bf16.mxu0 0
      %2573 = vmatpush1.bf16.msra.mxu0 0
      %2574 = vmatprep.subr.bf16.mxu0 0
      %2575 = vmatpush1.bf16.msra.mxu0 0
      %2576 = vmatprep.subr.bf16.mxu0 0
      %2577 = vmatpush1.bf16.msra.mxu0 0
      %2578 = vmatprep.subr.bf16.mxu0 0
      %2579 = vmatpush1.bf16.msra.mxu0 0
      %2580 = vmatprep.subr.bf16.mxu0 0
      %2581 = vmatpush1.bf16.msra.mxu0 0
      %2582 = vmatprep.subr.bf16.mxu0 0
      %2583 = vmatpush1.bf16.msra.mxu0 0
      %2584 = vmatprep.subr.bf16.mxu0 0
      %2585 = vmatpush1.bf16.msra.mxu0 0
      %2586 = vmatprep.subr.bf16.mxu0 0
      %2587 = vmatpush1.bf16.msra.mxu0 0
      %2588 = vmatprep.subr.bf16.mxu0 0
      %2589 = vmatpush1.bf16.msra.mxu0 0
      %2590 = vmatprep.mubr.bf16.mxu0 0
      %2591 = vmatmul.mubr.bf16.gmra.mrb[0].mxu0 %v2515
      %v2592 = vpop.f32.mrb[0].mxu0
      %v2593 = vadd.f32 0.0, %v2592
      %v2594 = vpop.f32.mrb[0].mxu0
      %v2595 = vadd.f32 0.0, %v2594
      %v2596 = vpop.f32.mrb[0].mxu0
      %v2597 = vpop.f32.mrb[0].mxu0
      %2598 = vdwg.mxu0
      %v2599 = vadd.f32 %v2492, %v2552
      %v2600 = vadd.f32 %v2493, %v2554
      %v2601 = vadd.f32 %v2494, %v2593
      %v2602 = vadd.f32 %v2495, %v2595
      %s2603 = scalar_lea.vmem %s2, 24
      %v2604 = vld [vmem:[%s2603] sm:$0xf]
      %2605 = vrot.lane.b32.xlu0 %v1979, 103
      %v2606 = vpop.permute.xlu0 %2605
      %2607 = vrot.lane.b32.xlu0 %v1980, 103
      %v2608 = vpop.permute.xlu0 %2607
      %2609 = vrot.lane.b32.xlu0 %v1981, 103
      %v2610 = vpop.permute.xlu0 %2609
      %2611 = vrot.lane.b32.xlu0 %v1982, 103
      %v2612 = vpop.permute.xlu0 %2611
      %vm2613 = vcmask 842752
      %v2614 = vsel %vm2613, %v2606, %v2608
      %v2615 = vsel %vm2613, %v2608, %v2610
      %v2616 = vsel %vm2613, %v2610, %v2612
      %v2622 = vsel %vm2005, %v2604, 0
      %2624 = vmatprep.subr.bf16.mxu0 %v2615
      %2625 = vmatpush1.bf16.msra.mxu0 %v2614
      %2626 = vmatprep.subr.bf16.mxu0 0
      %2627 = vmatpush1.bf16.msra.mxu0 0
      %2628 = vmatprep.subr.bf16.mxu0 0
      %2629 = vmatpush1.bf16.msra.mxu0 0
      %2630 = vmatprep.subr.bf16.mxu0 0
      %2631 = vmatpush1.bf16.msra.mxu0 0
      %2632 = vmatprep.subr.bf16.mxu0 0
      %2633 = vmatpush1.bf16.msra.mxu0 0
      %2634 = vmatprep.subr.bf16.mxu0 0
      %2635 = vmatpush1.bf16.msra.mxu0 0
      %2636 = vmatprep.subr.bf16.mxu0 0
      %2637 = vmatpush1.bf16.msra.mxu0 0
      %2638 = vmatprep.subr.bf16.mxu0 0
      %2639 = vmatpush1.bf16.msra.mxu0 0
      %2640 = vmatprep.subr.bf16.mxu0 0
      %2641 = vmatpush1.bf16.msra.mxu0 0
      %2642 = vmatprep.subr.bf16.mxu0 0
      %2643 = vmatpush1.bf16.msra.mxu0 0
      %2644 = vmatprep.subr.bf16.mxu0 0
      %2645 = vmatpush1.bf16.msra.mxu0 0
      %2646 = vmatprep.subr.bf16.mxu0 0
      %2647 = vmatpush1.bf16.msra.mxu0 0
      %2648 = vmatprep.subr.bf16.mxu0 0
      %2649 = vmatpush1.bf16.msra.mxu0 0
      %2650 = vmatprep.subr.bf16.mxu0 0
      %2651 = vmatpush1.bf16.msra.mxu0 0
      %2652 = vmatprep.subr.bf16.mxu0 0
      %2653 = vmatpush1.bf16.msra.mxu0 0
      %2654 = vmatprep.subr.bf16.mxu0 0
      %2655 = vmatpush1.bf16.msra.mxu0 0
      %2656 = vmatprep.mubr.bf16.mxu0 0
      %2657 = vmatmul.mubr.bf16.gmra.mrb[0].mxu0 %v2622
      %v2658 = vpop.f32.mrb[0].mxu0
      %v2659 = vadd.f32 0.0, %v2658
      %v2660 = vpop.f32.mrb[0].mxu0
      %v2661 = vadd.f32 0.0, %v2660
      %v2662 = vpop.f32.mrb[0].mxu0
      %v2663 = vpop.f32.mrb[0].mxu0
      %2664 = vdwg.mxu0
      %2665 = vmatprep.subr.bf16.mxu0 %v2612
      %2666 = vmatpush1.bf16.msra.mxu0 %v2616
      %2667 = vmatprep.subr.bf16.mxu0 0
      %2668 = vmatpush1.bf16.msra.mxu0 0
      %2669 = vmatprep.subr.bf16.mxu0 0
      %2670 = vmatpush1.bf16.msra.mxu0 0
      %2671 = vmatprep.subr.bf16.mxu0 0
      %2672 = vmatpush1.bf16.msra.mxu0 0
      %2673 = vmatprep.subr.bf16.mxu0 0
      %2674 = vmatpush1.bf16.msra.mxu0 0
      %2675 = vmatprep.subr.bf16.mxu0 0
      %2676 = vmatpush1.bf16.msra.mxu0 0
      %2677 = vmatprep.subr.bf16.mxu0 0
      %2678 = vmatpush1.bf16.msra.mxu0 0
      %2679 = vmatprep.subr.bf16.mxu0 0
      %2680 = vmatpush1.bf16.msra.mxu0 0
      %2681 = vmatprep.subr.bf16.mxu0 0
      %2682 = vmatpush1.bf16.msra.mxu0 0
      %2683 = vmatprep.subr.bf16.mxu0 0
      %2684 = vmatpush1.bf16.msra.mxu0 0
      %2685 = vmatprep.subr.bf16.mxu0 0
      %2686 = vmatpush1.bf16.msra.mxu0 0
      %2687 = vmatprep.subr.bf16.mxu0 0
      %2688 = vmatpush1.bf16.msra.mxu0 0
      %2689 = vmatprep.subr.bf16.mxu0 0
      %2690 = vmatpush1.bf16.msra.mxu0 0
      %2691 = vmatprep.subr.bf16.mxu0 0
      %2692 = vmatpush1.bf16.msra.mxu0 0
      %2693 = vmatprep.subr.bf16.mxu0 0
      %2694 = vmatpush1.bf16.msra.mxu0 0
      %2695 = vmatprep.subr.bf16.mxu0 0
      %2696 = vmatpush1.bf16.msra.mxu0 0
      %2697 = vmatprep.mubr.bf16.mxu0 0
      %2698 = vmatmul.mubr.bf16.gmra.mrb[0].mxu0 %v2622
      %v2699 = vpop.f32.mrb[0].mxu0
      %v2700 = vadd.f32 0.0, %v2699
      %v2701 = vpop.f32.mrb[0].mxu0
      %v2702 = vadd.f32 0.0, %v2701
      %v2703 = vpop.f32.mrb[0].mxu0
      %v2704 = vpop.f32.mrb[0].mxu0
      %2705 = vdwg.mxu0
      %v2706 = vadd.f32 %v2599, %v2659
      %v2707 = vadd.f32 %v2600, %v2661
      %v2708 = vadd.f32 %v2601, %v2700
      %v2709 = vadd.f32 %v2602, %v2702
      %s2710 = scalar_lea.vmem %s2, 28
      %v2711 = vld [vmem:[%s2710] sm:$0xf]
      %2712 = vrot.lane.b32.xlu0 %v1979, 102
      %v2713 = vpop.permute.xlu0 %2712
      %2714 = vrot.lane.b32.xlu0 %v1980, 102
      %v2715 = vpop.permute.xlu0 %2714
      %2716 = vrot.lane.b32.xlu0 %v1981, 102
      %v2717 = vpop.permute.xlu0 %2716
      %2718 = vrot.lane.b32.xlu0 %v1982, 102
      %v2719 = vpop.permute.xlu0 %2718
      %vm2720 = vcmask 834560
      %v2721 = vsel %vm2720, %v2713, %v2715
      %v2722 = vsel %vm2720, %v2715, %v2717
      %v2723 = vsel %vm2720, %v2717, %v2719
      %v2729 = vsel %vm2005, %v2711, 0
      %2731 = vmatprep.subr.bf16.mxu0 %v2722
      %2732 = vmatpush1.bf16.msra.mxu0 %v2721
      %2733 = vmatprep.subr.bf16.mxu0 0
      %2734 = vmatpush1.bf16.msra.mxu0 0
      %2735 = vmatprep.subr.bf16.mxu0 0
      %2736 = vmatpush1.bf16.msra.mxu0 0
      %2737 = vmatprep.subr.bf16.mxu0 0
      %2738 = vmatpush1.bf16.msra.mxu0 0
      %2739 = vmatprep.subr.bf16.mxu0 0
      %2740 = vmatpush1.bf16.msra.mxu0 0
      %2741 = vmatprep.subr.bf16.mxu0 0
      %2742 = vmatpush1.bf16.msra.mxu0 0
      %2743 = vmatprep.subr.bf16.mxu0 0
      %2744 = vmatpush1.bf16.msra.mxu0 0
      %2745 = vmatprep.subr.bf16.mxu0 0
      %2746 = vmatpush1.bf16.msra.mxu0 0
      %2747 = vmatprep.subr.bf16.mxu0 0
      %2748 = vmatpush1.bf16.msra.mxu0 0
      %2749 = vmatprep.subr.bf16.mxu0 0
      %2750 = vmatpush1.bf16.msra.mxu0 0
      %2751 = vmatprep.subr.bf16.mxu0 0
      %2752 = vmatpush1.bf16.msra.mxu0 0
      %2753 = vmatprep.subr.bf16.mxu0 0
      %2754 = vmatpush1.bf16.msra.mxu0 0
      %2755 = vmatprep.subr.bf16.mxu0 0
      %2756 = vmatpush1.bf16.msra.mxu0 0
      %2757 = vmatprep.subr.bf16.mxu0 0
      %2758 = vmatpush1.bf16.msra.mxu0 0
      %2759 = vmatprep.subr.bf16.mxu0 0
      %2760 = vmatpush1.bf16.msra.mxu0 0
      %2761 = vmatprep.subr.bf16.mxu0 0
      %2762 = vmatpush1.bf16.msra.mxu0 0
      %2763 = vmatprep.mubr.bf16.mxu0 0
      %2764 = vmatmul.mubr.bf16.gmra.mrb[0].mxu0 %v2729
      %v2765 = vpop.f32.mrb[0].mxu0
      %v2766 = vadd.f32 0.0, %v2765
      %v2767 = vpop.f32.mrb[0].mxu0
      %v2768 = vadd.f32 0.0, %v2767
      %v2769 = vpop.f32.mrb[0].mxu0
      %v2770 = vpop.f32.mrb[0].mxu0
      %2771 = vdwg.mxu0
      %2772 = vmatprep.subr.bf16.mxu0 %v2719
      %2773 = vmatpush1.bf16.msra.mxu0 %v2723
      %2774 = vmatprep.subr.bf16.mxu0 0
      %2775 = vmatpush1.bf16.msra.mxu0 0
      %2776 = vmatprep.subr.bf16.mxu0 0
      %2777 = vmatpush1.bf16.msra.mxu0 0
      %2778 = vmatprep.subr.bf16.mxu0 0
      %2779 = vmatpush1.bf16.msra.mxu0 0
      %2780 = vmatprep.subr.bf16.mxu0 0
      %2781 = vmatpush1.bf16.msra.mxu0 0
      %2782 = vmatprep.subr.bf16.mxu0 0
      %2783 = vmatpush1.bf16.msra.mxu0 0
      %2784 = vmatprep.subr.bf16.mxu0 0
      %2785 = vmatpush1.bf16.msra.mxu0 0
      %2786 = vmatprep.subr.bf16.mxu0 0
      %2787 = vmatpush1.bf16.msra.mxu0 0
      %2788 = vmatprep.subr.bf16.mxu0 0
      %2789 = vmatpush1.bf16.msra.mxu0 0
      %2790 = vmatprep.subr.bf16.mxu0 0
      %2791 = vmatpush1.bf16.msra.mxu0 0
      %2792 = vmatprep.subr.bf16.mxu0 0
      %2793 = vmatpush1.bf16.msra.mxu0 0
      %2794 = vmatprep.subr.bf16.mxu0 0
      %2795 = vmatpush1.bf16.msra.mxu0 0
      %2796 = vmatprep.subr.bf16.mxu0 0
      %2797 = vmatpush1.bf16.msra.mxu0 0
      %2798 = vmatprep.subr.bf16.mxu0 0
      %2799 = vmatpush1.bf16.msra.mxu0 0
      %2800 = vmatprep.subr.bf16.mxu0 0
      %2801 = vmatpush1.bf16.msra.mxu0 0
      %2802 = vmatprep.subr.bf16.mxu0 0
      %2803 = vmatpush1.bf16.msra.mxu0 0
      %2804 = vmatprep.mubr.bf16.mxu0 0
      %2805 = vmatmul.mubr.bf16.gmra.mrb[0].mxu0 %v2729
      %v2806 = vpop.f32.mrb[0].mxu0
      %v2807 = vadd.f32 0.0, %v2806
      %v2808 = vpop.f32.mrb[0].mxu0
      %v2809 = vadd.f32 0.0, %v2808
      %v2810 = vpop.f32.mrb[0].mxu0
      %v2811 = vpop.f32.mrb[0].mxu0
      %2812 = vdwg.mxu0
      %v2813 = vadd.f32 %v2706, %v2766
      %v2814 = vadd.f32 %v2707, %v2768
      %v2815 = vadd.f32 %v2708, %v2807
      %v2816 = vadd.f32 %v2709, %v2809
      %s2817 = scalar_lea.vmem %s2, 32
      %v2818 = vld [vmem:[%s2817] sm:$0xf]
      %2819 = vrot.lane.b32.xlu0 %v1979, 101
      %v2820 = vpop.permute.xlu0 %2819
      %2821 = vrot.lane.b32.xlu0 %v1980, 101
      %v2822 = vpop.permute.xlu0 %2821
      %2823 = vrot.lane.b32.xlu0 %v1981, 101
      %v2824 = vpop.permute.xlu0 %2823
      %2825 = vrot.lane.b32.xlu0 %v1982, 101
      %v2826 = vpop.permute.xlu0 %2825
      %vm2827 = vcmask 826368
      %v2828 = vsel %vm2827, %v2820, %v2822
      %v2829 = vsel %vm2827, %v2822, %v2824
      %v2830 = vsel %vm2827, %v2824, %v2826
      %v2836 = vsel %vm2005, %v2818, 0
      %2838 = vmatprep.subr.bf16.mxu0 %v2829
      %2839 = vmatpush1.bf16.msra.mxu0 %v2828
      %2840 = vmatprep.subr.bf16.mxu0 0
      %2841 = vmatpush1.bf16.msra.mxu0 0
      %2842 = vmatprep.subr.bf16.mxu0 0
      %2843 = vmatpush1.bf16.msra.mxu0 0
      %2844 = vmatprep.subr.bf16.mxu0 0
      %2845 = vmatpush1.bf16.msra.mxu0 0
      %2846 = vmatprep.subr.bf16.mxu0 0
      %2847 = vmatpush1.bf16.msra.mxu0 0
      %2848 = vmatprep.subr.bf16.mxu0 0
      %2849 = vmatpush1.bf16.msra.mxu0 0
      %2850 = vmatprep.subr.bf16.mxu0 0
      %2851 = vmatpush1.bf16.msra.mxu0 0
      %2852 = vmatprep.subr.bf16.mxu0 0
      %2853 = vmatpush1.bf16.msra.mxu0 0
      %2854 = vmatprep.subr.bf16.mxu0 0
      %2855 = vmatpush1.bf16.msra.mxu0 0
      %2856 = vmatprep.subr.bf16.mxu0 0
      %2857 = vmatpush1.bf16.msra.mxu0 0
      %2858 = vmatprep.subr.bf16.mxu0 0
      %2859 = vmatpush1.bf16.msra.mxu0 0
      %2860 = vmatprep.subr.bf16.mxu0 0
      %2861 = vmatpush1.bf16.msra.mxu0 0
      %2862 = vmatprep.subr.bf16.mxu0 0
      %2863 = vmatpush1.bf16.msra.mxu0 0
      %2864 = vmatprep.subr.bf16.mxu0 0
      %2865 = vmatpush1.bf16.msra.mxu0 0
      %2866 = vmatprep.subr.bf16.mxu0 0
      %2867 = vmatpush1.bf16.msra.mxu0 0
      %2868 = vmatprep.subr.bf16.mxu0 0
      %2869 = vmatpush1.bf16.msra.mxu0 0
      %2870 = vmatprep.mubr.bf16.mxu0 0
      %2871 = vmatmul.mubr.bf16.gmra.mrb[0].mxu0 %v2836
      %v2872 = vpop.f32.mrb[0].mxu0
      %v2873 = vadd.f32 0.0, %v2872
      %v2874 = vpop.f32.mrb[0].mxu0
      %v2875 = vadd.f32 0.0, %v2874
      %v2876 = vpop.f32.mrb[0].mxu0
      %v2877 = vpop.f32.mrb[0].mxu0
      %2878 = vdwg.mxu0
      %2879 = vmatprep.subr.bf16.mxu0 %v2826
      %2880 = vmatpush1.bf16.msra.mxu0 %v2830
      %2881 = vmatprep.subr.bf16.mxu0 0
      %2882 = vmatpush1.bf16.msra.mxu0 0
      %2883 = vmatprep.subr.bf16.mxu0 0
      %2884 = vmatpush1.bf16.msra.mxu0 0
      %2885 = vmatprep.subr.bf16.mxu0 0
      %2886 = vmatpush1.bf16.msra.mxu0 0
      %2887 = vmatprep.subr.bf16.mxu0 0
      %2888 = vmatpush1.bf16.msra.mxu0 0
      %2889 = vmatprep.subr.bf16.mxu0 0
      %2890 = vmatpush1.bf16.msra.mxu0 0
      %2891 = vmatprep.subr.bf16.mxu0 0
      %2892 = vmatpush1.bf16.msra.mxu0 0
      %2893 = vmatprep.subr.bf16.mxu0 0
      %2894 = vmatpush1.bf16.msra.mxu0 0
      %2895 = vmatprep.subr.bf16.mxu0 0
      %2896 = vmatpush1.bf16.msra.mxu0 0
      %2897 = vmatprep.subr.bf16.mxu0 0
      %2898 = vmatpush1.bf16.msra.mxu0 0
      %2899 = vmatprep.subr.bf16.mxu0 0
      %2900 = vmatpush1.bf16.msra.mxu0 0
      %2901 = vmatprep.subr.bf16.mxu0 0
      %2902 = vmatpush1.bf16.msra.mxu0 0
      %2903 = vmatprep.subr.bf16.mxu0 0
      %2904 = vmatpush1.bf16.msra.mxu0 0
      %2905 = vmatprep.subr.bf16.mxu0 0
      %2906 = vmatpush1.bf16.msra.mxu0 0
      %2907 = vmatprep.subr.bf16.mxu0 0
      %2908 = vmatpush1.bf16.msra.mxu0 0
      %2909 = vmatprep.subr.bf16.mxu0 0
      %2910 = vmatpush1.bf16.msra.mxu0 0
      %2911 = vmatprep.mubr.bf16.mxu0 0
      %2912 = vmatmul.mubr.bf16.gmra.mrb[0].mxu0 %v2836
      %v2913 = vpop.f32.mrb[0].mxu0
      %v2914 = vadd.f32 0.0, %v2913
      %v2915 = vpop.f32.mrb[0].mxu0
      %v2916 = vadd.f32 0.0, %v2915
      %v2917 = vpop.f32.mrb[0].mxu0
      %v2918 = vpop.f32.mrb[0].mxu0
      %2919 = vdwg.mxu0
      %v2920 = vadd.f32 %v2813, %v2873
      %v2921 = vadd.f32 %v2814, %v2875
      %v2922 = vadd.f32 %v2815, %v2914
      %v2923 = vadd.f32 %v2816, %v2916
      %s2924 = scalar_lea.vmem %s2, 36
      %v2925 = vld [vmem:[%s2924] sm:$0xf]
      %2926 = vrot.lane.b32.xlu0 %v1979, 100
      %v2927 = vpop.permute.xlu0 %2926
      %2928 = vrot.lane.b32.xlu0 %v1980, 100
      %v2929 = vpop.permute.xlu0 %2928
      %2930 = vrot.lane.b32.xlu0 %v1981, 100
      %v2931 = vpop.permute.xlu0 %2930
      %2932 = vrot.lane.b32.xlu0 %v1982, 100
      %v2933 = vpop.permute.xlu0 %2932
      %vm2934 = vcmask 818176
      %v2935 = vsel %vm2934, %v2927, %v2929
      %v2936 = vsel %vm2934, %v2929, %v2931
      %v2937 = vsel %vm2934, %v2931, %v2933
      %v2943 = vsel %vm2005, %v2925, 0
      %2945 = vmatprep.subr.bf16.mxu0 %v2936
      %2946 = vmatpush1.bf16.msra.mxu0 %v2935
      %2947 = vmatprep.subr.bf16.mxu0 0
      %2948 = vmatpush1.bf16.msra.mxu0 0
      %2949 = vmatprep.subr.bf16.mxu0 0
      %2950 = vmatpush1.bf16.msra.mxu0 0
      %2951 = vmatprep.subr.bf16.mxu0 0
      %2952 = vmatpush1.bf16.msra.mxu0 0
      %2953 = vmatprep.subr.bf16.mxu0 0
      %2954 = vmatpush1.bf16.msra.mxu0 0
      %2955 = vmatprep.subr.bf16.mxu0 0
      %2956 = vmatpush1.bf16.msra.mxu0 0
      %2957 = vmatprep.subr.bf16.mxu0 0
      %2958 = vmatpush1.bf16.msra.mxu0 0
      %2959 = vmatprep.subr.bf16.mxu0 0
      %2960 = vmatpush1.bf16.msra.mxu0 0
      %2961 = vmatprep.subr.bf16.mxu0 0
      %2962 = vmatpush1.bf16.msra.mxu0 0
      %2963 = vmatprep.subr.bf16.mxu0 0
      %2964 = vmatpush1.bf16.msra.mxu0 0
      %2965 = vmatprep.subr.bf16.mxu0 0
      %2966 = vmatpush1.bf16.msra.mxu0 0
      %2967 = vmatprep.subr.bf16.mxu0 0
      %2968 = vmatpush1.bf16.msra.mxu0 0
      %2969 = vmatprep.subr.bf16.mxu0 0
      %2970 = vmatpush1.bf16.msra.mxu0 0
      %2971 = vmatprep.subr.bf16.mxu0 0
      %2972 = vmatpush1.bf16.msra.mxu0 0
      %2973 = vmatprep.subr.bf16.mxu0 0
      %2974 = vmatpush1.bf16.msra.mxu0 0
      %2975 = vmatprep.subr.bf16.mxu0 0
      %2976 = vmatpush1.bf16.msra.mxu0 0
      %2977 = vmatprep.mubr.bf16.mxu0 0
      %2978 = vmatmul.mubr.bf16.gmra.mrb[0].mxu0 %v2943
      %v2979 = vpop.f32.mrb[0].mxu0
      %v2980 = vadd.f32 0.0, %v2979
      %v2981 = vpop.f32.mrb[0].mxu0
      %v2982 = vadd.f32 0.0, %v2981
      %v2983 = vpop.f32.mrb[0].mxu0
      %v2984 = vpop.f32.mrb[0].mxu0
      %2985 = vdwg.mxu0
      %2986 = vmatprep.subr.bf16.mxu0 %v2933
      %2987 = vmatpush1.bf16.msra.mxu0 %v2937
      %2988 = vmatprep.subr.bf16.mxu0 0
      %2989 = vmatpush1.bf16.msra.mxu0 0
      %2990 = vmatprep.subr.bf16.mxu0 0
      %2991 = vmatpush1.bf16.msra.mxu0 0
      %2992 = vmatprep.subr.bf16.mxu0 0
      %2993 = vmatpush1.bf16.msra.mxu0 0
      %2994 = vmatprep.subr.bf16.mxu0 0
      %2995 = vmatpush1.bf16.msra.mxu0 0
      %2996 = vmatprep.subr.bf16.mxu0 0
      %2997 = vmatpush1.bf16.msra.mxu0 0
      %2998 = vmatprep.subr.bf16.mxu0 0
      %2999 = vmatpush1.bf16.msra.mxu0 0
      %3000 = vmatprep.subr.bf16.mxu0 0
      %3001 = vmatpush1.bf16.msra.mxu0 0
      %3002 = vmatprep.subr.bf16.mxu0 0
      %3003 = vmatpush1.bf16.msra.mxu0 0
      %3004 = vmatprep.subr.bf16.mxu0 0
      %3005 = vmatpush1.bf16.msra.mxu0 0
      %3006 = vmatprep.subr.bf16.mxu0 0
      %3007 = vmatpush1.bf16.msra.mxu0 0
      %3008 = vmatprep.subr.bf16.mxu0 0
      %3009 = vmatpush1.bf16.msra.mxu0 0
      %3010 = vmatprep.subr.bf16.mxu0 0
      %3011 = vmatpush1.bf16.msra.mxu0 0
      %3012 = vmatprep.subr.bf16.mxu0 0
      %3013 = vmatpush1.bf16.msra.mxu0 0
      %3014 = vmatprep.subr.bf16.mxu0 0
      %3015 = vmatpush1.bf16.msra.mxu0 0
      %3016 = vmatprep.subr.bf16.mxu0 0
      %3017 = vmatpush1.bf16.msra.mxu0 0
      %3018 = vmatprep.mubr.bf16.mxu0 0
      %3019 = vmatmul.mubr.bf16.gmra.mrb[0].mxu0 %v2943
      %v3020 = vpop.f32.mrb[0].mxu0
      %v3021 = vadd.f32 0.0, %v3020
      %v3022 = vpop.f32.mrb[0].mxu0
      %v3023 = vadd.f32 0.0, %v3022
      %v3024 = vpop.f32.mrb[0].mxu0
      %v3025 = vpop.f32.mrb[0].mxu0
      %3026 = vdwg.mxu0
      %v3027 = vadd.f32 %v2920, %v2980
      %v3028 = vadd.f32 %v2921, %v2982
      %v3029 = vadd.f32 %v2922, %v3021
      %v3030 = vadd.f32 %v2923, %v3023
      %v3031 = vld [vmem:[#allocation3] sm:$0xff]
      %v3032 = vld [vmem:[#allocation3 + $0x8] sm:$0xff]
      %v3033 = vld [vmem:[#allocation3 + $0x10] sm:$0xff]
      %v3034 = vld [vmem:[#allocation3 + $0x18] sm:$0xff]
      %v3035 = vld [vmem:[#allocation3 + $0x20] sm:$0xff]
      %s3036 = scalar_lea.vmem %s2, 40
      %v3037 = vld [vmem:[%s3036] sm:$0xf]
      %3043 = vrot.lane.b32.xlu0 %v3031, 80
      %v3044 = vpop.permute.xlu0 %3043
      %3045 = vrot.lane.b32.xlu0 %v3032, 80
      %v3046 = vpop.permute.xlu0 %3045
      %3047 = vrot.lane.b32.xlu0 %v3033, 80
      %v3048 = vpop.permute.xlu0 %3047
      %3049 = vrot.lane.b32.xlu0 %v3034, 80
      %v3050 = vpop.permute.xlu0 %3049
      %3051 = vrot.lane.b32.xlu0 %v3035, 80
      %v3052 = vpop.permute.xlu0 %3051
      %vm3053 = vcmask 654336
      %v3054 = vsel %vm3053, %v3044, %v3046
      %v3055 = vsel %vm3053, %v3046, %v3048
      %v3056 = vsel %vm3053, %v3048, %v3050
      %v3057 = vsel %vm3053, %v3050, %v3052
      %v3063 = vsel %vm2005, %v3037, 0
      %3065 = vmatprep.subr.bf16.mxu0 %v3055
      %3066 = vmatpush1.bf16.msra.mxu0 %v3054
      %3067 = vmatprep.subr.bf16.mxu0 0
      %3068 = vmatpush1.bf16.msra.mxu0 0
      %3069 = vmatprep.subr.bf16.mxu0 0
      %3070 = vmatpush1.bf16.msra.mxu0 0
      %3071 = vmatprep.subr.bf16.mxu0 0
      %3072 = vmatpush1.bf16.msra.mxu0 0
      %3073 = vmatprep.subr.bf16.mxu0 0
      %3074 = vmatpush1.bf16.msra.mxu0 0
      %3075 = vmatprep.subr.bf16.mxu0 0
      %3076 = vmatpush1.bf16.msra.mxu0 0
      %3077 = vmatprep.subr.bf16.mxu0 0
      %3078 = vmatpush1.bf16.msra.mxu0 0
      %3079 = vmatprep.subr.bf16.mxu0 0
      %3080 = vmatpush1.bf16.msra.mxu0 0
      %3081 = vmatprep.subr.bf16.mxu0 0
      %3082 = vmatpush1.bf16.msra.mxu0 0
      %3083 = vmatprep.subr.bf16.mxu0 0
      %3084 = vmatpush1.bf16.msra.mxu0 0
      %3085 = vmatprep.subr.bf16.mxu0 0
      %3086 = vmatpush1.bf16.msra.mxu0 0
      %3087 = vmatprep.subr.bf16.mxu0 0
      %3088 = vmatpush1.bf16.msra.mxu0 0
      %3089 = vmatprep.subr.bf16.mxu0 0
      %3090 = vmatpush1.bf16.msra.mxu0 0
      %3091 = vmatprep.subr.bf16.mxu0 0
      %3092 = vmatpush1.bf16.msra.mxu0 0
      %3093 = vmatprep.subr.bf16.mxu0 0
      %3094 = vmatpush1.bf16.msra.mxu0 0
      %3095 = vmatprep.subr.bf16.mxu0 0
      %3096 = vmatpush1.bf16.msra.mxu0 0
      %3097 = vmatprep.mubr.bf16.mxu0 0
      %3098 = vmatmul.mubr.bf16.gmra.mrb[0].mxu0 %v3063
      %v3099 = vpop.f32.mrb[0].mxu0
      %v3100 = vadd.f32 0.0, %v3099
      %v3101 = vpop.f32.mrb[0].mxu0
      %v3102 = vadd.f32 0.0, %v3101
      %v3103 = vpop.f32.mrb[0].mxu0
      %v3104 = vpop.f32.mrb[0].mxu0
      %3105 = vdwg.mxu0
      %3106 = vmatprep.subr.bf16.mxu0 %v3057
      %3107 = vmatpush1.bf16.msra.mxu0 %v3056
      %3108 = vmatprep.subr.bf16.mxu0 0
      %3109 = vmatpush1.bf16.msra.mxu0 0
      %3110 = vmatprep.subr.bf16.mxu0 0
      %3111 = vmatpush1.bf16.msra.mxu0 0
      %3112 = vmatprep.subr.bf16.mxu0 0
      %3113 = vmatpush1.bf16.msra.mxu0 0
      %3114 = vmatprep.subr.bf16.mxu0 0
      %3115 = vmatpush1.bf16.msra.mxu0 0
      %3116 = vmatprep.subr.bf16.mxu0 0
      %3117 = vmatpush1.bf16.msra.mxu0 0
      %3118 = vmatprep.subr.bf16.mxu0 0
      %3119 = vmatpush1.bf16.msra.mxu0 0
      %3120 = vmatprep.subr.bf16.mxu0 0
      %3121 = vmatpush1.bf16.msra.mxu0 0
      %3122 = vmatprep.subr.bf16.mxu0 0
      %3123 = vmatpush1.bf16.msra.mxu0 0
      %3124 = vmatprep.subr.bf16.mxu0 0
      %3125 = vmatpush1.bf16.msra.mxu0 0
      %3126 = vmatprep.subr.bf16.mxu0 0
      %3127 = vmatpush1.bf16.msra.mxu0 0
      %3128 = vmatprep.subr.bf16.mxu0 0
      %3129 = vmatpush1.bf16.msra.mxu0 0
      %3130 = vmatprep.subr.bf16.mxu0 0
      %3131 = vmatpush1.bf16.msra.mxu0 0
      %3132 = vmatprep.subr.bf16.mxu0 0
      %3133 = vmatpush1.bf16.msra.mxu0 0
      %3134 = vmatprep.subr.bf16.mxu0 0
      %3135 = vmatpush1.bf16.msra.mxu0 0
      %3136 = vmatprep.subr.bf16.mxu0 0
      %3137 = vmatpush1.bf16.msra.mxu0 0
      %3138 = vmatprep.mubr.bf16.mxu0 0
      %3139 = vmatmul.mubr.bf16.gmra.mrb[0].mxu0 %v3063
      %v3140 = vpop.f32.mrb[0].mxu0
      %v3141 = vadd.f32 0.0, %v3140
      %v3142 = vpop.f32.mrb[0].mxu0
      %v3143 = vadd.f32 0.0, %v3142
      %v3144 = vpop.f32.mrb[0].mxu0
      %v3145 = vpop.f32.mrb[0].mxu0
      %3146 = vdwg.mxu0
      %v3147 = vadd.f32 %v3027, %v3100
      %v3148 = vadd.f32 %v3028, %v3102
      %v3149 = vadd.f32 %v3029, %v3141
      %v3150 = vadd.f32 %v3030, %v3143
      %s3151 = scalar_lea.vmem %s2, 44
      %v3152 = vld [vmem:[%s3151] sm:$0xf]
      %3153 = vrot.lane.b32.xlu0 %v3031, 79
      %v3154 = vpop.permute.xlu0 %3153
      %3155 = vrot.lane.b32.xlu0 %v3032, 79
      %v3156 = vpop.permute.xlu0 %3155
      %3157 = vrot.lane.b32.xlu0 %v3033, 79
      %v3158 = vpop.permute.xlu0 %3157
      %3159 = vrot.lane.b32.xlu0 %v3034, 79
      %v3160 = vpop.permute.xlu0 %3159
      %3161 = vrot.lane.b32.xlu0 %v3035, 79
      %v3162 = vpop.permute.xlu0 %3161
      %vm3163 = vcmask 646144
      %v3164 = vsel %vm3163, %v3154, %v3156
      %v3165 = vsel %vm3163, %v3156, %v3158
      %v3166 = vsel %vm3163, %v3158, %v3160
      %v3167 = vsel %vm3163, %v3160, %v3162
      %v3173 = vsel %vm2005, %v3152, 0
      %3175 = vmatprep.subr.bf16.mxu0 %v3165
      %3176 = vmatpush1.bf16.msra.mxu0 %v3164
      %3177 = vmatprep.subr.bf16.mxu0 0
      %3178 = vmatpush1.bf16.msra.mxu0 0
      %3179 = vmatprep.subr.bf16.mxu0 0
      %3180 = vmatpush1.bf16.msra.mxu0 0
      %3181 = vmatprep.subr.bf16.mxu0 0
      %3182 = vmatpush1.bf16.msra.mxu0 0
      %3183 = vmatprep.subr.bf16.mxu0 0
      %3184 = vmatpush1.bf16.msra.mxu0 0
      %3185 = vmatprep.subr.bf16.mxu0 0
      %3186 = vmatpush1.bf16.msra.mxu0 0
      %3187 = vmatprep.subr.bf16.mxu0 0
      %3188 = vmatpush1.bf16.msra.mxu0 0
      %3189 = vmatprep.subr.bf16.mxu0 0
      %3190 = vmatpush1.bf16.msra.mxu0 0
      %3191 = vmatprep.subr.bf16.mxu0 0
      %3192 = vmatpush1.bf16.msra.mxu0 0
      %3193 = vmatprep.subr.bf16.mxu0 0
      %3194 = vmatpush1.bf16.msra.mxu0 0
      %3195 = vmatprep.subr.bf16.mxu0 0
      %3196 = vmatpush1.bf16.msra.mxu0 0
      %3197 = vmatprep.subr.bf16.mxu0 0
      %3198 = vmatpush1.bf16.msra.mxu0 0
      %3199 = vmatprep.subr.bf16.mxu0 0
      %3200 = vmatpush1.bf16.msra.mxu0 0
      %3201 = vmatprep.subr.bf16.mxu0 0
      %3202 = vmatpush1.bf16.msra.mxu0 0
      %3203 = vmatprep.subr.bf16.mxu0 0
      %3204 = vmatpush1.bf16.msra.mxu0 0
      %3205 = vmatprep.subr.bf16.mxu0 0
      %3206 = vmatpush1.bf16.msra.mxu0 0
      %3207 = vmatprep.mubr.bf16.mxu0 0
      %3208 = vmatmul.mubr.bf16.gmra.mrb[0].mxu0 %v3173
      %v3209 = vpop.f32.mrb[0].mxu0
      %v3210 = vadd.f32 0.0, %v3209
      %v3211 = vpop.f32.mrb[0].mxu0
      %v3212 = vadd.f32 0.0, %v3211
      %v3213 = vpop.f32.mrb[0].mxu0
      %v3214 = vpop.f32.mrb[0].mxu0
      %3215 = vdwg.mxu0
      %3216 = vmatprep.subr.bf16.mxu0 %v3167
      %3217 = vmatpush1.bf16.msra.mxu0 %v3166
      %3218 = vmatprep.subr.bf16.mxu0 0
      %3219 = vmatpush1.bf16.msra.mxu0 0
      %3220 = vmatprep.subr.bf16.mxu0 0
      %3221 = vmatpush1.bf16.msra.mxu0 0
      %3222 = vmatprep.subr.bf16.mxu0 0
      %3223 = vmatpush1.bf16.msra.mxu0 0
      %3224 = vmatprep.subr.bf16.mxu0 0
      %3225 = vmatpush1.bf16.msra.mxu0 0
      %3226 = vmatprep.subr.bf16.mxu0 0
      %3227 = vmatpush1.bf16.msra.mxu0 0
      %3228 = vmatprep.subr.bf16.mxu0 0
      %3229 = vmatpush1.bf16.msra.mxu0 0
      %3230 = vmatprep.subr.bf16.mxu0 0
      %3231 = vmatpush1.bf16.msra.mxu0 0
      %3232 = vmatprep.subr.bf16.mxu0 0
      %3233 = vmatpush1.bf16.msra.mxu0 0
      %3234 = vmatprep.subr.bf16.mxu0 0
      %3235 = vmatpush1.bf16.msra.mxu0 0
      %3236 = vmatprep.subr.bf16.mxu0 0
      %3237 = vmatpush1.bf16.msra.mxu0 0
      %3238 = vmatprep.subr.bf16.mxu0 0
      %3239 = vmatpush1.bf16.msra.mxu0 0
      %3240 = vmatprep.subr.bf16.mxu0 0
      %3241 = vmatpush1.bf16.msra.mxu0 0
      %3242 = vmatprep.subr.bf16.mxu0 0
      %3243 = vmatpush1.bf16.msra.mxu0 0
      %3244 = vmatprep.subr.bf16.mxu0 0
      %3245 = vmatpush1.bf16.msra.mxu0 0
      %3246 = vmatprep.subr.bf16.mxu0 0
      %3247 = vmatpush1.bf16.msra.mxu0 0
      %3248 = vmatprep.mubr.bf16.mxu0 0
      %3249 = vmatmul.mubr.bf16.gmra.mrb[0].mxu0 %v3173
      %v3250 = vpop.f32.mrb[0].mxu0
      %v3251 = vadd.f32 0.0, %v3250
      %v3252 = vpop.f32.mrb[0].mxu0
      %v3253 = vadd.f32 0.0, %v3252
      %v3254 = vpop.f32.mrb[0].mxu0
      %v3255 = vpop.f32.mrb[0].mxu0
      %3256 = vdwg.mxu0
      %v3257 = vadd.f32 %v3147, %v3210
      %v3258 = vadd.f32 %v3148, %v3212
      %v3259 = vadd.f32 %v3149, %v3251
      %v3260 = vadd.f32 %v3150, %v3253
      %s3261 = scalar_lea.vmem %s2, 48
      %v3262 = vld [vmem:[%s3261] sm:$0xf]
      %3263 = vrot.lane.b32.xlu0 %v3031, 78
      %v3264 = vpop.permute.xlu0 %3263
      %3265 = vrot.lane.b32.xlu0 %v3032, 78
      %v3266 = vpop.permute.xlu0 %3265
      %3267 = vrot.lane.b32.xlu0 %v3033, 78
      %v3268 = vpop.permute.xlu0 %3267
      %3269 = vrot.lane.b32.xlu0 %v3034, 78
      %v3270 = vpop.permute.xlu0 %3269
      %3271 = vrot.lane.b32.xlu0 %v3035, 78
      %v3272 = vpop.permute.xlu0 %3271
      %vm3273 = vcmask 637952
      %v3274 = vsel %vm3273, %v3264, %v3266
      %v3275 = vsel %vm3273, %v3266, %v3268
      %v3276 = vsel %vm3273, %v3268, %v3270
      %v3277 = vsel %vm3273, %v3270, %v3272
      %v3283 = vsel %vm2005, %v3262, 0
      %3285 = vmatprep.subr.bf16.mxu0 %v3275
      %3286 = vmatpush1.bf16.msra.mxu0 %v3274
      %3287 = vmatprep.subr.bf16.mxu0 0
      %3288 = vmatpush1.bf16.msra.mxu0 0
      %3289 = vmatprep.subr.bf16.mxu0 0
      %3290 = vmatpush1.bf16.msra.mxu0 0
      %3291 = vmatprep.subr.bf16.mxu0 0
      %3292 = vmatpush1.bf16.msra.mxu0 0
      %3293 = vmatprep.subr.bf16.mxu0 0
      %3294 = vmatpush1.bf16.msra.mxu0 0
      %3295 = vmatprep.subr.bf16.mxu0 0
      %3296 = vmatpush1.bf16.msra.mxu0 0
      %3297 = vmatprep.subr.bf16.mxu0 0
      %3298 = vmatpush1.bf16.msra.mxu0 0
      %3299 = vmatprep.subr.bf16.mxu0 0
      %3300 = vmatpush1.bf16.msra.mxu0 0
      %3301 = vmatprep.subr.bf16.mxu0 0
      %3302 = vmatpush1.bf16.msra.mxu0 0
      %3303 = vmatprep.subr.bf16.mxu0 0
      %3304 = vmatpush1.bf16.msra.mxu0 0
      %3305 = vmatprep.subr.bf16.mxu0 0
      %3306 = vmatpush1.bf16.msra.mxu0 0
      %3307 = vmatprep.subr.bf16.mxu0 0
      %3308 = vmatpush1.bf16.msra.mxu0 0
      %3309 = vmatprep.subr.bf16.mxu0 0
      %3310 = vmatpush1.bf16.msra.mxu0 0
      %3311 = vmatprep.subr.bf16.mxu0 0
      %3312 = vmatpush1.bf16.msra.mxu0 0
      %3313 = vmatprep.subr.bf16.mxu0 0
      %3314 = vmatpush1.bf16.msra.mxu0 0
      %3315 = vmatprep.subr.bf16.mxu0 0
      %3316 = vmatpush1.bf16.msra.mxu0 0
      %3317 = vmatprep.mubr.bf16.mxu0 0
      %3318 = vmatmul.mubr.bf16.gmra.mrb[0].mxu0 %v3283
      %v3319 = vpop.f32.mrb[0].mxu0
      %v3320 = vadd.f32 0.0, %v3319
      %v3321 = vpop.f32.mrb[0].mxu0
      %v3322 = vadd.f32 0.0, %v3321
      %v3323 = vpop.f32.mrb[0].mxu0
      %v3324 = vpop.f32.mrb[0].mxu0
      %3325 = vdwg.mxu0
      %3326 = vmatprep.subr.bf16.mxu0 %v3277
      %3327 = vmatpush1.bf16.msra.mxu0 %v3276
      %3328 = vmatprep.subr.bf16.mxu0 0
      %3329 = vmatpush1.bf16.msra.mxu0 0
      %3330 = vmatprep.subr.bf16.mxu0 0
      %3331 = vmatpush1.bf16.msra.mxu0 0
      %3332 = vmatprep.subr.bf16.mxu0 0
      %3333 = vmatpush1.bf16.msra.mxu0 0
      %3334 = vmatprep.subr.bf16.mxu0 0
      %3335 = vmatpush1.bf16.msra.mxu0 0
      %3336 = vmatprep.subr.bf16.mxu0 0
      %3337 = vmatpush1.bf16.msra.mxu0 0
      %3338 = vmatprep.subr.bf16.mxu0 0
      %3339 = vmatpush1.bf16.msra.mxu0 0
      %3340 = vmatprep.subr.bf16.mxu0 0
      %3341 = vmatpush1.bf16.msra.mxu0 0
      %3342 = vmatprep.subr.bf16.mxu0 0
      %3343 = vmatpush1.bf16.msra.mxu0 0
      %3344 = vmatprep.subr.bf16.mxu0 0
      %3345 = vmatpush1.bf16.msra.mxu0 0
      %3346 = vmatprep.subr.bf16.mxu0 0
      %3347 = vmatpush1.bf16.msra.mxu0 0
      %3348 = vmatprep.subr.bf16.mxu0 0
      %3349 = vmatpush1.bf16.msra.mxu0 0
      %3350 = vmatprep.subr.bf16.mxu0 0
      %3351 = vmatpush1.bf16.msra.mxu0 0
      %3352 = vmatprep.subr.bf16.mxu0 0
      %3353 = vmatpush1.bf16.msra.mxu0 0
      %3354 = vmatprep.subr.bf16.mxu0 0
      %3355 = vmatpush1.bf16.msra.mxu0 0
      %3356 = vmatprep.subr.bf16.mxu0 0
      %3357 = vmatpush1.bf16.msra.mxu0 0
      %3358 = vmatprep.mubr.bf16.mxu0 0
      %3359 = vmatmul.mubr.bf16.gmra.mrb[0].mxu0 %v3283
      %v3360 = vpop.f32.mrb[0].mxu0
      %v3361 = vadd.f32 0.0, %v3360
      %v3362 = vpop.f32.mrb[0].mxu0
      %v3363 = vadd.f32 0.0, %v3362
      %v3364 = vpop.f32.mrb[0].mxu0
      %v3365 = vpop.f32.mrb[0].mxu0
      %3366 = vdwg.mxu0
      %v3367 = vadd.f32 %v3257, %v3320
      %v3368 = vadd.f32 %v3258, %v3322
      %v3369 = vadd.f32 %v3259, %v3361
      %v3370 = vadd.f32 %v3260, %v3363
      %s3371 = scalar_lea.vmem %s2, 52
      %v3372 = vld [vmem:[%s3371] sm:$0xf]
      %3373 = vrot.lane.b32.xlu0 %v3031, 77
      %v3374 = vpop.permute.xlu0 %3373
      %3375 = vrot.lane.b32.xlu0 %v3032, 77
      %v3376 = vpop.permute.xlu0 %3375
      %3377 = vrot.lane.b32.xlu0 %v3033, 77
      %v3378 = vpop.permute.xlu0 %3377
      %3379 = vrot.lane.b32.xlu0 %v3034, 77
      %v3380 = vpop.permute.xlu0 %3379
      %3381 = vrot.lane.b32.xlu0 %v3035, 77
      %v3382 = vpop.permute.xlu0 %3381
      %vm3383 = vcmask 629760
      %v3384 = vsel %vm3383, %v3374, %v3376
      %v3385 = vsel %vm3383, %v3376, %v3378
      %v3386 = vsel %vm3383, %v3378, %v3380
      %v3387 = vsel %vm3383, %v3380, %v3382
      %v3393 = vsel %vm2005, %v3372, 0
      %3395 = vmatprep.subr.bf16.mxu0 %v3385
      %3396 = vmatpush1.bf16.msra.mxu0 %v3384
      %3397 = vmatprep.subr.bf16.mxu0 0
      %3398 = vmatpush1.bf16.msra.mxu0 0
      %3399 = vmatprep.subr.bf16.mxu0 0
      %3400 = vmatpush1.bf16.msra.mxu0 0
      %3401 = vmatprep.subr.bf16.mxu0 0
      %3402 = vmatpush1.bf16.msra.mxu0 0
      %3403 = vmatprep.subr.bf16.mxu0 0
      %3404 = vmatpush1.bf16.msra.mxu0 0
      %3405 = vmatprep.subr.bf16.mxu0 0
      %3406 = vmatpush1.bf16.msra.mxu0 0
      %3407 = vmatprep.subr.bf16.mxu0 0
      %3408 = vmatpush1.bf16.msra.mxu0 0
      %3409 = vmatprep.subr.bf16.mxu0 0
      %3410 = vmatpush1.bf16.msra.mxu0 0
      %3411 = vmatprep.subr.bf16.mxu0 0
      %3412 = vmatpush1.bf16.msra.mxu0 0
      %3413 = vmatprep.subr.bf16.mxu0 0
      %3414 = vmatpush1.bf16.msra.mxu0 0
      %3415 = vmatprep.subr.bf16.mxu0 0
      %3416 = vmatpush1.bf16.msra.mxu0 0
      %3417 = vmatprep.subr.bf16.mxu0 0
      %3418 = vmatpush1.bf16.msra.mxu0 0
      %3419 = vmatprep.subr.bf16.mxu0 0
      %3420 = vmatpush1.bf16.msra.mxu0 0
      %3421 = vmatprep.subr.bf16.mxu0 0
      %3422 = vmatpush1.bf16.msra.mxu0 0
      %3423 = vmatprep.subr.bf16.mxu0 0
      %3424 = vmatpush1.bf16.msra.mxu0 0
      %3425 = vmatprep.subr.bf16.mxu0 0
      %3426 = vmatpush1.bf16.msra.mxu0 0
      %3427 = vmatprep.mubr.bf16.mxu0 0
      %3428 = vmatmul.mubr.bf16.gmra.mrb[0].mxu0 %v3393
      %v3429 = vpop.f32.mrb[0].mxu0
      %v3430 = vadd.f32 0.0, %v3429
      %v3431 = vpop.f32.mrb[0].mxu0
      %v3432 = vadd.f32 0.0, %v3431
      %v3433 = vpop.f32.mrb[0].mxu0
      %v3434 = vpop.f32.mrb[0].mxu0
      %3435 = vdwg.mxu0
      %3436 = vmatprep.subr.bf16.mxu0 %v3387
      %3437 = vmatpush1.bf16.msra.mxu0 %v3386
      %3438 = vmatprep.subr.bf16.mxu0 0
      %3439 = vmatpush1.bf16.msra.mxu0 0
      %3440 = vmatprep.subr.bf16.mxu0 0
      %3441 = vmatpush1.bf16.msra.mxu0 0
      %3442 = vmatprep.subr.bf16.mxu0 0
      %3443 = vmatpush1.bf16.msra.mxu0 0
      %3444 = vmatprep.subr.bf16.mxu0 0
      %3445 = vmatpush1.bf16.msra.mxu0 0
      %3446 = vmatprep.subr.bf16.mxu0 0
      %3447 = vmatpush1.bf16.msra.mxu0 0
      %3448 = vmatprep.subr.bf16.mxu0 0
      %3449 = vmatpush1.bf16.msra.mxu0 0
      %3450 = vmatprep.subr.bf16.mxu0 0
      %3451 = vmatpush1.bf16.msra.mxu0 0
      %3452 = vmatprep.subr.bf16.mxu0 0
      %3453 = vmatpush1.bf16.msra.mxu0 0
      %3454 = vmatprep.subr.bf16.mxu0 0
      %3455 = vmatpush1.bf16.msra.mxu0 0
      %3456 = vmatprep.subr.bf16.mxu0 0
      %3457 = vmatpush1.bf16.msra.mxu0 0
      %3458 = vmatprep.subr.bf16.mxu0 0
      %3459 = vmatpush1.bf16.msra.mxu0 0
      %3460 = vmatprep.subr.bf16.mxu0 0
      %3461 = vmatpush1.bf16.msra.mxu0 0
      %3462 = vmatprep.subr.bf16.mxu0 0
      %3463 = vmatpush1.bf16.msra.mxu0 0
      %3464 = vmatprep.subr.bf16.mxu0 0
      %3465 = vmatpush1.bf16.msra.mxu0 0
      %3466 = vmatprep.subr.bf16.mxu0 0
      %3467 = vmatpush1.bf16.msra.mxu0 0
      %3468 = vmatprep.mubr.bf16.mxu0 0
      %3469 = vmatmul.mubr.bf16.gmra.mrb[0].mxu0 %v3393
      %v3470 = vpop.f32.mrb[0].mxu0
      %v3471 = vadd.f32 0.0, %v3470
      %v3472 = vpop.f32.mrb[0].mxu0
      %v3473 = vadd.f32 0.0, %v3472
      %v3474 = vpop.f32.mrb[0].mxu0
      %v3475 = vpop.f32.mrb[0].mxu0
      %3476 = vdwg.mxu0
      %v3477 = vadd.f32 %v3367, %v3430
      %v3478 = vadd.f32 %v3368, %v3432
      %v3479 = vadd.f32 %v3369, %v3471
      %v3480 = vadd.f32 %v3370, %v3473
      %s3481 = scalar_lea.vmem %s2, 56
      %v3482 = vld [vmem:[%s3481] sm:$0xf]
      %3483 = vrot.lane.b32.xlu0 %v3031, 76
      %v3484 = vpop.permute.xlu0 %3483
      %3485 = vrot.lane.b32.xlu0 %v3032, 76
      %v3486 = vpop.permute.xlu0 %3485
      %3487 = vrot.lane.b32.xlu0 %v3033, 76
      %v3488 = vpop.permute.xlu0 %3487
      %3489 = vrot.lane.b32.xlu0 %v3034, 76
      %v3490 = vpop.permute.xlu0 %3489
      %3491 = vrot.lane.b32.xlu0 %v3035, 76
      %v3492 = vpop.permute.xlu0 %3491
      %vm3493 = vcmask 621568
      %v3494 = vsel %vm3493, %v3484, %v3486
      %v3495 = vsel %vm3493, %v3486, %v3488
      %v3496 = vsel %vm3493, %v3488, %v3490
      %v3497 = vsel %vm3493, %v3490, %v3492
      %v3503 = vsel %vm2005, %v3482, 0
      %3505 = vmatprep.subr.bf16.mxu0 %v3495
      %3506 = vmatpush1.bf16.msra.mxu0 %v3494
      %3507 = vmatprep.subr.bf16.mxu0 0
      %3508 = vmatpush1.bf16.msra.mxu0 0
      %3509 = vmatprep.subr.bf16.mxu0 0
      %3510 = vmatpush1.bf16.msra.mxu0 0
      %3511 = vmatprep.subr.bf16.mxu0 0
      %3512 = vmatpush1.bf16.msra.mxu0 0
      %3513 = vmatprep.subr.bf16.mxu0 0
      %3514 = vmatpush1.bf16.msra.mxu0 0
      %3515 = vmatprep.subr.bf16.mxu0 0
      %3516 = vmatpush1.bf16.msra.mxu0 0
      %3517 = vmatprep.subr.bf16.mxu0 0
      %3518 = vmatpush1.bf16.msra.mxu0 0
      %3519 = vmatprep.subr.bf16.mxu0 0
      %3520 = vmatpush1.bf16.msra.mxu0 0
      %3521 = vmatprep.subr.bf16.mxu0 0
      %3522 = vmatpush1.bf16.msra.mxu0 0
      %3523 = vmatprep.subr.bf16.mxu0 0
      %3524 = vmatpush1.bf16.msra.mxu0 0
      %3525 = vmatprep.subr.bf16.mxu0 0
      %3526 = vmatpush1.bf16.msra.mxu0 0
      %3527 = vmatprep.subr.bf16.mxu0 0
      %3528 = vmatpush1.bf16.msra.mxu0 0
      %3529 = vmatprep.subr.bf16.mxu0 0
      %3530 = vmatpush1.bf16.msra.mxu0 0
      %3531 = vmatprep.subr.bf16.mxu0 0
      %3532 = vmatpush1.bf16.msra.mxu0 0
      %3533 = vmatprep.subr.bf16.mxu0 0
      %3534 = vmatpush1.bf16.msra.mxu0 0
      %3535 = vmatprep.subr.bf16.mxu0 0
      %3536 = vmatpush1.bf16.msra.mxu0 0
      %3537 = vmatprep.mubr.bf16.mxu0 0
      %3538 = vmatmul.mubr.bf16.gmra.mrb[0].mxu0 %v3503
      %v3539 = vpop.f32.mrb[0].mxu0
      %v3540 = vadd.f32 0.0, %v3539
      %v3541 = vpop.f32.mrb[0].mxu0
      %v3542 = vadd.f32 0.0, %v3541
      %v3543 = vpop.f32.mrb[0].mxu0
      %v3544 = vpop.f32.mrb[0].mxu0
      %3545 = vdwg.mxu0
      %3546 = vmatprep.subr.bf16.mxu0 %v3497
      %3547 = vmatpush1.bf16.msra.mxu0 %v3496
      %3548 = vmatprep.subr.bf16.mxu0 0
      %3549 = vmatpush1.bf16.msra.mxu0 0
      %3550 = vmatprep.subr.bf16.mxu0 0
      %3551 = vmatpush1.bf16.msra.mxu0 0
      %3552 = vmatprep.subr.bf16.mxu0 0
      %3553 = vmatpush1.bf16.msra.mxu0 0
      %3554 = vmatprep.subr.bf16.mxu0 0
      %3555 = vmatpush1.bf16.msra.mxu0 0
      %3556 = vmatprep.subr.bf16.mxu0 0
      %3557 = vmatpush1.bf16.msra.mxu0 0
      %3558 = vmatprep.subr.bf16.mxu0 0
      %3559 = vmatpush1.bf16.msra.mxu0 0
      %3560 = vmatprep.subr.bf16.mxu0 0
      %3561 = vmatpush1.bf16.msra.mxu0 0
      %3562 = vmatprep.subr.bf16.mxu0 0
      %3563 = vmatpush1.bf16.msra.mxu0 0
      %3564 = vmatprep.subr.bf16.mxu0 0
      %3565 = vmatpush1.bf16.msra.mxu0 0
      %3566 = vmatprep.subr.bf16.mxu0 0
      %3567 = vmatpush1.bf16.msra.mxu0 0
      %3568 = vmatprep.subr.bf16.mxu0 0
      %3569 = vmatpush1.bf16.msra.mxu0 0
      %3570 = vmatprep.subr.bf16.mxu0 0
      %3571 = vmatpush1.bf16.msra.mxu0 0
      %3572 = vmatprep.subr.bf16.mxu0 0
      %3573 = vmatpush1.bf16.msra.mxu0 0
      %3574 = vmatprep.subr.bf16.mxu0 0
      %3575 = vmatpush1.bf16.msra.mxu0 0
      %3576 = vmatprep.subr.bf16.mxu0 0
      %3577 = vmatpush1.bf16.msra.mxu0 0
      %3578 = vmatprep.mubr.bf16.mxu0 0
      %3579 = vmatmul.mubr.bf16.gmra.mrb[0].mxu0 %v3503
      %v3580 = vpop.f32.mrb[0].mxu0
      %v3581 = vadd.f32 0.0, %v3580
      %v3582 = vpop.f32.mrb[0].mxu0
      %v3583 = vadd.f32 0.0, %v3582
      %v3584 = vpop.f32.mrb[0].mxu0
      %v3585 = vpop.f32.mrb[0].mxu0
      %3586 = vdwg.mxu0
      %v3587 = vadd.f32 %v3477, %v3540
      %v3588 = vadd.f32 %v3478, %v3542
      %v3589 = vadd.f32 %v3479, %v3581
      %v3590 = vadd.f32 %v3480, %v3583
      %s3591 = scalar_lea.vmem %s2, 60
      %v3592 = vld [vmem:[%s3591] sm:$0xf]
      %3593 = vrot.lane.b32.xlu0 %v3031, 56
      %v3594 = vpop.permute.xlu0 %3593
      %3595 = vrot.lane.b32.xlu0 %v3032, 56
      %v3596 = vpop.permute.xlu0 %3595
      %3597 = vrot.lane.b32.xlu0 %v3033, 56
      %v3598 = vpop.permute.xlu0 %3597
      %3599 = vrot.lane.b32.xlu0 %v3034, 56
      %v3600 = vpop.permute.xlu0 %3599
      %3601 = vrot.lane.b32.xlu0 %v3035, 56
      %v3602 = vpop.permute.xlu0 %3601
      %v3603 = vsel %vm1969, %v3594, %v3596
      %v3604 = vsel %vm1969, %v3596, %v3598
      %v3605 = vsel %vm1969, %v3598, %v3600
      %v3606 = vsel %vm1969, %v3600, %v3602
      %v3612 = vsel %vm2005, %v3592, 0
      %3614 = vmatprep.subr.bf16.mxu0 %v3604
      %3615 = vmatpush1.bf16.msra.mxu0 %v3603
      %3616 = vmatprep.subr.bf16.mxu0 0
      %3617 = vmatpush1.bf16.msra.mxu0 0
      %3618 = vmatprep.subr.bf16.mxu0 0
      %3619 = vmatpush1.bf16.msra.mxu0 0
      %3620 = vmatprep.subr.bf16.mxu0 0
      %3621 = vmatpush1.bf16.msra.mxu0 0
      %3622 = vmatprep.subr.bf16.mxu0 0
      %3623 = vmatpush1.bf16.msra.mxu0 0
      %3624 = vmatprep.subr.bf16.mxu0 0
      %3625 = vmatpush1.bf16.msra.mxu0 0
      %3626 = vmatprep.subr.bf16.mxu0 0
      %3627 = vmatpush1.bf16.msra.mxu0 0
      %3628 = vmatprep.subr.bf16.mxu0 0
      %3629 = vmatpush1.bf16.msra.mxu0 0
      %3630 = vmatprep.subr.bf16.mxu0 0
      %3631 = vmatpush1.bf16.msra.mxu0 0
      %3632 = vmatprep.subr.bf16.mxu0 0
      %3633 = vmatpush1.bf16.msra.mxu0 0
      %3634 = vmatprep.subr.bf16.mxu0 0
      %3635 = vmatpush1.bf16.msra.mxu0 0
      %3636 = vmatprep.subr.bf16.mxu0 0
      %3637 = vmatpush1.bf16.msra.mxu0 0
      %3638 = vmatprep.subr.bf16.mxu0 0
      %3639 = vmatpush1.bf16.msra.mxu0 0
      %3640 = vmatprep.subr.bf16.mxu0 0
      %3641 = vmatpush1.bf16.msra.mxu0 0
      %3642 = vmatprep.subr.bf16.mxu0 0
      %3643 = vmatpush1.bf16.msra.mxu0 0
      %3644 = vmatprep.subr.bf16.mxu0 0
      %3645 = vmatpush1.bf16.msra.mxu0 0
      %3646 = vmatprep.mubr.bf16.mxu0 0
      %3647 = vmatmul.mubr.bf16.gmra.mrb[0].mxu0 %v3612
      %v3648 = vpop.f32.mrb[0].mxu0
      %v3649 = vadd.f32 0.0, %v3648
      %v3650 = vpop.f32.mrb[0].mxu0
      %v3651 = vadd.f32 0.0, %v3650
      %v3652 = vpop.f32.mrb[0].mxu0
      %v3653 = vpop.f32.mrb[0].mxu0
      %3654 = vdwg.mxu0
      %3655 = vmatprep.subr.bf16.mxu0 %v3606
      %3656 = vmatpush1.bf16.msra.mxu0 %v3605
      %3657 = vmatprep.subr.bf16.mxu0 0
      %3658 = vmatpush1.bf16.msra.mxu0 0
      %3659 = vmatprep.subr.bf16.mxu0 0
      %3660 = vmatpush1.bf16.msra.mxu0 0
      %3661 = vmatprep.subr.bf16.mxu0 0
      %3662 = vmatpush1.bf16.msra.mxu0 0
      %3663 = vmatprep.subr.bf16.mxu0 0
      %3664 = vmatpush1.bf16.msra.mxu0 0
      %3665 = vmatprep.subr.bf16.mxu0 0
      %3666 = vmatpush1.bf16.msra.mxu0 0
      %3667 = vmatprep.subr.bf16.mxu0 0
      %3668 = vmatpush1.bf16.msra.mxu0 0
      %3669 = vmatprep.subr.bf16.mxu0 0
      %3670 = vmatpush1.bf16.msra.mxu0 0
      %3671 = vmatprep.subr.bf16.mxu0 0
      %3672 = vmatpush1.bf16.msra.mxu0 0
      %3673 = vmatprep.subr.bf16.mxu0 0
      %3674 = vmatpush1.bf16.msra.mxu0 0
      %3675 = vmatprep.subr.bf16.mxu0 0
      %3676 = vmatpush1.bf16.msra.mxu0 0
      %3677 = vmatprep.subr.bf16.mxu0 0
      %3678 = vmatpush1.bf16.msra.mxu0 0
      %3679 = vmatprep.subr.bf16.mxu0 0
      %3680 = vmatpush1.bf16.msra.mxu0 0
      %3681 = vmatprep.subr.bf16.mxu0 0
      %3682 = vmatpush1.bf16.msra.mxu0 0
      %3683 = vmatprep.subr.bf16.mxu0 0
      %3684 = vmatpush1.bf16.msra.mxu0 0
      %3685 = vmatprep.subr.bf16.mxu0 0
      %3686 = vmatpush1.bf16.msra.mxu0 0
      %3687 = vmatprep.mubr.bf16.mxu0 0
      %3688 = vmatmul.mubr.bf16.gmra.mrb[0].mxu0 %v3612
      %v3689 = vpop.f32.mrb[0].mxu0
      %v3690 = vadd.f32 0.0, %v3689
      %v3691 = vpop.f32.mrb[0].mxu0
      %v3692 = vadd.f32 0.0, %v3691
      %v3693 = vpop.f32.mrb[0].mxu0
      %v3694 = vpop.f32.mrb[0].mxu0
      %3695 = vdwg.mxu0
      %v3696 = vadd.f32 %v3587, %v3649
      %v3697 = vadd.f32 %v3588, %v3651
      %v3698 = vadd.f32 %v3589, %v3690
      %v3699 = vadd.f32 %v3590, %v3692
      %s3700 = scalar_lea.vmem %s2, 64
      %v3701 = vld [vmem:[%s3700] sm:$0xf]
      %3702 = vrot.lane.b32.xlu0 %v3031, 55
      %v3703 = vpop.permute.xlu0 %3702
      %3704 = vrot.lane.b32.xlu0 %v3032, 55
      %v3705 = vpop.permute.xlu0 %3704
      %3706 = vrot.lane.b32.xlu0 %v3033, 55
      %v3707 = vpop.permute.xlu0 %3706
      %3708 = vrot.lane.b32.xlu0 %v3034, 55
      %v3709 = vpop.permute.xlu0 %3708
      %3710 = vrot.lane.b32.xlu0 %v3035, 55
      %v3711 = vpop.permute.xlu0 %3710
      %vm3712 = vcmask 449536
      %v3713 = vsel %vm3712, %v3703, %v3705
      %v3714 = vsel %vm3712, %v3705, %v3707
      %v3715 = vsel %vm3712, %v3707, %v3709
      %v3716 = vsel %vm3712, %v3709, %v3711
      %v3722 = vsel %vm2005, %v3701, 0
      %3724 = vmatprep.subr.bf16.mxu0 %v3714
      %3725 = vmatpush1.bf16.msra.mxu0 %v3713
      %3726 = vmatprep.subr.bf16.mxu0 0
      %3727 = vmatpush1.bf16.msra.mxu0 0
      %3728 = vmatprep.subr.bf16.mxu0 0
      %3729 = vmatpush1.bf16.msra.mxu0 0
      %3730 = vmatprep.subr.bf16.mxu0 0
      %3731 = vmatpush1.bf16.msra.mxu0 0
      %3732 = vmatprep.subr.bf16.mxu0 0
      %3733 = vmatpush1.bf16.msra.mxu0 0
      %3734 = vmatprep.subr.bf16.mxu0 0
      %3735 = vmatpush1.bf16.msra.mxu0 0
      %3736 = vmatprep.subr.bf16.mxu0 0
      %3737 = vmatpush1.bf16.msra.mxu0 0
      %3738 = vmatprep.subr.bf16.mxu0 0
      %3739 = vmatpush1.bf16.msra.mxu0 0
      %3740 = vmatprep.subr.bf16.mxu0 0
      %3741 = vmatpush1.bf16.msra.mxu0 0
      %3742 = vmatprep.subr.bf16.mxu0 0
      %3743 = vmatpush1.bf16.msra.mxu0 0
      %3744 = vmatprep.subr.bf16.mxu0 0
      %3745 = vmatpush1.bf16.msra.mxu0 0
      %3746 = vmatprep.subr.bf16.mxu0 0
      %3747 = vmatpush1.bf16.msra.mxu0 0
      %3748 = vmatprep.subr.bf16.mxu0 0
      %3749 = vmatpush1.bf16.msra.mxu0 0
      %3750 = vmatprep.subr.bf16.mxu0 0
      %3751 = vmatpush1.bf16.msra.mxu0 0
      %3752 = vmatprep.subr.bf16.mxu0 0
      %3753 = vmatpush1.bf16.msra.mxu0 0
      %3754 = vmatprep.subr.bf16.mxu0 0
      %3755 = vmatpush1.bf16.msra.mxu0 0
      %3756 = vmatprep.mubr.bf16.mxu0 0
      %3757 = vmatmul.mubr.bf16.gmra.mrb[0].mxu0 %v3722
      %v3758 = vpop.f32.mrb[0].mxu0
      %v3759 = vadd.f32 0.0, %v3758
      %v3760 = vpop.f32.mrb[0].mxu0
      %v3761 = vadd.f32 0.0, %v3760
      %v3762 = vpop.f32.mrb[0].mxu0
      %v3763 = vpop.f32.mrb[0].mxu0
      %3764 = vdwg.mxu0
      %3765 = vmatprep.subr.bf16.mxu0 %v3716
      %3766 = vmatpush1.bf16.msra.mxu0 %v3715
      %3767 = vmatprep.subr.bf16.mxu0 0
      %3768 = vmatpush1.bf16.msra.mxu0 0
      %3769 = vmatprep.subr.bf16.mxu0 0
      %3770 = vmatpush1.bf16.msra.mxu0 0
      %3771 = vmatprep.subr.bf16.mxu0 0
      %3772 = vmatpush1.bf16.msra.mxu0 0
      %3773 = vmatprep.subr.bf16.mxu0 0
      %3774 = vmatpush1.bf16.msra.mxu0 0
      %3775 = vmatprep.subr.bf16.mxu0 0
      %3776 = vmatpush1.bf16.msra.mxu0 0
      %3777 = vmatprep.subr.bf16.mxu0 0
      %3778 = vmatpush1.bf16.msra.mxu0 0
      %3779 = vmatprep.subr.bf16.mxu0 0
      %3780 = vmatpush1.bf16.msra.mxu0 0
      %3781 = vmatprep.subr.bf16.mxu0 0
      %3782 = vmatpush1.bf16.msra.mxu0 0
      %3783 = vmatprep.subr.bf16.mxu0 0
      %3784 = vmatpush1.bf16.msra.mxu0 0
      %3785 = vmatprep.subr.bf16.mxu0 0
      %3786 = vmatpush1.bf16.msra.mxu0 0
      %3787 = vmatprep.subr.bf16.mxu0 0
      %3788 = vmatpush1.bf16.msra.mxu0 0
      %3789 = vmatprep.subr.bf16.mxu0 0
      %3790 = vmatpush1.bf16.msra.mxu0 0
      %3791 = vmatprep.subr.bf16.mxu0 0
      %3792 = vmatpush1.bf16.msra.mxu0 0
      %3793 = vmatprep.subr.bf16.mxu0 0
      %3794 = vmatpush1.bf16.msra.mxu0 0
      %3795 = vmatprep.subr.bf16.mxu0 0
      %3796 = vmatpush1.bf16.msra.mxu0 0
      %3797 = vmatprep.mubr.bf16.mxu0 0
      %3798 = vmatmul.mubr.bf16.gmra.mrb[0].mxu0 %v3722
      %v3799 = vpop.f32.mrb[0].mxu0
      %v3800 = vadd.f32 0.0, %v3799
      %v3801 = vpop.f32.mrb[0].mxu0
      %v3802 = vadd.f32 0.0, %v3801
      %v3803 = vpop.f32.mrb[0].mxu0
      %v3804 = vpop.f32.mrb[0].mxu0
      %3805 = vdwg.mxu0
      %v3806 = vadd.f32 %v3696, %v3759
      %v3807 = vadd.f32 %v3697, %v3761
      %v3808 = vadd.f32 %v3698, %v3800
      %v3809 = vadd.f32 %v3699, %v3802
      %s3810 = scalar_lea.vmem %s2, 68
      %v3811 = vld [vmem:[%s3810] sm:$0xf]
      %3812 = vrot.lane.b32.xlu0 %v3031, 54
      %v3813 = vpop.permute.xlu0 %3812
      %3814 = vrot.lane.b32.xlu0 %v3032, 54
      %v3815 = vpop.permute.xlu0 %3814
      %3816 = vrot.lane.b32.xlu0 %v3033, 54
      %v3817 = vpop.permute.xlu0 %3816
      %3818 = vrot.lane.b32.xlu0 %v3034, 54
      %v3819 = vpop.permute.xlu0 %3818
      %3820 = vrot.lane.b32.xlu0 %v3035, 54
      %v3821 = vpop.permute.xlu0 %3820
      %vm3822 = vcmask 441344
      %v3823 = vsel %vm3822, %v3813, %v3815
      %v3824 = vsel %vm3822, %v3815, %v3817
      %v3825 = vsel %vm3822, %v3817, %v3819
      %v3826 = vsel %vm3822, %v3819, %v3821
      %v3832 = vsel %vm2005, %v3811, 0
      %3834 = vmatprep.subr.bf16.mxu0 %v3824
      %3835 = vmatpush1.bf16.msra.mxu0 %v3823
      %3836 = vmatprep.subr.bf16.mxu0 0
      %3837 = vmatpush1.bf16.msra.mxu0 0
      %3838 = vmatprep.subr.bf16.mxu0 0
      %3839 = vmatpush1.bf16.msra.mxu0 0
      %3840 = vmatprep.subr.bf16.mxu0 0
      %3841 = vmatpush1.bf16.msra.mxu0 0
      %3842 = vmatprep.subr.bf16.mxu0 0
      %3843 = vmatpush1.bf16.msra.mxu0 0
      %3844 = vmatprep.subr.bf16.mxu0 0
      %3845 = vmatpush1.bf16.msra.mxu0 0
      %3846 = vmatprep.subr.bf16.mxu0 0
      %3847 = vmatpush1.bf16.msra.mxu0 0
      %3848 = vmatprep.subr.bf16.mxu0 0
      %3849 = vmatpush1.bf16.msra.mxu0 0
      %3850 = vmatprep.subr.bf16.mxu0 0
      %3851 = vmatpush1.bf16.msra.mxu0 0
      %3852 = vmatprep.subr.bf16.mxu0 0
      %3853 = vmatpush1.bf16.msra.mxu0 0
      %3854 = vmatprep.subr.bf16.mxu0 0
      %3855 = vmatpush1.bf16.msra.mxu0 0
      %3856 = vmatprep.subr.bf16.mxu0 0
      %3857 = vmatpush1.bf16.msra.mxu0 0
      %3858 = vmatprep.subr.bf16.mxu0 0
      %3859 = vmatpush1.bf16.msra.mxu0 0
      %3860 = vmatprep.subr.bf16.mxu0 0
      %3861 = vmatpush1.bf16.msra.mxu0 0
      %3862 = vmatprep.subr.bf16.mxu0 0
      %3863 = vmatpush1.bf16.msra.mxu0 0
      %3864 = vmatprep.subr.bf16.mxu0 0
      %3865 = vmatpush1.bf16.msra.mxu0 0
      %3866 = vmatprep.mubr.bf16.mxu0 0
      %3867 = vmatmul.mubr.bf16.gmra.mrb[0].mxu0 %v3832
      %v3868 = vpop.f32.mrb[0].mxu0
      %v3869 = vadd.f32 0.0, %v3868
      %v3870 = vpop.f32.mrb[0].mxu0
      %v3871 = vadd.f32 0.0, %v3870
      %v3872 = vpop.f32.mrb[0].mxu0
      %v3873 = vpop.f32.mrb[0].mxu0
      %3874 = vdwg.mxu0
      %3875 = vmatprep.subr.bf16.mxu0 %v3826
      %3876 = vmatpush1.bf16.msra.mxu0 %v3825
      %3877 = vmatprep.subr.bf16.mxu0 0
      %3878 = vmatpush1.bf16.msra.mxu0 0
      %3879 = vmatprep.subr.bf16.mxu0 0
      %3880 = vmatpush1.bf16.msra.mxu0 0
      %3881 = vmatprep.subr.bf16.mxu0 0
      %3882 = vmatpush1.bf16.msra.mxu0 0
      %3883 = vmatprep.subr.bf16.mxu0 0
      %3884 = vmatpush1.bf16.msra.mxu0 0
      %3885 = vmatprep.subr.bf16.mxu0 0
      %3886 = vmatpush1.bf16.msra.mxu0 0
      %3887 = vmatprep.subr.bf16.mxu0 0
      %3888 = vmatpush1.bf16.msra.mxu0 0
      %3889 = vmatprep.subr.bf16.mxu0 0
      %3890 = vmatpush1.bf16.msra.mxu0 0
      %3891 = vmatprep.subr.bf16.mxu0 0
      %3892 = vmatpush1.bf16.msra.mxu0 0
      %3893 = vmatprep.subr.bf16.mxu0 0
      %3894 = vmatpush1.bf16.msra.mxu0 0
      %3895 = vmatprep.subr.bf16.mxu0 0
      %3896 = vmatpush1.bf16.msra.mxu0 0
      %3897 = vmatprep.subr.bf16.mxu0 0
      %3898 = vmatpush1.bf16.msra.mxu0 0
      %3899 = vmatprep.subr.bf16.mxu0 0
      %3900 = vmatpush1.bf16.msra.mxu0 0
      %3901 = vmatprep.subr.bf16.mxu0 0
      %3902 = vmatpush1.bf16.msra.mxu0 0
      %3903 = vmatprep.subr.bf16.mxu0 0
      %3904 = vmatpush1.bf16.msra.mxu0 0
      %3905 = vmatprep.subr.bf16.mxu0 0
      %3906 = vmatpush1.bf16.msra.mxu0 0
      %3907 = vmatprep.mubr.bf16.mxu0 0
      %3908 = vmatmul.mubr.bf16.gmra.mrb[0].mxu0 %v3832
      %v3909 = vpop.f32.mrb[0].mxu0
      %v3910 = vadd.f32 0.0, %v3909
      %v3911 = vpop.f32.mrb[0].mxu0
      %v3912 = vadd.f32 0.0, %v3911
      %v3913 = vpop.f32.mrb[0].mxu0
      %v3914 = vpop.f32.mrb[0].mxu0
      %3915 = vdwg.mxu0
      %v3916 = vadd.f32 %v3806, %v3869
      %v3917 = vadd.f32 %v3807, %v3871
      %v3918 = vadd.f32 %v3808, %v3910
      %v3919 = vadd.f32 %v3809, %v3912
      %s3920 = scalar_lea.vmem %s2, 72
      %v3921 = vld [vmem:[%s3920] sm:$0xf]
      %3922 = vrot.lane.b32.xlu0 %v3031, 53
      %v3923 = vpop.permute.xlu0 %3922
      %3924 = vrot.lane.b32.xlu0 %v3032, 53
      %v3925 = vpop.permute.xlu0 %3924
      %3926 = vrot.lane.b32.xlu0 %v3033, 53
      %v3927 = vpop.permute.xlu0 %3926
      %3928 = vrot.lane.b32.xlu0 %v3034, 53
      %v3929 = vpop.permute.xlu0 %3928
      %3930 = vrot.lane.b32.xlu0 %v3035, 53
      %v3931 = vpop.permute.xlu0 %3930
      %vm3932 = vcmask 433152
      %v3933 = vsel %vm3932, %v3923, %v3925
      %v3934 = vsel %vm3932, %v3925, %v3927
      %v3935 = vsel %vm3932, %v3927, %v3929
      %v3936 = vsel %vm3932, %v3929, %v3931
      %v3942 = vsel %vm2005, %v3921, 0
      %3944 = vmatprep.subr.bf16.mxu0 %v3934
      %3945 = vmatpush1.bf16.msra.mxu0 %v3933
      %3946 = vmatprep.subr.bf16.mxu0 0
      %3947 = vmatpush1.bf16.msra.mxu0 0
      %3948 = vmatprep.subr.bf16.mxu0 0
      %3949 = vmatpush1.bf16.msra.mxu0 0
      %3950 = vmatprep.subr.bf16.mxu0 0
      %3951 = vmatpush1.bf16.msra.mxu0 0
      %3952 = vmatprep.subr.bf16.mxu0 0
      %3953 = vmatpush1.bf16.msra.mxu0 0
      %3954 = vmatprep.subr.bf16.mxu0 0
      %3955 = vmatpush1.bf16.msra.mxu0 0
      %3956 = vmatprep.subr.bf16.mxu0 0
      %3957 = vmatpush1.bf16.msra.mxu0 0
      %3958 = vmatprep.subr.bf16.mxu0 0
      %3959 = vmatpush1.bf16.msra.mxu0 0
      %3960 = vmatprep.subr.bf16.mxu0 0
      %3961 = vmatpush1.bf16.msra.mxu0 0
      %3962 = vmatprep.subr.bf16.mxu0 0
      %3963 = vmatpush1.bf16.msra.mxu0 0
      %3964 = vmatprep.subr.bf16.mxu0 0
      %3965 = vmatpush1.bf16.msra.mxu0 0
      %3966 = vmatprep.subr.bf16.mxu0 0
      %3967 = vmatpush1.bf16.msra.mxu0 0
      %3968 = vmatprep.subr.bf16.mxu0 0
      %3969 = vmatpush1.bf16.msra.mxu0 0
      %3970 = vmatprep.subr.bf16.mxu0 0
      %3971 = vmatpush1.bf16.msra.mxu0 0
      %3972 = vmatprep.subr.bf16.mxu0 0
      %3973 = vmatpush1.bf16.msra.mxu0 0
      %3974 = vmatprep.subr.bf16.mxu0 0
      %3975 = vmatpush1.bf16.msra.mxu0 0
      %3976 = vmatprep.mubr.bf16.mxu0 0
      %3977 = vmatmul.mubr.bf16.gmra.mrb[0].mxu0 %v3942
      %v3978 = vpop.f32.mrb[0].mxu0
      %v3979 = vadd.f32 0.0, %v3978
      %v3980 = vpop.f32.mrb[0].mxu0
      %v3981 = vadd.f32 0.0, %v3980
      %v3982 = vpop.f32.mrb[0].mxu0
      %v3983 = vpop.f32.mrb[0].mxu0
      %3984 = vdwg.mxu0
      %3985 = vmatprep.subr.bf16.mxu0 %v3936
      %3986 = vmatpush1.bf16.msra.mxu0 %v3935
      %3987 = vmatprep.subr.bf16.mxu0 0
      %3988 = vmatpush1.bf16.msra.mxu0 0
      %3989 = vmatprep.subr.bf16.mxu0 0
      %3990 = vmatpush1.bf16.msra.mxu0 0
      %3991 = vmatprep.subr.bf16.mxu0 0
      %3992 = vmatpush1.bf16.msra.mxu0 0
      %3993 = vmatprep.subr.bf16.mxu0 0
      %3994 = vmatpush1.bf16.msra.mxu0 0
      %3995 = vmatprep.subr.bf16.mxu0 0
      %3996 = vmatpush1.bf16.msra.mxu0 0
      %3997 = vmatprep.subr.bf16.mxu0 0
      %3998 = vmatpush1.bf16.msra.mxu0 0
      %3999 = vmatprep.subr.bf16.mxu0 0
      %4000 = vmatpush1.bf16.msra.mxu0 0
      %4001 = vmatprep.subr.bf16.mxu0 0
      %4002 = vmatpush1.bf16.msra.mxu0 0
      %4003 = vmatprep.subr.bf16.mxu0 0
      %4004 = vmatpush1.bf16.msra.mxu0 0
      %4005 = vmatprep.subr.bf16.mxu0 0
      %4006 = vmatpush1.bf16.msra.mxu0 0
      %4007 = vmatprep.subr.bf16.mxu0 0
      %4008 = vmatpush1.bf16.msra.mxu0 0
      %4009 = vmatprep.subr.bf16.mxu0 0
      %4010 = vmatpush1.bf16.msra.mxu0 0
      %4011 = vmatprep.subr.bf16.mxu0 0
      %4012 = vmatpush1.bf16.msra.mxu0 0
      %4013 = vmatprep.subr.bf16.mxu0 0
      %4014 = vmatpush1.bf16.msra.mxu0 0
      %4015 = vmatprep.subr.bf16.mxu0 0
      %4016 = vmatpush1.bf16.msra.mxu0 0
      %4017 = vmatprep.mubr.bf16.mxu0 0
      %4018 = vmatmul.mubr.bf16.gmra.mrb[0].mxu0 %v3942
      %v4019 = vpop.f32.mrb[0].mxu0
      %v4020 = vadd.f32 0.0, %v4019
      %v4021 = vpop.f32.mrb[0].mxu0
      %v4022 = vadd.f32 0.0, %v4021
      %v4023 = vpop.f32.mrb[0].mxu0
      %v4024 = vpop.f32.mrb[0].mxu0
      %4025 = vdwg.mxu0
      %v4026 = vadd.f32 %v3916, %v3979
      %v4027 = vadd.f32 %v3917, %v3981
      %v4028 = vadd.f32 %v3918, %v4020
      %v4029 = vadd.f32 %v3919, %v4022
      %s4030 = scalar_lea.vmem %s2, 76
      %v4031 = vld [vmem:[%s4030] sm:$0xf]
      %4032 = vrot.lane.b32.xlu0 %v3031, 52
      %v4033 = vpop.permute.xlu0 %4032
      %4034 = vrot.lane.b32.xlu0 %v3032, 52
      %v4035 = vpop.permute.xlu0 %4034
      %4036 = vrot.lane.b32.xlu0 %v3033, 52
      %v4037 = vpop.permute.xlu0 %4036
      %4038 = vrot.lane.b32.xlu0 %v3034, 52
      %v4039 = vpop.permute.xlu0 %4038
      %4040 = vrot.lane.b32.xlu0 %v3035, 52
      %v4041 = vpop.permute.xlu0 %4040
      %vm4042 = vcmask 424960
      %v4043 = vsel %vm4042, %v4033, %v4035
      %v4044 = vsel %vm4042, %v4035, %v4037
      %v4045 = vsel %vm4042, %v4037, %v4039
      %v4046 = vsel %vm4042, %v4039, %v4041
      %v4052 = vsel %vm2005, %v4031, 0
      %4054 = vmatprep.subr.bf16.mxu0 %v4044
      %4055 = vmatpush1.bf16.msra.mxu0 %v4043
      %4056 = vmatprep.subr.bf16.mxu0 0
      %4057 = vmatpush1.bf16.msra.mxu0 0
      %4058 = vmatprep.subr.bf16.mxu0 0
      %4059 = vmatpush1.bf16.msra.mxu0 0
      %4060 = vmatprep.subr.bf16.mxu0 0
      %4061 = vmatpush1.bf16.msra.mxu0 0
      %4062 = vmatprep.subr.bf16.mxu0 0
      %4063 = vmatpush1.bf16.msra.mxu0 0
      %4064 = vmatprep.subr.bf16.mxu0 0
      %4065 = vmatpush1.bf16.msra.mxu0 0
      %4066 = vmatprep.subr.bf16.mxu0 0
      %4067 = vmatpush1.bf16.msra.mxu0 0
      %4068 = vmatprep.subr.bf16.mxu0 0
      %4069 = vmatpush1.bf16.msra.mxu0 0
      %4070 = vmatprep.subr.bf16.mxu0 0
      %4071 = vmatpush1.bf16.msra.mxu0 0
      %4072 = vmatprep.subr.bf16.mxu0 0
      %4073 = vmatpush1.bf16.msra.mxu0 0
      %4074 = vmatprep.subr.bf16.mxu0 0
      %4075 = vmatpush1.bf16.msra.mxu0 0
      %4076 = vmatprep.subr.bf16.mxu0 0
      %4077 = vmatpush1.bf16.msra.mxu0 0
      %4078 = vmatprep.subr.bf16.mxu0 0
      %4079 = vmatpush1.bf16.msra.mxu0 0
      %4080 = vmatprep.subr.bf16.mxu0 0
      %4081 = vmatpush1.bf16.msra.mxu0 0
      %4082 = vmatprep.subr.bf16.mxu0 0
      %4083 = vmatpush1.bf16.msra.mxu0 0
      %4084 = vmatprep.subr.bf16.mxu0 0
      %4085 = vmatpush1.bf16.msra.mxu0 0
      %4086 = vmatprep.mubr.bf16.mxu0 0
      %4087 = vmatmul.mubr.bf16.gmra.mrb[0].mxu0 %v4052
      %v4088 = vpop.f32.mrb[0].mxu0
      %v4089 = vadd.f32 0.0, %v4088
      %v4090 = vpop.f32.mrb[0].mxu0
      %v4091 = vadd.f32 0.0, %v4090
      %v4092 = vpop.f32.mrb[0].mxu0
      %v4093 = vpop.f32.mrb[0].mxu0
      %4094 = vdwg.mxu0
      %4095 = vmatprep.subr.bf16.mxu0 %v4046
      %4096 = vmatpush1.bf16.msra.mxu0 %v4045
      %4097 = vmatprep.subr.bf16.mxu0 0
      %4098 = vmatpush1.bf16.msra.mxu0 0
      %4099 = vmatprep.subr.bf16.mxu0 0
      %4100 = vmatpush1.bf16.msra.mxu0 0
      %4101 = vmatprep.subr.bf16.mxu0 0
      %4102 = vmatpush1.bf16.msra.mxu0 0
      %4103 = vmatprep.subr.bf16.mxu0 0
      %4104 = vmatpush1.bf16.msra.mxu0 0
      %4105 = vmatprep.subr.bf16.mxu0 0
      %4106 = vmatpush1.bf16.msra.mxu0 0
      %4107 = vmatprep.subr.bf16.mxu0 0
      %4108 = vmatpush1.bf16.msra.mxu0 0
      %4109 = vmatprep.subr.bf16.mxu0 0
      %4110 = vmatpush1.bf16.msra.mxu0 0
      %4111 = vmatprep.subr.bf16.mxu0 0
      %4112 = vmatpush1.bf16.msra.mxu0 0
      %4113 = vmatprep.subr.bf16.mxu0 0
      %4114 = vmatpush1.bf16.msra.mxu0 0
      %4115 = vmatprep.subr.bf16.mxu0 0
      %4116 = vmatpush1.bf16.msra.mxu0 0
      %4117 = vmatprep.subr.bf16.mxu0 0
      %4118 = vmatpush1.bf16.msra.mxu0 0
      %4119 = vmatprep.subr.bf16.mxu0 0
      %4120 = vmatpush1.bf16.msra.mxu0 0
      %4121 = vmatprep.subr.bf16.mxu0 0
      %4122 = vmatpush1.bf16.msra.mxu0 0
      %4123 = vmatprep.subr.bf16.mxu0 0
      %4124 = vmatpush1.bf16.msra.mxu0 0
      %4125 = vmatprep.subr.bf16.mxu0 0
      %4126 = vmatpush1.bf16.msra.mxu0 0
      %4127 = vmatprep.mubr.bf16.mxu0 0
      %4128 = vmatmul.mubr.bf16.gmra.mrb[0].mxu0 %v4052
      %v4129 = vpop.f32.mrb[0].mxu0
      %v4130 = vadd.f32 0.0, %v4129
      %v4131 = vpop.f32.mrb[0].mxu0
      %v4132 = vadd.f32 0.0, %v4131
      %v4133 = vpop.f32.mrb[0].mxu0
      %v4134 = vpop.f32.mrb[0].mxu0
      %4135 = vdwg.mxu0
      %v4136 = vadd.f32 %v4026, %v4089
      %v4137 = vadd.f32 %v4027, %v4091
      %v4138 = vadd.f32 %v4028, %v4130
      %v4139 = vadd.f32 %v4029, %v4132
      %s4140 = scalar_lea.vmem %s2, 80
      %v4141 = vld [vmem:[%s4140] sm:$0xf]
      %4142 = vrot.lane.b32.xlu0 %v3031, 32
      %v4143 = vpop.permute.xlu0 %4142
      %4144 = vrot.lane.b32.xlu0 %v3032, 32
      %v4145 = vpop.permute.xlu0 %4144
      %4146 = vrot.lane.b32.xlu0 %v3033, 32
      %v4147 = vpop.permute.xlu0 %4146
      %4148 = vrot.lane.b32.xlu0 %v3034, 32
      %v4149 = vpop.permute.xlu0 %4148
      %4150 = vrot.lane.b32.xlu0 %v3035, 32
      %v4151 = vpop.permute.xlu0 %4150
      %vm4152 = vcmask 261120
      %v4153 = vsel %vm4152, %v4143, %v4145
      %v4154 = vsel %vm4152, %v4145, %v4147
      %v4155 = vsel %vm4152, %v4147, %v4149
      %v4156 = vsel %vm4152, %v4149, %v4151
      %v4162 = vsel %vm2005, %v4141, 0
      %4164 = vmatprep.subr.bf16.mxu0 %v4154
      %4165 = vmatpush1.bf16.msra.mxu0 %v4153
      %4166 = vmatprep.subr.bf16.mxu0 0
      %4167 = vmatpush1.bf16.msra.mxu0 0
      %4168 = vmatprep.subr.bf16.mxu0 0
      %4169 = vmatpush1.bf16.msra.mxu0 0
      %4170 = vmatprep.subr.bf16.mxu0 0
      %4171 = vmatpush1.bf16.msra.mxu0 0
      %4172 = vmatprep.subr.bf16.mxu0 0
      %4173 = vmatpush1.bf16.msra.mxu0 0
      %4174 = vmatprep.subr.bf16.mxu0 0
      %4175 = vmatpush1.bf16.msra.mxu0 0
      %4176 = vmatprep.subr.bf16.mxu0 0
      %4177 = vmatpush1.bf16.msra.mxu0 0
      %4178 = vmatprep.subr.bf16.mxu0 0
      %4179 = vmatpush1.bf16.msra.mxu0 0
      %4180 = vmatprep.subr.bf16.mxu0 0
      %4181 = vmatpush1.bf16.msra.mxu0 0
      %4182 = vmatprep.subr.bf16.mxu0 0
      %4183 = vmatpush1.bf16.msra.mxu0 0
      %4184 = vmatprep.subr.bf16.mxu0 0
      %4185 = vmatpush1.bf16.msra.mxu0 0
      %4186 = vmatprep.subr.bf16.mxu0 0
      %4187 = vmatpush1.bf16.msra.mxu0 0
      %4188 = vmatprep.subr.bf16.mxu0 0
      %4189 = vmatpush1.bf16.msra.mxu0 0
      %4190 = vmatprep.subr.bf16.mxu0 0
      %4191 = vmatpush1.bf16.msra.mxu0 0
      %4192 = vmatprep.subr.bf16.mxu0 0
      %4193 = vmatpush1.bf16.msra.mxu0 0
      %4194 = vmatprep.subr.bf16.mxu0 0
      %4195 = vmatpush1.bf16.msra.mxu0 0
      %4196 = vmatprep.mubr.bf16.mxu0 0
      %4197 = vmatmul.mubr.bf16.gmra.mrb[0].mxu0 %v4162
      %v4198 = vpop.f32.mrb[0].mxu0
      %v4199 = vadd.f32 0.0, %v4198
      %v4200 = vpop.f32.mrb[0].mxu0
      %v4201 = vadd.f32 0.0, %v4200
      %v4202 = vpop.f32.mrb[0].mxu0
      %v4203 = vpop.f32.mrb[0].mxu0
      %4204 = vdwg.mxu0
      %4205 = vmatprep.subr.bf16.mxu0 %v4156
      %4206 = vmatpush1.bf16.msra.mxu0 %v4155
      %4207 = vmatprep.subr.bf16.mxu0 0
      %4208 = vmatpush1.bf16.msra.mxu0 0
      %4209 = vmatprep.subr.bf16.mxu0 0
      %4210 = vmatpush1.bf16.msra.mxu0 0
      %4211 = vmatprep.subr.bf16.mxu0 0
      %4212 = vmatpush1.bf16.msra.mxu0 0
      %4213 = vmatprep.subr.bf16.mxu0 0
      %4214 = vmatpush1.bf16.msra.mxu0 0
      %4215 = vmatprep.subr.bf16.mxu0 0
      %4216 = vmatpush1.bf16.msra.mxu0 0
      %4217 = vmatprep.subr.bf16.mxu0 0
      %4218 = vmatpush1.bf16.msra.mxu0 0
      %4219 = vmatprep.subr.bf16.mxu0 0
      %4220 = vmatpush1.bf16.msra.mxu0 0
      %4221 = vmatprep.subr.bf16.mxu0 0
      %4222 = vmatpush1.bf16.msra.mxu0 0
      %4223 = vmatprep.subr.bf16.mxu0 0
      %4224 = vmatpush1.bf16.msra.mxu0 0
      %4225 = vmatprep.subr.bf16.mxu0 0
      %4226 = vmatpush1.bf16.msra.mxu0 0
      %4227 = vmatprep.subr.bf16.mxu0 0
      %4228 = vmatpush1.bf16.msra.mxu0 0
      %4229 = vmatprep.subr.bf16.mxu0 0
      %4230 = vmatpush1.bf16.msra.mxu0 0
      %4231 = vmatprep.subr.bf16.mxu0 0
      %4232 = vmatpush1.bf16.msra.mxu0 0
      %4233 = vmatprep.subr.bf16.mxu0 0
      %4234 = vmatpush1.bf16.msra.mxu0 0
      %4235 = vmatprep.subr.bf16.mxu0 0
      %4236 = vmatpush1.bf16.msra.mxu0 0
      %4237 = vmatprep.mubr.bf16.mxu0 0
      %4238 = vmatmul.mubr.bf16.gmra.mrb[0].mxu0 %v4162
      %v4239 = vpop.f32.mrb[0].mxu0
      %v4240 = vadd.f32 0.0, %v4239
      %v4241 = vpop.f32.mrb[0].mxu0
      %v4242 = vadd.f32 0.0, %v4241
      %v4243 = vpop.f32.mrb[0].mxu0
      %v4244 = vpop.f32.mrb[0].mxu0
      %4245 = vdwg.mxu0
      %v4246 = vadd.f32 %v4136, %v4199
      %v4247 = vadd.f32 %v4137, %v4201
      %v4248 = vadd.f32 %v4138, %v4240
      %v4249 = vadd.f32 %v4139, %v4242
      %s4250 = scalar_lea.vmem %s2, 84
      %v4251 = vld [vmem:[%s4250] sm:$0xf]
      %4252 = vrot.lane.b32.xlu0 %v3031, 31
      %v4253 = vpop.permute.xlu0 %4252
      %4254 = vrot.lane.b32.xlu0 %v3032, 31
      %v4255 = vpop.permute.xlu0 %4254
      %4256 = vrot.lane.b32.xlu0 %v3033, 31
      %v4257 = vpop.permute.xlu0 %4256
      %4258 = vrot.lane.b32.xlu0 %v3034, 31
      %v4259 = vpop.permute.xlu0 %4258
      %4260 = vrot.lane.b32.xlu0 %v3035, 31
      %v4261 = vpop.permute.xlu0 %4260
      %v4262 = vsel %vm480, %v4253, %v4255
      %v4263 = vsel %vm480, %v4255, %v4257
      %v4264 = vsel %vm480, %v4257, %v4259
      %v4265 = vsel %vm480, %v4259, %v4261
      %v4271 = vsel %vm2005, %v4251, 0
      %4273 = vmatprep.subr.bf16.mxu0 %v4263
      %4274 = vmatpush1.bf16.msra.mxu0 %v4262
      %4275 = vmatprep.subr.bf16.mxu0 0
      %4276 = vmatpush1.bf16.msra.mxu0 0
      %4277 = vmatprep.subr.bf16.mxu0 0
      %4278 = vmatpush1.bf16.msra.mxu0 0
      %4279 = vmatprep.subr.bf16.mxu0 0
      %4280 = vmatpush1.bf16.msra.mxu0 0
      %4281 = vmatprep.subr.bf16.mxu0 0
      %4282 = vmatpush1.bf16.msra.mxu0 0
      %4283 = vmatprep.subr.bf16.mxu0 0
      %4284 = vmatpush1.bf16.msra.mxu0 0
      %4285 = vmatprep.subr.bf16.mxu0 0
      %4286 = vmatpush1.bf16.msra.mxu0 0
      %4287 = vmatprep.subr.bf16.mxu0 0
      %4288 = vmatpush1.bf16.msra.mxu0 0
      %4289 = vmatprep.subr.bf16.mxu0 0
      %4290 = vmatpush1.bf16.msra.mxu0 0
      %4291 = vmatprep.subr.bf16.mxu0 0
      %4292 = vmatpush1.bf16.msra.mxu0 0
      %4293 = vmatprep.subr.bf16.mxu0 0
      %4294 = vmatpush1.bf16.msra.mxu0 0
      %4295 = vmatprep.subr.bf16.mxu0 0
      %4296 = vmatpush1.bf16.msra.mxu0 0
      %4297 = vmatprep.subr.bf16.mxu0 0
      %4298 = vmatpush1.bf16.msra.mxu0 0
      %4299 = vmatprep.subr.bf16.mxu0 0
      %4300 = vmatpush1.bf16.msra.mxu0 0
      %4301 = vmatprep.subr.bf16.mxu0 0
      %4302 = vmatpush1.bf16.msra.mxu0 0
      %4303 = vmatprep.subr.bf16.mxu0 0
      %4304 = vmatpush1.bf16.msra.mxu0 0
      %4305 = vmatprep.mubr.bf16.mxu0 0
      %4306 = vmatmul.mubr.bf16.gmra.mrb[0].mxu0 %v4271
      %v4307 = vpop.f32.mrb[0].mxu0
      %v4308 = vadd.f32 0.0, %v4307
      %v4309 = vpop.f32.mrb[0].mxu0
      %v4310 = vadd.f32 0.0, %v4309
      %v4311 = vpop.f32.mrb[0].mxu0
      %v4312 = vpop.f32.mrb[0].mxu0
      %4313 = vdwg.mxu0
      %4314 = vmatprep.subr.bf16.mxu0 %v4265
      %4315 = vmatpush1.bf16.msra.mxu0 %v4264
      %4316 = vmatprep.subr.bf16.mxu0 0
      %4317 = vmatpush1.bf16.msra.mxu0 0
      %4318 = vmatprep.subr.bf16.mxu0 0
      %4319 = vmatpush1.bf16.msra.mxu0 0
      %4320 = vmatprep.subr.bf16.mxu0 0
      %4321 = vmatpush1.bf16.msra.mxu0 0
      %4322 = vmatprep.subr.bf16.mxu0 0
      %4323 = vmatpush1.bf16.msra.mxu0 0
      %4324 = vmatprep.subr.bf16.mxu0 0
      %4325 = vmatpush1.bf16.msra.mxu0 0
      %4326 = vmatprep.subr.bf16.mxu0 0
      %4327 = vmatpush1.bf16.msra.mxu0 0
      %4328 = vmatprep.subr.bf16.mxu0 0
      %4329 = vmatpush1.bf16.msra.mxu0 0
      %4330 = vmatprep.subr.bf16.mxu0 0
      %4331 = vmatpush1.bf16.msra.mxu0 0
      %4332 = vmatprep.subr.bf16.mxu0 0
      %4333 = vmatpush1.bf16.msra.mxu0 0
      %4334 = vmatprep.subr.bf16.mxu0 0
      %4335 = vmatpush1.bf16.msra.mxu0 0
      %4336 = vmatprep.subr.bf16.mxu0 0
      %4337 = vmatpush1.bf16.msra.mxu0 0
      %4338 = vmatprep.subr.bf16.mxu0 0
      %4339 = vmatpush1.bf16.msra.mxu0 0
      %4340 = vmatprep.subr.bf16.mxu0 0
      %4341 = vmatpush1.bf16.msra.mxu0 0
      %4342 = vmatprep.subr.bf16.mxu0 0
      %4343 = vmatpush1.bf16.msra.mxu0 0
      %4344 = vmatprep.subr.bf16.mxu0 0
      %4345 = vmatpush1.bf16.msra.mxu0 0
      %4346 = vmatprep.mubr.bf16.mxu0 0
      %4347 = vmatmul.mubr.bf16.gmra.mrb[0].mxu0 %v4271
      %v4348 = vpop.f32.mrb[0].mxu0
      %v4349 = vadd.f32 0.0, %v4348
      %v4350 = vpop.f32.mrb[0].mxu0
      %v4351 = vadd.f32 0.0, %v4350
      %v4352 = vpop.f32.mrb[0].mxu0
      %v4353 = vpop.f32.mrb[0].mxu0
      %4354 = vdwg.mxu0
      %v4355 = vadd.f32 %v4246, %v4308
      %v4356 = vadd.f32 %v4247, %v4310
      %v4357 = vadd.f32 %v4248, %v4349
      %v4358 = vadd.f32 %v4249, %v4351
      %s4359 = scalar_lea.vmem %s2, 88
      %v4360 = vld [vmem:[%s4359] sm:$0xf]
      %4361 = vrot.lane.b32.xlu0 %v3031, 30
      %v4362 = vpop.permute.xlu0 %4361
      %4363 = vrot.lane.b32.xlu0 %v3032, 30
      %v4364 = vpop.permute.xlu0 %4363
      %4365 = vrot.lane.b32.xlu0 %v3033, 30
      %v4366 = vpop.permute.xlu0 %4365
      %4367 = vrot.lane.b32.xlu0 %v3034, 30
      %v4368 = vpop.permute.xlu0 %4367
      %4369 = vrot.lane.b32.xlu0 %v3035, 30
      %v4370 = vpop.permute.xlu0 %4369
      %vm4371 = vcmask 244736
      %v4372 = vsel %vm4371, %v4362, %v4364
      %v4373 = vsel %vm4371, %v4364, %v4366
      %v4374 = vsel %vm4371, %v4366, %v4368
      %v4375 = vsel %vm4371, %v4368, %v4370
      %v4381 = vsel %vm2005, %v4360, 0
      %4383 = vmatprep.subr.bf16.mxu0 %v4373
      %4384 = vmatpush1.bf16.msra.mxu0 %v4372
      %4385 = vmatprep.subr.bf16.mxu0 0
      %4386 = vmatpush1.bf16.msra.mxu0 0
      %4387 = vmatprep.subr.bf16.mxu0 0
      %4388 = vmatpush1.bf16.msra.mxu0 0
      %4389 = vmatprep.subr.bf16.mxu0 0
      %4390 = vmatpush1.bf16.msra.mxu0 0
      %4391 = vmatprep.subr.bf16.mxu0 0
      %4392 = vmatpush1.bf16.msra.mxu0 0
      %4393 = vmatprep.subr.bf16.mxu0 0
      %4394 = vmatpush1.bf16.msra.mxu0 0
      %4395 = vmatprep.subr.bf16.mxu0 0
      %4396 = vmatpush1.bf16.msra.mxu0 0
      %4397 = vmatprep.subr.bf16.mxu0 0
      %4398 = vmatpush1.bf16.msra.mxu0 0
      %4399 = vmatprep.subr.bf16.mxu0 0
      %4400 = vmatpush1.bf16.msra.mxu0 0
      %4401 = vmatprep.subr.bf16.mxu0 0
      %4402 = vmatpush1.bf16.msra.mxu0 0
      %4403 = vmatprep.subr.bf16.mxu0 0
      %4404 = vmatpush1.bf16.msra.mxu0 0
      %4405 = vmatprep.subr.bf16.mxu0 0
      %4406 = vmatpush1.bf16.msra.mxu0 0
      %4407 = vmatprep.subr.bf16.mxu0 0
      %4408 = vmatpush1.bf16.msra.mxu0 0
      %4409 = vmatprep.subr.bf16.mxu0 0
      %4410 = vmatpush1.bf16.msra.mxu0 0
      %4411 = vmatprep.subr.bf16.mxu0 0
      %4412 = vmatpush1.bf16.msra.mxu0 0
      %4413 = vmatprep.subr.bf16.mxu0 0
      %4414 = vmatpush1.bf16.msra.mxu0 0
      %4415 = vmatprep.mubr.bf16.mxu0 0
      %4416 = vmatmul.mubr.bf16.gmra.mrb[0].mxu0 %v4381
      %v4417 = vpop.f32.mrb[0].mxu0
      %v4418 = vadd.f32 0.0, %v4417
      %v4419 = vpop.f32.mrb[0].mxu0
      %v4420 = vadd.f32 0.0, %v4419
      %v4421 = vpop.f32.mrb[0].mxu0
      %v4422 = vpop.f32.mrb[0].mxu0
      %4423 = vdwg.mxu0
      %4424 = vmatprep.subr.bf16.mxu0 %v4375
      %4425 = vmatpush1.bf16.msra.mxu0 %v4374
      %4426 = vmatprep.subr.bf16.mxu0 0
      %4427 = vmatpush1.bf16.msra.mxu0 0
      %4428 = vmatprep.subr.bf16.mxu0 0
      %4429 = vmatpush1.bf16.msra.mxu0 0
      %4430 = vmatprep.subr.bf16.mxu0 0
      %4431 = vmatpush1.bf16.msra.mxu0 0
      %4432 = vmatprep.subr.bf16.mxu0 0
      %4433 = vmatpush1.bf16.msra.mxu0 0
      %4434 = vmatprep.subr.bf16.mxu0 0
      %4435 = vmatpush1.bf16.msra.mxu0 0
      %4436 = vmatprep.subr.bf16.mxu0 0
      %4437 = vmatpush1.bf16.msra.mxu0 0
      %4438 = vmatprep.subr.bf16.mxu0 0
      %4439 = vmatpush1.bf16.msra.mxu0 0
      %4440 = vmatprep.subr.bf16.mxu0 0
      %4441 = vmatpush1.bf16.msra.mxu0 0
      %4442 = vmatprep.subr.bf16.mxu0 0
      %4443 = vmatpush1.bf16.msra.mxu0 0
      %4444 = vmatprep.subr.bf16.mxu0 0
      %4445 = vmatpush1.bf16.msra.mxu0 0
      %4446 = vmatprep.subr.bf16.mxu0 0
      %4447 = vmatpush1.bf16.msra.mxu0 0
      %4448 = vmatprep.subr.bf16.mxu0 0
      %4449 = vmatpush1.bf16.msra.mxu0 0
      %4450 = vmatprep.subr.bf16.mxu0 0
      %4451 = vmatpush1.bf16.msra.mxu0 0
      %4452 = vmatprep.subr.bf16.mxu0 0
      %4453 = vmatpush1.bf16.msra.mxu0 0
      %4454 = vmatprep.subr.bf16.mxu0 0
      %4455 = vmatpush1.bf16.msra.mxu0 0
      %4456 = vmatprep.mubr.bf16.mxu0 0
      %4457 = vmatmul.mubr.bf16.gmra.mrb[0].mxu0 %v4381
      %v4458 = vpop.f32.mrb[0].mxu0
      %v4459 = vadd.f32 0.0, %v4458
      %v4460 = vpop.f32.mrb[0].mxu0
      %v4461 = vadd.f32 0.0, %v4460
      %v4462 = vpop.f32.mrb[0].mxu0
      %v4463 = vpop.f32.mrb[0].mxu0
      %4464 = vdwg.mxu0
      %v4465 = vadd.f32 %v4355, %v4418
      %v4466 = vadd.f32 %v4356, %v4420
      %v4467 = vadd.f32 %v4357, %v4459
      %v4468 = vadd.f32 %v4358, %v4461
      %s4469 = scalar_lea.vmem %s2, 92
      %v4470 = vld [vmem:[%s4469] sm:$0xf]
      %4471 = vrot.lane.b32.xlu0 %v3031, 29
      %v4472 = vpop.permute.xlu0 %4471
      %4473 = vrot.lane.b32.xlu0 %v3032, 29
      %v4474 = vpop.permute.xlu0 %4473
      %4475 = vrot.lane.b32.xlu0 %v3033, 29
      %v4476 = vpop.permute.xlu0 %4475
      %4477 = vrot.lane.b32.xlu0 %v3034, 29
      %v4478 = vpop.permute.xlu0 %4477
      %4479 = vrot.lane.b32.xlu0 %v3035, 29
      %v4480 = vpop.permute.xlu0 %4479
      %vm4481 = vcmask 236544
      %v4482 = vsel %vm4481, %v4472, %v4474
      %v4483 = vsel %vm4481, %v4474, %v4476
      %v4484 = vsel %vm4481, %v4476, %v4478
      %v4485 = vsel %vm4481, %v4478, %v4480
      %v4491 = vsel %vm2005, %v4470, 0
      %4493 = vmatprep.subr.bf16.mxu0 %v4483
      %4494 = vmatpush1.bf16.msra.mxu0 %v4482
      %4495 = vmatprep.subr.bf16.mxu0 0
      %4496 = vmatpush1.bf16.msra.mxu0 0
      %4497 = vmatprep.subr.bf16.mxu0 0
      %4498 = vmatpush1.bf16.msra.mxu0 0
      %4499 = vmatprep.subr.bf16.mxu0 0
      %4500 = vmatpush1.bf16.msra.mxu0 0
      %4501 = vmatprep.subr.bf16.mxu0 0
      %4502 = vmatpush1.bf16.msra.mxu0 0
      %4503 = vmatprep.subr.bf16.mxu0 0
      %4504 = vmatpush1.bf16.msra.mxu0 0
      %4505 = vmatprep.subr.bf16.mxu0 0
      %4506 = vmatpush1.bf16.msra.mxu0 0
      %4507 = vmatprep.subr.bf16.mxu0 0
      %4508 = vmatpush1.bf16.msra.mxu0 0
      %4509 = vmatprep.subr.bf16.mxu0 0
      %4510 = vmatpush1.bf16.msra.mxu0 0
      %4511 = vmatprep.subr.bf16.mxu0 0
      %4512 = vmatpush1.bf16.msra.mxu0 0
      %4513 = vmatprep.subr.bf16.mxu0 0
      %4514 = vmatpush1.bf16.msra.mxu0 0
      %4515 = vmatprep.subr.bf16.mxu0 0
      %4516 = vmatpush1.bf16.msra.mxu0 0
      %4517 = vmatprep.subr.bf16.mxu0 0
      %4518 = vmatpush1.bf16.msra.mxu0 0
      %4519 = vmatprep.subr.bf16.mxu0 0
      %4520 = vmatpush1.bf16.msra.mxu0 0
      %4521 = vmatprep.subr.bf16.mxu0 0
      %4522 = vmatpush1.bf16.msra.mxu0 0
      %4523 = vmatprep.subr.bf16.mxu0 0
      %4524 = vmatpush1.bf16.msra.mxu0 0
      %4525 = vmatprep.mubr.bf16.mxu0 0
      %4526 = vmatmul.mubr.bf16.gmra.mrb[0].mxu0 %v4491
      %v4527 = vpop.f32.mrb[0].mxu0
      %v4528 = vadd.f32 0.0, %v4527
      %v4529 = vpop.f32.mrb[0].mxu0
      %v4530 = vadd.f32 0.0, %v4529
      %v4531 = vpop.f32.mrb[0].mxu0
      %v4532 = vpop.f32.mrb[0].mxu0
      %4533 = vdwg.mxu0
      %4534 = vmatprep.subr.bf16.mxu0 %v4485
      %4535 = vmatpush1.bf16.msra.mxu0 %v4484
      %4536 = vmatprep.subr.bf16.mxu0 0
      %4537 = vmatpush1.bf16.msra.mxu0 0
      %4538 = vmatprep.subr.bf16.mxu0 0
      %4539 = vmatpush1.bf16.msra.mxu0 0
      %4540 = vmatprep.subr.bf16.mxu0 0
      %4541 = vmatpush1.bf16.msra.mxu0 0
      %4542 = vmatprep.subr.bf16.mxu0 0
      %4543 = vmatpush1.bf16.msra.mxu0 0
      %4544 = vmatprep.subr.bf16.mxu0 0
      %4545 = vmatpush1.bf16.msra.mxu0 0
      %4546 = vmatprep.subr.bf16.mxu0 0
      %4547 = vmatpush1.bf16.msra.mxu0 0
      %4548 = vmatprep.subr.bf16.mxu0 0
      %4549 = vmatpush1.bf16.msra.mxu0 0
      %4550 = vmatprep.subr.bf16.mxu0 0
      %4551 = vmatpush1.bf16.msra.mxu0 0
      %4552 = vmatprep.subr.bf16.mxu0 0
      %4553 = vmatpush1.bf16.msra.mxu0 0
      %4554 = vmatprep.subr.bf16.mxu0 0
      %4555 = vmatpush1.bf16.msra.mxu0 0
      %4556 = vmatprep.subr.bf16.mxu0 0
      %4557 = vmatpush1.bf16.msra.mxu0 0
      %4558 = vmatprep.subr.bf16.mxu0 0
      %4559 = vmatpush1.bf16.msra.mxu0 0
      %4560 = vmatprep.subr.bf16.mxu0 0
      %4561 = vmatpush1.bf16.msra.mxu0 0
      %4562 = vmatprep.subr.bf16.mxu0 0
      %4563 = vmatpush1.bf16.msra.mxu0 0
      %4564 = vmatprep.subr.bf16.mxu0 0
      %4565 = vmatpush1.bf16.msra.mxu0 0
      %4566 = vmatprep.mubr.bf16.mxu0 0
      %4567 = vmatmul.mubr.bf16.gmra.mrb[0].mxu0 %v4491
      %v4568 = vpop.f32.mrb[0].mxu0
      %v4569 = vadd.f32 0.0, %v4568
      %v4570 = vpop.f32.mrb[0].mxu0
      %v4571 = vadd.f32 0.0, %v4570
      %v4572 = vpop.f32.mrb[0].mxu0
      %v4573 = vpop.f32.mrb[0].mxu0
      %4574 = vdwg.mxu0
      %v4575 = vadd.f32 %v4465, %v4528
      %v4576 = vadd.f32 %v4466, %v4530
      %v4577 = vadd.f32 %v4467, %v4569
      %v4578 = vadd.f32 %v4468, %v4571
      %s4579 = scalar_lea.vmem %s2, 96
      %v4580 = vld [vmem:[%s4579] sm:$0xf]
      %4581 = vrot.lane.b32.xlu0 %v3031, 28
      %v4582 = vpop.permute.xlu0 %4581
      %4583 = vrot.lane.b32.xlu0 %v3032, 28
      %v4584 = vpop.permute.xlu0 %4583
      %4585 = vrot.lane.b32.xlu0 %v3033, 28
      %v4586 = vpop.permute.xlu0 %4585
      %4587 = vrot.lane.b32.xlu0 %v3034, 28
      %v4588 = vpop.permute.xlu0 %4587
      %4589 = vrot.lane.b32.xlu0 %v3035, 28
      %v4590 = vpop.permute.xlu0 %4589
      %vm4591 = vcmask 228352
      %v4592 = vsel %vm4591, %v4582, %v4584
      %v4593 = vsel %vm4591, %v4584, %v4586
      %v4594 = vsel %vm4591, %v4586, %v4588
      %v4595 = vsel %vm4591, %v4588, %v4590
      %v4601 = vsel %vm2005, %v4580, 0
      %4603 = vmatprep.subr.bf16.mxu0 %v4593
      %4604 = vmatpush1.bf16.msra.mxu0 %v4592
      %4605 = vmatprep.subr.bf16.mxu0 0
      %4606 = vmatpush1.bf16.msra.mxu0 0
      %4607 = vmatprep.subr.bf16.mxu0 0
      %4608 = vmatpush1.bf16.msra.mxu0 0
      %4609 = vmatprep.subr.bf16.mxu0 0
      %4610 = vmatpush1.bf16.msra.mxu0 0
      %4611 = vmatprep.subr.bf16.mxu0 0
      %4612 = vmatpush1.bf16.msra.mxu0 0
      %4613 = vmatprep.subr.bf16.mxu0 0
      %4614 = vmatpush1.bf16.msra.mxu0 0
      %4615 = vmatprep.subr.bf16.mxu0 0
      %4616 = vmatpush1.bf16.msra.mxu0 0
      %4617 = vmatprep.subr.bf16.mxu0 0
      %4618 = vmatpush1.bf16.msra.mxu0 0
      %4619 = vmatprep.subr.bf16.mxu0 0
      %4620 = vmatpush1.bf16.msra.mxu0 0
      %4621 = vmatprep.subr.bf16.mxu0 0
      %4622 = vmatpush1.bf16.msra.mxu0 0
      %4623 = vmatprep.subr.bf16.mxu0 0
      %4624 = vmatpush1.bf16.msra.mxu0 0
      %4625 = vmatprep.subr.bf16.mxu0 0
      %4626 = vmatpush1.bf16.msra.mxu0 0
      %4627 = vmatprep.subr.bf16.mxu0 0
      %4628 = vmatpush1.bf16.msra.mxu0 0
      %4629 = vmatprep.subr.bf16.mxu0 0
      %4630 = vmatpush1.bf16.msra.mxu0 0
      %4631 = vmatprep.subr.bf16.mxu0 0
      %4632 = vmatpush1.bf16.msra.mxu0 0
      %4633 = vmatprep.subr.bf16.mxu0 0
      %4634 = vmatpush1.bf16.msra.mxu0 0
      %4635 = vmatprep.mubr.bf16.mxu0 0
      %4636 = vmatmul.mubr.bf16.gmra.mrb[0].mxu0 %v4601
      %v4637 = vpop.f32.mrb[0].mxu0
      %v4638 = vadd.f32 0.0, %v4637
      %v4639 = vpop.f32.mrb[0].mxu0
      %v4640 = vadd.f32 0.0, %v4639
      %v4641 = vpop.f32.mrb[0].mxu0
      %v4642 = vpop.f32.mrb[0].mxu0
      %4643 = vdwg.mxu0
      %4644 = vmatprep.subr.bf16.mxu0 %v4595
      %4645 = vmatpush1.bf16.msra.mxu0 %v4594
      %4646 = vmatprep.subr.bf16.mxu0 0
      %4647 = vmatpush1.bf16.msra.mxu0 0
      %4648 = vmatprep.subr.bf16.mxu0 0
      %4649 = vmatpush1.bf16.msra.mxu0 0
      %4650 = vmatprep.subr.bf16.mxu0 0
      %4651 = vmatpush1.bf16.msra.mxu0 0
      %4652 = vmatprep.subr.bf16.mxu0 0
      %4653 = vmatpush1.bf16.msra.mxu0 0
      %4654 = vmatprep.subr.bf16.mxu0 0
      %4655 = vmatpush1.bf16.msra.mxu0 0
      %4656 = vmatprep.subr.bf16.mxu0 0
      %4657 = vmatpush1.bf16.msra.mxu0 0
      %4658 = vmatprep.subr.bf16.mxu0 0
      %4659 = vmatpush1.bf16.msra.mxu0 0
      %4660 = vmatprep.subr.bf16.mxu0 0
      %4661 = vmatpush1.bf16.msra.mxu0 0
      %4662 = vmatprep.subr.bf16.mxu0 0
      %4663 = vmatpush1.bf16.msra.mxu0 0
      %4664 = vmatprep.subr.bf16.mxu0 0
      %4665 = vmatpush1.bf16.msra.mxu0 0
      %4666 = vmatprep.subr.bf16.mxu0 0
      %4667 = vmatpush1.bf16.msra.mxu0 0
      %4668 = vmatprep.subr.bf16.mxu0 0
      %4669 = vmatpush1.bf16.msra.mxu0 0
      %4670 = vmatprep.subr.bf16.mxu0 0
      %4671 = vmatpush1.bf16.msra.mxu0 0
      %4672 = vmatprep.subr.bf16.mxu0 0
      %4673 = vmatpush1.bf16.msra.mxu0 0
      %4674 = vmatprep.subr.bf16.mxu0 0
      %4675 = vmatpush1.bf16.msra.mxu0 0
      %4676 = vmatprep.mubr.bf16.mxu0 0
      %4677 = vmatmul.mubr.bf16.gmra.mrb[0].mxu0 %v4601
      %v4678 = vpop.f32.mrb[0].mxu0
      %v4679 = vadd.f32 0.0, %v4678
      %v4680 = vpop.f32.mrb[0].mxu0
      %v4681 = vadd.f32 0.0, %v4680
      %v4682 = vpop.f32.mrb[0].mxu0
      %v4683 = vpop.f32.mrb[0].mxu0
      %4684 = vdwg.mxu0
      %v4685 = vadd.f32 %v4575, %v4638
      %v4686 = vadd.f32 %v4576, %v4640
      %v4687 = vadd.f32 %v4577, %v4679
      %v4688 = vadd.f32 %v4578, %v4681
      %v4689 = vld [vmem:[%s5] sm:$0xff]
      %4691 = vset.pattern.permute.xlu0 0
      %4692 = vperm.xlu0 %4691, %v4689
      %v4693 = vpop.permute.xlu0 %4692
      %v4695 = vadd.f32 %v4685, %v4693
      %v4696 = vadd.f32 %v4686, %v4693
      %v4697 = vadd.f32 %v4687, %v4693
      %v4698 = vadd.f32 %v4688, %v4693
      %v4699 = vmax.f32 %v4695, 0.0
      %v4700 = vmax.f32 %v4696, 0.0
      %v4701 = vmax.f32 %v4697, 0.0
      %v4702 = vmax.f32 %v4698, 0.0
      %v4703 = vpack.c.bf16 %v4699, %v4699
      %v4704 = vpack.c.bf16 %v4700, %v4700
      %v4705 = vpack.c.bf16 %v4701, %v4701
      %v4706 = vpack.c.bf16 %v4702, %v4702
      %v4708 = vunpack.c.l.b16 %v4703
      %v4709 = vpack.c.b16 %v4708, %v4708
      %4710 = vrot.lane.b32.xlu0 %v4709, 23
      %v4711 = vpop.permute.xlu0 %4710
      %vm4713 = vcmask 347320
      %4714 = vst.msk [vmem:[#allocation4] sm:$0xf] %vm4713, %v4711
      %4715 = vrot.lane.b32.xlu0 %v4709, 21
      %v4716 = vpop.permute.xlu0 %4715
      %vm4718 = vcmask 527720
      %4719 = vst.msk [vmem:[#allocation4] sm:$0xf] %vm4718, %v4716
      %4720 = vrot.lane.b32.xlu0 %v4709, 19
      %v4721 = vpop.permute.xlu0 %4720
      %vm4723 = vcmask 708120
      %4724 = vst.msk [vmem:[#allocation4] sm:$0xf] %vm4723, %v4721
      %4725 = vrot.lane.b32.xlu0 %v4709, 17
      %v4726 = vpop.permute.xlu0 %4725
      %vm4728 = vcmask 888520
      %4729 = vst.msk [vmem:[#allocation4] sm:$0xf] %vm4728, %v4726
      %4730 = vrot.lane.b32.xlu0 %v4709, 15
      %v4731 = vpop.permute.xlu0 %4730
      %v4732 = vrot.slane %v4731, 4
      %vm4733 = vcmask 121856
      %v4734 = vsel %vm4733, %v4732, %v4731
      %vm4736 = vcmask 1044344
      %vm4737 = vcmask 23556
      %vm4738 = vmor %vm4737, %vm4736
      %4739 = vst.msk [vmem:[#allocation4] sm:$0xff] %vm4738, %v4734
      %v4741 = vunpack.c.l.b16 %v4704
      %v4742 = vpack.c.b16 %v4741, %v4708
      %4743 = vrot.lane.b32.xlu0 %v4742, 13
      %v4744 = vpop.permute.xlu0 %4743
      %v4745 = vrot.slane %v4744, 4
      %vm4746 = vcmask 105472
      %v4747 = vsel %vm4746, %v4744, %v4745
      %vm4749 = vcmask 199720
      %4750 = vst.msk [vmem:[#allocation4 + $0x4] sm:$0xf] %vm4749, %v4747
      %v4751 = vpack.c.b16 %v4741, %v4741
      %4752 = vrot.lane.b32.xlu0 %v4751, 11
      %v4753 = vpop.permute.xlu0 %4752
      %vm4755 = vcmask 380120
      %4756 = vst.msk [vmem:[#allocation4 + $0x4] sm:$0xf] %vm4755, %v4753
      %4757 = vrot.lane.b32.xlu0 %v4751, 9
      %v4758 = vpop.permute.xlu0 %4757
      %vm4760 = vcmask 560520
      %4761 = vst.msk [vmem:[#allocation4 + $0x4] sm:$0xf] %vm4760, %v4758
      %4762 = vrot.lane.b32.xlu0 %v4751, 7
      %v4763 = vpop.permute.xlu0 %4762
      %vm4765 = vcmask 740920
      %4766 = vst.msk [vmem:[#allocation4 + $0x4] sm:$0xf] %vm4765, %v4763
      %4767 = vrot.lane.b32.xlu0 %v4751, 5
      %v4768 = vpop.permute.xlu0 %4767
      %vm4770 = vcmask 921320
      %4771 = vst.msk [vmem:[#allocation4 + $0x4] sm:$0xf] %vm4770, %v4768
      %v4773 = vunpack.c.l.b16 %v4705
      %v4774 = vpack.c.b16 %v4773, %v4741
      %4775 = vrot.lane.b32.xlu0 %v4774, 3
      %v4776 = vpop.permute.xlu0 %4775
      %v4777 = vrot.slane %v4776, 4
      %vm4778 = vcmask 23552
      %v4779 = vsel %vm4778, %v4777, %v4776
      %vm4781 = vcmask 1044376
      %vm4782 = vcmask 56324
      %vm4783 = vmor %vm4782, %vm4781
      %4784 = vst.msk [vmem:[#allocation4 + $0x4] sm:$0xff] %vm4783, %v4779
      %v4785 = vpack.c.b16 %v4773, %v4773
      %4786 = vrot.lane.b32.xlu0 %v4785, 1
      %v4787 = vpop.permute.xlu0 %4786
      %vm4789 = vcmask 232520
      %4790 = vst.msk [vmem:[#allocation4 + $0x8] sm:$0xf] %vm4789, %v4787
      %4791 = vrot.lane.b32.xlu0 %v4785, 127
      %v4792 = vpop.permute.xlu0 %4791
      %vm4794 = vcmask 412920
      %4795 = vst.msk [vmem:[#allocation4 + $0x8] sm:$0xf] %vm4794, %v4792
      %4796 = vrot.lane.b32.xlu0 %v4785, 125
      %v4797 = vpop.permute.xlu0 %4796
      %vm4799 = vcmask 593320
      %4800 = vst.msk [vmem:[#allocation4 + $0x8] sm:$0xf] %vm4799, %v4797
      %4801 = vrot.lane.b32.xlu0 %v4785, 123
      %v4802 = vpop.permute.xlu0 %4801
      %vm4804 = vcmask 773720
      %4805 = vst.msk [vmem:[#allocation4 + $0x8] sm:$0xf] %vm4804, %v4802
      %4806 = vrot.lane.b32.xlu0 %v4785, 121
      %v4807 = vpop.permute.xlu0 %4806
      %vm4809 = vcmask 954120
      %4810 = vst.msk [vmem:[#allocation4 + $0x8] sm:$0xf] %vm4809, %v4807
      %v4812 = vunpack.c.l.b16 %v4706
      %v4813 = vpack.c.b16 %v4812, %v4812
      %4814 = vrot.lane.b32.xlu0 %v4813, 119
      %v4815 = vpop.permute.xlu0 %4814
      %v4816 = vrot.slane %v4815, 4
      %vm4817 = vcmask 973824
      %v4818 = vsel %vm4817, %v4816, %v4815
      %vm4820 = vcmask 1044408
      %vm4821 = vcmask 89092
      %vm4822 = vmor %vm4821, %vm4820
      %4823 = vst.msk [vmem:[#allocation4 + $0x8] sm:$0xff] %vm4822, %v4818
      %4824 = vrot.lane.b32.xlu0 %v4813, 117
      %v4825 = vpop.permute.xlu0 %4824
      %vm4827 = vcmask 265320
      %4828 = vst.msk [vmem:[#allocation4 + $0xc] sm:$0xf] %vm4827, %v4825
      %4829 = vrot.lane.b32.xlu0 %v4813, 115
      %v4830 = vpop.permute.xlu0 %4829
      %vm4832 = vcmask 445720
      %4833 = vst.msk [vmem:[#allocation4 + $0xc] sm:$0xf] %vm4832, %v4830
      %4834 = vrot.lane.b32.xlu0 %v4813, 113
      %v4835 = vpop.permute.xlu0 %4834
      %vm4837 = vcmask 626120
      %4838 = vst.msk [vmem:[#allocation4 + $0xc] sm:$0xf] %vm4837, %v4835
      %v4839 = vld [vmem:[#allocation4] sm:$0xff]
      %v4840 = vld [vmem:[#allocation4 + $0x8] sm:$0xff]
      %v4841 = vld [vmem:[%s3] sm:$0x3]
      %s4842 = scalar_lea.vmem %s3, 2
      %v4843 = vld [vmem:[%s4842] sm:$0x3]
      %v4846 = vunpack.c.l.b16 %v4839
      %v4847 = vunpack.c.h.b16 %v4839
      %v4848 = vunpack.c.l.b16 %v4840
      %v4849 = vunpack.c.h.b16 %v4840
      %v4850 = vpack.c.b16 %v4846, %v4846
      %v4851 = vpack.c.b16 %v4847, %v4847
      %v4852 = vpack.c.b16 %v4848, %v4848
      %v4853 = vpack.c.b16 %v4849, %v4849
      %4854 = vrot.lane.b32.xlu0 %v4850, 127
      %v4855 = vpop.permute.xlu0 %4854
      %4856 = vrot.lane.b32.xlu0 %v4851, 127
      %v4857 = vpop.permute.xlu0 %4856
      %4858 = vrot.lane.b32.xlu0 %v4852, 127
      %v4859 = vpop.permute.xlu0 %4858
      %4860 = vrot.lane.b32.xlu0 %v4853, 127
      %v4861 = vpop.permute.xlu0 %4860
      %v4862 = vsel %vm693, %v4855, %v4857
      %v4863 = vsel %vm693, %v4857, %v4859
      %v4864 = vsel %vm693, %v4859, %v4861
      %vm4865 = vcmask 64512
      %v4867 = vsel %vm4865, %v4843, 0
      %v4870 = vsel %vm355, %v4862, 0
      %v4873 = vsel %vm355, %v4863, 0
      %v4876 = vsel %vm355, %v4864, 0
      %v4879 = vsel %vm355, %v4861, 0
      %4881 = vmatprep.subr.bf16.mxu0 %v4873
      %4882 = vmatpush1.bf16.msra.mxu0 %v4870
      %4883 = vmatprep.subr.bf16.mxu0 0
      %4884 = vmatpush1.bf16.msra.mxu0 0
      %4885 = vmatprep.subr.bf16.mxu0 0
      %4886 = vmatpush1.bf16.msra.mxu0 0
      %4887 = vmatprep.subr.bf16.mxu0 0
      %4888 = vmatpush1.bf16.msra.mxu0 0
      %4889 = vmatprep.subr.bf16.mxu0 0
      %4890 = vmatpush1.bf16.msra.mxu0 0
      %4891 = vmatprep.subr.bf16.mxu0 0
      %4892 = vmatpush1.bf16.msra.mxu0 0
      %4893 = vmatprep.subr.bf16.mxu0 0
      %4894 = vmatpush1.bf16.msra.mxu0 0
      %4895 = vmatprep.subr.bf16.mxu0 0
      %4896 = vmatpush1.bf16.msra.mxu0 0
      %4897 = vmatprep.subr.bf16.mxu0 0
      %4898 = vmatpush1.bf16.msra.mxu0 0
      %4899 = vmatprep.subr.bf16.mxu0 0
      %4900 = vmatpush1.bf16.msra.mxu0 0
      %4901 = vmatprep.subr.bf16.mxu0 0
      %4902 = vmatpush1.bf16.msra.mxu0 0
      %4903 = vmatprep.subr.bf16.mxu0 0
      %4904 = vmatpush1.bf16.msra.mxu0 0
      %4905 = vmatprep.subr.bf16.mxu0 0
      %4906 = vmatpush1.bf16.msra.mxu0 0
      %4907 = vmatprep.subr.bf16.mxu0 0
      %4908 = vmatpush1.bf16.msra.mxu0 0
      %4909 = vmatprep.subr.bf16.mxu0 0
      %4910 = vmatpush1.bf16.msra.mxu0 0
      %4911 = vmatprep.subr.bf16.mxu0 0
      %4912 = vmatpush1.bf16.msra.mxu0 0
      %4913 = vmatprep.mubr.bf16.mxu0 0
      %4914 = vmatmul.mubr.bf16.gmra.mrb[0].mxu0 %v4867
      %v4915 = vpop.f32.mrb[0].mxu0
      %v4916 = vadd.f32 0.0, %v4915
      %v4917 = vpop.f32.mrb[0].mxu0
      %v4918 = vadd.f32 0.0, %v4917
      %v4919 = vpop.f32.mrb[0].mxu0
      %v4920 = vpop.f32.mrb[0].mxu0
      %4921 = vdwg.mxu0
      %4922 = vmatprep.subr.bf16.mxu0 %v4879
      %4923 = vmatpush1.bf16.msra.mxu0 %v4876
      %4924 = vmatprep.subr.bf16.mxu0 0
      %4925 = vmatpush1.bf16.msra.mxu0 0
      %4926 = vmatprep.subr.bf16.mxu0 0
      %4927 = vmatpush1.bf16.msra.mxu0 0
      %4928 = vmatprep.subr.bf16.mxu0 0
      %4929 = vmatpush1.bf16.msra.mxu0 0
      %4930 = vmatprep.subr.bf16.mxu0 0
      %4931 = vmatpush1.bf16.msra.mxu0 0
      %4932 = vmatprep.subr.bf16.mxu0 0
      %4933 = vmatpush1.bf16.msra.mxu0 0
      %4934 = vmatprep.subr.bf16.mxu0 0
      %4935 = vmatpush1.bf16.msra.mxu0 0
      %4936 = vmatprep.subr.bf16.mxu0 0
      %4937 = vmatpush1.bf16.msra.mxu0 0
      %4938 = vmatprep.subr.bf16.mxu0 0
      %4939 = vmatpush1.bf16.msra.mxu0 0
      %4940 = vmatprep.subr.bf16.mxu0 0
      %4941 = vmatpush1.bf16.msra.mxu0 0
      %4942 = vmatprep.subr.bf16.mxu0 0
      %4943 = vmatpush1.bf16.msra.mxu0 0
      %4944 = vmatprep.subr.bf16.mxu0 0
      %4945 = vmatpush1.bf16.msra.mxu0 0
      %4946 = vmatprep.subr.bf16.mxu0 0
      %4947 = vmatpush1.bf16.msra.mxu0 0
      %4948 = vmatprep.subr.bf16.mxu0 0
      %4949 = vmatpush1.bf16.msra.mxu0 0
      %4950 = vmatprep.subr.bf16.mxu0 0
      %4951 = vmatpush1.bf16.msra.mxu0 0
      %4952 = vmatprep.subr.bf16.mxu0 0
      %4953 = vmatpush1.bf16.msra.mxu0 0
      %4954 = vmatprep.mubr.bf16.mxu0 0
      %4955 = vmatmul.mubr.bf16.gmra.mrb[0].mxu0 %v4867
      %v4956 = vpop.f32.mrb[0].mxu0
      %v4957 = vadd.f32 0.0, %v4956
      %v4958 = vpop.f32.mrb[0].mxu0
      %v4959 = vadd.f32 0.0, %v4958
      %v4960 = vpop.f32.mrb[0].mxu0
      %v4961 = vpop.f32.mrb[0].mxu0
      %4962 = vdwg.mxu0
      %v4964 = vsel %vm4865, %v4841, 0
      %v4967 = vsel %vm355, %v4850, 0
      %v4970 = vsel %vm355, %v4851, 0
      %v4973 = vsel %vm355, %v4852, 0
      %v4976 = vsel %vm355, %v4853, 0
      %4978 = vmatprep.subr.bf16.mxu0 %v4970
      %4979 = vmatpush1.bf16.msra.mxu0 %v4967
      %4980 = vmatprep.subr.bf16.mxu0 0
      %4981 = vmatpush1.bf16.msra.mxu0 0
      %4982 = vmatprep.subr.bf16.mxu0 0
      %4983 = vmatpush1.bf16.msra.mxu0 0
      %4984 = vmatprep.subr.bf16.mxu0 0
      %4985 = vmatpush1.bf16.msra.mxu0 0
      %4986 = vmatprep.subr.bf16.mxu0 0
      %4987 = vmatpush1.bf16.msra.mxu0 0
      %4988 = vmatprep.subr.bf16.mxu0 0
      %4989 = vmatpush1.bf16.msra.mxu0 0
      %4990 = vmatprep.subr.bf16.mxu0 0
      %4991 = vmatpush1.bf16.msra.mxu0 0
      %4992 = vmatprep.subr.bf16.mxu0 0
      %4993 = vmatpush1.bf16.msra.mxu0 0
      %4994 = vmatprep.subr.bf16.mxu0 0
      %4995 = vmatpush1.bf16.msra.mxu0 0
      %4996 = vmatprep.subr.bf16.mxu0 0
      %4997 = vmatpush1.bf16.msra.mxu0 0
      %4998 = vmatprep.subr.bf16.mxu0 0
      %4999 = vmatpush1.bf16.msra.mxu0 0
      %5000 = vmatprep.subr.bf16.mxu0 0
      %5001 = vmatpush1.bf16.msra.mxu0 0
      %5002 = vmatprep.subr.bf16.mxu0 0
      %5003 = vmatpush1.bf16.msra.mxu0 0
      %5004 = vmatprep.subr.bf16.mxu0 0
      %5005 = vmatpush1.bf16.msra.mxu0 0
      %5006 = vmatprep.subr.bf16.mxu0 0
      %5007 = vmatpush1.bf16.msra.mxu0 0
      %5008 = vmatprep.subr.bf16.mxu0 0
      %5009 = vmatpush1.bf16.msra.mxu0 0
      %5010 = vmatprep.mubr.bf16.mxu0 0
      %5011 = vmatmul.mubr.bf16.gmra.mrb[0].mxu0 %v4964
      %v5012 = vpop.f32.mrb[0].mxu0
      %v5013 = vadd.f32 %v4916, %v5012
      %v5014 = vpop.f32.mrb[0].mxu0
      %v5015 = vadd.f32 %v4918, %v5014
      %v5016 = vpop.f32.mrb[0].mxu0
      %v5017 = vpop.f32.mrb[0].mxu0
      %5018 = vdwg.mxu0
      %5019 = vmatprep.subr.bf16.mxu0 %v4976
      %5020 = vmatpush1.bf16.msra.mxu0 %v4973
      %5021 = vmatprep.subr.bf16.mxu0 0
      %5022 = vmatpush1.bf16.msra.mxu0 0
      %5023 = vmatprep.subr.bf16.mxu0 0
      %5024 = vmatpush1.bf16.msra.mxu0 0
      %5025 = vmatprep.subr.bf16.mxu0 0
      %5026 = vmatpush1.bf16.msra.mxu0 0
      %5027 = vmatprep.subr.bf16.mxu0 0
      %5028 = vmatpush1.bf16.msra.mxu0 0
      %5029 = vmatprep.subr.bf16.mxu0 0
      %5030 = vmatpush1.bf16.msra.mxu0 0
      %5031 = vmatprep.subr.bf16.mxu0 0
      %5032 = vmatpush1.bf16.msra.mxu0 0
      %5033 = vmatprep.subr.bf16.mxu0 0
      %5034 = vmatpush1.bf16.msra.mxu0 0
      %5035 = vmatprep.subr.bf16.mxu0 0
      %5036 = vmatpush1.bf16.msra.mxu0 0
      %5037 = vmatprep.subr.bf16.mxu0 0
      %5038 = vmatpush1.bf16.msra.mxu0 0
      %5039 = vmatprep.subr.bf16.mxu0 0
      %5040 = vmatpush1.bf16.msra.mxu0 0
      %5041 = vmatprep.subr.bf16.mxu0 0
      %5042 = vmatpush1.bf16.msra.mxu0 0
      %5043 = vmatprep.subr.bf16.mxu0 0
      %5044 = vmatpush1.bf16.msra.mxu0 0
      %5045 = vmatprep.subr.bf16.mxu0 0
      %5046 = vmatpush1.bf16.msra.mxu0 0
      %5047 = vmatprep.subr.bf16.mxu0 0
      %5048 = vmatpush1.bf16.msra.mxu0 0
      %5049 = vmatprep.subr.bf16.mxu0 0
      %5050 = vmatpush1.bf16.msra.mxu0 0
      %5051 = vmatprep.mubr.bf16.mxu0 0
      %5052 = vmatmul.mubr.bf16.gmra.mrb[0].mxu0 %v4964
      %v5053 = vpop.f32.mrb[0].mxu0
      %v5054 = vadd.f32 %v4957, %v5053
      %v5055 = vpop.f32.mrb[0].mxu0
      %v5056 = vadd.f32 %v4959, %v5055
      %v5057 = vpop.f32.mrb[0].mxu0
      %v5058 = vpop.f32.mrb[0].mxu0
      %5059 = vdwg.mxu0
      %s5060 = scalar_lea.vmem %s3, 4
      %v5061 = vld [vmem:[%s5060] sm:$0x3]
      %5062 = vrot.lane.b32.xlu0 %v4850, 126
      %v5063 = vpop.permute.xlu0 %5062
      %5064 = vrot.lane.b32.xlu0 %v4851, 126
      %v5065 = vpop.permute.xlu0 %5064
      %5066 = vrot.lane.b32.xlu0 %v4852, 126
      %v5067 = vpop.permute.xlu0 %5066
      %5068 = vrot.lane.b32.xlu0 %v4853, 126
      %v5069 = vpop.permute.xlu0 %5068
      %v5070 = vsel %vm930, %v5063, %v5065
      %v5071 = vsel %vm930, %v5065, %v5067
      %v5072 = vsel %vm930, %v5067, %v5069
      %v5074 = vsel %vm4865, %v5061, 0
      %v5077 = vsel %vm355, %v5070, 0
      %v5080 = vsel %vm355, %v5071, 0
      %v5083 = vsel %vm355, %v5072, 0
      %v5086 = vsel %vm355, %v5069, 0
      %5088 = vmatprep.subr.bf16.mxu0 %v5080
      %5089 = vmatpush1.bf16.msra.mxu0 %v5077
      %5090 = vmatprep.subr.bf16.mxu0 0
      %5091 = vmatpush1.bf16.msra.mxu0 0
      %5092 = vmatprep.subr.bf16.mxu0 0
      %5093 = vmatpush1.bf16.msra.mxu0 0
      %5094 = vmatprep.subr.bf16.mxu0 0
      %5095 = vmatpush1.bf16.msra.mxu0 0
      %5096 = vmatprep.subr.bf16.mxu0 0
      %5097 = vmatpush1.bf16.msra.mxu0 0
      %5098 = vmatprep.subr.bf16.mxu0 0
      %5099 = vmatpush1.bf16.msra.mxu0 0
      %5100 = vmatprep.subr.bf16.mxu0 0
      %5101 = vmatpush1.bf16.msra.mxu0 0
      %5102 = vmatprep.subr.bf16.mxu0 0
      %5103 = vmatpush1.bf16.msra.mxu0 0
      %5104 = vmatprep.subr.bf16.mxu0 0
      %5105 = vmatpush1.bf16.msra.mxu0 0
      %5106 = vmatprep.subr.bf16.mxu0 0
      %5107 = vmatpush1.bf16.msra.mxu0 0
      %5108 = vmatprep.subr.bf16.mxu0 0
      %5109 = vmatpush1.bf16.msra.mxu0 0
      %5110 = vmatprep.subr.bf16.mxu0 0
      %5111 = vmatpush1.bf16.msra.mxu0 0
      %5112 = vmatprep.subr.bf16.mxu0 0
      %5113 = vmatpush1.bf16.msra.mxu0 0
      %5114 = vmatprep.subr.bf16.mxu0 0
      %5115 = vmatpush1.bf16.msra.mxu0 0
      %5116 = vmatprep.subr.bf16.mxu0 0
      %5117 = vmatpush1.bf16.msra.mxu0 0
      %5118 = vmatprep.subr.bf16.mxu0 0
      %5119 = vmatpush1.bf16.msra.mxu0 0
      %5120 = vmatprep.mubr.bf16.mxu0 0
      %5121 = vmatmul.mubr.bf16.gmra.mrb[0].mxu0 %v5074
      %v5122 = vpop.f32.mrb[0].mxu0
      %v5123 = vadd.f32 0.0, %v5122
      %v5124 = vpop.f32.mrb[0].mxu0
      %v5125 = vadd.f32 0.0, %v5124
      %v5126 = vpop.f32.mrb[0].mxu0
      %v5127 = vpop.f32.mrb[0].mxu0
      %5128 = vdwg.mxu0
      %5129 = vmatprep.subr.bf16.mxu0 %v5086
      %5130 = vmatpush1.bf16.msra.mxu0 %v5083
      %5131 = vmatprep.subr.bf16.mxu0 0
      %5132 = vmatpush1.bf16.msra.mxu0 0
      %5133 = vmatprep.subr.bf16.mxu0 0
      %5134 = vmatpush1.bf16.msra.mxu0 0
      %5135 = vmatprep.subr.bf16.mxu0 0
      %5136 = vmatpush1.bf16.msra.mxu0 0
      %5137 = vmatprep.subr.bf16.mxu0 0
      %5138 = vmatpush1.bf16.msra.mxu0 0
      %5139 = vmatprep.subr.bf16.mxu0 0
      %5140 = vmatpush1.bf16.msra.mxu0 0
      %5141 = vmatprep.subr.bf16.mxu0 0
      %5142 = vmatpush1.bf16.msra.mxu0 0
      %5143 = vmatprep.subr.bf16.mxu0 0
      %5144 = vmatpush1.bf16.msra.mxu0 0
      %5145 = vmatprep.subr.bf16.mxu0 0
      %5146 = vmatpush1.bf16.msra.mxu0 0
      %5147 = vmatprep.subr.bf16.mxu0 0
      %5148 = vmatpush1.bf16.msra.mxu0 0
      %5149 = vmatprep.subr.bf16.mxu0 0
      %5150 = vmatpush1.bf16.msra.mxu0 0
      %5151 = vmatprep.subr.bf16.mxu0 0
      %5152 = vmatpush1.bf16.msra.mxu0 0
      %5153 = vmatprep.subr.bf16.mxu0 0
      %5154 = vmatpush1.bf16.msra.mxu0 0
      %5155 = vmatprep.subr.bf16.mxu0 0
      %5156 = vmatpush1.bf16.msra.mxu0 0
      %5157 = vmatprep.subr.bf16.mxu0 0
      %5158 = vmatpush1.bf16.msra.mxu0 0
      %5159 = vmatprep.subr.bf16.mxu0 0
      %5160 = vmatpush1.bf16.msra.mxu0 0
      %5161 = vmatprep.mubr.bf16.mxu0 0
      %5162 = vmatmul.mubr.bf16.gmra.mrb[0].mxu0 %v5074
      %v5163 = vpop.f32.mrb[0].mxu0
      %v5164 = vadd.f32 0.0, %v5163
      %v5165 = vpop.f32.mrb[0].mxu0
      %v5166 = vadd.f32 0.0, %v5165
      %v5167 = vpop.f32.mrb[0].mxu0
      %v5168 = vpop.f32.mrb[0].mxu0
      %5169 = vdwg.mxu0
      %v5170 = vadd.f32 %v5013, %v5123
      %v5171 = vadd.f32 %v5015, %v5125
      %v5172 = vadd.f32 %v5054, %v5164
      %v5173 = vadd.f32 %v5056, %v5166
      %s5174 = scalar_lea.vmem %s3, 6
      %v5175 = vld [vmem:[%s5174] sm:$0x3]
      %5176 = vrot.lane.b32.xlu0 %v4850, 106
      %v5177 = vpop.permute.xlu0 %5176
      %5178 = vrot.lane.b32.xlu0 %v4851, 106
      %v5179 = vpop.permute.xlu0 %5178
      %5180 = vrot.lane.b32.xlu0 %v4852, 106
      %v5181 = vpop.permute.xlu0 %5180
      %5182 = vrot.lane.b32.xlu0 %v4853, 106
      %v5183 = vpop.permute.xlu0 %5182
      %vm5184 = vcmask 867328
      %v5185 = vsel %vm5184, %v5177, %v5179
      %v5186 = vsel %vm5184, %v5179, %v5181
      %v5187 = vsel %vm5184, %v5181, %v5183
      %v5189 = vsel %vm4865, %v5175, 0
      %v5192 = vsel %vm355, %v5185, 0
      %v5195 = vsel %vm355, %v5186, 0
      %v5198 = vsel %vm355, %v5187, 0
      %v5201 = vsel %vm355, %v5183, 0
      %5203 = vmatprep.subr.bf16.mxu0 %v5195
      %5204 = vmatpush1.bf16.msra.mxu0 %v5192
      %5205 = vmatprep.subr.bf16.mxu0 0
      %5206 = vmatpush1.bf16.msra.mxu0 0
      %5207 = vmatprep.subr.bf16.mxu0 0
      %5208 = vmatpush1.bf16.msra.mxu0 0
      %5209 = vmatprep.subr.bf16.mxu0 0
      %5210 = vmatpush1.bf16.msra.mxu0 0
      %5211 = vmatprep.subr.bf16.mxu0 0
      %5212 = vmatpush1.bf16.msra.mxu0 0
      %5213 = vmatprep.subr.bf16.mxu0 0
      %5214 = vmatpush1.bf16.msra.mxu0 0
      %5215 = vmatprep.subr.bf16.mxu0 0
      %5216 = vmatpush1.bf16.msra.mxu0 0
      %5217 = vmatprep.subr.bf16.mxu0 0
      %5218 = vmatpush1.bf16.msra.mxu0 0
      %5219 = vmatprep.subr.bf16.mxu0 0
      %5220 = vmatpush1.bf16.msra.mxu0 0
      %5221 = vmatprep.subr.bf16.mxu0 0
      %5222 = vmatpush1.bf16.msra.mxu0 0
      %5223 = vmatprep.subr.bf16.mxu0 0
      %5224 = vmatpush1.bf16.msra.mxu0 0
      %5225 = vmatprep.subr.bf16.mxu0 0
      %5226 = vmatpush1.bf16.msra.mxu0 0
      %5227 = vmatprep.subr.bf16.mxu0 0
      %5228 = vmatpush1.bf16.msra.mxu0 0
      %5229 = vmatprep.subr.bf16.mxu0 0
      %5230 = vmatpush1.bf16.msra.mxu0 0
      %5231 = vmatprep.subr.bf16.mxu0 0
      %5232 = vmatpush1.bf16.msra.mxu0 0
      %5233 = vmatprep.subr.bf16.mxu0 0
      %5234 = vmatpush1.bf16.msra.mxu0 0
      %5235 = vmatprep.mubr.bf16.mxu0 0
      %5236 = vmatmul.mubr.bf16.gmra.mrb[0].mxu0 %v5189
      %v5237 = vpop.f32.mrb[0].mxu0
      %v5238 = vadd.f32 0.0, %v5237
      %v5239 = vpop.f32.mrb[0].mxu0
      %v5240 = vadd.f32 0.0, %v5239
      %v5241 = vpop.f32.mrb[0].mxu0
      %v5242 = vpop.f32.mrb[0].mxu0
      %5243 = vdwg.mxu0
      %5244 = vmatprep.subr.bf16.mxu0 %v5201
      %5245 = vmatpush1.bf16.msra.mxu0 %v5198
      %5246 = vmatprep.subr.bf16.mxu0 0
      %5247 = vmatpush1.bf16.msra.mxu0 0
      %5248 = vmatprep.subr.bf16.mxu0 0
      %5249 = vmatpush1.bf16.msra.mxu0 0
      %5250 = vmatprep.subr.bf16.mxu0 0
      %5251 = vmatpush1.bf16.msra.mxu0 0
      %5252 = vmatprep.subr.bf16.mxu0 0
      %5253 = vmatpush1.bf16.msra.mxu0 0
      %5254 = vmatprep.subr.bf16.mxu0 0
      %5255 = vmatpush1.bf16.msra.mxu0 0
      %5256 = vmatprep.subr.bf16.mxu0 0
      %5257 = vmatpush1.bf16.msra.mxu0 0
      %5258 = vmatprep.subr.bf16.mxu0 0
      %5259 = vmatpush1.bf16.msra.mxu0 0
      %5260 = vmatprep.subr.bf16.mxu0 0
      %5261 = vmatpush1.bf16.msra.mxu0 0
      %5262 = vmatprep.subr.bf16.mxu0 0
      %5263 = vmatpush1.bf16.msra.mxu0 0
      %5264 = vmatprep.subr.bf16.mxu0 0
      %5265 = vmatpush1.bf16.msra.mxu0 0
      %5266 = vmatprep.subr.bf16.mxu0 0
      %5267 = vmatpush1.bf16.msra.mxu0 0
      %5268 = vmatprep.subr.bf16.mxu0 0
      %5269 = vmatpush1.bf16.msra.mxu0 0
      %5270 = vmatprep.subr.bf16.mxu0 0
      %5271 = vmatpush1.bf16.msra.mxu0 0
      %5272 = vmatprep.subr.bf16.mxu0 0
      %5273 = vmatpush1.bf16.msra.mxu0 0
      %5274 = vmatprep.subr.bf16.mxu0 0
      %5275 = vmatpush1.bf16.msra.mxu0 0
      %5276 = vmatprep.mubr.bf16.mxu0 0
      %5277 = vmatmul.mubr.bf16.gmra.mrb[0].mxu0 %v5189
      %v5278 = vpop.f32.mrb[0].mxu0
      %v5279 = vadd.f32 0.0, %v5278
      %v5280 = vpop.f32.mrb[0].mxu0
      %v5281 = vadd.f32 0.0, %v5280
      %v5282 = vpop.f32.mrb[0].mxu0
      %v5283 = vpop.f32.mrb[0].mxu0
      %5284 = vdwg.mxu0
      %v5285 = vadd.f32 %v5170, %v5238
      %v5286 = vadd.f32 %v5171, %v5240
      %v5287 = vadd.f32 %v5172, %v5279
      %v5288 = vadd.f32 %v5173, %v5281
      %s5289 = scalar_lea.vmem %s3, 8
      %v5290 = vld [vmem:[%s5289] sm:$0x3]
      %5291 = vrot.lane.b32.xlu0 %v4850, 105
      %v5292 = vpop.permute.xlu0 %5291
      %5293 = vrot.lane.b32.xlu0 %v4851, 105
      %v5294 = vpop.permute.xlu0 %5293
      %5295 = vrot.lane.b32.xlu0 %v4852, 105
      %v5296 = vpop.permute.xlu0 %5295
      %5297 = vrot.lane.b32.xlu0 %v4853, 105
      %v5298 = vpop.permute.xlu0 %5297
      %vm5299 = vcmask 859136
      %v5300 = vsel %vm5299, %v5292, %v5294
      %v5301 = vsel %vm5299, %v5294, %v5296
      %v5302 = vsel %vm5299, %v5296, %v5298
      %v5304 = vsel %vm4865, %v5290, 0
      %v5307 = vsel %vm355, %v5300, 0
      %v5310 = vsel %vm355, %v5301, 0
      %v5313 = vsel %vm355, %v5302, 0
      %v5316 = vsel %vm355, %v5298, 0
      %5318 = vmatprep.subr.bf16.mxu0 %v5310
      %5319 = vmatpush1.bf16.msra.mxu0 %v5307
      %5320 = vmatprep.subr.bf16.mxu0 0
      %5321 = vmatpush1.bf16.msra.mxu0 0
      %5322 = vmatprep.subr.bf16.mxu0 0
      %5323 = vmatpush1.bf16.msra.mxu0 0
      %5324 = vmatprep.subr.bf16.mxu0 0
      %5325 = vmatpush1.bf16.msra.mxu0 0
      %5326 = vmatprep.subr.bf16.mxu0 0
      %5327 = vmatpush1.bf16.msra.mxu0 0
      %5328 = vmatprep.subr.bf16.mxu0 0
      %5329 = vmatpush1.bf16.msra.mxu0 0
      %5330 = vmatprep.subr.bf16.mxu0 0
      %5331 = vmatpush1.bf16.msra.mxu0 0
      %5332 = vmatprep.subr.bf16.mxu0 0
      %5333 = vmatpush1.bf16.msra.mxu0 0
      %5334 = vmatprep.subr.bf16.mxu0 0
      %5335 = vmatpush1.bf16.msra.mxu0 0
      %5336 = vmatprep.subr.bf16.mxu0 0
      %5337 = vmatpush1.bf16.msra.mxu0 0
      %5338 = vmatprep.subr.bf16.mxu0 0
      %5339 = vmatpush1.bf16.msra.mxu0 0
      %5340 = vmatprep.subr.bf16.mxu0 0
      %5341 = vmatpush1.bf16.msra.mxu0 0
      %5342 = vmatprep.subr.bf16.mxu0 0
      %5343 = vmatpush1.bf16.msra.mxu0 0
      %5344 = vmatprep.subr.bf16.mxu0 0
      %5345 = vmatpush1.bf16.msra.mxu0 0
      %5346 = vmatprep.subr.bf16.mxu0 0
      %5347 = vmatpush1.bf16.msra.mxu0 0
      %5348 = vmatprep.subr.bf16.mxu0 0
      %5349 = vmatpush1.bf16.msra.mxu0 0
      %5350 = vmatprep.mubr.bf16.mxu0 0
      %5351 = vmatmul.mubr.bf16.gmra.mrb[0].mxu0 %v5304
      %v5352 = vpop.f32.mrb[0].mxu0
      %v5353 = vadd.f32 0.0, %v5352
      %v5354 = vpop.f32.mrb[0].mxu0
      %v5355 = vadd.f32 0.0, %v5354
      %v5356 = vpop.f32.mrb[0].mxu0
      %v5357 = vpop.f32.mrb[0].mxu0
      %5358 = vdwg.mxu0
      %5359 = vmatprep.subr.bf16.mxu0 %v5316
      %5360 = vmatpush1.bf16.msra.mxu0 %v5313
      %5361 = vmatprep.subr.bf16.mxu0 0
      %5362 = vmatpush1.bf16.msra.mxu0 0
      %5363 = vmatprep.subr.bf16.mxu0 0
      %5364 = vmatpush1.bf16.msra.mxu0 0
      %5365 = vmatprep.subr.bf16.mxu0 0
      %5366 = vmatpush1.bf16.msra.mxu0 0
      %5367 = vmatprep.subr.bf16.mxu0 0
      %5368 = vmatpush1.bf16.msra.mxu0 0
      %5369 = vmatprep.subr.bf16.mxu0 0
      %5370 = vmatpush1.bf16.msra.mxu0 0
      %5371 = vmatprep.subr.bf16.mxu0 0
      %5372 = vmatpush1.bf16.msra.mxu0 0
      %5373 = vmatprep.subr.bf16.mxu0 0
      %5374 = vmatpush1.bf16.msra.mxu0 0
      %5375 = vmatprep.subr.bf16.mxu0 0
      %5376 = vmatpush1.bf16.msra.mxu0 0
      %5377 = vmatprep.subr.bf16.mxu0 0
      %5378 = vmatpush1.bf16.msra.mxu0 0
      %5379 = vmatprep.subr.bf16.mxu0 0
      %5380 = vmatpush1.bf16.msra.mxu0 0
      %5381 = vmatprep.subr.bf16.mxu0 0
      %5382 = vmatpush1.bf16.msra.mxu0 0
      %5383 = vmatprep.subr.bf16.mxu0 0
      %5384 = vmatpush1.bf16.msra.mxu0 0
      %5385 = vmatprep.subr.bf16.mxu0 0
      %5386 = vmatpush1.bf16.msra.mxu0 0
      %5387 = vmatprep.subr.bf16.mxu0 0
      %5388 = vmatpush1.bf16.msra.mxu0 0
      %5389 = vmatprep.subr.bf16.mxu0 0
      %5390 = vmatpush1.bf16.msra.mxu0 0
      %5391 = vmatprep.mubr.bf16.mxu0 0
      %5392 = vmatmul.mubr.bf16.gmra.mrb[0].mxu0 %v5304
      %v5393 = vpop.f32.mrb[0].mxu0
      %v5394 = vadd.f32 0.0, %v5393
      %v5395 = vpop.f32.mrb[0].mxu0
      %v5396 = vadd.f32 0.0, %v5395
      %v5397 = vpop.f32.mrb[0].mxu0
      %v5398 = vpop.f32.mrb[0].mxu0
      %5399 = vdwg.mxu0
      %v5400 = vadd.f32 %v5285, %v5353
      %v5401 = vadd.f32 %v5286, %v5355
      %v5402 = vadd.f32 %v5287, %v5394
      %v5403 = vadd.f32 %v5288, %v5396
      %s5404 = scalar_lea.vmem %s3, 10
      %v5405 = vld [vmem:[%s5404] sm:$0x3]
      %5406 = vrot.lane.b32.xlu0 %v4850, 104
      %v5407 = vpop.permute.xlu0 %5406
      %5408 = vrot.lane.b32.xlu0 %v4851, 104
      %v5409 = vpop.permute.xlu0 %5408
      %5410 = vrot.lane.b32.xlu0 %v4852, 104
      %v5411 = vpop.permute.xlu0 %5410
      %5412 = vrot.lane.b32.xlu0 %v4853, 104
      %v5413 = vpop.permute.xlu0 %5412
      %v5414 = vsel %vm2506, %v5407, %v5409
      %v5415 = vsel %vm2506, %v5409, %v5411
      %v5416 = vsel %vm2506, %v5411, %v5413
      %v5418 = vsel %vm4865, %v5405, 0
      %v5421 = vsel %vm355, %v5414, 0
      %v5424 = vsel %vm355, %v5415, 0
      %v5427 = vsel %vm355, %v5416, 0
      %v5430 = vsel %vm355, %v5413, 0
      %5432 = vmatprep.subr.bf16.mxu0 %v5424
      %5433 = vmatpush1.bf16.msra.mxu0 %v5421
      %5434 = vmatprep.subr.bf16.mxu0 0
      %5435 = vmatpush1.bf16.msra.mxu0 0
      %5436 = vmatprep.subr.bf16.mxu0 0
      %5437 = vmatpush1.bf16.msra.mxu0 0
      %5438 = vmatprep.subr.bf16.mxu0 0
      %5439 = vmatpush1.bf16.msra.mxu0 0
      %5440 = vmatprep.subr.bf16.mxu0 0
      %5441 = vmatpush1.bf16.msra.mxu0 0
      %5442 = vmatprep.subr.bf16.mxu0 0
      %5443 = vmatpush1.bf16.msra.mxu0 0
      %5444 = vmatprep.subr.bf16.mxu0 0
      %5445 = vmatpush1.bf16.msra.mxu0 0
      %5446 = vmatprep.subr.bf16.mxu0 0
      %5447 = vmatpush1.bf16.msra.mxu0 0
      %5448 = vmatprep.subr.bf16.mxu0 0
      %5449 = vmatpush1.bf16.msra.mxu0 0
      %5450 = vmatprep.subr.bf16.mxu0 0
      %5451 = vmatpush1.bf16.msra.mxu0 0
      %5452 = vmatprep.subr.bf16.mxu0 0
      %5453 = vmatpush1.bf16.msra.mxu0 0
      %5454 = vmatprep.subr.bf16.mxu0 0
      %5455 = vmatpush1.bf16.msra.mxu0 0
      %5456 = vmatprep.subr.bf16.mxu0 0
      %5457 = vmatpush1.bf16.msra.mxu0 0
      %5458 = vmatprep.subr.bf16.mxu0 0
      %5459 = vmatpush1.bf16.msra.mxu0 0
      %5460 = vmatprep.subr.bf16.mxu0 0
      %5461 = vmatpush1.bf16.msra.mxu0 0
      %5462 = vmatprep.subr.bf16.mxu0 0
      %5463 = vmatpush1.bf16.msra.mxu0 0
      %5464 = vmatprep.mubr.bf16.mxu0 0
      %5465 = vmatmul.mubr.bf16.gmra.mrb[0].mxu0 %v5418
      %v5466 = vpop.f32.mrb[0].mxu0
      %v5467 = vadd.f32 0.0, %v5466
      %v5468 = vpop.f32.mrb[0].mxu0
      %v5469 = vadd.f32 0.0, %v5468
      %v5470 = vpop.f32.mrb[0].mxu0
      %v5471 = vpop.f32.mrb[0].mxu0
      %5472 = vdwg.mxu0
      %5473 = vmatprep.subr.bf16.mxu0 %v5430
      %5474 = vmatpush1.bf16.msra.mxu0 %v5427
      %5475 = vmatprep.subr.bf16.mxu0 0
      %5476 = vmatpush1.bf16.msra.mxu0 0
      %5477 = vmatprep.subr.bf16.mxu0 0
      %5478 = vmatpush1.bf16.msra.mxu0 0
      %5479 = vmatprep.subr.bf16.mxu0 0
      %5480 = vmatpush1.bf16.msra.mxu0 0
      %5481 = vmatprep.subr.bf16.mxu0 0
      %5482 = vmatpush1.bf16.msra.mxu0 0
      %5483 = vmatprep.subr.bf16.mxu0 0
      %5484 = vmatpush1.bf16.msra.mxu0 0
      %5485 = vmatprep.subr.bf16.mxu0 0
      %5486 = vmatpush1.bf16.msra.mxu0 0
      %5487 = vmatprep.subr.bf16.mxu0 0
      %5488 = vmatpush1.bf16.msra.mxu0 0
      %5489 = vmatprep.subr.bf16.mxu0 0
      %5490 = vmatpush1.bf16.msra.mxu0 0
      %5491 = vmatprep.subr.bf16.mxu0 0
      %5492 = vmatpush1.bf16.msra.mxu0 0
      %5493 = vmatprep.subr.bf16.mxu0 0
      %5494 = vmatpush1.bf16.msra.mxu0 0
      %5495 = vmatprep.subr.bf16.mxu0 0
      %5496 = vmatpush1.bf16.msra.mxu0 0
      %5497 = vmatprep.subr.bf16.mxu0 0
      %5498 = vmatpush1.bf16.msra.mxu0 0
      %5499 = vmatprep.subr.bf16.mxu0 0
      %5500 = vmatpush1.bf16.msra.mxu0 0
      %5501 = vmatprep.subr.bf16.mxu0 0
      %5502 = vmatpush1.bf16.msra.mxu0 0
      %5503 = vmatprep.subr.bf16.mxu0 0
      %5504 = vmatpush1.bf16.msra.mxu0 0
      %5505 = vmatprep.mubr.bf16.mxu0 0
      %5506 = vmatmul.mubr.bf16.gmra.mrb[0].mxu0 %v5418
      %v5507 = vpop.f32.mrb[0].mxu0
      %v5508 = vadd.f32 0.0, %v5507
      %v5509 = vpop.f32.mrb[0].mxu0
      %v5510 = vadd.f32 0.0, %v5509
      %v5511 = vpop.f32.mrb[0].mxu0
      %v5512 = vpop.f32.mrb[0].mxu0
      %5513 = vdwg.mxu0
      %v5514 = vadd.f32 %v5400, %v5467
      %v5515 = vadd.f32 %v5401, %v5469
      %v5516 = vadd.f32 %v5402, %v5508
      %v5517 = vadd.f32 %v5403, %v5510
      %s5518 = scalar_lea.vmem %s3, 12
      %v5519 = vld [vmem:[%s5518] sm:$0x3]
      %5520 = vrot.lane.b32.xlu0 %v4850, 84
      %v5521 = vpop.permute.xlu0 %5520
      %5522 = vrot.lane.b32.xlu0 %v4851, 84
      %v5523 = vpop.permute.xlu0 %5522
      %5524 = vrot.lane.b32.xlu0 %v4852, 84
      %v5525 = vpop.permute.xlu0 %5524
      %5526 = vrot.lane.b32.xlu0 %v4853, 84
      %v5527 = vpop.permute.xlu0 %5526
      %vm5528 = vcmask 687104
      %v5529 = vsel %vm5528, %v5521, %v5523
      %v5530 = vsel %vm5528, %v5523, %v5525
      %v5531 = vsel %vm5528, %v5525, %v5527
      %v5533 = vsel %vm4865, %v5519, 0
      %v5536 = vsel %vm355, %v5529, 0
      %v5539 = vsel %vm355, %v5530, 0
      %v5542 = vsel %vm355, %v5531, 0
      %v5545 = vsel %vm355, %v5527, 0
      %5547 = vmatprep.subr.bf16.mxu0 %v5539
      %5548 = vmatpush1.bf16.msra.mxu0 %v5536
      %5549 = vmatprep.subr.bf16.mxu0 0
      %5550 = vmatpush1.bf16.msra.mxu0 0
      %5551 = vmatprep.subr.bf16.mxu0 0
      %5552 = vmatpush1.bf16.msra.mxu0 0
      %5553 = vmatprep.subr.bf16.mxu0 0
      %5554 = vmatpush1.bf16.msra.mxu0 0
      %5555 = vmatprep.subr.bf16.mxu0 0
      %5556 = vmatpush1.bf16.msra.mxu0 0
      %5557 = vmatprep.subr.bf16.mxu0 0
      %5558 = vmatpush1.bf16.msra.mxu0 0
      %5559 = vmatprep.subr.bf16.mxu0 0
      %5560 = vmatpush1.bf16.msra.mxu0 0
      %5561 = vmatprep.subr.bf16.mxu0 0
      %5562 = vmatpush1.bf16.msra.mxu0 0
      %5563 = vmatprep.subr.bf16.mxu0 0
      %5564 = vmatpush1.bf16.msra.mxu0 0
      %5565 = vmatprep.subr.bf16.mxu0 0
      %5566 = vmatpush1.bf16.msra.mxu0 0
      %5567 = vmatprep.subr.bf16.mxu0 0
      %5568 = vmatpush1.bf16.msra.mxu0 0
      %5569 = vmatprep.subr.bf16.mxu0 0
      %5570 = vmatpush1.bf16.msra.mxu0 0
      %5571 = vmatprep.subr.bf16.mxu0 0
      %5572 = vmatpush1.bf16.msra.mxu0 0
      %5573 = vmatprep.subr.bf16.mxu0 0
      %5574 = vmatpush1.bf16.msra.mxu0 0
      %5575 = vmatprep.subr.bf16.mxu0 0
      %5576 = vmatpush1.bf16.msra.mxu0 0
      %5577 = vmatprep.subr.bf16.mxu0 0
      %5578 = vmatpush1.bf16.msra.mxu0 0
      %5579 = vmatprep.mubr.bf16.mxu0 0
      %5580 = vmatmul.mubr.bf16.gmra.mrb[0].mxu0 %v5533
      %v5581 = vpop.f32.mrb[0].mxu0
      %v5582 = vadd.f32 0.0, %v5581
      %v5583 = vpop.f32.mrb[0].mxu0
      %v5584 = vadd.f32 0.0, %v5583
      %v5585 = vpop.f32.mrb[0].mxu0
      %v5586 = vpop.f32.mrb[0].mxu0
      %5587 = vdwg.mxu0
      %5588 = vmatprep.subr.bf16.mxu0 %v5545
      %5589 = vmatpush1.bf16.msra.mxu0 %v5542
      %5590 = vmatprep.subr.bf16.mxu0 0
      %5591 = vmatpush1.bf16.msra.mxu0 0
      %5592 = vmatprep.subr.bf16.mxu0 0
      %5593 = vmatpush1.bf16.msra.mxu0 0
      %5594 = vmatprep.subr.bf16.mxu0 0
      %5595 = vmatpush1.bf16.msra.mxu0 0
      %5596 = vmatprep.subr.bf16.mxu0 0
      %5597 = vmatpush1.bf16.msra.mxu0 0
      %5598 = vmatprep.subr.bf16.mxu0 0
      %5599 = vmatpush1.bf16.msra.mxu0 0
      %5600 = vmatprep.subr.bf16.mxu0 0
      %5601 = vmatpush1.bf16.msra.mxu0 0
      %5602 = vmatprep.subr.bf16.mxu0 0
      %5603 = vmatpush1.bf16.msra.mxu0 0
      %5604 = vmatprep.subr.bf16.mxu0 0
      %5605 = vmatpush1.bf16.msra.mxu0 0
      %5606 = vmatprep.subr.bf16.mxu0 0
      %5607 = vmatpush1.bf16.msra.mxu0 0
      %5608 = vmatprep.subr.bf16.mxu0 0
      %5609 = vmatpush1.bf16.msra.mxu0 0
      %5610 = vmatprep.subr.bf16.mxu0 0
      %5611 = vmatpush1.bf16.msra.mxu0 0
      %5612 = vmatprep.subr.bf16.mxu0 0
      %5613 = vmatpush1.bf16.msra.mxu0 0
      %5614 = vmatprep.subr.bf16.mxu0 0
      %5615 = vmatpush1.bf16.msra.mxu0 0
      %5616 = vmatprep.subr.bf16.mxu0 0
      %5617 = vmatpush1.bf16.msra.mxu0 0
      %5618 = vmatprep.subr.bf16.mxu0 0
      %5619 = vmatpush1.bf16.msra.mxu0 0
      %5620 = vmatprep.mubr.bf16.mxu0 0
      %5621 = vmatmul.mubr.bf16.gmra.mrb[0].mxu0 %v5533
      %v5622 = vpop.f32.mrb[0].mxu0
      %v5623 = vadd.f32 0.0, %v5622
      %v5624 = vpop.f32.mrb[0].mxu0
      %v5625 = vadd.f32 0.0, %v5624
      %v5626 = vpop.f32.mrb[0].mxu0
      %v5627 = vpop.f32.mrb[0].mxu0
      %5628 = vdwg.mxu0
      %v5629 = vadd.f32 %v5514, %v5582
      %v5630 = vadd.f32 %v5515, %v5584
      %v5631 = vadd.f32 %v5516, %v5623
      %v5632 = vadd.f32 %v5517, %v5625
      %s5633 = scalar_lea.vmem %s3, 14
      %v5634 = vld [vmem:[%s5633] sm:$0x3]
      %5635 = vrot.lane.b32.xlu0 %v4850, 83
      %v5636 = vpop.permute.xlu0 %5635
      %5637 = vrot.lane.b32.xlu0 %v4851, 83
      %v5638 = vpop.permute.xlu0 %5637
      %5639 = vrot.lane.b32.xlu0 %v4852, 83
      %v5640 = vpop.permute.xlu0 %5639
      %5641 = vrot.lane.b32.xlu0 %v4853, 83
      %v5642 = vpop.permute.xlu0 %5641
      %vm5643 = vcmask 678912
      %v5644 = vsel %vm5643, %v5636, %v5638
      %v5645 = vsel %vm5643, %v5638, %v5640
      %v5646 = vsel %vm5643, %v5640, %v5642
      %v5648 = vsel %vm4865, %v5634, 0
      %v5651 = vsel %vm355, %v5644, 0
      %v5654 = vsel %vm355, %v5645, 0
      %v5657 = vsel %vm355, %v5646, 0
      %v5660 = vsel %vm355, %v5642, 0
      %5662 = vmatprep.subr.bf16.mxu0 %v5654
      %5663 = vmatpush1.bf16.msra.mxu0 %v5651
      %5664 = vmatprep.subr.bf16.mxu0 0
      %5665 = vmatpush1.bf16.msra.mxu0 0
      %5666 = vmatprep.subr.bf16.mxu0 0
      %5667 = vmatpush1.bf16.msra.mxu0 0
      %5668 = vmatprep.subr.bf16.mxu0 0
      %5669 = vmatpush1.bf16.msra.mxu0 0
      %5670 = vmatprep.subr.bf16.mxu0 0
      %5671 = vmatpush1.bf16.msra.mxu0 0
      %5672 = vmatprep.subr.bf16.mxu0 0
      %5673 = vmatpush1.bf16.msra.mxu0 0
      %5674 = vmatprep.subr.bf16.mxu0 0
      %5675 = vmatpush1.bf16.msra.mxu0 0
      %5676 = vmatprep.subr.bf16.mxu0 0
      %5677 = vmatpush1.bf16.msra.mxu0 0
      %5678 = vmatprep.subr.bf16.mxu0 0
      %5679 = vmatpush1.bf16.msra.mxu0 0
      %5680 = vmatprep.subr.bf16.mxu0 0
      %5681 = vmatpush1.bf16.msra.mxu0 0
      %5682 = vmatprep.subr.bf16.mxu0 0
      %5683 = vmatpush1.bf16.msra.mxu0 0
      %5684 = vmatprep.subr.bf16.mxu0 0
      %5685 = vmatpush1.bf16.msra.mxu0 0
      %5686 = vmatprep.subr.bf16.mxu0 0
      %5687 = vmatpush1.bf16.msra.mxu0 0
      %5688 = vmatprep.subr.bf16.mxu0 0
      %5689 = vmatpush1.bf16.msra.mxu0 0
      %5690 = vmatprep.subr.bf16.mxu0 0
      %5691 = vmatpush1.bf16.msra.mxu0 0
      %5692 = vmatprep.subr.bf16.mxu0 0
      %5693 = vmatpush1.bf16.msra.mxu0 0
      %5694 = vmatprep.mubr.bf16.mxu0 0
      %5695 = vmatmul.mubr.bf16.gmra.mrb[0].mxu0 %v5648
      %v5696 = vpop.f32.mrb[0].mxu0
      %v5697 = vadd.f32 0.0, %v5696
      %v5698 = vpop.f32.mrb[0].mxu0
      %v5699 = vadd.f32 0.0, %v5698
      %v5700 = vpop.f32.mrb[0].mxu0
      %v5701 = vpop.f32.mrb[0].mxu0
      %5702 = vdwg.mxu0
      %5703 = vmatprep.subr.bf16.mxu0 %v5660
      %5704 = vmatpush1.bf16.msra.mxu0 %v5657
      %5705 = vmatprep.subr.bf16.mxu0 0
      %5706 = vmatpush1.bf16.msra.mxu0 0
      %5707 = vmatprep.subr.bf16.mxu0 0
      %5708 = vmatpush1.bf16.msra.mxu0 0
      %5709 = vmatprep.subr.bf16.mxu0 0
      %5710 = vmatpush1.bf16.msra.mxu0 0
      %5711 = vmatprep.subr.bf16.mxu0 0
      %5712 = vmatpush1.bf16.msra.mxu0 0
      %5713 = vmatprep.subr.bf16.mxu0 0
      %5714 = vmatpush1.bf16.msra.mxu0 0
      %5715 = vmatprep.subr.bf16.mxu0 0
      %5716 = vmatpush1.bf16.msra.mxu0 0
      %5717 = vmatprep.subr.bf16.mxu0 0
      %5718 = vmatpush1.bf16.msra.mxu0 0
      %5719 = vmatprep.subr.bf16.mxu0 0
      %5720 = vmatpush1.bf16.msra.mxu0 0
      %5721 = vmatprep.subr.bf16.mxu0 0
      %5722 = vmatpush1.bf16.msra.mxu0 0
      %5723 = vmatprep.subr.bf16.mxu0 0
      %5724 = vmatpush1.bf16.msra.mxu0 0
      %5725 = vmatprep.subr.bf16.mxu0 0
      %5726 = vmatpush1.bf16.msra.mxu0 0
      %5727 = vmatprep.subr.bf16.mxu0 0
      %5728 = vmatpush1.bf16.msra.mxu0 0
      %5729 = vmatprep.subr.bf16.mxu0 0
      %5730 = vmatpush1.bf16.msra.mxu0 0
      %5731 = vmatprep.subr.bf16.mxu0 0
      %5732 = vmatpush1.bf16.msra.mxu0 0
      %5733 = vmatprep.subr.bf16.mxu0 0
      %5734 = vmatpush1.bf16.msra.mxu0 0
      %5735 = vmatprep.mubr.bf16.mxu0 0
      %5736 = vmatmul.mubr.bf16.gmra.mrb[0].mxu0 %v5648
      %v5737 = vpop.f32.mrb[0].mxu0
      %v5738 = vadd.f32 0.0, %v5737
      %v5739 = vpop.f32.mrb[0].mxu0
      %v5740 = vadd.f32 0.0, %v5739
      %v5741 = vpop.f32.mrb[0].mxu0
      %v5742 = vpop.f32.mrb[0].mxu0
      %5743 = vdwg.mxu0
      %v5744 = vadd.f32 %v5629, %v5697
      %v5745 = vadd.f32 %v5630, %v5699
      %v5746 = vadd.f32 %v5631, %v5738
      %v5747 = vadd.f32 %v5632, %v5740
      %s5748 = scalar_lea.vmem %s3, 16
      %v5749 = vld [vmem:[%s5748] sm:$0x3]
      %5750 = vrot.lane.b32.xlu0 %v4850, 82
      %v5751 = vpop.permute.xlu0 %5750
      %5752 = vrot.lane.b32.xlu0 %v4851, 82
      %v5753 = vpop.permute.xlu0 %5752
      %5754 = vrot.lane.b32.xlu0 %v4852, 82
      %v5755 = vpop.permute.xlu0 %5754
      %5756 = vrot.lane.b32.xlu0 %v4853, 82
      %v5757 = vpop.permute.xlu0 %5756
      %vm5758 = vcmask 670720
      %v5759 = vsel %vm5758, %v5751, %v5753
      %v5760 = vsel %vm5758, %v5753, %v5755
      %v5761 = vsel %vm5758, %v5755, %v5757
      %v5763 = vsel %vm4865, %v5749, 0
      %v5766 = vsel %vm355, %v5759, 0
      %v5769 = vsel %vm355, %v5760, 0
      %v5772 = vsel %vm355, %v5761, 0
      %v5775 = vsel %vm355, %v5757, 0
      %5777 = vmatprep.subr.bf16.mxu0 %v5769
      %5778 = vmatpush1.bf16.msra.mxu0 %v5766
      %5779 = vmatprep.subr.bf16.mxu0 0
      %5780 = vmatpush1.bf16.msra.mxu0 0
      %5781 = vmatprep.subr.bf16.mxu0 0
      %5782 = vmatpush1.bf16.msra.mxu0 0
      %5783 = vmatprep.subr.bf16.mxu0 0
      %5784 = vmatpush1.bf16.msra.mxu0 0
      %5785 = vmatprep.subr.bf16.mxu0 0
      %5786 = vmatpush1.bf16.msra.mxu0 0
      %5787 = vmatprep.subr.bf16.mxu0 0
      %5788 = vmatpush1.bf16.msra.mxu0 0
      %5789 = vmatprep.subr.bf16.mxu0 0
      %5790 = vmatpush1.bf16.msra.mxu0 0
      %5791 = vmatprep.subr.bf16.mxu0 0
      %5792 = vmatpush1.bf16.msra.mxu0 0
      %5793 = vmatprep.subr.bf16.mxu0 0
      %5794 = vmatpush1.bf16.msra.mxu0 0
      %5795 = vmatprep.subr.bf16.mxu0 0
      %5796 = vmatpush1.bf16.msra.mxu0 0
      %5797 = vmatprep.subr.bf16.mxu0 0
      %5798 = vmatpush1.bf16.msra.mxu0 0
      %5799 = vmatprep.subr.bf16.mxu0 0
      %5800 = vmatpush1.bf16.msra.mxu0 0
      %5801 = vmatprep.subr.bf16.mxu0 0
      %5802 = vmatpush1.bf16.msra.mxu0 0
      %5803 = vmatprep.subr.bf16.mxu0 0
      %5804 = vmatpush1.bf16.msra.mxu0 0
      %5805 = vmatprep.subr.bf16.mxu0 0
      %5806 = vmatpush1.bf16.msra.mxu0 0
      %5807 = vmatprep.subr.bf16.mxu0 0
      %5808 = vmatpush1.bf16.msra.mxu0 0
      %5809 = vmatprep.mubr.bf16.mxu0 0
      %5810 = vmatmul.mubr.bf16.gmra.mrb[0].mxu0 %v5763
      %v5811 = vpop.f32.mrb[0].mxu0
      %v5812 = vadd.f32 0.0, %v5811
      %v5813 = vpop.f32.mrb[0].mxu0
      %v5814 = vadd.f32 0.0, %v5813
      %v5815 = vpop.f32.mrb[0].mxu0
      %v5816 = vpop.f32.mrb[0].mxu0
      %5817 = vdwg.mxu0
      %5818 = vmatprep.subr.bf16.mxu0 %v5775
      %5819 = vmatpush1.bf16.msra.mxu0 %v5772
      %5820 = vmatprep.subr.bf16.mxu0 0
      %5821 = vmatpush1.bf16.msra.mxu0 0
      %5822 = vmatprep.subr.bf16.mxu0 0
      %5823 = vmatpush1.bf16.msra.mxu0 0
      %5824 = vmatprep.subr.bf16.mxu0 0
      %5825 = vmatpush1.bf16.msra.mxu0 0
      %5826 = vmatprep.subr.bf16.mxu0 0
      %5827 = vmatpush1.bf16.msra.mxu0 0
      %5828 = vmatprep.subr.bf16.mxu0 0
      %5829 = vmatpush1.bf16.msra.mxu0 0
      %5830 = vmatprep.subr.bf16.mxu0 0
      %5831 = vmatpush1.bf16.msra.mxu0 0
      %5832 = vmatprep.subr.bf16.mxu0 0
      %5833 = vmatpush1.bf16.msra.mxu0 0
      %5834 = vmatprep.subr.bf16.mxu0 0
      %5835 = vmatpush1.bf16.msra.mxu0 0
      %5836 = vmatprep.subr.bf16.mxu0 0
      %5837 = vmatpush1.bf16.msra.mxu0 0
      %5838 = vmatprep.subr.bf16.mxu0 0
      %5839 = vmatpush1.bf16.msra.mxu0 0
      %5840 = vmatprep.subr.bf16.mxu0 0
      %5841 = vmatpush1.bf16.msra.mxu0 0
      %5842 = vmatprep.subr.bf16.mxu0 0
      %5843 = vmatpush1.bf16.msra.mxu0 0
      %5844 = vmatprep.subr.bf16.mxu0 0
      %5845 = vmatpush1.bf16.msra.mxu0 0
      %5846 = vmatprep.subr.bf16.mxu0 0
      %5847 = vmatpush1.bf16.msra.mxu0 0
      %5848 = vmatprep.subr.bf16.mxu0 0
      %5849 = vmatpush1.bf16.msra.mxu0 0
      %5850 = vmatprep.mubr.bf16.mxu0 0
      %5851 = vmatmul.mubr.bf16.gmra.mrb[0].mxu0 %v5763
      %v5852 = vpop.f32.mrb[0].mxu0
      %v5853 = vadd.f32 0.0, %v5852
      %v5854 = vpop.f32.mrb[0].mxu0
      %v5855 = vadd.f32 0.0, %v5854
      %v5856 = vpop.f32.mrb[0].mxu0
      %v5857 = vpop.f32.mrb[0].mxu0
      %5858 = vdwg.mxu0
      %v5859 = vadd.f32 %v5744, %v5812
      %v5860 = vadd.f32 %v5745, %v5814
      %v5861 = vadd.f32 %v5746, %v5853
      %v5862 = vadd.f32 %v5747, %v5855
      %v5863 = vld [vmem:[%s6] sm:$0x7]
      %5865 = vset.pattern.permute.xlu0 0
      %5866 = vperm.xlu0 %5865, %v5863
      %v5867 = vpop.permute.xlu0 %5866
      %v5869 = vadd.f32 %v5859, %v5867
      %v5870 = vadd.f32 %v5860, %v5867
      %v5871 = vadd.f32 %v5861, %v5867
      %v5872 = vadd.f32 %v5862, %v5867
      %v5873 = vmax.f32 %v5869, 0.0
      %v5874 = vmax.f32 %v5870, 0.0
      %v5875 = vmax.f32 %v5871, 0.0
      %v5876 = vmax.f32 %v5872, 0.0
      %v5877 = vld [vmem:[%s7] sm:$0x7]
      %5879 = vset.pattern.permute.xlu0 0
      %5880 = vperm.xlu0 %5879, %v5877
      %v5881 = vpop.permute.xlu0 %5880
      %v5883 = vmul.f32 %v5873, %v5881
      %v5884 = vmul.f32 %v5874, %v5881
      %v5885 = vmul.f32 %v5875, %v5881
      %v5886 = vmul.f32 %v5876, %v5881
      %v5887 = vld [vmem:[%s8] sm:$0x7]
      %5889 = vset.pattern.permute.xlu0 0
      %5890 = vperm.xlu0 %5889, %v5887
      %v5891 = vpop.permute.xlu0 %5890
      %v5893 = vadd.f32 %v5883, %v5891
      %v5894 = vadd.f32 %v5884, %v5891
      %v5895 = vadd.f32 %v5885, %v5891
      %v5896 = vadd.f32 %v5886, %v5891
      %vm5897 = vcmask 157696
      %5898 = vst.msk [vmem:[%s332] sm:$0x7] %vm5897, %v5893
      %5900 = vrot.lane.b32.xlu0 %v5893, 126
      %v5901 = vpop.permute.xlu0 %5900
      %vm5903 = vcmask 321696
      %5904 = vst.msk [vmem:[%s332] sm:$0x7] %vm5903, %v5901
      %5905 = vrot.lane.b32.xlu0 %v5893, 124
      %v5906 = vpop.permute.xlu0 %5905
      %vm5908 = vcmask 485696
      %5909 = vst.msk [vmem:[%s332] sm:$0x7] %vm5908, %v5906
      %5910 = vrot.lane.b32.xlu0 %v5893, 122
      %v5911 = vpop.permute.xlu0 %5910
      %vm5913 = vcmask 649696
      %5914 = vst.msk [vmem:[%s332] sm:$0x7] %vm5913, %v5911
      %5915 = vrot.lane.b32.xlu0 %v5893, 120
      %v5916 = vpop.permute.xlu0 %5915
      %vm5918 = vcmask 813696
      %5919 = vst.msk [vmem:[%s332] sm:$0x7] %vm5918, %v5916
      %v5921 = vcombine.low %v5893, %v5894
      %5922 = vrot.lane.b32.xlu0 %v5921, 118
      %v5923 = vpop.permute.xlu0 %5922
      %v5924 = vrot.slane %v5923, 4
      %vm5925 = vcmask 965632
      %v5926 = vsel %vm5925, %v5923, %v5924
      %vm5928 = vcmask 977696
      %5929 = vst.msk [vmem:[%s332] sm:$0x7] %vm5928, %v5926
      %5930 = vrot.lane.b32.xlu0 %v5894, 116
      %v5931 = vpop.permute.xlu0 %5930
      %v5932 = vrot.slane %v5931, 4
      %vm5933 = vcmask 949248
      %v5934 = vsel %vm5933, %v5932, %v5931
      %vm5936 = vcmask 1043392
      %vm5937 = vcmask 96260
      %vm5938 = vmor %vm5937, %vm5936
      %5939 = vst.msk [vmem:[%s332] sm:$0x77] %vm5938, %v5934
      %5940 = vrot.lane.b32.xlu0 %v5894, 114
      %v5941 = vpop.permute.xlu0 %5940
      %vm5943 = vcmask 256096
      %5944 = vst.msk [vmem:[%s332 + $0x4] sm:$0x7] %vm5943, %v5941
      %5945 = vrot.lane.b32.xlu0 %v5894, 112
      %v5946 = vpop.permute.xlu0 %5945
      %vm5948 = vcmask 420096
      %5949 = vst.msk [vmem:[%s332 + $0x4] sm:$0x7] %vm5948, %v5946
      %5950 = vrot.lane.b32.xlu0 %v5894, 110
      %v5951 = vpop.permute.xlu0 %5950
      %vm5953 = vcmask 584096
      %5954 = vst.msk [vmem:[%s332 + $0x4] sm:$0x7] %vm5953, %v5951
      %5955 = vrot.lane.b32.xlu0 %v5894, 108
      %v5956 = vpop.permute.xlu0 %5955
      %vm5958 = vcmask 748096
      %5959 = vst.msk [vmem:[%s332 + $0x4] sm:$0x7] %vm5958, %v5956
      %v5961 = vcombine.low %v5894, %v5895
      %5962 = vrot.lane.b32.xlu0 %v5961, 106
      %v5963 = vpop.permute.xlu0 %5962
      %v5964 = vrot.slane %v5963, 4
      %vm5965 = vcmask 867328
      %v5966 = vsel %vm5965, %v5963, %v5964
      %vm5968 = vcmask 912096
      %5969 = vst.msk [vmem:[%s332 + $0x4] sm:$0x7] %vm5968, %v5966
      %5970 = vrot.lane.b32.xlu0 %v5895, 104
      %v5971 = vpop.permute.xlu0 %5970
      %v5972 = vrot.slane %v5971, 4
      %vm5973 = vcmask 850944
      %v5974 = vsel %vm5973, %v5972, %v5971
      %vm5976 = vcmask 1043328
      %vm5977 = vcmask 30724
      %vm5978 = vmor %vm5977, %vm5976
      %5979 = vst.msk [vmem:[%s332 + $0x4] sm:$0x77] %vm5978, %v5974
      %5980 = vrot.lane.b32.xlu0 %v5895, 102
      %v5981 = vpop.permute.xlu0 %5980
      %vm5983 = vcmask 190496
      %5984 = vst.msk [vmem:[%s332 + $0x8] sm:$0x7] %vm5983, %v5981
      %5985 = vrot.lane.b32.xlu0 %v5895, 100
      %v5986 = vpop.permute.xlu0 %5985
      %vm5988 = vcmask 354496
      %5989 = vst.msk [vmem:[%s332 + $0x8] sm:$0x7] %vm5988, %v5986
      %5990 = vrot.lane.b32.xlu0 %v5895, 98
      %v5991 = vpop.permute.xlu0 %5990
      %vm5993 = vcmask 518496
      %5994 = vst.msk [vmem:[%s332 + $0x8] sm:$0x7] %vm5993, %v5991
      %5995 = vrot.lane.b32.xlu0 %v5895, 96
      %v5996 = vpop.permute.xlu0 %5995
      %vm5998 = vcmask 682496
      %5999 = vst.msk [vmem:[%s332 + $0x8] sm:$0x7] %vm5998, %v5996
      %v6001 = vcombine.low %v5895, %v5896
      %6002 = vrot.lane.b32.xlu0 %v6001, 94
      %v6003 = vpop.permute.xlu0 %6002
      %v6004 = vrot.slane %v6003, 4
      %vm6005 = vcmask 769024
      %v6006 = vsel %vm6005, %v6003, %v6004
      %vm6008 = vcmask 846496
      %6009 = vst.msk [vmem:[%s332 + $0x8] sm:$0x7] %vm6008, %v6006
      %6010 = vrot.lane.b32.xlu0 %v5896, 92
      %v6011 = vpop.permute.xlu0 %6010
      %vm6013 = vcmask 1010496
      %6014 = vst.msk [vmem:[%s332 + $0x8] sm:$0x7] %vm6013, %v6011
      %6015 = vrot.lane.b32.xlu0 %v5896, 90
      %v6016 = vpop.permute.xlu0 %6015
      %v6017 = vrot.slane %v6016, 4
      %vm6018 = vcmask 736256
      %v6019 = vsel %vm6018, %v6017, %v6016
      %vm6021 = vcmask 1043424
      %vm6022 = vcmask 129028
      %vm6023 = vmor %vm6022, %vm6021
      %6024 = vst.msk [vmem:[%s332 + $0x8] sm:$0x77] %vm6023, %v6019
      %p6025 = scmp.lt.s32.totalorder %s20, 1
      %s6026 = scalar_select %p6025, %s20, 1
      %s6027 = smul.addr %s6026, 4
      %s6028 = smul.addr %s6027, 4
      %s6029 = scalar_lea.vmem %s9, %s6028
      // Predicated region
      $region57: #{decoder_forward.1} parent=55 // pred_check
        %p6030 = pneg %p232
      $region58: #{decoder_forward.1} parent=55 // pred_check_branch
        %6032 = sbr.rel (%p6030) target = $region60
      $region59: #{decoder_forward.1} parent=55 // pred_region
        _
      $region60: #{decoder_forward.1} parent=55 // pred_fallthru
        _
    $region56: #{decoder_forward.1} parent=5 // pred_fallthru
      _
    %p6033 = scmp.le.s32.totalorder 2, %s15
    // Predicated region
    $region61: #{decoder_forward.1} parent=5 // pred_check
      %p6034 = pneg %p6033
    $region62: #{decoder_forward.1} parent=5 // pred_check_branch
      %6036 = sbr.rel (%p6034) target = $region64
    $region63: #{decoder_forward.1} parent=5 // pred_region
      %s6037 = ssub.s32 %s15, 2
      // Predicated region
      $region65: #{decoder_forward.1} parent=63 // pred_check
        %p6038 = pneg %p238
      $region66: #{decoder_forward.1} parent=63 // pred_check_branch
        %6040 = sbr.rel (%p6038) target = $region68
      $region67: #{decoder_forward.1} parent=63 // pred_region
        %p6041 = scmp.lt.s32.totalorder %s21, 1
        %s6042 = scalar_select %p6041, %s21, 1
        %s6043 = smul.addr %s6042, 4
        %s6044 = smul.addr %s6043, 4
        %s6045 = scalar_lea.vmem %s9, %s6044
      $region68: #{decoder_forward.1} parent=63 // pred_fallthru
        _
    $region64: #{decoder_forward.1} parent=5 // pred_fallthru
      _
  $region6: #{decoder_forward.1} parent=0 // loop_footer
    %s19 = sadd.s32 1, %s15
  $region7: #{decoder_forward.1} parent=0 // loop_footer_branch
    %14 = sbr.rel target = $region3
  $region8: #{decoder_forward.1} parent=0 // loop_exit
    _

</llo_original>
